<compile_context>
chip_gen: v5e
topology: v5e:2x2
jax: 0.10.0
libtpu: 0.0.40
codegen_flags: <defaults>
</compile_context>

<pallas_src>
import jax
import jax.numpy as jnp
from jax.experimental import pallas as pl
from jax.experimental.pallas import tpu as pltpu

# ---- scaled-down "roberta-base" config (all matmul dims multiples of 128) ----
NUM_LAYERS = 2
D_MODEL = 256
NUM_HEADS = 2
HEAD_DIM = D_MODEL // NUM_HEADS          # 128 -> lane-aligned head slices
D_FFN = 512
NUM_CLASSES = 3                          # aligned / contradict / neutral
VOCAB = 128
SEQ_LEN = 64                             # padded pair length
MAX_POS = 72
LN_EPS = 1e-5
CLS_ID, PAD_ID, SEP_ID = 0, 1, 2

B_TILE = 2                               # pairs per kernel invocation
T_TILE = B_TILE * SEQ_LEN                # 128 token rows per tile (MXU-sized M)

# packed small-per-layer-params rows
ROW_BQKV, ROW_BO, ROW_LN1G, ROW_LN1B, ROW_B1, ROW_B2, ROW_LN2G, ROW_LN2B = range(8)
SMALL_PW = 3 * D_MODEL                   # >= max(3D, F, D)


def _layer_norm(x, g, b):
    mu = jnp.mean(x, axis=-1, keepdims=True)
    var = jnp.mean((x - mu) ** 2, axis=-1, keepdims=True)
    return (x - mu) * jax.lax.rsqrt(var + LN_EPS) * g + b


def _align_encoder_kernel(x_hbm_ref, mask_ref,
                          wqkv_ref, wo_ref, w1_ref, w2_ref, small_ref,
                          wcls_ref, bcls_ref,
                          probs_ref,
                          h_ref, dma_sem):
    """grid = (pair_tiles, layers); hidden state carried in h_ref scratch."""
    p = pl.program_id(0)                  # pair-tile axis ("parallel")
    l = pl.program_id(1)                  # layer axis ("arbitrary", sequential)
    T, D = h_ref.shape
    B, S = mask_ref.shape[1], mask_ref.shape[2]
    scale = 1.0 / (HEAD_DIM ** 0.5)
    bf16 = jnp.bfloat16

    # ---- l == 0: one-shot DMA of this pair tile's embeddings into the
    # persistent hidden-state scratch (embeddings are not resident in VMEM). ----
    @pl.when(l == 0)
    def _():
        cp = pltpu.make_async_copy(x_hbm_ref.at[p], h_ref, dma_sem)
        cp.start()
        cp.wait()

    h = h_ref[...]                                    # [T, D] f32

    small = small_ref[0]                              # [8, SMALL_PW], one DMA/layer
    bqkv = small[ROW_BQKV:ROW_BQKV + 1, :3 * D]
    bo   = small[ROW_BO:ROW_BO + 1, :D]
    ln1g = small[ROW_LN1G:ROW_LN1G + 1, :D]
    ln1b = small[ROW_LN1B:ROW_LN1B + 1, :D]
    b1   = small[ROW_B1:ROW_B1 + 1, :D_FFN]
    b2   = small[ROW_B2:ROW_B2 + 1, :D]
    ln2g = small[ROW_LN2G:ROW_LN2G + 1, :D]
    ln2b = small[ROW_LN2B:ROW_LN2B + 1, :D]

    # ---- fused QKV projection: one bf16 MXU pass, f32 accumulation ----
    qkv = jnp.dot(h.astype(bf16), wqkv_ref[0],
                  preferred_element_type=jnp.float32) + bqkv       # [T, 3D]
    # 128-aligned lane slices (D is a multiple of 128) -> no masked loads.
    q = qkv[:, 0 * D:1 * D].reshape(B, S, D).astype(bf16)
    k = qkv[:, 1 * D:2 * D].reshape(B, S, D).astype(bf16)
    v = qkv[:, 2 * D:3 * D].reshape(B, S, D).astype(bf16)

    key_mask = mask_ref[0]                            # [B, S] additive (0 / -1e9)
    key_mask_b = key_mask[:, None, :]                 # hoisted broadcast [B, 1, S]

    # ---- multi-head self-attention; HEAD_DIM = 128 -> lane-aligned slices and
    # a full-width MXU contraction per head; heads stay in registers. ----
    heads = []
    for hh in range(NUM_HEADS):                       # static, 2 iterations
        lo = hh * HEAD_DIM
        qh = q[:, :, lo:lo + HEAD_DIM]
        kh = k[:, :, lo:lo + HEAD_DIM]
        vh = v[:, :, lo:lo + HEAD_DIM]
        s = jnp.einsum('bqd,bkd->bqk', qh, kh,
                       preferred_element_type=jnp.float32) * scale
        s = s + key_mask_b                            # key padding mask
        s = s - jnp.max(s, axis=-1, keepdims=True)
        e = jnp.exp(s)
        pr = e * pl.reciprocal(jnp.sum(e, axis=-1, keepdims=True), approx=True)
        heads.append(jnp.einsum('bqk,bkd->bqd', pr.astype(bf16), vh,
                                preferred_element_type=jnp.float32))
    attn = jnp.concatenate(heads, axis=-1).reshape(T, D)   # 128-aligned concat
    attn = jnp.dot(attn.astype(bf16), wo_ref[0],
                   preferred_element_type=jnp.float32) + bo
    h = _layer_norm(h + attn, ln1g, ln1b)

    # ---- GELU feed-forward ----
    f = jnp.dot(h.astype(bf16), w1_ref[0],
                preferred_element_type=jnp.float32) + b1
    # TODO(synk): HF roberta-base uses erf-based gelu; tanh approximation here.
    f = jax.nn.gelu(f, approximate=True)
    f = jnp.dot(f.astype(bf16), w2_ref[0],
                preferred_element_type=jnp.float32) + b2
    h = _layer_norm(h + f, ln2g, ln2b)

    h_ref[...] = h                                    # carry to next layer

    # ---- last layer: 3-way NLI head on [CLS]; EXACT softmax for the score ----
    @pl.when(l == pl.num_programs(1) - 1)
    def _():
        cls = h.reshape(B, S, D)[:, 0, :]             # [B, D]
        logits = jnp.dot(cls.astype(bf16), wcls_ref[...],
                         preferred_element_type=jnp.float32) + bcls_ref[...]
        logits = logits - jnp.max(logits, axis=-1, keepdims=True)
        e2 = jnp.exp(logits)
        probs_ref[0] = e2 / jnp.sum(e2, axis=-1, keepdims=True)


def init_params(key):
    ks = jax.random.split(key, 8)
    std = 0.02
    L, D, F, C = NUM_LAYERS, D_MODEL, D_FFN, NUM_CLASSES
    bf = jnp.bfloat16

    def nrm(k, shape, dtype=jnp.float32):
        return (jax.random.normal(k, shape, jnp.float32) * std).astype(dtype)

    # pack the eight small per-layer tensors into one [L, 8, SMALL_PW] array
    small = jnp.zeros((L, 8, SMALL_PW), jnp.float32)
    small = small.at[:, ROW_LN1G, :D].set(1.0)
    small = small.at[:, ROW_LN2G, :D].set(1.0)

    return dict(
        tok_emb=nrm(ks[0], (VOCAB, D)),
        pos_emb=nrm(ks[1], (MAX_POS, D)),
        emb_ln_g=jnp.ones((D,), jnp.float32),
        emb_ln_b=jnp.zeros((D,), jnp.float32),
        # MXU weights stored in bf16; packed biases / LN params stay f32.
        wqkv=nrm(ks[2], (L, D, 3 * D), bf),
        wo=nrm(ks[3], (L, D, D), bf),
        w1=nrm(ks[4], (L, D, F), bf),
        w2=nrm(ks[5], (L, F, D), bf),
        small=small,
        wcls=nrm(ks[6], (D, C), bf),
        bcls=jnp.zeros((1, C), jnp.float32),
    )


@jax.jit
def align_scorer_forward(ref_ids, hyp_ids, params):
    """AlignScorer.forward(refs, hyps) -> per-pair alignment score in [0, 1]."""
    B = ref_ids.shape[0]
    assert B % B_TILE == 0
    # roberta pair packing: <s> context </s></s> claim </s>
    ids = jnp.concatenate(
        [jnp.full((B, 1), CLS_ID, jnp.int32), ref_ids,
         jnp.full((B, 1), SEP_ID, jnp.int32), jnp.full((B, 1), SEP_ID, jnp.int32),
         hyp_ids, jnp.full((B, 1), SEP_ID, jnp.int32)], axis=1)
    real_len = ids.shape[1]
    assert real_len <= SEQ_LEN
    ids = jnp.pad(ids, ((0, 0), (0, SEQ_LEN - real_len)), constant_values=PAD_ID)

    # additive key-padding mask (0 valid / -1e9 padded)
    key_mask = jnp.where(jnp.arange(SEQ_LEN) < real_len, 0.0, -1e9).astype(jnp.float32)
    key_mask = jnp.broadcast_to(key_mask[None, :], (B, SEQ_LEN))

    # Embedding lookup + RoBERTa position offset + embedding LayerNorm (glue).
    # TODO(synk): real RoBERTa assigns padding_idx position ids to pad tokens.
    positions = jnp.arange(SEQ_LEN, dtype=jnp.int32) + 2
    x = params['tok_emb'][ids] + params['pos_emb'][positions][None, :, :]
    mu = jnp.mean(x, -1, keepdims=True)
    var = jnp.mean((x - mu) ** 2, -1, keepdims=True)
    x = (x - mu) * jax.lax.rsqrt(var + LN_EPS) * params['emb_ln_g'] + params['emb_ln_b']

    L, D, F, C = NUM_LAYERS, D_MODEL, D_FFN, NUM_CLASSES
    P = B // B_TILE
    x_slabs = x.reshape(P, T_TILE, D).astype(jnp.float32)   # stays in HBM (pl.ANY)
    mask3 = key_mask.reshape(P, B_TILE, SEQ_LEN)

    in_specs = [
        pl.BlockSpec(memory_space=pl.ANY),                           # embeddings (HBM)
        pl.BlockSpec((1, B_TILE, SEQ_LEN), lambda p, l: (p, 0, 0)),  # key mask
        pl.BlockSpec((1, D, 3 * D), lambda p, l: (l, 0, 0)),         # wqkv
        pl.BlockSpec((1, D, D), lambda p, l: (l, 0, 0)),             # wo
        pl.BlockSpec((1, D, F), lambda p, l: (l, 0, 0)),             # w1
        pl.BlockSpec((1, F, D), lambda p, l: (l, 0, 0)),             # w2
        pl.BlockSpec((1, 8, SMALL_PW), lambda p, l: (l, 0, 0)),      # packed small params
        pl.BlockSpec((D, C), lambda p, l: (0, 0)),                   # wcls
        pl.BlockSpec((1, C), lambda p, l: (0, 0)),                   # bcls
    ]

    probs = pl.pallas_call(
        _align_encoder_kernel,
        out_shape=jax.ShapeDtypeStruct((P, B_TILE, C), jnp.float32),
        grid_spec=pltpu.PrefetchScalarGridSpec(
            num_scalar_prefetch=0,
            grid=(P, L),                               # (pair tiles, layers)
            in_specs=in_specs,
            out_specs=pl.BlockSpec((1, B_TILE, C), lambda p, l: (p, 0, 0)),
            scratch_shapes=[
                pltpu.VMEM((T_TILE, D), jnp.float32),  # persistent hidden state
                pltpu.SemaphoreType.DMA(()),           # one-shot embedding DMA
            ],
        ),
        compiler_params=pltpu.CompilerParams(
            # pair tiles shard across TensorCores (v7x); layers are sequential.
            dimension_semantics=("parallel", "arbitrary"),
            # TODO(synk): re-derive per generation at real roberta dims
            # (~13.6 MiB/layer bf16 weights double-buffered + token-tiled acts);
            # toy working set is ~3 MiB so 32 MiB is ample on v5e/v6e/v7x.
            vmem_limit_bytes=32 * 1024 * 1024,
        ),
    )(x_slabs, mask3, params['wqkv'], params['wo'], params['w1'], params['w2'],
      params['small'], params['wcls'], params['bcls'])

    probs = probs.reshape(B, C)
    # TODO(synk): real 'nli_sp' mode splits contexts into ~350-token chunks and
    # claims into sentences, then takes max over chunks / mean over sentences;
    # here each (ref, hyp) pair is scored as a single chunk/sentence.
    # TODO(synk): 'aligned' class assumed to be index 0 of the 3-way head;
    # verify against the actual AlignScore checkpoint label ordering.
    return probs[:, 0]


if __name__ == "__main__":
    key = jax.random.PRNGKey(0)
    pk, rk, hk = jax.random.split(key, 3)
    params = init_params(pk)

    B, S_REF, S_HYP = 4, 9, 9
    # TODO(synk): AlignScore tokenizes raw ref/hyp strings with the roberta-base
    # tokenizer; string tokenization has no Pallas equivalent, so inputs here
    # are pre-tokenized int32 token ids.
    refs = jax.random.randint(rk, (B, S_REF), 3, VOCAB, dtype=jnp.int32)
    hyps = jax.random.randint(hk, (B, S_HYP), 3, VOCAB, dtype=jnp.int32)

    scores = align_scorer_forward(refs, hyps, params)
    jax.block_until_ready(scores)
    assert scores.shape == (B,)
    assert bool(jnp.all((scores >= 0.0) & (scores <= 1.0)))
    print("KERNEL_OK")
</pallas_src>

<mosaic_0001>
module attributes {stable_mosaic.version = 11 : i64} {
  func.func @_align_encoder_kernel(%arg0: i32, %arg1: i32, %arg2: memref<2x128x256xf32, #tpu.memory_space<any>>, %arg3: memref<1x2x64xf32, #tpu.memory_space<vmem>>, %arg4: memref<1x256x768xbf16, #tpu.memory_space<vmem>>, %arg5: memref<1x256x256xbf16, #tpu.memory_space<vmem>>, %arg6: memref<1x256x512xbf16, #tpu.memory_space<vmem>>, %arg7: memref<1x512x256xbf16, #tpu.memory_space<vmem>>, %arg8: memref<1x8x768xf32, #tpu.memory_space<vmem>>, %arg9: memref<256x3xbf16, #tpu.memory_space<vmem>>, %arg10: memref<1x3xf32, #tpu.memory_space<vmem>>, %arg11: memref<1x2x3xf32, #tpu.memory_space<vmem>>, %arg12: memref<128x256xf32, #tpu.memory_space<vmem>>, %arg13: memref<!tpu.dma_semaphore, #tpu.memory_space<semaphore_mem>>) attributes {dimension_semantics = [#tpu.dimension_semantics<parallel>, #tpu.dimension_semantics<arbitrary>], iteration_bounds = array<i64: 2, 2>, scalar_prefetch = 0 : i64, scratch_operands = 2 : i64, tpu.core_type = #tpu.core_type<tc>, window_params = [{}, {transform_indices = @transform_1, window_bounds = array<i64: 1, 2, 64>}, {transform_indices = @transform_2, window_bounds = array<i64: 1, 256, 768>}, {transform_indices = @transform_3, window_bounds = array<i64: 1, 256, 256>}, {transform_indices = @transform_4, window_bounds = array<i64: 1, 256, 512>}, {transform_indices = @transform_5, window_bounds = array<i64: 1, 512, 256>}, {transform_indices = @transform_6, window_bounds = array<i64: 1, 8, 768>}, {pipeline_mode = #tpu.pipeline_mode<synchronous>, transform_indices = @transform_7, window_bounds = array<i64: 256, 3>}, {pipeline_mode = #tpu.pipeline_mode<synchronous>, transform_indices = @transform_8, window_bounds = array<i64: 1, 3>}, {transform_indices = @transform_9, window_bounds = array<i64: 1, 2, 3>}]} {
    %c0_i32 = arith.constant 0 : i32
    %0 = arith.cmpi eq, %arg1, %c0_i32 : i32
    %1 = arith.extui %0 : i1 to i32
    %c0_i32_0 = arith.constant 0 : i32
    %2 = arith.cmpi ne, %1, %c0_i32_0 : i32
    scf.if %2 {
      %c0_i32_50 = arith.constant 0 : i32
      %c0_i32_51 = arith.constant 0 : i32
      %155 = tpu.memref_slice %arg2[%arg0, %c0_i32_50, %c0_i32_51] : memref<2x128x256xf32, #tpu.memory_space<any>> -> memref<1x128x256xf32, #tpu.memory_space<any>>
      %156 = tpu.memref_squeeze %155 : memref<1x128x256xf32, #tpu.memory_space<any>> -> memref<128x256xf32, #tpu.memory_space<any>>
      tpu.enqueue_dma source(%156 : memref<128x256xf32, #tpu.memory_space<any>>) target(%arg12 : memref<128x256xf32, #tpu.memory_space<vmem>>) target_semaphore(%arg13 : memref<!tpu.dma_semaphore, #tpu.memory_space<semaphore_mem>>)
      %c0_i32_52 = arith.constant 0 : i32
      %c0_i32_53 = arith.constant 0 : i32
      %157 = tpu.memref_slice %arg2[%arg0, %c0_i32_52, %c0_i32_53] : memref<2x128x256xf32, #tpu.memory_space<any>> -> memref<1x128x256xf32, #tpu.memory_space<any>>
      %158 = tpu.memref_squeeze %157 : memref<1x128x256xf32, #tpu.memory_space<any>> -> memref<128x256xf32, #tpu.memory_space<any>>
      tpu.wait_dma2 semaphore(%arg13 : memref<!tpu.dma_semaphore, #tpu.memory_space<semaphore_mem>>) src(%158 : memref<128x256xf32, #tpu.memory_space<any>>) dst(%arg12 : memref<128x256xf32, #tpu.memory_space<vmem>>)
    } else {
    }
    %c0 = arith.constant 0 : index
    %c0_1 = arith.constant 0 : index
    %3 = vector.load %arg12[%c0, %c0_1] : memref<128x256xf32, #tpu.memory_space<vmem>>, vector<128x256xf32>
    %c0_2 = arith.constant 0 : index
    %c0_3 = arith.constant 0 : index
    %c0_4 = arith.constant 0 : index
    %4 = vector.load %arg8[%c0_2, %c0_3, %c0_4] : memref<1x8x768xf32, #tpu.memory_space<vmem>>, vector<1x8x768xf32>
    %5 = vector.shape_cast %4 : vector<1x8x768xf32> to vector<8x768xf32>
    %6 = vector.extract_strided_slice %5 {offsets = [0, 0], sizes = [1, 768], strides = [1, 1]} : vector<8x768xf32> to vector<1x768xf32>
    %7 = vector.extract_strided_slice %5 {offsets = [1, 0], sizes = [1, 256], strides = [1, 1]} : vector<8x768xf32> to vector<1x256xf32>
    %8 = vector.extract_strided_slice %5 {offsets = [2, 0], sizes = [1, 256], strides = [1, 1]} : vector<8x768xf32> to vector<1x256xf32>
    %9 = vector.extract_strided_slice %5 {offsets = [3, 0], sizes = [1, 256], strides = [1, 1]} : vector<8x768xf32> to vector<1x256xf32>
    %10 = vector.extract_strided_slice %5 {offsets = [4, 0], sizes = [1, 512], strides = [1, 1]} : vector<8x768xf32> to vector<1x512xf32>
    %11 = vector.extract_strided_slice %5 {offsets = [5, 0], sizes = [1, 256], strides = [1, 1]} : vector<8x768xf32> to vector<1x256xf32>
    %12 = vector.extract_strided_slice %5 {offsets = [6, 0], sizes = [1, 256], strides = [1, 1]} : vector<8x768xf32> to vector<1x256xf32>
    %13 = vector.extract_strided_slice %5 {offsets = [7, 0], sizes = [1, 256], strides = [1, 1]} : vector<8x768xf32> to vector<1x256xf32>
    %14 = arith.truncf %3 : vector<128x256xf32> to vector<128x256xbf16>
    %c0_5 = arith.constant 0 : index
    %c0_6 = arith.constant 0 : index
    %c0_7 = arith.constant 0 : index
    %15 = vector.load %arg4[%c0_5, %c0_6, %c0_7] : memref<1x256x768xbf16, #tpu.memory_space<vmem>>, vector<1x256x768xbf16>
    %16 = vector.shape_cast %15 : vector<1x256x768xbf16> to vector<256x768xbf16>
    %cst = arith.constant dense<0.000000e+00> : vector<128x768xf32>
    %17 = tpu.matmul %14, %16, %cst {dimension_numbers = #tpu.dot_dimension_numbers<[1], [0], [0], [1], [0, 0, 1, 1], [], []>} : vector<128x256xbf16>, vector<256x768xbf16>, vector<128x768xf32> -> vector<128x768xf32>
    %18 = vector.broadcast %6 : vector<1x768xf32> to vector<128x768xf32>
    %19 = arith.addf %17, %18 : vector<128x768xf32>
    %20 = vector.extract_strided_slice %19 {offsets = [0, 0], sizes = [128, 256], strides = [1, 1]} : vector<128x768xf32> to vector<128x256xf32>
    %21 = vector.shape_cast %20 : vector<128x256xf32> to vector<2x64x256xf32>
    %22 = arith.truncf %21 : vector<2x64x256xf32> to vector<2x64x256xbf16>
    %23 = vector.extract_strided_slice %19 {offsets = [0, 256], sizes = [128, 256], strides = [1, 1]} : vector<128x768xf32> to vector<128x256xf32>
    %24 = vector.shape_cast %23 : vector<128x256xf32> to vector<2x64x256xf32>
    %25 = arith.truncf %24 : vector<2x64x256xf32> to vector<2x64x256xbf16>
    %26 = vector.extract_strided_slice %19 {offsets = [0, 512], sizes = [128, 256], strides = [1, 1]} : vector<128x768xf32> to vector<128x256xf32>
    %27 = vector.shape_cast %26 : vector<128x256xf32> to vector<2x64x256xf32>
    %28 = arith.truncf %27 : vector<2x64x256xf32> to vector<2x64x256xbf16>
    %c0_8 = arith.constant 0 : index
    %c0_9 = arith.constant 0 : index
    %c0_10 = arith.constant 0 : index
    %29 = vector.load %arg3[%c0_8, %c0_9, %c0_10] : memref<1x2x64xf32, #tpu.memory_space<vmem>>, vector<1x2x64xf32>
    %30 = vector.shape_cast %29 : vector<1x2x64xf32> to vector<2x64xf32>
    %31 = vector.shape_cast %30 : vector<2x64xf32> to vector<2x1x64xf32>
    %32 = vector.extract_strided_slice %22 {offsets = [0, 0, 0], sizes = [2, 64, 128], strides = [1, 1, 1]} : vector<2x64x256xbf16> to vector<2x64x128xbf16>
    %33 = vector.extract_strided_slice %25 {offsets = [0, 0, 0], sizes = [2, 64, 128], strides = [1, 1, 1]} : vector<2x64x256xbf16> to vector<2x64x128xbf16>
    %34 = vector.extract_strided_slice %28 {offsets = [0, 0, 0], sizes = [2, 64, 128], strides = [1, 1, 1]} : vector<2x64x256xbf16> to vector<2x64x128xbf16>
    "tpu.trace_start"() <{level = 10 : i32, message = "bqd,bkd->bqk"}> : () -> ()
    %cst_11 = arith.constant dense<0.000000e+00> : vector<2x64x64xf32>
    %35 = tpu.matmul %32, %33, %cst_11 {dimension_numbers = #tpu.dot_dimension_numbers<[2], [2], [1], [1], [0, 0, 0, 1, 1, 1], [0], [0]>} : vector<2x64x128xbf16>, vector<2x64x128xbf16>, vector<2x64x64xf32> -> vector<2x64x64xf32>
    "tpu.trace_stop"() : () -> ()
    %cst_12 = arith.constant 0.0883883461 : f32
    %36 = vector.broadcast %cst_12 : f32 to vector<2x64x64xf32>
    %37 = arith.mulf %35, %36 : vector<2x64x64xf32>
    %38 = vector.broadcast %31 : vector<2x1x64xf32> to vector<2x64x64xf32>
    %39 = arith.addf %37, %38 : vector<2x64x64xf32>
    %cst_13 = arith.constant dense<0xFF800000> : vector<2x64xf32>
    %40 = vector.multi_reduction <maximumf>, %39, %cst_13 [2] : vector<2x64x64xf32> to vector<2x64xf32>
    %41 = vector.shape_cast %40 : vector<2x64xf32> to vector<2x64x1xf32>
    %42 = vector.broadcast %41 : vector<2x64x1xf32> to vector<2x64x64xf32>
    %43 = arith.subf %39, %42 : vector<2x64x64xf32>
    %44 = math.exp %43 : vector<2x64x64xf32>
    %cst_14 = arith.constant dense<0.000000e+00> : vector<2x64xf32>
    %45 = vector.multi_reduction <add>, %44, %cst_14 [2] : vector<2x64x64xf32> to vector<2x64xf32>
    %46 = vector.shape_cast %45 : vector<2x64xf32> to vector<2x64x1xf32>
    %47 = tpu.reciprocal %46 {approx = true} : vector<2x64x1xf32> -> vector<2x64x1xf32>
    %48 = vector.broadcast %47 : vector<2x64x1xf32> to vector<2x64x64xf32>
    %49 = arith.mulf %44, %48 : vector<2x64x64xf32>
    %50 = arith.truncf %49 : vector<2x64x64xf32> to vector<2x64x64xbf16>
    "tpu.trace_start"() <{level = 10 : i32, message = "bqk,bkd->bqd"}> : () -> ()
    %cst_15 = arith.constant dense<0.000000e+00> : vector<2x64x128xf32>
    %51 = tpu.matmul %50, %34, %cst_15 {dimension_numbers = #tpu.dot_dimension_numbers<[2], [1], [1], [2], [0, 0, 0, 1, 1, 2], [0], [0]>} : vector<2x64x64xbf16>, vector<2x64x128xbf16>, vector<2x64x128xf32> -> vector<2x64x128xf32>
    "tpu.trace_stop"() : () -> ()
    %52 = vector.extract_strided_slice %22 {offsets = [0, 0, 128], sizes = [2, 64, 128], strides = [1, 1, 1]} : vector<2x64x256xbf16> to vector<2x64x128xbf16>
    %53 = vector.extract_strided_slice %25 {offsets = [0, 0, 128], sizes = [2, 64, 128], strides = [1, 1, 1]} : vector<2x64x256xbf16> to vector<2x64x128xbf16>
    %54 = vector.extract_strided_slice %28 {offsets = [0, 0, 128], sizes = [2, 64, 128], strides = [1, 1, 1]} : vector<2x64x256xbf16> to vector<2x64x128xbf16>
    "tpu.trace_start"() <{level = 10 : i32, message = "bqd,bkd->bqk"}> : () -> ()
    %cst_16 = arith.constant dense<0.000000e+00> : vector<2x64x64xf32>
    %55 = tpu.matmul %52, %53, %cst_16 {dimension_numbers = #tpu.dot_dimension_numbers<[2], [2], [1], [1], [0, 0, 0, 1, 1, 1], [0], [0]>} : vector<2x64x128xbf16>, vector<2x64x128xbf16>, vector<2x64x64xf32> -> vector<2x64x64xf32>
    "tpu.trace_stop"() : () -> ()
    %cst_17 = arith.constant 0.0883883461 : f32
    %56 = vector.broadcast %cst_17 : f32 to vector<2x64x64xf32>
    %57 = arith.mulf %55, %56 : vector<2x64x64xf32>
    %58 = vector.broadcast %31 : vector<2x1x64xf32> to vector<2x64x64xf32>
    %59 = arith.addf %57, %58 : vector<2x64x64xf32>
    %cst_18 = arith.constant dense<0xFF800000> : vector<2x64xf32>
    %60 = vector.multi_reduction <maximumf>, %59, %cst_18 [2] : vector<2x64x64xf32> to vector<2x64xf32>
    %61 = vector.shape_cast %60 : vector<2x64xf32> to vector<2x64x1xf32>
    %62 = vector.broadcast %61 : vector<2x64x1xf32> to vector<2x64x64xf32>
    %63 = arith.subf %59, %62 : vector<2x64x64xf32>
    %64 = math.exp %63 : vector<2x64x64xf32>
    %cst_19 = arith.constant dense<0.000000e+00> : vector<2x64xf32>
    %65 = vector.multi_reduction <add>, %64, %cst_19 [2] : vector<2x64x64xf32> to vector<2x64xf32>
    %66 = vector.shape_cast %65 : vector<2x64xf32> to vector<2x64x1xf32>
    %67 = tpu.reciprocal %66 {approx = true} : vector<2x64x1xf32> -> vector<2x64x1xf32>
    %68 = vector.broadcast %67 : vector<2x64x1xf32> to vector<2x64x64xf32>
    %69 = arith.mulf %64, %68 : vector<2x64x64xf32>
    %70 = arith.truncf %69 : vector<2x64x64xf32> to vector<2x64x64xbf16>
    "tpu.trace_start"() <{level = 10 : i32, message = "bqk,bkd->bqd"}> : () -> ()
    %cst_20 = arith.constant dense<0.000000e+00> : vector<2x64x128xf32>
    %71 = tpu.matmul %70, %54, %cst_20 {dimension_numbers = #tpu.dot_dimension_numbers<[2], [1], [1], [2], [0, 0, 0, 1, 1, 2], [0], [0]>} : vector<2x64x64xbf16>, vector<2x64x128xbf16>, vector<2x64x128xf32> -> vector<2x64x128xf32>
    "tpu.trace_stop"() : () -> ()
    %72 = tpu.concatenate %51, %71 in 2 : vector<2x64x128xf32>, vector<2x64x128xf32> -> vector<2x64x256xf32>
    %73 = vector.shape_cast %72 : vector<2x64x256xf32> to vector<128x256xf32>
    %74 = arith.truncf %73 : vector<128x256xf32> to vector<128x256xbf16>
    %c0_21 = arith.constant 0 : index
    %c0_22 = arith.constant 0 : index
    %c0_23 = arith.constant 0 : index
    %75 = vector.load %arg5[%c0_21, %c0_22, %c0_23] : memref<1x256x256xbf16, #tpu.memory_space<vmem>>, vector<1x256x256xbf16>
    %76 = vector.shape_cast %75 : vector<1x256x256xbf16> to vector<256x256xbf16>
    %cst_24 = arith.constant dense<0.000000e+00> : vector<128x256xf32>
    %77 = tpu.matmul %74, %76, %cst_24 {dimension_numbers = #tpu.dot_dimension_numbers<[1], [0], [0], [1], [0, 0, 1, 1], [], []>} : vector<128x256xbf16>, vector<256x256xbf16>, vector<128x256xf32> -> vector<128x256xf32>
    %78 = vector.broadcast %7 : vector<1x256xf32> to vector<128x256xf32>
    %79 = arith.addf %77, %78 : vector<128x256xf32>
    %80 = arith.addf %3, %79 : vector<128x256xf32>
    %cst_25 = arith.constant dense<0.000000e+00> : vector<128xf32>
    %81 = vector.multi_reduction <add>, %80, %cst_25 [1] : vector<128x256xf32> to vector<128xf32>
    %82 = vector.shape_cast %81 : vector<128xf32> to vector<128x1xf32>
    %cst_26 = arith.constant 2.560000e+02 : f32
    %83 = vector.broadcast %cst_26 : f32 to vector<128x1xf32>
    %84 = arith.divf %82, %83 : vector<128x1xf32>
    %85 = vector.broadcast %84 : vector<128x1xf32> to vector<128x256xf32>
    %86 = arith.subf %80, %85 : vector<128x256xf32>
    %87 = arith.mulf %86, %86 : vector<128x256xf32>
    %cst_27 = arith.constant dense<0.000000e+00> : vector<128xf32>
    %88 = vector.multi_reduction <add>, %87, %cst_27 [1] : vector<128x256xf32> to vector<128xf32>
    %89 = vector.shape_cast %88 : vector<128xf32> to vector<128x1xf32>
    %cst_28 = arith.constant 2.560000e+02 : f32
    %90 = vector.broadcast %cst_28 : f32 to vector<128x1xf32>
    %91 = arith.divf %89, %90 : vector<128x1xf32>
    %92 = vector.broadcast %84 : vector<128x1xf32> to vector<128x256xf32>
    %93 = arith.subf %80, %92 : vector<128x256xf32>
    %cst_29 = arith.constant 9.99999974E-6 : f32
    %94 = vector.broadcast %cst_29 : f32 to vector<128x1xf32>
    %95 = arith.addf %91, %94 : vector<128x1xf32>
    %96 = math.rsqrt %95 : vector<128x1xf32>
    %97 = vector.broadcast %96 : vector<128x1xf32> to vector<128x256xf32>
    %98 = arith.mulf %93, %97 : vector<128x256xf32>
    %99 = vector.broadcast %8 : vector<1x256xf32> to vector<128x256xf32>
    %100 = arith.mulf %98, %99 : vector<128x256xf32>
    %101 = vector.broadcast %9 : vector<1x256xf32> to vector<128x256xf32>
    %102 = arith.addf %100, %101 : vector<128x256xf32>
    %103 = arith.truncf %102 : vector<128x256xf32> to vector<128x256xbf16>
    %c0_30 = arith.constant 0 : index
    %c0_31 = arith.constant 0 : index
    %c0_32 = arith.constant 0 : index
    %104 = vector.load %arg6[%c0_30, %c0_31, %c0_32] : memref<1x256x512xbf16, #tpu.memory_space<vmem>>, vector<1x256x512xbf16>
    %105 = vector.shape_cast %104 : vector<1x256x512xbf16> to vector<256x512xbf16>
    %cst_33 = arith.constant dense<0.000000e+00> : vector<128x512xf32>
    %106 = tpu.matmul %103, %105, %cst_33 {dimension_numbers = #tpu.dot_dimension_numbers<[1], [0], [0], [1], [0, 0, 1, 1], [], []>} : vector<128x256xbf16>, vector<256x512xbf16>, vector<128x512xf32> -> vector<128x512xf32>
    %107 = vector.broadcast %10 : vector<1x512xf32> to vector<128x512xf32>
    %108 = arith.addf %106, %107 : vector<128x512xf32>
    %109 = arith.mulf %108, %108 : vector<128x512xf32>
    %110 = arith.mulf %108, %109 : vector<128x512xf32>
    %cst_34 = arith.constant 4.471500e-02 : f32
    %111 = vector.broadcast %cst_34 : f32 to vector<128x512xf32>
    %112 = arith.mulf %111, %110 : vector<128x512xf32>
    %113 = arith.addf %108, %112 : vector<128x512xf32>
    %cst_35 = arith.constant 0.797884583 : f32
    %114 = vector.broadcast %cst_35 : f32 to vector<128x512xf32>
    %115 = arith.mulf %114, %113 : vector<128x512xf32>
    %116 = math.tanh %115 : vector<128x512xf32>
    %cst_36 = arith.constant 1.000000e+00 : f32
    %117 = vector.broadcast %cst_36 : f32 to vector<128x512xf32>
    %118 = arith.addf %117, %116 : vector<128x512xf32>
    %cst_37 = arith.constant 5.000000e-01 : f32
    %119 = vector.broadcast %cst_37 : f32 to vector<128x512xf32>
    %120 = arith.mulf %119, %118 : vector<128x512xf32>
    %121 = arith.mulf %108, %120 : vector<128x512xf32>
    %122 = arith.truncf %121 : vector<128x512xf32> to vector<128x512xbf16>
    %c0_38 = arith.constant 0 : index
    %c0_39 = arith.constant 0 : index
    %c0_40 = arith.constant 0 : index
    %123 = vector.load %arg7[%c0_38, %c0_39, %c0_40] : memref<1x512x256xbf16, #tpu.memory_space<vmem>>, vector<1x512x256xbf16>
    %124 = vector.shape_cast %123 : vector<1x512x256xbf16> to vector<512x256xbf16>
    %cst_41 = arith.constant dense<0.000000e+00> : vector<128x256xf32>
    %125 = tpu.matmul %122, %124, %cst_41 {dimension_numbers = #tpu.dot_dimension_numbers<[1], [0], [0], [1], [0, 0, 1, 1], [], []>} : vector<128x512xbf16>, vector<512x256xbf16>, vector<128x256xf32> -> vector<128x256xf32>
    %126 = vector.broadcast %11 : vector<1x256xf32> to vector<128x256xf32>
    %127 = arith.addf %125, %126 : vector<128x256xf32>
    %128 = arith.addf %102, %127 : vector<128x256xf32>
    %cst_42 = arith.constant dense<0.000000e+00> : vector<128xf32>
    %129 = vector.multi_reduction <add>, %128, %cst_42 [1] : vector<128x256xf32> to vector<128xf32>
    %130 = vector.shape_cast %129 : vector<128xf32> to vector<128x1xf32>
    %cst_43 = arith.constant 2.560000e+02 : f32
    %131 = vector.broadcast %cst_43 : f32 to vector<128x1xf32>
    %132 = arith.divf %130, %131 : vector<128x1xf32>
    %133 = vector.broadcast %132 : vector<128x1xf32> to vector<128x256xf32>
    %134 = arith.subf %128, %133 : vector<128x256xf32>
    %135 = arith.mulf %134, %134 : vector<128x256xf32>
    %cst_44 = arith.constant dense<0.000000e+00> : vector<128xf32>
    %136 = vector.multi_reduction <add>, %135, %cst_44 [1] : vector<128x256xf32> to vector<128xf32>
    %137 = vector.shape_cast %136 : vector<128xf32> to vector<128x1xf32>
    %cst_45 = arith.constant 2.560000e+02 : f32
    %138 = vector.broadcast %cst_45 : f32 to vector<128x1xf32>
    %139 = arith.divf %137, %138 : vector<128x1xf32>
    %140 = vector.broadcast %132 : vector<128x1xf32> to vector<128x256xf32>
    %141 = arith.subf %128, %140 : vector<128x256xf32>
    %cst_46 = arith.constant 9.99999974E-6 : f32
    %142 = vector.broadcast %cst_46 : f32 to vector<128x1xf32>
    %143 = arith.addf %139, %142 : vector<128x1xf32>
    %144 = math.rsqrt %143 : vector<128x1xf32>
    %145 = vector.broadcast %144 : vector<128x1xf32> to vector<128x256xf32>
    %146 = arith.mulf %141, %145 : vector<128x256xf32>
    %147 = vector.broadcast %12 : vector<1x256xf32> to vector<128x256xf32>
    %148 = arith.mulf %146, %147 : vector<128x256xf32>
    %149 = vector.broadcast %13 : vector<1x256xf32> to vector<128x256xf32>
    %150 = arith.addf %148, %149 : vector<128x256xf32>
    %c0_47 = arith.constant 0 : index
    %c0_48 = arith.constant 0 : index
    %151 = vector.load %arg12[%c0_47, %c0_48] : memref<128x256xf32, #tpu.memory_space<vmem>>, vector<128x256xf32>
    tpu.vector_store %arg12[%c0_47, %c0_48], %150 {strides = array<i32>} : memref<128x256xf32, #tpu.memory_space<vmem>>, vector<128x256xf32>,
    %c1_i32 = arith.constant 1 : i32
    %152 = arith.cmpi eq, %arg1, %c1_i32 : i32
    %153 = arith.extui %152 : i1 to i32
    %c0_i32_49 = arith.constant 0 : i32
    %154 = arith.cmpi ne, %153, %c0_i32_49 : i32
    scf.if %154 {
      %155 = vector.shape_cast %150 : vector<128x256xf32> to vector<2x64x256xf32>
      %156 = vector.extract_strided_slice %155 {offsets = [0, 0, 0], sizes = [2, 1, 256], strides = [1, 1, 1]} : vector<2x64x256xf32> to vector<2x1x256xf32>
      %157 = vector.shape_cast %156 : vector<2x1x256xf32> to vector<2x256xf32>
      %158 = arith.truncf %157 : vector<2x256xf32> to vector<2x256xbf16>
      %c0_50 = arith.constant 0 : index
      %c0_51 = arith.constant 0 : index
      %159 = vector.load %arg9[%c0_50, %c0_51] : memref<256x3xbf16, #tpu.memory_space<vmem>>, vector<256x3xbf16>
      %cst_52 = arith.constant dense<0.000000e+00> : vector<2x3xf32>
      %160 = tpu.matmul %158, %159, %cst_52 {dimension_numbers = #tpu.dot_dimension_numbers<[1], [0], [0], [1], [0, 0, 1, 1], [], []>} : vector<2x256xbf16>, vector<256x3xbf16>, vector<2x3xf32> -> vector<2x3xf32>
      %c0_53 = arith.constant 0 : index
      %c0_54 = arith.constant 0 : index
      %161 = vector.load %arg10[%c0_53, %c0_54] : memref<1x3xf32, #tpu.memory_space<vmem>>, vector<1x3xf32>
      %162 = vector.broadcast %161 : vector<1x3xf32> to vector<2x3xf32>
      %163 = arith.addf %160, %162 : vector<2x3xf32>
      %cst_55 = arith.constant dense<0xFF800000> : vector<2xf32>
      %164 = vector.multi_reduction <maximumf>, %163, %cst_55 [1] : vector<2x3xf32> to vector<2xf32>
      %165 = vector.shape_cast %164 : vector<2xf32> to vector<2x1xf32>
      %166 = vector.broadcast %165 : vector<2x1xf32> to vector<2x3xf32>
      %167 = arith.subf %163, %166 : vector<2x3xf32>
      %168 = math.exp %167 : vector<2x3xf32>
      %cst_56 = arith.constant dense<0.000000e+00> : vector<2xf32>
      %169 = vector.multi_reduction <add>, %168, %cst_56 [1] : vector<2x3xf32> to vector<2xf32>
      %170 = vector.shape_cast %169 : vector<2xf32> to vector<2x1xf32>
      %171 = vector.broadcast %170 : vector<2x1xf32> to vector<2x3xf32>
      %172 = arith.divf %168, %171 : vector<2x3xf32>
      %c0_57 = arith.constant 0 : index
      %c0_58 = arith.constant 0 : index
      %c0_59 = arith.constant 0 : index
      %173 = vector.load %arg11[%c0_57, %c0_58, %c0_59] : memref<1x2x3xf32, #tpu.memory_space<vmem>>, vector<1x2x3xf32>
      %174 = vector.shape_cast %173 : vector<1x2x3xf32> to vector<2x3xf32>
      %175 = vector.shape_cast %172 : vector<2x3xf32> to vector<1x2x3xf32>
      tpu.vector_store %arg11[%c0_57, %c0_58, %c0_59], %175 {strides = array<i32>} : memref<1x2x3xf32, #tpu.memory_space<vmem>>, vector<1x2x3xf32>,
    } else {
    }
    return
  }
  func.func @transform_1(%arg0: i32, %arg1: i32) -> (i32, i32, i32) {
    %c0_i32 = arith.constant 0 : i32
    %c0_i32_0 = arith.constant 0 : i32
    %c0_i32_1 = arith.constant 0 : i32
    return %arg0, %c0_i32, %c0_i32_0 : i32, i32, i32
  }
  func.func @transform_2(%arg0: i32, %arg1: i32) -> (i32, i32, i32) {
    %c0_i32 = arith.constant 0 : i32
    %c0_i32_0 = arith.constant 0 : i32
    %c0_i32_1 = arith.constant 0 : i32
    return %arg1, %c0_i32, %c0_i32_0 : i32, i32, i32
  }
  func.func @transform_3(%arg0: i32, %arg1: i32) -> (i32, i32, i32) {
    %c0_i32 = arith.constant 0 : i32
    %c0_i32_0 = arith.constant 0 : i32
    %c0_i32_1 = arith.constant 0 : i32
    return %arg1, %c0_i32, %c0_i32_0 : i32, i32, i32
  }
  func.func @transform_4(%arg0: i32, %arg1: i32) -> (i32, i32, i32) {
    %c0_i32 = arith.constant 0 : i32
    %c0_i32_0 = arith.constant 0 : i32
    %c0_i32_1 = arith.constant 0 : i32
    return %arg1, %c0_i32, %c0_i32_0 : i32, i32, i32
  }
  func.func @transform_5(%arg0: i32, %arg1: i32) -> (i32, i32, i32) {
    %c0_i32 = arith.constant 0 : i32
    %c0_i32_0 = arith.constant 0 : i32
    %c0_i32_1 = arith.constant 0 : i32
    return %arg1, %c0_i32, %c0_i32_0 : i32, i32, i32
  }
  func.func @transform_6(%arg0: i32, %arg1: i32) -> (i32, i32, i32) {
    %c0_i32 = arith.constant 0 : i32
    %c0_i32_0 = arith.constant 0 : i32
    %c0_i32_1 = arith.constant 0 : i32
    return %arg1, %c0_i32, %c0_i32_0 : i32, i32, i32
  }
  func.func @transform_7(%arg0: i32, %arg1: i32) -> (i32, i32) {
    %c0_i32 = arith.constant 0 : i32
    %c0_i32_0 = arith.constant 0 : i32
    %c0_i32_1 = arith.constant 0 : i32
    return %c0_i32, %c0_i32_0 : i32, i32
  }
  func.func @transform_8(%arg0: i32, %arg1: i32) -> (i32, i32) {
    %c0_i32 = arith.constant 0 : i32
    %c0_i32_0 = arith.constant 0 : i32
    %c0_i32_1 = arith.constant 0 : i32
    return %c0_i32, %c0_i32_0 : i32, i32
  }
  func.func @transform_9(%arg0: i32, %arg1: i32) -> (i32, i32, i32) {
    %c0_i32 = arith.constant 0 : i32
    %c0_i32_0 = arith.constant 0 : i32
    %c0_i32_1 = arith.constant 0 : i32
    return %arg0, %c0_i32, %c0_i32_0 : i32, i32, i32
  }
}

</mosaic_0001>

<llo_original>
// kernel: align_scorer_forward.1
$region0: #{align_scorer_forward.1}
  #allocation0 [shape = 'u32[]', space=smem, size = 0x4, offset = 0x4, fixed_abs, tag = 'smem constant byte address 0x4 - core index']
  #allocation1 [shape = 'u32[72,128]{1,0:T(1,128)}', space=vmem, size = 0x9000, scoped, tag = 'internal scratch']
  #allocation2 [shape = 'f32[128,256]{1,0:T(8,128)}', space=vmem, size = 0x20000, scoped, tag = 'scratch operand']
  #allocation3 [shape = 's32[1]{0}', space=sflag, size = 0x4, scoped, tag = 'scratch operand']
  #allocation4 [shape = 's32[]', space=sflag, size = 0x4, offset = 0, fixed_abs, tag = 'sflag constant byte address 0x0 - dummy sync flag']
  %s0 = inlined_call_operand.vmem [shape: f32[2,128,256], index: 0, kind: input, shape index: {}]
  %s1 = inlined_call_operand.vmem [shape: f32[2,2,64], index: 1, kind: input, shape index: {}]
  %s2 = inlined_call_operand.vmem [shape: bf16[2,256,768], index: 2, kind: input, shape index: {}]
  %s3 = inlined_call_operand.vmem [shape: bf16[2,256,256], index: 3, kind: input, shape index: {}]
  %s4 = inlined_call_operand.vmem [shape: bf16[2,256,512], index: 4, kind: input, shape index: {}]
  %s5 = inlined_call_operand.vmem [shape: bf16[2,512,256], index: 5, kind: input, shape index: {}]
  %s6 = inlined_call_operand.vmem [shape: f32[2,8,768], index: 6, kind: input, shape index: {}]
  %s7 = inlined_call_operand.vmem [shape: bf16[256,3], index: 7, kind: input, shape index: {}]
  %s8 = inlined_call_operand.vmem [shape: f32[1,3], index: 8, kind: input, shape index: {}]
  %s9 = inlined_call_operand.vmem [shape: f32[2,2,3], index: 9, kind: output, shape index: {}]
  %s10 = sld [smem:[#allocation0]]
  $region92: #{align_scorer_forward.1} parent=0
    _
  %s12 = ssub.s32 1, %s10
  %s13 = scalar_select 0, %s12, %s10
  loop: start=0, step=1, limit=6
  $region2: #{align_scorer_forward.1} parent=0 // loop_pre_header
    _
  $region3: #{align_scorer_forward.1} parent=0 // loop_header
    %s15 = sphi 0, %s19
    %p16 = scmp.ge.s32.totalorder %s15, 6
    %s22 = sphi 0, %s34
    %s23 = sphi 0, %s30
    %s24 = sphi 0, %s22
    %s25 = sphi 0, %s23
    %s26 = sphi 0, %s24
    %s27 = sphi 0, %s25
    %s37 = sphi 0, %s39
    %s40 = sphi 0, %s37
    %s41 = sphi 0, %s40
    %s57 = sphi 0, %s41
    %s63 = sphi 0, %s65
    %s66 = sphi 0, %s63
    %s67 = sphi 0, %s66
    %s83 = sphi 0, %s67
    %s89 = sphi 0, %s91
    %s92 = sphi 0, %s89
    %s93 = sphi 0, %s92
    %s109 = sphi 0, %s93
    %s115 = sphi 0, %s117
    %s118 = sphi 0, %s115
    %s119 = sphi 0, %s118
    %s135 = sphi 0, %s119
    %s141 = sphi 0, %s143
    %s144 = sphi 0, %s141
    %s145 = sphi 0, %s144
    %s161 = sphi 0, %s145
    %s167 = sphi 0, %s169
    %s170 = sphi 0, %s167
    %s171 = sphi 0, %s170
    %s187 = sphi 0, %s171
    %s191 = sphi 0, %s191
    %s193 = sphi 0, %s191
    %s194 = sphi 0, %s193
    %s208 = sphi 0, %s194
    %s212 = sphi 0, %s212
    %s214 = sphi 0, %s212
    %s215 = sphi 0, %s214
    %s229 = sphi 0, %s215
    %s235 = sphi 0, %s237
    %s238 = sphi 0, %s235
    %s239 = sphi 0, %s238
    %s255 = sphi 0, %s239
  $region4: #{align_scorer_forward.1} parent=0 // loop_header_branch
    %18 = sbr.rel (%p16) target = $region8
  $region5: #{align_scorer_forward.1} parent=0 // loop_body
    %s20 = ssub.s32 %s15, 1
    %s21 = ssub.s32 %s15, 2
    %s28 = sadd.s32 1, %s23
    %p29 = scmp.ge.s32.totalorder %s28, 2
    %s30 = scalar_select %p29, 0, %s28
    %s31 = sadd.s32 1, %s22
    %s32 = scalar_select %p29, %s31, %s22
    %p33 = scmp.ge.s32.totalorder %s32, 2
    %s34 = scalar_select %p33, 0, %s32
    %s35 = ssub.s32 %s22, %s34
    %p36 = scmp.eq.s32.totalorder %s35, 0
    %s38 = sadd.s32 %s37, 1
    %s39 = scalar_select %p36, %s37, %s38
    %p42 = pneg %p36
    %p43 = scmp.eq.s32.totalorder %s15, 3
    %p44 = por %p42, %p43
    %p45 = scmp.ne.s32.totalorder %s37, %s40
    %p46 = scmp.eq.s32.totalorder %s15, 0
    %p47 = por %p45, %p46
    %p48 = scmp.ne.s32.totalorder %s37, %s40
    %p49 = scmp.eq.s32.totalorder %s20, 3
    %p50 = por %p48, %p49
    %p51 = scmp.ne.s32.totalorder %s40, %s41
    %p52 = scmp.eq.s32.totalorder %s20, 0
    %p53 = por %p51, %p52
    %p54 = scmp.ne.s32.totalorder %s40, %s41
    %p55 = scmp.eq.s32.totalorder %s21, 3
    %p56 = por %p54, %p55
    %p58 = scmp.ne.s32.totalorder %s41, %s57
    %p59 = scmp.eq.s32.totalorder %s21, 0
    %p60 = por %p58, %p59
    %s61 = ssub.s32 %s23, %s30
    %p62 = scmp.eq.s32.totalorder %s61, 0
    %s64 = sadd.s32 %s63, 1
    %s65 = scalar_select %p62, %s63, %s64
    %p68 = pneg %p62
    %p69 = scmp.eq.s32.totalorder %s15, 3
    %p70 = por %p68, %p69
    %p71 = scmp.ne.s32.totalorder %s63, %s66
    %p72 = scmp.eq.s32.totalorder %s15, 0
    %p73 = por %p71, %p72
    %p74 = scmp.ne.s32.totalorder %s63, %s66
    %p75 = scmp.eq.s32.totalorder %s20, 3
    %p76 = por %p74, %p75
    %p77 = scmp.ne.s32.totalorder %s66, %s67
    %p78 = scmp.eq.s32.totalorder %s20, 0
    %p79 = por %p77, %p78
    %p80 = scmp.ne.s32.totalorder %s66, %s67
    %p81 = scmp.eq.s32.totalorder %s21, 3
    %p82 = por %p80, %p81
    %p84 = scmp.ne.s32.totalorder %s67, %s83
    %p85 = scmp.eq.s32.totalorder %s21, 0
    %p86 = por %p84, %p85
    %s87 = ssub.s32 %s23, %s30
    %p88 = scmp.eq.s32.totalorder %s87, 0
    %s90 = sadd.s32 %s89, 1
    %s91 = scalar_select %p88, %s89, %s90
    %p94 = pneg %p88
    %p95 = scmp.eq.s32.totalorder %s15, 3
    %p96 = por %p94, %p95
    %p97 = scmp.ne.s32.totalorder %s89, %s92
    %p98 = scmp.eq.s32.totalorder %s15, 0
    %p99 = por %p97, %p98
    %p100 = scmp.ne.s32.totalorder %s89, %s92
    %p101 = scmp.eq.s32.totalorder %s20, 3
    %p102 = por %p100, %p101
    %p103 = scmp.ne.s32.totalorder %s92, %s93
    %p104 = scmp.eq.s32.totalorder %s20, 0
    %p105 = por %p103, %p104
    %p106 = scmp.ne.s32.totalorder %s92, %s93
    %p107 = scmp.eq.s32.totalorder %s21, 3
    %p108 = por %p106, %p107
    %p110 = scmp.ne.s32.totalorder %s93, %s109
    %p111 = scmp.eq.s32.totalorder %s21, 0
    %p112 = por %p110, %p111
    %s113 = ssub.s32 %s23, %s30
    %p114 = scmp.eq.s32.totalorder %s113, 0
    %s116 = sadd.s32 %s115, 1
    %s117 = scalar_select %p114, %s115, %s116
    %p120 = pneg %p114
    %p121 = scmp.eq.s32.totalorder %s15, 3
    %p122 = por %p120, %p121
    %p123 = scmp.ne.s32.totalorder %s115, %s118
    %p124 = scmp.eq.s32.totalorder %s15, 0
    %p125 = por %p123, %p124
    %p126 = scmp.ne.s32.totalorder %s115, %s118
    %p127 = scmp.eq.s32.totalorder %s20, 3
    %p128 = por %p126, %p127
    %p129 = scmp.ne.s32.totalorder %s118, %s119
    %p130 = scmp.eq.s32.totalorder %s20, 0
    %p131 = por %p129, %p130
    %p132 = scmp.ne.s32.totalorder %s118, %s119
    %p133 = scmp.eq.s32.totalorder %s21, 3
    %p134 = por %p132, %p133
    %p136 = scmp.ne.s32.totalorder %s119, %s135
    %p137 = scmp.eq.s32.totalorder %s21, 0
    %p138 = por %p136, %p137
    %s139 = ssub.s32 %s23, %s30
    %p140 = scmp.eq.s32.totalorder %s139, 0
    %s142 = sadd.s32 %s141, 1
    %s143 = scalar_select %p140, %s141, %s142
    %p146 = pneg %p140
    %p147 = scmp.eq.s32.totalorder %s15, 3
    %p148 = por %p146, %p147
    %p149 = scmp.ne.s32.totalorder %s141, %s144
    %p150 = scmp.eq.s32.totalorder %s15, 0
    %p151 = por %p149, %p150
    %p152 = scmp.ne.s32.totalorder %s141, %s144
    %p153 = scmp.eq.s32.totalorder %s20, 3
    %p154 = por %p152, %p153
    %p155 = scmp.ne.s32.totalorder %s144, %s145
    %p156 = scmp.eq.s32.totalorder %s20, 0
    %p157 = por %p155, %p156
    %p158 = scmp.ne.s32.totalorder %s144, %s145
    %p159 = scmp.eq.s32.totalorder %s21, 3
    %p160 = por %p158, %p159
    %p162 = scmp.ne.s32.totalorder %s145, %s161
    %p163 = scmp.eq.s32.totalorder %s21, 0
    %p164 = por %p162, %p163
    %s165 = ssub.s32 %s23, %s30
    %p166 = scmp.eq.s32.totalorder %s165, 0
    %s168 = sadd.s32 %s167, 1
    %s169 = scalar_select %p166, %s167, %s168
    %p172 = pneg %p166
    %p173 = scmp.eq.s32.totalorder %s15, 3
    %p174 = por %p172, %p173
    %p175 = scmp.ne.s32.totalorder %s167, %s170
    %p176 = scmp.eq.s32.totalorder %s15, 0
    %p177 = por %p175, %p176
    %p178 = scmp.ne.s32.totalorder %s167, %s170
    %p179 = scmp.eq.s32.totalorder %s20, 3
    %p180 = por %p178, %p179
    %p181 = scmp.ne.s32.totalorder %s170, %s171
    %p182 = scmp.eq.s32.totalorder %s20, 0
    %p183 = por %p181, %p182
    %p184 = scmp.ne.s32.totalorder %s170, %s171
    %p185 = scmp.eq.s32.totalorder %s21, 3
    %p186 = por %p184, %p185
    %p188 = scmp.ne.s32.totalorder %s171, %s187
    %p189 = scmp.eq.s32.totalorder %s21, 0
    %p190 = por %p188, %p189
    %s192 = sadd.s32 %s191, 1
    %p195 = scmp.eq.s32.totalorder %s15, 3
    %p196 = scmp.ne.s32.totalorder %s191, %s193
    %p197 = scmp.eq.s32.totalorder %s15, 0
    %p198 = por %p196, %p197
    %p199 = scmp.ne.s32.totalorder %s191, %s193
    %p200 = scmp.eq.s32.totalorder %s20, 3
    %p201 = por %p199, %p200
    %p202 = scmp.ne.s32.totalorder %s193, %s194
    %p203 = scmp.eq.s32.totalorder %s20, 0
    %p204 = por %p202, %p203
    %p205 = scmp.ne.s32.totalorder %s193, %s194
    %p206 = scmp.eq.s32.totalorder %s21, 3
    %p207 = por %p205, %p206
    %p209 = scmp.ne.s32.totalorder %s194, %s208
    %p210 = scmp.eq.s32.totalorder %s21, 0
    %p211 = por %p209, %p210
    %s213 = sadd.s32 %s212, 1
    %p216 = scmp.eq.s32.totalorder %s15, 3
    %p217 = scmp.ne.s32.totalorder %s212, %s214
    %p218 = scmp.eq.s32.totalorder %s15, 0
    %p219 = por %p217, %p218
    %p220 = scmp.ne.s32.totalorder %s212, %s214
    %p221 = scmp.eq.s32.totalorder %s20, 3
    %p222 = por %p220, %p221
    %p223 = scmp.ne.s32.totalorder %s214, %s215
    %p224 = scmp.eq.s32.totalorder %s20, 0
    %p225 = por %p223, %p224
    %p226 = scmp.ne.s32.totalorder %s214, %s215
    %p227 = scmp.eq.s32.totalorder %s21, 3
    %p228 = por %p226, %p227
    %p230 = scmp.ne.s32.totalorder %s215, %s229
    %p231 = scmp.eq.s32.totalorder %s21, 0
    %p232 = por %p230, %p231
    %s233 = ssub.s32 %s22, %s34
    %p234 = scmp.eq.s32.totalorder %s233, 0
    %s236 = sadd.s32 %s235, 1
    %s237 = scalar_select %p234, %s235, %s236
    %p240 = pneg %p234
    %p241 = scmp.eq.s32.totalorder %s15, 3
    %p242 = por %p240, %p241
    %p243 = scmp.ne.s32.totalorder %s235, %s238
    %p244 = scmp.eq.s32.totalorder %s15, 0
    %p245 = por %p243, %p244
    %p246 = scmp.ne.s32.totalorder %s235, %s238
    %p247 = scmp.eq.s32.totalorder %s20, 3
    %p248 = por %p246, %p247
    %p249 = scmp.ne.s32.totalorder %s238, %s239
    %p250 = scmp.eq.s32.totalorder %s20, 0
    %p251 = por %p249, %p250
    %p252 = scmp.ne.s32.totalorder %s238, %s239
    %p253 = scmp.eq.s32.totalorder %s21, 3
    %p254 = por %p252, %p253
    %p256 = scmp.ne.s32.totalorder %s239, %s255
    %p257 = scmp.eq.s32.totalorder %s21, 0
    %p258 = por %p256, %p257
    %p259 = scmp.le.s32.totalorder 1, %s15
    %p260 = scmp.lt.s32.totalorder %s15, 5
    %p261 = pnand %p259, %p260
    %p262 = pneg %p261
    // Predicated region
    $region9: #{align_scorer_forward.1} parent=5 // pred_check
      _
    $region10: #{align_scorer_forward.1} parent=5 // pred_check_branch
      %264 = sbr.rel (%p261) target = $region12
    $region11: #{align_scorer_forward.1} parent=5 // pred_region
      %s265 = ssub.s32 %s15, 1
      // Predicated region
      $region13: #{align_scorer_forward.1} parent=11 // pred_check
        %p266 = pneg %p204
      $region14: #{align_scorer_forward.1} parent=11 // pred_check_branch
        %268 = sbr.rel (%p266) target = $region16
      $region15: #{align_scorer_forward.1} parent=11 // pred_region
        _
      $region16: #{align_scorer_forward.1} parent=11 // pred_fallthru
        _
      // Predicated region
      $region17: #{align_scorer_forward.1} parent=11 // pred_check
        %p269 = pneg %p225
      $region18: #{align_scorer_forward.1} parent=11 // pred_check_branch
        %271 = sbr.rel (%p269) target = $region20
      $region19: #{align_scorer_forward.1} parent=11 // pred_region
        _
      $region20: #{align_scorer_forward.1} parent=11 // pred_fallthru
        _
    $region12: #{align_scorer_forward.1} parent=5 // pred_fallthru
      _
    %p272 = scmp.lt.s32.totalorder %s15, 4
    // Predicated region
    $region21: #{align_scorer_forward.1} parent=5 // pred_check
      %p273 = pneg %p272
    $region22: #{align_scorer_forward.1} parent=5 // pred_check_branch
      %275 = sbr.rel (%p273) target = $region24
    $region23: #{align_scorer_forward.1} parent=5 // pred_region
      // Predicated region
      $region25: #{align_scorer_forward.1} parent=23 // pred_check
        %p276 = pneg %p47
      $region26: #{align_scorer_forward.1} parent=23 // pred_check_branch
        %278 = sbr.rel (%p276) target = $region28
      $region27: #{align_scorer_forward.1} parent=23 // pred_region
        %p279 = scmp.lt.s32.totalorder %s22, 1
        %s280 = scalar_select %p279, %s22, 1
        %s281 = smul.addr %s280, 2
        %s282 = scalar_lea.vmem %s1, %s281
      $region28: #{align_scorer_forward.1} parent=23 // pred_fallthru
        _
      // Predicated region
      $region29: #{align_scorer_forward.1} parent=23 // pred_check
        %p283 = pneg %p73
      $region30: #{align_scorer_forward.1} parent=23 // pred_check_branch
        %285 = sbr.rel (%p283) target = $region32
      $region31: #{align_scorer_forward.1} parent=23 // pred_region
        %p286 = scmp.lt.s32.totalorder %s23, 1
        %s287 = scalar_select %p286, %s23, 1
        %s288 = smul.addr %s287, 192
        %s289 = smul.addr %s288, 4
        %s290 = scalar_lea.vmem %s2, %s289
      $region32: #{align_scorer_forward.1} parent=23 // pred_fallthru
        _
      // Predicated region
      $region33: #{align_scorer_forward.1} parent=23 // pred_check
        %p291 = pneg %p99
      $region34: #{align_scorer_forward.1} parent=23 // pred_check_branch
        %293 = sbr.rel (%p291) target = $region36
      $region35: #{align_scorer_forward.1} parent=23 // pred_region
        %p294 = scmp.lt.s32.totalorder %s23, 1
        %s295 = scalar_select %p294, %s23, 1
        %s296 = smul.addr %s295, 64
        %s297 = smul.addr %s296, 4
        %s298 = scalar_lea.vmem %s3, %s297
      $region36: #{align_scorer_forward.1} parent=23 // pred_fallthru
        _
      // Predicated region
      $region37: #{align_scorer_forward.1} parent=23 // pred_check
        %p299 = pneg %p125
      $region38: #{align_scorer_forward.1} parent=23 // pred_check_branch
        %301 = sbr.rel (%p299) target = $region40
      $region39: #{align_scorer_forward.1} parent=23 // pred_region
        %p302 = scmp.lt.s32.totalorder %s23, 1
        %s303 = scalar_select %p302, %s23, 1
        %s304 = smul.addr %s303, 128
        %s305 = smul.addr %s304, 4
        %s306 = scalar_lea.vmem %s4, %s305
      $region40: #{align_scorer_forward.1} parent=23 // pred_fallthru
        _
      // Predicated region
      $region41: #{align_scorer_forward.1} parent=23 // pred_check
        %p307 = pneg %p151
      $region42: #{align_scorer_forward.1} parent=23 // pred_check_branch
        %309 = sbr.rel (%p307) target = $region44
      $region43: #{align_scorer_forward.1} parent=23 // pred_region
        %p310 = scmp.lt.s32.totalorder %s23, 1
        %s311 = scalar_select %p310, %s23, 1
        %s312 = smul.addr %s311, 128
        %s313 = smul.addr %s312, 4
        %s314 = scalar_lea.vmem %s5, %s313
      $region44: #{align_scorer_forward.1} parent=23 // pred_fallthru
        _
      // Predicated region
      $region45: #{align_scorer_forward.1} parent=23 // pred_check
        %p315 = pneg %p177
      $region46: #{align_scorer_forward.1} parent=23 // pred_check_branch
        %317 = sbr.rel (%p315) target = $region48
      $region47: #{align_scorer_forward.1} parent=23 // pred_region
        %p318 = scmp.lt.s32.totalorder %s23, 1
        %s319 = scalar_select %p318, %s23, 1
        %s320 = smul.addr %s319, 6
        %s321 = smul.addr %s320, 8
        %s322 = scalar_lea.vmem %s6, %s321
      $region48: #{align_scorer_forward.1} parent=23 // pred_fallthru
        _
    $region24: #{align_scorer_forward.1} parent=5 // pred_fallthru
      _
    %p323 = scmp.le.s32.totalorder 1, %s15
    %p324 = scmp.lt.s32.totalorder %s15, 5
    %p325 = pnand %p323, %p324
    %p326 = pneg %p325
    // Predicated region
    $region49: #{align_scorer_forward.1} parent=5 // pred_check
      _
    $region50: #{align_scorer_forward.1} parent=5 // pred_check_branch
      %328 = sbr.rel (%p325) target = $region52
    $region51: #{align_scorer_forward.1} parent=5 // pred_region
      %s329 = ssub.s32 %s15, 1
      %p330 = scmp.lt.s32.totalorder %s24, 1
      %s331 = scalar_select %p330, %s24, 1
      %s332 = smul.addr %s331, 2
      %s333 = scalar_lea.vmem %s1, %s332
      %p334 = pneg %p53
      %p335 = pneg %p50
      %p336 = scmp.lt.s32.totalorder %s25, 1
      %s337 = scalar_select %p336, %s25, 1
      %s338 = smul.addr %s337, 192
      %s339 = smul.addr %s338, 4
      %s340 = scalar_lea.vmem %s2, %s339
      %p341 = pneg %p79
      %p342 = pneg %p76
      %p343 = scmp.lt.s32.totalorder %s25, 1
      %s344 = scalar_select %p343, %s25, 1
      %s345 = smul.addr %s344, 64
      %s346 = smul.addr %s345, 4
      %s347 = scalar_lea.vmem %s3, %s346
      %p348 = pneg %p105
      %p349 = pneg %p102
      %p350 = scmp.lt.s32.totalorder %s25, 1
      %s351 = scalar_select %p350, %s25, 1
      %s352 = smul.addr %s351, 128
      %s353 = smul.addr %s352, 4
      %s354 = scalar_lea.vmem %s4, %s353
      %p355 = pneg %p131
      %p356 = pneg %p128
      %p357 = scmp.lt.s32.totalorder %s25, 1
      %s358 = scalar_select %p357, %s25, 1
      %s359 = smul.addr %s358, 128
      %s360 = smul.addr %s359, 4
      %s361 = scalar_lea.vmem %s5, %s360
      %p362 = pneg %p157
      %p363 = pneg %p154
      %p364 = scmp.lt.s32.totalorder %s25, 1
      %s365 = scalar_select %p364, %s25, 1
      %s366 = smul.addr %s365, 6
      %s367 = smul.addr %s366, 8
      %s368 = scalar_lea.vmem %s6, %s367
      %p369 = pneg %p183
      %p370 = pneg %p180
      %p371 = pneg %p204
      %p372 = pneg %p201
      %p373 = pneg %p225
      %p374 = pneg %p222
      %p375 = pneg %p251
      %p376 = pneg %p248
      %p377 = scmp.lt.s32.totalorder %s24, 1
      %s378 = scalar_select %p377, %s24, 1
      %s379 = smul.addr %s378, 2
      %s380 = scalar_lea.vmem %s9, %s379
      %p381 = scmp.lt.s32.totalorder %s24, 1
      %s382 = scalar_select %p381, %s24, 1
      %s383 = smul.addr %s382, 2
      %s384 = scalar_lea.vmem %s1, %s383
      %p385 = scmp.lt.s32.totalorder %s25, 1
      %s386 = scalar_select %p385, %s25, 1
      %s387 = smul.addr %s386, 192
      %s388 = smul.addr %s387, 4
      %s389 = scalar_lea.vmem %s2, %s388
      %p390 = scmp.lt.s32.totalorder %s25, 1
      %s391 = scalar_select %p390, %s25, 1
      %s392 = smul.addr %s391, 64
      %s393 = smul.addr %s392, 4
      %s394 = scalar_lea.vmem %s3, %s393
      %p395 = scmp.lt.s32.totalorder %s25, 1
      %s396 = scalar_select %p395, %s25, 1
      %s397 = smul.addr %s396, 128
      %s398 = smul.addr %s397, 4
      %s399 = scalar_lea.vmem %s4, %s398
      %p400 = scmp.lt.s32.totalorder %s25, 1
      %s401 = scalar_select %p400, %s25, 1
      %s402 = smul.addr %s401, 128
      %s403 = smul.addr %s402, 4
      %s404 = scalar_lea.vmem %s5, %s403
      %p405 = scmp.lt.s32.totalorder %s25, 1
      %s406 = scalar_select %p405, %s25, 1
      %s407 = smul.addr %s406, 6
      %s408 = smul.addr %s407, 8
      %s409 = scalar_lea.vmem %s6, %s408
      %p410 = scmp.lt.s32.totalorder %s24, 1
      %s411 = scalar_select %p410, %s24, 1
      %s412 = smul.addr %s411, 2
      %s413 = scalar_lea.vmem %s9, %s412
      %p415 = scmp.eq.s32.totalorder %s25, 0
      // Predicated region
      $region53: #{align_scorer_forward.1} parent=51 // pred_check
        %p416 = pneg %p415
      $region54: #{align_scorer_forward.1} parent=51 // pred_check_branch
        %418 = sbr.rel (%p416) target = $region56
      $region55: #{align_scorer_forward.1} parent=51 // pred_region
        %s419 = smul.u32 %s24, 32
        %s420 = smul.addr %s419, 8
        %s421 = scalar_lea.vmem %s0, %s420
        // Predicated region
        $region57: #{align_scorer_forward.1} parent=55 // pred_check
          _
        $region58: #{align_scorer_forward.1} parent=55 // pred_check_branch
          %423 = sbr.rel (0) target = $region60
        $region59: #{align_scorer_forward.1} parent=55 // pred_region
          loop: start=0, step=1, limit=1
          $region61: #{align_scorer_forward.1} parent=59 // loop_pre_header
            _
          $region62: #{align_scorer_forward.1} parent=59 // loop_header
            %s425 = sphi 0, %s429
            %p426 = scmp.ge.s32.totalorder %s425, 1
            %s430 = sphi %s421, %s421
            %s431 = sphi [#allocation2], [#allocation2]
          $region63: #{align_scorer_forward.1} parent=59 // loop_header_branch
            %428 = sbr.rel (%p426) target = $region67
          $region64: #{align_scorer_forward.1} parent=59 // loop_body
            %v432 = vld [vmem:[%s430] sm:$0xff]
            %433 = vst [vmem:[%s431] sm:$0xff] %v432
            %v434 = vld [vmem:[%s430 + $0x8] sm:$0xff]
            %435 = vst [vmem:[%s431 + $0x8] sm:$0xff] %v434
            %v436 = vld [vmem:[%s430 + $0x10] sm:$0xff]
            %437 = vst [vmem:[%s431 + $0x10] sm:$0xff] %v436
            %v438 = vld [vmem:[%s430 + $0x18] sm:$0xff]
            %439 = vst [vmem:[%s431 + $0x18] sm:$0xff] %v438
            %v440 = vld [vmem:[%s430 + $0x20] sm:$0xff]
            %441 = vst [vmem:[%s431 + $0x20] sm:$0xff] %v440
            %v442 = vld [vmem:[%s430 + $0x28] sm:$0xff]
            %443 = vst [vmem:[%s431 + $0x28] sm:$0xff] %v442
            %v444 = vld [vmem:[%s430 + $0x30] sm:$0xff]
            %445 = vst [vmem:[%s431 + $0x30] sm:$0xff] %v444
            %v446 = vld [vmem:[%s430 + $0x38] sm:$0xff]
            %447 = vst [vmem:[%s431 + $0x38] sm:$0xff] %v446
            %v448 = vld [vmem:[%s430 + $0x40] sm:$0xff]
            %449 = vst [vmem:[%s431 + $0x40] sm:$0xff] %v448
            %v450 = vld [vmem:[%s430 + $0x48] sm:$0xff]
            %451 = vst [vmem:[%s431 + $0x48] sm:$0xff] %v450
            %v452 = vld [vmem:[%s430 + $0x50] sm:$0xff]
            %453 = vst [vmem:[%s431 + $0x50] sm:$0xff] %v452
            %v454 = vld [vmem:[%s430 + $0x58] sm:$0xff]
            %455 = vst [vmem:[%s431 + $0x58] sm:$0xff] %v454
            %v456 = vld [vmem:[%s430 + $0x60] sm:$0xff]
            %457 = vst [vmem:[%s431 + $0x60] sm:$0xff] %v456
            %v458 = vld [vmem:[%s430 + $0x68] sm:$0xff]
            %459 = vst [vmem:[%s431 + $0x68] sm:$0xff] %v458
            %v460 = vld [vmem:[%s430 + $0x70] sm:$0xff]
            %461 = vst [vmem:[%s431 + $0x70] sm:$0xff] %v460
            %v462 = vld [vmem:[%s430 + $0x78] sm:$0xff]
            %463 = vst [vmem:[%s431 + $0x78] sm:$0xff] %v462
            %v464 = vld [vmem:[%s430 + $0x80] sm:$0xff]
            %465 = vst [vmem:[%s431 + $0x80] sm:$0xff] %v464
            %v466 = vld [vmem:[%s430 + $0x88] sm:$0xff]
            %467 = vst [vmem:[%s431 + $0x88] sm:$0xff] %v466
            %v468 = vld [vmem:[%s430 + $0x90] sm:$0xff]
            %469 = vst [vmem:[%s431 + $0x90] sm:$0xff] %v468
            %v470 = vld [vmem:[%s430 + $0x98] sm:$0xff]
            %471 = vst [vmem:[%s431 + $0x98] sm:$0xff] %v470
            %v472 = vld [vmem:[%s430 + $0xa0] sm:$0xff]
            %473 = vst [vmem:[%s431 + $0xa0] sm:$0xff] %v472
            %v474 = vld [vmem:[%s430 + $0xa8] sm:$0xff]
            %475 = vst [vmem:[%s431 + $0xa8] sm:$0xff] %v474
            %v476 = vld [vmem:[%s430 + $0xb0] sm:$0xff]
            %477 = vst [vmem:[%s431 + $0xb0] sm:$0xff] %v476
            %v478 = vld [vmem:[%s430 + $0xb8] sm:$0xff]
            %479 = vst [vmem:[%s431 + $0xb8] sm:$0xff] %v478
            %v480 = vld [vmem:[%s430 + $0xc0] sm:$0xff]
            %481 = vst [vmem:[%s431 + $0xc0] sm:$0xff] %v480
            %v482 = vld [vmem:[%s430 + $0xc8] sm:$0xff]
            %483 = vst [vmem:[%s431 + $0xc8] sm:$0xff] %v482
            %v484 = vld [vmem:[%s430 + $0xd0] sm:$0xff]
            %485 = vst [vmem:[%s431 + $0xd0] sm:$0xff] %v484
            %v486 = vld [vmem:[%s430 + $0xd8] sm:$0xff]
            %487 = vst [vmem:[%s431 + $0xd8] sm:$0xff] %v486
            %v488 = vld [vmem:[%s430 + $0xe0] sm:$0xff]
            %489 = vst [vmem:[%s431 + $0xe0] sm:$0xff] %v488
            %v490 = vld [vmem:[%s430 + $0xe8] sm:$0xff]
            %491 = vst [vmem:[%s431 + $0xe8] sm:$0xff] %v490
            %v492 = vld [vmem:[%s430 + $0xf0] sm:$0xff]
            %493 = vst [vmem:[%s431 + $0xf0] sm:$0xff] %v492
            %v494 = vld [vmem:[%s430 + $0xf8] sm:$0xff]
            %495 = vst [vmem:[%s431 + $0xf8] sm:$0xff] %v494
          $region65: #{align_scorer_forward.1} parent=59 // loop_footer
            %s429 = sadd.s32 1, %s425
          $region66: #{align_scorer_forward.1} parent=59 // loop_footer_branch
            %424 = sbr.rel target = $region62
          $region67: #{align_scorer_forward.1} parent=59 // loop_exit
            _
        $region60: #{align_scorer_forward.1} parent=55 // pred_fallthru
          _
        // Predicated region
        $region68: #{align_scorer_forward.1} parent=55 // pred_check
          _
        $region69: #{align_scorer_forward.1} parent=55 // pred_check_branch
          %497 = sbr.rel target = $region71
        $region70: #{align_scorer_forward.1} parent=55 // pred_region
          _
        $region71: #{align_scorer_forward.1} parent=55 // pred_fallthru
          _
        // Predicated region
        $region72: #{align_scorer_forward.1} parent=55 // pred_check
          _
        $region73: #{align_scorer_forward.1} parent=55 // pred_check_branch
          %500 = sbr.rel (0) target = $region75
        $region74: #{align_scorer_forward.1} parent=55 // pred_region
          %501 = vsyncadd [#allocation3], 4096
        $region75: #{align_scorer_forward.1} parent=55 // pred_fallthru
          _
        %s502 = smul.u32 8, 16
        %s503 = smul.u32 %s502, 2
        %s504 = sshll.u32 %s503, 4
        %505 = dma.done [#allocation3], %s504
      $region56: #{align_scorer_forward.1} parent=51 // pred_fallthru
        _
      %v506 = vld [vmem:[#allocation2] sm:$0xff]
      %v507 = vld [vmem:[#allocation2 + $0x8] sm:$0xff]
      %v508 = vld [vmem:[#allocation2 + $0x10] sm:$0xff]
      %v509 = vld [vmem:[#allocation2 + $0x18] sm:$0xff]
      %v510 = vld [vmem:[#allocation2 + $0x20] sm:$0xff]
      %v511 = vld [vmem:[#allocation2 + $0x28] sm:$0xff]
      %v512 = vld [vmem:[#allocation2 + $0x30] sm:$0xff]
      %v513 = vld [vmem:[#allocation2 + $0x38] sm:$0xff]
      %v514 = vld [vmem:[#allocation2 + $0x40] sm:$0xff]
      %v515 = vld [vmem:[#allocation2 + $0x48] sm:$0xff]
      %v516 = vld [vmem:[#allocation2 + $0x50] sm:$0xff]
      %v517 = vld [vmem:[#allocation2 + $0x58] sm:$0xff]
      %v518 = vld [vmem:[#allocation2 + $0x60] sm:$0xff]
      %v519 = vld [vmem:[#allocation2 + $0x68] sm:$0xff]
      %v520 = vld [vmem:[#allocation2 + $0x70] sm:$0xff]
      %v521 = vld [vmem:[#allocation2 + $0x78] sm:$0xff]
      %v522 = vld [vmem:[#allocation2 + $0x80] sm:$0xff]
      %v523 = vld [vmem:[#allocation2 + $0x88] sm:$0xff]
      %v524 = vld [vmem:[#allocation2 + $0x90] sm:$0xff]
      %v525 = vld [vmem:[#allocation2 + $0x98] sm:$0xff]
      %v526 = vld [vmem:[#allocation2 + $0xa0] sm:$0xff]
      %v527 = vld [vmem:[#allocation2 + $0xa8] sm:$0xff]
      %v528 = vld [vmem:[#allocation2 + $0xb0] sm:$0xff]
      %v529 = vld [vmem:[#allocation2 + $0xb8] sm:$0xff]
      %v530 = vld [vmem:[#allocation2 + $0xc0] sm:$0xff]
      %v531 = vld [vmem:[#allocation2 + $0xc8] sm:$0xff]
      %v532 = vld [vmem:[#allocation2 + $0xd0] sm:$0xff]
      %v533 = vld [vmem:[#allocation2 + $0xd8] sm:$0xff]
      %v534 = vld [vmem:[#allocation2 + $0xe0] sm:$0xff]
      %v535 = vld [vmem:[#allocation2 + $0xe8] sm:$0xff]
      %v536 = vld [vmem:[#allocation2 + $0xf0] sm:$0xff]
      %v537 = vld [vmem:[#allocation2 + $0xf8] sm:$0xff]
      %v538 = vld [vmem:[%s409] sm:$0xff]
      %v539 = vld [vmem:[%s409 + $0x8] sm:$0xff]
      %v540 = vld [vmem:[%s409 + $0x10] sm:$0xff]
      %v541 = vld [vmem:[%s409 + $0x18] sm:$0xff]
      %v542 = vld [vmem:[%s409 + $0x20] sm:$0xff]
      %v543 = vld [vmem:[%s409 + $0x28] sm:$0xff]
      %v544 = vpack.c.bf16 %v508, %v506
      %v545 = vpack.c.bf16 %v509, %v507
      %v546 = vpack.c.bf16 %v512, %v510
      %v547 = vpack.c.bf16 %v513, %v511
      %v548 = vpack.c.bf16 %v516, %v514
      %v549 = vpack.c.bf16 %v517, %v515
      %v550 = vpack.c.bf16 %v520, %v518
      %v551 = vpack.c.bf16 %v521, %v519
      %v552 = vpack.c.bf16 %v524, %v522
      %v553 = vpack.c.bf16 %v525, %v523
      %v554 = vpack.c.bf16 %v528, %v526
      %v555 = vpack.c.bf16 %v529, %v527
      %v556 = vpack.c.bf16 %v532, %v530
      %v557 = vpack.c.bf16 %v533, %v531
      %v558 = vpack.c.bf16 %v536, %v534
      %v559 = vpack.c.bf16 %v537, %v535
      %v560 = vld [vmem:[%s389] sm:$0xff]
      %v561 = vld [vmem:[%s389 + $0x8] sm:$0xff]
      %v562 = vld [vmem:[%s389 + $0x10] sm:$0xff]
      %v563 = vld [vmem:[%s389 + $0x18] sm:$0xff]
      %v564 = vld [vmem:[%s389 + $0x20] sm:$0xff]
      %v565 = vld [vmem:[%s389 + $0x28] sm:$0xff]
      %v566 = vld [vmem:[%s389 + $0x30] sm:$0xff]
      %v567 = vld [vmem:[%s389 + $0x38] sm:$0xff]
      %v568 = vld [vmem:[%s389 + $0x40] sm:$0xff]
      %v569 = vld [vmem:[%s389 + $0x48] sm:$0xff]
      %v570 = vld [vmem:[%s389 + $0x50] sm:$0xff]
      %v571 = vld [vmem:[%s389 + $0x58] sm:$0xff]
      %v572 = vld [vmem:[%s389 + $0x60] sm:$0xff]
      %v573 = vld [vmem:[%s389 + $0x68] sm:$0xff]
      %v574 = vld [vmem:[%s389 + $0x70] sm:$0xff]
      %v575 = vld [vmem:[%s389 + $0x78] sm:$0xff]
      %v576 = vld [vmem:[%s389 + $0x80] sm:$0xff]
      %v577 = vld [vmem:[%s389 + $0x88] sm:$0xff]
      %v578 = vld [vmem:[%s389 + $0x90] sm:$0xff]
      %v579 = vld [vmem:[%s389 + $0x98] sm:$0xff]
      %v580 = vld [vmem:[%s389 + $0xa0] sm:$0xff]
      %v581 = vld [vmem:[%s389 + $0xa8] sm:$0xff]
      %v582 = vld [vmem:[%s389 + $0xb0] sm:$0xff]
      %v583 = vld [vmem:[%s389 + $0xb8] sm:$0xff]
      %v584 = vld [vmem:[%s389 + $0xc0] sm:$0xff]
      %v585 = vld [vmem:[%s389 + $0xc8] sm:$0xff]
      %v586 = vld [vmem:[%s389 + $0xd0] sm:$0xff]
      %v587 = vld [vmem:[%s389 + $0xd8] sm:$0xff]
      %v588 = vld [vmem:[%s389 + $0xe0] sm:$0xff]
      %v589 = vld [vmem:[%s389 + $0xe8] sm:$0xff]
      %v590 = vld [vmem:[%s389 + $0xf0] sm:$0xff]
      %v591 = vld [vmem:[%s389 + $0xf8] sm:$0xff]
      %v592 = vld [vmem:[%s389 + $0x100] sm:$0xff]
      %v593 = vld [vmem:[%s389 + $0x108] sm:$0xff]
      %v594 = vld [vmem:[%s389 + $0x110] sm:$0xff]
      %v595 = vld [vmem:[%s389 + $0x118] sm:$0xff]
      %v596 = vld [vmem:[%s389 + $0x120] sm:$0xff]
      %v597 = vld [vmem:[%s389 + $0x128] sm:$0xff]
      %v598 = vld [vmem:[%s389 + $0x130] sm:$0xff]
      %v599 = vld [vmem:[%s389 + $0x138] sm:$0xff]
      %v600 = vld [vmem:[%s389 + $0x140] sm:$0xff]
      %v601 = vld [vmem:[%s389 + $0x148] sm:$0xff]
      %v602 = vld [vmem:[%s389 + $0x150] sm:$0xff]
      %v603 = vld [vmem:[%s389 + $0x158] sm:$0xff]
      %v604 = vld [vmem:[%s389 + $0x160] sm:$0xff]
      %v605 = vld [vmem:[%s389 + $0x168] sm:$0xff]
      %v606 = vld [vmem:[%s389 + $0x170] sm:$0xff]
      %v607 = vld [vmem:[%s389 + $0x178] sm:$0xff]
      %v608 = vld [vmem:[%s389 + $0x180] sm:$0xff]
      %v609 = vld [vmem:[%s389 + $0x188] sm:$0xff]
      %v610 = vld [vmem:[%s389 + $0x190] sm:$0xff]
      %v611 = vld [vmem:[%s389 + $0x198] sm:$0xff]
      %v612 = vld [vmem:[%s389 + $0x1a0] sm:$0xff]
      %v613 = vld [vmem:[%s389 + $0x1a8] sm:$0xff]
      %v614 = vld [vmem:[%s389 + $0x1b0] sm:$0xff]
      %v615 = vld [vmem:[%s389 + $0x1b8] sm:$0xff]
      %v616 = vld [vmem:[%s389 + $0x1c0] sm:$0xff]
      %v617 = vld [vmem:[%s389 + $0x1c8] sm:$0xff]
      %v618 = vld [vmem:[%s389 + $0x1d0] sm:$0xff]
      %v619 = vld [vmem:[%s389 + $0x1d8] sm:$0xff]
      %v620 = vld [vmem:[%s389 + $0x1e0] sm:$0xff]
      %v621 = vld [vmem:[%s389 + $0x1e8] sm:$0xff]
      %v622 = vld [vmem:[%s389 + $0x1f0] sm:$0xff]
      %v623 = vld [vmem:[%s389 + $0x1f8] sm:$0xff]
      %v624 = vld [vmem:[%s389 + $0x200] sm:$0xff]
      %v625 = vld [vmem:[%s389 + $0x208] sm:$0xff]
      %v626 = vld [vmem:[%s389 + $0x210] sm:$0xff]
      %v627 = vld [vmem:[%s389 + $0x218] sm:$0xff]
      %v628 = vld [vmem:[%s389 + $0x220] sm:$0xff]
      %v629 = vld [vmem:[%s389 + $0x228] sm:$0xff]
      %v630 = vld [vmem:[%s389 + $0x230] sm:$0xff]
      %v631 = vld [vmem:[%s389 + $0x238] sm:$0xff]
      %v632 = vld [vmem:[%s389 + $0x240] sm:$0xff]
      %v633 = vld [vmem:[%s389 + $0x248] sm:$0xff]
      %v634 = vld [vmem:[%s389 + $0x250] sm:$0xff]
      %v635 = vld [vmem:[%s389 + $0x258] sm:$0xff]
      %v636 = vld [vmem:[%s389 + $0x260] sm:$0xff]
      %v637 = vld [vmem:[%s389 + $0x268] sm:$0xff]
      %v638 = vld [vmem:[%s389 + $0x270] sm:$0xff]
      %v639 = vld [vmem:[%s389 + $0x278] sm:$0xff]
      %v640 = vld [vmem:[%s389 + $0x280] sm:$0xff]
      %v641 = vld [vmem:[%s389 + $0x288] sm:$0xff]
      %v642 = vld [vmem:[%s389 + $0x290] sm:$0xff]
      %v643 = vld [vmem:[%s389 + $0x298] sm:$0xff]
      %v644 = vld [vmem:[%s389 + $0x2a0] sm:$0xff]
      %v645 = vld [vmem:[%s389 + $0x2a8] sm:$0xff]
      %v646 = vld [vmem:[%s389 + $0x2b0] sm:$0xff]
      %v647 = vld [vmem:[%s389 + $0x2b8] sm:$0xff]
      %v648 = vld [vmem:[%s389 + $0x2c0] sm:$0xff]
      %v649 = vld [vmem:[%s389 + $0x2c8] sm:$0xff]
      %v650 = vld [vmem:[%s389 + $0x2d0] sm:$0xff]
      %v651 = vld [vmem:[%s389 + $0x2d8] sm:$0xff]
      %v652 = vld [vmem:[%s389 + $0x2e0] sm:$0xff]
      %v653 = vld [vmem:[%s389 + $0x2e8] sm:$0xff]
      %v654 = vld [vmem:[%s389 + $0x2f0] sm:$0xff]
      %v655 = vld [vmem:[%s389 + $0x2f8] sm:$0xff]
      %v656 = vperm.slane %v538, 0
      %v657 = vperm.slane %v539, 0
      %v658 = vperm.slane %v540, 0
      %v659 = vperm.slane %v541, 0
      %v660 = vperm.slane %v542, 0
      %v661 = vperm.slane %v543, 0
      %v758 = vunpack.c.l.b16 %v560
      %v759 = vunpack.c.h.b16 %v560
      %v760 = vunpack.c.l.b16 %v561
      %v761 = vunpack.c.h.b16 %v561
      %v762 = vunpack.c.l.b16 %v562
      %v763 = vunpack.c.h.b16 %v562
      %v764 = vunpack.c.l.b16 %v563
      %v765 = vunpack.c.h.b16 %v563
      %v766 = vunpack.c.l.b16 %v564
      %v767 = vunpack.c.h.b16 %v564
      %v768 = vunpack.c.l.b16 %v565
      %v769 = vunpack.c.h.b16 %v565
      %v770 = vunpack.c.l.b16 %v566
      %v771 = vunpack.c.h.b16 %v566
      %v772 = vunpack.c.l.b16 %v567
      %v773 = vunpack.c.h.b16 %v567
      %v774 = vunpack.c.l.b16 %v568
      %v775 = vunpack.c.h.b16 %v568
      %v776 = vunpack.c.l.b16 %v569
      %v777 = vunpack.c.h.b16 %v569
      %v778 = vunpack.c.l.b16 %v570
      %v779 = vunpack.c.h.b16 %v570
      %v780 = vunpack.c.l.b16 %v571
      %v781 = vunpack.c.h.b16 %v571
      %v782 = vunpack.c.l.b16 %v572
      %v783 = vunpack.c.h.b16 %v572
      %v784 = vunpack.c.l.b16 %v573
      %v785 = vunpack.c.h.b16 %v573
      %v786 = vunpack.c.l.b16 %v574
      %v787 = vunpack.c.h.b16 %v574
      %v788 = vunpack.c.l.b16 %v575
      %v789 = vunpack.c.h.b16 %v575
      %v790 = vunpack.c.l.b16 %v576
      %v791 = vunpack.c.h.b16 %v576
      %v792 = vunpack.c.l.b16 %v577
      %v793 = vunpack.c.h.b16 %v577
      %v794 = vunpack.c.l.b16 %v578
      %v795 = vunpack.c.h.b16 %v578
      %v796 = vunpack.c.l.b16 %v579
      %v797 = vunpack.c.h.b16 %v579
      %v798 = vunpack.c.l.b16 %v580
      %v799 = vunpack.c.h.b16 %v580
      %v800 = vunpack.c.l.b16 %v581
      %v801 = vunpack.c.h.b16 %v581
      %v802 = vunpack.c.l.b16 %v582
      %v803 = vunpack.c.h.b16 %v582
      %v804 = vunpack.c.l.b16 %v583
      %v805 = vunpack.c.h.b16 %v583
      %v806 = vunpack.c.l.b16 %v584
      %v807 = vunpack.c.h.b16 %v584
      %v808 = vunpack.c.l.b16 %v585
      %v809 = vunpack.c.h.b16 %v585
      %v810 = vunpack.c.l.b16 %v586
      %v811 = vunpack.c.h.b16 %v586
      %v812 = vunpack.c.l.b16 %v587
      %v813 = vunpack.c.h.b16 %v587
      %v814 = vunpack.c.l.b16 %v588
      %v815 = vunpack.c.h.b16 %v588
      %v816 = vunpack.c.l.b16 %v589
      %v817 = vunpack.c.h.b16 %v589
      %v818 = vunpack.c.l.b16 %v590
      %v819 = vunpack.c.h.b16 %v590
      %v820 = vunpack.c.l.b16 %v591
      %v821 = vunpack.c.h.b16 %v591
      %v822 = vunpack.c.l.b16 %v592
      %v823 = vunpack.c.h.b16 %v592
      %v824 = vunpack.c.l.b16 %v593
      %v825 = vunpack.c.h.b16 %v593
      %v826 = vunpack.c.l.b16 %v594
      %v827 = vunpack.c.h.b16 %v594
      %v828 = vunpack.c.l.b16 %v595
      %v829 = vunpack.c.h.b16 %v595
      %v830 = vunpack.c.l.b16 %v596
      %v831 = vunpack.c.h.b16 %v596
      %v832 = vunpack.c.l.b16 %v597
      %v833 = vunpack.c.h.b16 %v597
      %v834 = vunpack.c.l.b16 %v598
      %v835 = vunpack.c.h.b16 %v598
      %v836 = vunpack.c.l.b16 %v599
      %v837 = vunpack.c.h.b16 %v599
      %v838 = vunpack.c.l.b16 %v600
      %v839 = vunpack.c.h.b16 %v600
      %v840 = vunpack.c.l.b16 %v601
      %v841 = vunpack.c.h.b16 %v601
      %v842 = vunpack.c.l.b16 %v602
      %v843 = vunpack.c.h.b16 %v602
      %v844 = vunpack.c.l.b16 %v603
      %v845 = vunpack.c.h.b16 %v603
      %v846 = vunpack.c.l.b16 %v604
      %v847 = vunpack.c.h.b16 %v604
      %v848 = vunpack.c.l.b16 %v605
      %v849 = vunpack.c.h.b16 %v605
      %v850 = vunpack.c.l.b16 %v606
      %v851 = vunpack.c.h.b16 %v606
      %v852 = vunpack.c.l.b16 %v607
      %v853 = vunpack.c.h.b16 %v607
      %v854 = vunpack.c.l.b16 %v608
      %v855 = vunpack.c.h.b16 %v608
      %v856 = vunpack.c.l.b16 %v609
      %v857 = vunpack.c.h.b16 %v609
      %v858 = vunpack.c.l.b16 %v610
      %v859 = vunpack.c.h.b16 %v610
      %v860 = vunpack.c.l.b16 %v611
      %v861 = vunpack.c.h.b16 %v611
      %v862 = vunpack.c.l.b16 %v612
      %v863 = vunpack.c.h.b16 %v612
      %v864 = vunpack.c.l.b16 %v613
      %v865 = vunpack.c.h.b16 %v613
      %v866 = vunpack.c.l.b16 %v614
      %v867 = vunpack.c.h.b16 %v614
      %v868 = vunpack.c.l.b16 %v615
      %v869 = vunpack.c.h.b16 %v615
      %v870 = vunpack.c.l.b16 %v616
      %v871 = vunpack.c.h.b16 %v616
      %v872 = vunpack.c.l.b16 %v617
      %v873 = vunpack.c.h.b16 %v617
      %v874 = vunpack.c.l.b16 %v618
      %v875 = vunpack.c.h.b16 %v618
      %v876 = vunpack.c.l.b16 %v619
      %v877 = vunpack.c.h.b16 %v619
      %v878 = vunpack.c.l.b16 %v620
      %v879 = vunpack.c.h.b16 %v620
      %v880 = vunpack.c.l.b16 %v621
      %v881 = vunpack.c.h.b16 %v621
      %v882 = vunpack.c.l.b16 %v622
      %v883 = vunpack.c.h.b16 %v622
      %v884 = vunpack.c.l.b16 %v623
      %v885 = vunpack.c.h.b16 %v623
      %v886 = vunpack.c.l.b16 %v624
      %v887 = vunpack.c.h.b16 %v624
      %v888 = vunpack.c.l.b16 %v625
      %v889 = vunpack.c.h.b16 %v625
      %v890 = vunpack.c.l.b16 %v626
      %v891 = vunpack.c.h.b16 %v626
      %v892 = vunpack.c.l.b16 %v627
      %v893 = vunpack.c.h.b16 %v627
      %v894 = vunpack.c.l.b16 %v628
      %v895 = vunpack.c.h.b16 %v628
      %v896 = vunpack.c.l.b16 %v629
      %v897 = vunpack.c.h.b16 %v629
      %v898 = vunpack.c.l.b16 %v630
      %v899 = vunpack.c.h.b16 %v630
      %v900 = vunpack.c.l.b16 %v631
      %v901 = vunpack.c.h.b16 %v631
      %v902 = vunpack.c.l.b16 %v632
      %v903 = vunpack.c.h.b16 %v632
      %v904 = vunpack.c.l.b16 %v633
      %v905 = vunpack.c.h.b16 %v633
      %v906 = vunpack.c.l.b16 %v634
      %v907 = vunpack.c.h.b16 %v634
      %v908 = vunpack.c.l.b16 %v635
      %v909 = vunpack.c.h.b16 %v635
      %v910 = vunpack.c.l.b16 %v636
      %v911 = vunpack.c.h.b16 %v636
      %v912 = vunpack.c.l.b16 %v637
      %v913 = vunpack.c.h.b16 %v637
      %v914 = vunpack.c.l.b16 %v638
      %v915 = vunpack.c.h.b16 %v638
      %v916 = vunpack.c.l.b16 %v639
      %v917 = vunpack.c.h.b16 %v639
      %v918 = vunpack.c.l.b16 %v640
      %v919 = vunpack.c.h.b16 %v640
      %v920 = vunpack.c.l.b16 %v641
      %v921 = vunpack.c.h.b16 %v641
      %v922 = vunpack.c.l.b16 %v642
      %v923 = vunpack.c.h.b16 %v642
      %v924 = vunpack.c.l.b16 %v643
      %v925 = vunpack.c.h.b16 %v643
      %v926 = vunpack.c.l.b16 %v644
      %v927 = vunpack.c.h.b16 %v644
      %v928 = vunpack.c.l.b16 %v645
      %v929 = vunpack.c.h.b16 %v645
      %v930 = vunpack.c.l.b16 %v646
      %v931 = vunpack.c.h.b16 %v646
      %v932 = vunpack.c.l.b16 %v647
      %v933 = vunpack.c.h.b16 %v647
      %v934 = vunpack.c.l.b16 %v648
      %v935 = vunpack.c.h.b16 %v648
      %v936 = vunpack.c.l.b16 %v649
      %v937 = vunpack.c.h.b16 %v649
      %v938 = vunpack.c.l.b16 %v650
      %v939 = vunpack.c.h.b16 %v650
      %v940 = vunpack.c.l.b16 %v651
      %v941 = vunpack.c.h.b16 %v651
      %v942 = vunpack.c.l.b16 %v652
      %v943 = vunpack.c.h.b16 %v652
      %v944 = vunpack.c.l.b16 %v653
      %v945 = vunpack.c.h.b16 %v653
      %v946 = vunpack.c.l.b16 %v654
      %v947 = vunpack.c.h.b16 %v654
      %v948 = vunpack.c.l.b16 %v655
      %v949 = vunpack.c.h.b16 %v655
      %v950 = vpack.c.b16 %v764, %v758
      %v951 = vpack.c.b16 %v765, %v759
      %v952 = vpack.c.b16 %v766, %v760
      %v953 = vpack.c.b16 %v767, %v761
      %v954 = vpack.c.b16 %v768, %v762
      %v955 = vpack.c.b16 %v769, %v763
      %v956 = vpack.c.b16 %v776, %v770
      %v957 = vpack.c.b16 %v777, %v771
      %v958 = vpack.c.b16 %v778, %v772
      %v959 = vpack.c.b16 %v779, %v773
      %v960 = vpack.c.b16 %v780, %v774
      %v961 = vpack.c.b16 %v781, %v775
      %v962 = vpack.c.b16 %v788, %v782
      %v963 = vpack.c.b16 %v789, %v783
      %v964 = vpack.c.b16 %v790, %v784
      %v965 = vpack.c.b16 %v791, %v785
      %v966 = vpack.c.b16 %v792, %v786
      %v967 = vpack.c.b16 %v793, %v787
      %v968 = vpack.c.b16 %v800, %v794
      %v969 = vpack.c.b16 %v801, %v795
      %v970 = vpack.c.b16 %v802, %v796
      %v971 = vpack.c.b16 %v803, %v797
      %v972 = vpack.c.b16 %v804, %v798
      %v973 = vpack.c.b16 %v805, %v799
      %v974 = vpack.c.b16 %v812, %v806
      %v975 = vpack.c.b16 %v813, %v807
      %v976 = vpack.c.b16 %v814, %v808
      %v977 = vpack.c.b16 %v815, %v809
      %v978 = vpack.c.b16 %v816, %v810
      %v979 = vpack.c.b16 %v817, %v811
      %v980 = vpack.c.b16 %v824, %v818
      %v981 = vpack.c.b16 %v825, %v819
      %v982 = vpack.c.b16 %v826, %v820
      %v983 = vpack.c.b16 %v827, %v821
      %v984 = vpack.c.b16 %v828, %v822
      %v985 = vpack.c.b16 %v829, %v823
      %v986 = vpack.c.b16 %v836, %v830
      %v987 = vpack.c.b16 %v837, %v831
      %v988 = vpack.c.b16 %v838, %v832
      %v989 = vpack.c.b16 %v839, %v833
      %v990 = vpack.c.b16 %v840, %v834
      %v991 = vpack.c.b16 %v841, %v835
      %v992 = vpack.c.b16 %v848, %v842
      %v993 = vpack.c.b16 %v849, %v843
      %v994 = vpack.c.b16 %v850, %v844
      %v995 = vpack.c.b16 %v851, %v845
      %v996 = vpack.c.b16 %v852, %v846
      %v997 = vpack.c.b16 %v853, %v847
      %v998 = vpack.c.b16 %v860, %v854
      %v999 = vpack.c.b16 %v861, %v855
      %v1000 = vpack.c.b16 %v862, %v856
      %v1001 = vpack.c.b16 %v863, %v857
      %v1002 = vpack.c.b16 %v864, %v858
      %v1003 = vpack.c.b16 %v865, %v859
      %v1004 = vpack.c.b16 %v872, %v866
      %v1005 = vpack.c.b16 %v873, %v867
      %v1006 = vpack.c.b16 %v874, %v868
      %v1007 = vpack.c.b16 %v875, %v869
      %v1008 = vpack.c.b16 %v876, %v870
      %v1009 = vpack.c.b16 %v877, %v871
      %v1010 = vpack.c.b16 %v884, %v878
      %v1011 = vpack.c.b16 %v885, %v879
      %v1012 = vpack.c.b16 %v886, %v880
      %v1013 = vpack.c.b16 %v887, %v881
      %v1014 = vpack.c.b16 %v888, %v882
      %v1015 = vpack.c.b16 %v889, %v883
      %v1016 = vpack.c.b16 %v896, %v890
      %v1017 = vpack.c.b16 %v897, %v891
      %v1018 = vpack.c.b16 %v898, %v892
      %v1019 = vpack.c.b16 %v899, %v893
      %v1020 = vpack.c.b16 %v900, %v894
      %v1021 = vpack.c.b16 %v901, %v895
      %v1022 = vpack.c.b16 %v908, %v902
      %v1023 = vpack.c.b16 %v909, %v903
      %v1024 = vpack.c.b16 %v910, %v904
      %v1025 = vpack.c.b16 %v911, %v905
      %v1026 = vpack.c.b16 %v912, %v906
      %v1027 = vpack.c.b16 %v913, %v907
      %v1028 = vpack.c.b16 %v920, %v914
      %v1029 = vpack.c.b16 %v921, %v915
      %v1030 = vpack.c.b16 %v922, %v916
      %v1031 = vpack.c.b16 %v923, %v917
      %v1032 = vpack.c.b16 %v924, %v918
      %v1033 = vpack.c.b16 %v925, %v919
      %v1034 = vpack.c.b16 %v932, %v926
      %v1035 = vpack.c.b16 %v933, %v927
      %v1036 = vpack.c.b16 %v934, %v928
      %v1037 = vpack.c.b16 %v935, %v929
      %v1038 = vpack.c.b16 %v936, %v930
      %v1039 = vpack.c.b16 %v937, %v931
      %v1040 = vpack.c.b16 %v944, %v938
      %v1041 = vpack.c.b16 %v945, %v939
      %v1042 = vpack.c.b16 %v946, %v940
      %v1043 = vpack.c.b16 %v947, %v941
      %v1044 = vpack.c.b16 %v948, %v942
      %v1045 = vpack.c.b16 %v949, %v943
      %1142 = vmatpush.bf16.msra.mxu0 %v992
      %1143 = vmatpush.bf16.msra.mxu0 %v986
      %1144 = vmatpush.bf16.msra.mxu0 %v980
      %1145 = vmatpush.bf16.msra.mxu0 %v974
      %1146 = vmatpush.bf16.msra.mxu0 %v968
      %1147 = vmatpush.bf16.msra.mxu0 %v962
      %1148 = vmatpush.bf16.msra.mxu0 %v956
      %1149 = vmatpush.bf16.msra.mxu0 %v950
      %1150 = vmatmul.bf16.gmra.mxu0 %v544
      %v1151 = vpop.f32.mrf.mxu0
      %v1152 = vadd.f32 %v656, %v1151
      %v1153 = vpop.f32.mrf.mxu0
      %v1154 = vadd.f32 %v656, %v1153
      %1155 = vmatmul.bf16.gmra.mxu0 %v546
      %v1156 = vpop.f32.mrf.mxu0
      %v1157 = vadd.f32 %v656, %v1156
      %v1158 = vpop.f32.mrf.mxu0
      %v1159 = vadd.f32 %v656, %v1158
      %1160 = vmatmul.bf16.gmra.mxu0 %v548
      %v1161 = vpop.f32.mrf.mxu0
      %v1162 = vadd.f32 %v656, %v1161
      %v1163 = vpop.f32.mrf.mxu0
      %v1164 = vadd.f32 %v656, %v1163
      %1165 = vmatmul.bf16.gmra.mxu0 %v550
      %v1166 = vpop.f32.mrf.mxu0
      %v1167 = vadd.f32 %v656, %v1166
      %v1168 = vpop.f32.mrf.mxu0
      %v1169 = vadd.f32 %v656, %v1168
      %1170 = vmatmul.bf16.gmra.mxu0 %v552
      %v1171 = vpop.f32.mrf.mxu0
      %v1172 = vadd.f32 %v656, %v1171
      %v1173 = vpop.f32.mrf.mxu0
      %v1174 = vadd.f32 %v656, %v1173
      %1175 = vmatmul.bf16.gmra.mxu0 %v554
      %v1176 = vpop.f32.mrf.mxu0
      %v1177 = vadd.f32 %v656, %v1176
      %v1178 = vpop.f32.mrf.mxu0
      %v1179 = vadd.f32 %v656, %v1178
      %1180 = vmatmul.bf16.gmra.mxu0 %v556
      %v1181 = vpop.f32.mrf.mxu0
      %v1182 = vadd.f32 %v656, %v1181
      %v1183 = vpop.f32.mrf.mxu0
      %v1184 = vadd.f32 %v656, %v1183
      %1185 = vmatmul.bf16.gmra.mxu0 %v558
      %v1186 = vpop.f32.mrf.mxu0
      %v1187 = vadd.f32 %v656, %v1186
      %v1188 = vpop.f32.mrf.mxu0
      %v1189 = vadd.f32 %v656, %v1188
      %1190 = vdwg.mxu0
      %1191 = vmatpush.bf16.msra.mxu0 %v1040
      %1192 = vmatpush.bf16.msra.mxu0 %v1034
      %1193 = vmatpush.bf16.msra.mxu0 %v1028
      %1194 = vmatpush.bf16.msra.mxu0 %v1022
      %1195 = vmatpush.bf16.msra.mxu0 %v1016
      %1196 = vmatpush.bf16.msra.mxu0 %v1010
      %1197 = vmatpush.bf16.msra.mxu0 %v1004
      %1198 = vmatpush.bf16.msra.mxu0 %v998
      %1199 = vmatmul.bf16.gmra.mxu0 %v545
      %v1200 = vpop.f32.mrf.mxu0
      %v1201 = vadd.f32 %v1152, %v1200
      %v1202 = vpop.f32.mrf.mxu0
      %v1203 = vadd.f32 %v1154, %v1202
      %1204 = vmatmul.bf16.gmra.mxu0 %v547
      %v1205 = vpop.f32.mrf.mxu0
      %v1206 = vadd.f32 %v1157, %v1205
      %v1207 = vpop.f32.mrf.mxu0
      %v1208 = vadd.f32 %v1159, %v1207
      %1209 = vmatmul.bf16.gmra.mxu0 %v549
      %v1210 = vpop.f32.mrf.mxu0
      %v1211 = vadd.f32 %v1162, %v1210
      %v1212 = vpop.f32.mrf.mxu0
      %v1213 = vadd.f32 %v1164, %v1212
      %1214 = vmatmul.bf16.gmra.mxu0 %v551
      %v1215 = vpop.f32.mrf.mxu0
      %v1216 = vadd.f32 %v1167, %v1215
      %v1217 = vpop.f32.mrf.mxu0
      %v1218 = vadd.f32 %v1169, %v1217
      %1219 = vmatmul.bf16.gmra.mxu0 %v553
      %v1220 = vpop.f32.mrf.mxu0
      %v1221 = vadd.f32 %v1172, %v1220
      %v1222 = vpop.f32.mrf.mxu0
      %v1223 = vadd.f32 %v1174, %v1222
      %1224 = vmatmul.bf16.gmra.mxu0 %v555
      %v1225 = vpop.f32.mrf.mxu0
      %v1226 = vadd.f32 %v1177, %v1225
      %v1227 = vpop.f32.mrf.mxu0
      %v1228 = vadd.f32 %v1179, %v1227
      %1229 = vmatmul.bf16.gmra.mxu0 %v557
      %v1230 = vpop.f32.mrf.mxu0
      %v1231 = vadd.f32 %v1182, %v1230
      %v1232 = vpop.f32.mrf.mxu0
      %v1233 = vadd.f32 %v1184, %v1232
      %1234 = vmatmul.bf16.gmra.mxu0 %v559
      %v1235 = vpop.f32.mrf.mxu0
      %v1236 = vadd.f32 %v1187, %v1235
      %v1237 = vpop.f32.mrf.mxu0
      %v1238 = vadd.f32 %v1189, %v1237
      %1239 = vdwg.mxu0
      %1240 = vmatpush.bf16.msra.mxu0 %v993
      %1241 = vmatpush.bf16.msra.mxu0 %v987
      %1242 = vmatpush.bf16.msra.mxu0 %v981
      %1243 = vmatpush.bf16.msra.mxu0 %v975
      %1244 = vmatpush.bf16.msra.mxu0 %v969
      %1245 = vmatpush.bf16.msra.mxu0 %v963
      %1246 = vmatpush.bf16.msra.mxu0 %v957
      %1247 = vmatpush.bf16.msra.mxu0 %v951
      %1248 = vmatmul.bf16.gmra.mxu0 %v544
      %v1249 = vpop.f32.mrf.mxu0
      %v1250 = vadd.f32 %v657, %v1249
      %v1251 = vpop.f32.mrf.mxu0
      %v1252 = vadd.f32 %v657, %v1251
      %1253 = vmatmul.bf16.gmra.mxu0 %v546
      %v1254 = vpop.f32.mrf.mxu0
      %v1255 = vadd.f32 %v657, %v1254
      %v1256 = vpop.f32.mrf.mxu0
      %v1257 = vadd.f32 %v657, %v1256
      %1258 = vmatmul.bf16.gmra.mxu0 %v548
      %v1259 = vpop.f32.mrf.mxu0
      %v1260 = vadd.f32 %v657, %v1259
      %v1261 = vpop.f32.mrf.mxu0
      %v1262 = vadd.f32 %v657, %v1261
      %1263 = vmatmul.bf16.gmra.mxu0 %v550
      %v1264 = vpop.f32.mrf.mxu0
      %v1265 = vadd.f32 %v657, %v1264
      %v1266 = vpop.f32.mrf.mxu0
      %v1267 = vadd.f32 %v657, %v1266
      %1268 = vmatmul.bf16.gmra.mxu0 %v552
      %v1269 = vpop.f32.mrf.mxu0
      %v1270 = vadd.f32 %v657, %v1269
      %v1271 = vpop.f32.mrf.mxu0
      %v1272 = vadd.f32 %v657, %v1271
      %1273 = vmatmul.bf16.gmra.mxu0 %v554
      %v1274 = vpop.f32.mrf.mxu0
      %v1275 = vadd.f32 %v657, %v1274
      %v1276 = vpop.f32.mrf.mxu0
      %v1277 = vadd.f32 %v657, %v1276
      %1278 = vmatmul.bf16.gmra.mxu0 %v556
      %v1279 = vpop.f32.mrf.mxu0
      %v1280 = vadd.f32 %v657, %v1279
      %v1281 = vpop.f32.mrf.mxu0
      %v1282 = vadd.f32 %v657, %v1281
      %1283 = vmatmul.bf16.gmra.mxu0 %v558
      %v1284 = vpop.f32.mrf.mxu0
      %v1285 = vadd.f32 %v657, %v1284
      %v1286 = vpop.f32.mrf.mxu0
      %v1287 = vadd.f32 %v657, %v1286
      %1288 = vdwg.mxu0
      %1289 = vmatpush.bf16.msra.mxu0 %v1041
      %1290 = vmatpush.bf16.msra.mxu0 %v1035
      %1291 = vmatpush.bf16.msra.mxu0 %v1029
      %1292 = vmatpush.bf16.msra.mxu0 %v1023
      %1293 = vmatpush.bf16.msra.mxu0 %v1017
      %1294 = vmatpush.bf16.msra.mxu0 %v1011
      %1295 = vmatpush.bf16.msra.mxu0 %v1005
      %1296 = vmatpush.bf16.msra.mxu0 %v999
      %1297 = vmatmul.bf16.gmra.mxu0 %v545
      %v1298 = vpop.f32.mrf.mxu0
      %v1299 = vadd.f32 %v1250, %v1298
      %v1300 = vpop.f32.mrf.mxu0
      %v1301 = vadd.f32 %v1252, %v1300
      %1302 = vmatmul.bf16.gmra.mxu0 %v547
      %v1303 = vpop.f32.mrf.mxu0
      %v1304 = vadd.f32 %v1255, %v1303
      %v1305 = vpop.f32.mrf.mxu0
      %v1306 = vadd.f32 %v1257, %v1305
      %1307 = vmatmul.bf16.gmra.mxu0 %v549
      %v1308 = vpop.f32.mrf.mxu0
      %v1309 = vadd.f32 %v1260, %v1308
      %v1310 = vpop.f32.mrf.mxu0
      %v1311 = vadd.f32 %v1262, %v1310
      %1312 = vmatmul.bf16.gmra.mxu0 %v551
      %v1313 = vpop.f32.mrf.mxu0
      %v1314 = vadd.f32 %v1265, %v1313
      %v1315 = vpop.f32.mrf.mxu0
      %v1316 = vadd.f32 %v1267, %v1315
      %1317 = vmatmul.bf16.gmra.mxu0 %v553
      %v1318 = vpop.f32.mrf.mxu0
      %v1319 = vadd.f32 %v1270, %v1318
      %v1320 = vpop.f32.mrf.mxu0
      %v1321 = vadd.f32 %v1272, %v1320
      %1322 = vmatmul.bf16.gmra.mxu0 %v555
      %v1323 = vpop.f32.mrf.mxu0
      %v1324 = vadd.f32 %v1275, %v1323
      %v1325 = vpop.f32.mrf.mxu0
      %v1326 = vadd.f32 %v1277, %v1325
      %1327 = vmatmul.bf16.gmra.mxu0 %v557
      %v1328 = vpop.f32.mrf.mxu0
      %v1329 = vadd.f32 %v1280, %v1328
      %v1330 = vpop.f32.mrf.mxu0
      %v1331 = vadd.f32 %v1282, %v1330
      %1332 = vmatmul.bf16.gmra.mxu0 %v559
      %v1333 = vpop.f32.mrf.mxu0
      %v1334 = vadd.f32 %v1285, %v1333
      %v1335 = vpop.f32.mrf.mxu0
      %v1336 = vadd.f32 %v1287, %v1335
      %1337 = vdwg.mxu0
      %1338 = vmatpush.bf16.msra.mxu0 %v994
      %1339 = vmatpush.bf16.msra.mxu0 %v988
      %1340 = vmatpush.bf16.msra.mxu0 %v982
      %1341 = vmatpush.bf16.msra.mxu0 %v976
      %1342 = vmatpush.bf16.msra.mxu0 %v970
      %1343 = vmatpush.bf16.msra.mxu0 %v964
      %1344 = vmatpush.bf16.msra.mxu0 %v958
      %1345 = vmatpush.bf16.msra.mxu0 %v952
      %1346 = vmatmul.bf16.gmra.mxu0 %v544
      %v1347 = vpop.f32.mrf.mxu0
      %v1348 = vadd.f32 %v658, %v1347
      %v1349 = vpop.f32.mrf.mxu0
      %v1350 = vadd.f32 %v658, %v1349
      %1351 = vmatmul.bf16.gmra.mxu0 %v546
      %v1352 = vpop.f32.mrf.mxu0
      %v1353 = vadd.f32 %v658, %v1352
      %v1354 = vpop.f32.mrf.mxu0
      %v1355 = vadd.f32 %v658, %v1354
      %1356 = vmatmul.bf16.gmra.mxu0 %v548
      %v1357 = vpop.f32.mrf.mxu0
      %v1358 = vadd.f32 %v658, %v1357
      %v1359 = vpop.f32.mrf.mxu0
      %v1360 = vadd.f32 %v658, %v1359
      %1361 = vmatmul.bf16.gmra.mxu0 %v550
      %v1362 = vpop.f32.mrf.mxu0
      %v1363 = vadd.f32 %v658, %v1362
      %v1364 = vpop.f32.mrf.mxu0
      %v1365 = vadd.f32 %v658, %v1364
      %1366 = vmatmul.bf16.gmra.mxu0 %v552
      %v1367 = vpop.f32.mrf.mxu0
      %v1368 = vadd.f32 %v658, %v1367
      %v1369 = vpop.f32.mrf.mxu0
      %v1370 = vadd.f32 %v658, %v1369
      %1371 = vmatmul.bf16.gmra.mxu0 %v554
      %v1372 = vpop.f32.mrf.mxu0
      %v1373 = vadd.f32 %v658, %v1372
      %v1374 = vpop.f32.mrf.mxu0
      %v1375 = vadd.f32 %v658, %v1374
      %1376 = vmatmul.bf16.gmra.mxu0 %v556
      %v1377 = vpop.f32.mrf.mxu0
      %v1378 = vadd.f32 %v658, %v1377
      %v1379 = vpop.f32.mrf.mxu0
      %v1380 = vadd.f32 %v658, %v1379
      %1381 = vmatmul.bf16.gmra.mxu0 %v558
      %v1382 = vpop.f32.mrf.mxu0
      %v1383 = vadd.f32 %v658, %v1382
      %v1384 = vpop.f32.mrf.mxu0
      %v1385 = vadd.f32 %v658, %v1384
      %1386 = vdwg.mxu0
      %1387 = vmatpush.bf16.msra.mxu0 %v1042
      %1388 = vmatpush.bf16.msra.mxu0 %v1036
      %1389 = vmatpush.bf16.msra.mxu0 %v1030
      %1390 = vmatpush.bf16.msra.mxu0 %v1024
      %1391 = vmatpush.bf16.msra.mxu0 %v1018
      %1392 = vmatpush.bf16.msra.mxu0 %v1012
      %1393 = vmatpush.bf16.msra.mxu0 %v1006
      %1394 = vmatpush.bf16.msra.mxu0 %v1000
      %1395 = vmatmul.bf16.gmra.mxu0 %v545
      %v1396 = vpop.f32.mrf.mxu0
      %v1397 = vadd.f32 %v1348, %v1396
      %v1398 = vpop.f32.mrf.mxu0
      %v1399 = vadd.f32 %v1350, %v1398
      %1400 = vmatmul.bf16.gmra.mxu0 %v547
      %v1401 = vpop.f32.mrf.mxu0
      %v1402 = vadd.f32 %v1353, %v1401
      %v1403 = vpop.f32.mrf.mxu0
      %v1404 = vadd.f32 %v1355, %v1403
      %1405 = vmatmul.bf16.gmra.mxu0 %v549
      %v1406 = vpop.f32.mrf.mxu0
      %v1407 = vadd.f32 %v1358, %v1406
      %v1408 = vpop.f32.mrf.mxu0
      %v1409 = vadd.f32 %v1360, %v1408
      %1410 = vmatmul.bf16.gmra.mxu0 %v551
      %v1411 = vpop.f32.mrf.mxu0
      %v1412 = vadd.f32 %v1363, %v1411
      %v1413 = vpop.f32.mrf.mxu0
      %v1414 = vadd.f32 %v1365, %v1413
      %1415 = vmatmul.bf16.gmra.mxu0 %v553
      %v1416 = vpop.f32.mrf.mxu0
      %v1417 = vadd.f32 %v1368, %v1416
      %v1418 = vpop.f32.mrf.mxu0
      %v1419 = vadd.f32 %v1370, %v1418
      %1420 = vmatmul.bf16.gmra.mxu0 %v555
      %v1421 = vpop.f32.mrf.mxu0
      %v1422 = vadd.f32 %v1373, %v1421
      %v1423 = vpop.f32.mrf.mxu0
      %v1424 = vadd.f32 %v1375, %v1423
      %1425 = vmatmul.bf16.gmra.mxu0 %v557
      %v1426 = vpop.f32.mrf.mxu0
      %v1427 = vadd.f32 %v1378, %v1426
      %v1428 = vpop.f32.mrf.mxu0
      %v1429 = vadd.f32 %v1380, %v1428
      %1430 = vmatmul.bf16.gmra.mxu0 %v559
      %v1431 = vpop.f32.mrf.mxu0
      %v1432 = vadd.f32 %v1383, %v1431
      %v1433 = vpop.f32.mrf.mxu0
      %v1434 = vadd.f32 %v1385, %v1433
      %1435 = vdwg.mxu0
      %1436 = vmatpush.bf16.msra.mxu0 %v995
      %1437 = vmatpush.bf16.msra.mxu0 %v989
      %1438 = vmatpush.bf16.msra.mxu0 %v983
      %1439 = vmatpush.bf16.msra.mxu0 %v977
      %1440 = vmatpush.bf16.msra.mxu0 %v971
      %1441 = vmatpush.bf16.msra.mxu0 %v965
      %1442 = vmatpush.bf16.msra.mxu0 %v959
      %1443 = vmatpush.bf16.msra.mxu0 %v953
      %1444 = vmatmul.bf16.gmra.mxu0 %v544
      %v1445 = vpop.f32.mrf.mxu0
      %v1446 = vadd.f32 %v659, %v1445
      %v1447 = vpop.f32.mrf.mxu0
      %v1448 = vadd.f32 %v659, %v1447
      %1449 = vmatmul.bf16.gmra.mxu0 %v546
      %v1450 = vpop.f32.mrf.mxu0
      %v1451 = vadd.f32 %v659, %v1450
      %v1452 = vpop.f32.mrf.mxu0
      %v1453 = vadd.f32 %v659, %v1452
      %1454 = vmatmul.bf16.gmra.mxu0 %v548
      %v1455 = vpop.f32.mrf.mxu0
      %v1456 = vadd.f32 %v659, %v1455
      %v1457 = vpop.f32.mrf.mxu0
      %v1458 = vadd.f32 %v659, %v1457
      %1459 = vmatmul.bf16.gmra.mxu0 %v550
      %v1460 = vpop.f32.mrf.mxu0
      %v1461 = vadd.f32 %v659, %v1460
      %v1462 = vpop.f32.mrf.mxu0
      %v1463 = vadd.f32 %v659, %v1462
      %1464 = vmatmul.bf16.gmra.mxu0 %v552
      %v1465 = vpop.f32.mrf.mxu0
      %v1466 = vadd.f32 %v659, %v1465
      %v1467 = vpop.f32.mrf.mxu0
      %v1468 = vadd.f32 %v659, %v1467
      %1469 = vmatmul.bf16.gmra.mxu0 %v554
      %v1470 = vpop.f32.mrf.mxu0
      %v1471 = vadd.f32 %v659, %v1470
      %v1472 = vpop.f32.mrf.mxu0
      %v1473 = vadd.f32 %v659, %v1472
      %1474 = vmatmul.bf16.gmra.mxu0 %v556
      %v1475 = vpop.f32.mrf.mxu0
      %v1476 = vadd.f32 %v659, %v1475
      %v1477 = vpop.f32.mrf.mxu0
      %v1478 = vadd.f32 %v659, %v1477
      %1479 = vmatmul.bf16.gmra.mxu0 %v558
      %v1480 = vpop.f32.mrf.mxu0
      %v1481 = vadd.f32 %v659, %v1480
      %v1482 = vpop.f32.mrf.mxu0
      %v1483 = vadd.f32 %v659, %v1482
      %1484 = vdwg.mxu0
      %1485 = vmatpush.bf16.msra.mxu0 %v1043
      %1486 = vmatpush.bf16.msra.mxu0 %v1037
      %1487 = vmatpush.bf16.msra.mxu0 %v1031
      %1488 = vmatpush.bf16.msra.mxu0 %v1025
      %1489 = vmatpush.bf16.msra.mxu0 %v1019
      %1490 = vmatpush.bf16.msra.mxu0 %v1013
      %1491 = vmatpush.bf16.msra.mxu0 %v1007
      %1492 = vmatpush.bf16.msra.mxu0 %v1001
      %1493 = vmatmul.bf16.gmra.mxu0 %v545
      %v1494 = vpop.f32.mrf.mxu0
      %v1495 = vadd.f32 %v1446, %v1494
      %v1496 = vpop.f32.mrf.mxu0
      %v1497 = vadd.f32 %v1448, %v1496
      %1498 = vmatmul.bf16.gmra.mxu0 %v547
      %v1499 = vpop.f32.mrf.mxu0
      %v1500 = vadd.f32 %v1451, %v1499
      %v1501 = vpop.f32.mrf.mxu0
      %v1502 = vadd.f32 %v1453, %v1501
      %1503 = vmatmul.bf16.gmra.mxu0 %v549
      %v1504 = vpop.f32.mrf.mxu0
      %v1505 = vadd.f32 %v1456, %v1504
      %v1506 = vpop.f32.mrf.mxu0
      %v1507 = vadd.f32 %v1458, %v1506
      %1508 = vmatmul.bf16.gmra.mxu0 %v551
      %v1509 = vpop.f32.mrf.mxu0
      %v1510 = vadd.f32 %v1461, %v1509
      %v1511 = vpop.f32.mrf.mxu0
      %v1512 = vadd.f32 %v1463, %v1511
      %1513 = vmatmul.bf16.gmra.mxu0 %v553
      %v1514 = vpop.f32.mrf.mxu0
      %v1515 = vadd.f32 %v1466, %v1514
      %v1516 = vpop.f32.mrf.mxu0
      %v1517 = vadd.f32 %v1468, %v1516
      %1518 = vmatmul.bf16.gmra.mxu0 %v555
      %v1519 = vpop.f32.mrf.mxu0
      %v1520 = vadd.f32 %v1471, %v1519
      %v1521 = vpop.f32.mrf.mxu0
      %v1522 = vadd.f32 %v1473, %v1521
      %1523 = vmatmul.bf16.gmra.mxu0 %v557
      %v1524 = vpop.f32.mrf.mxu0
      %v1525 = vadd.f32 %v1476, %v1524
      %v1526 = vpop.f32.mrf.mxu0
      %v1527 = vadd.f32 %v1478, %v1526
      %1528 = vmatmul.bf16.gmra.mxu0 %v559
      %v1529 = vpop.f32.mrf.mxu0
      %v1530 = vadd.f32 %v1481, %v1529
      %v1531 = vpop.f32.mrf.mxu0
      %v1532 = vadd.f32 %v1483, %v1531
      %1533 = vdwg.mxu0
      %1534 = vmatpush.bf16.msra.mxu0 %v996
      %1535 = vmatpush.bf16.msra.mxu0 %v990
      %1536 = vmatpush.bf16.msra.mxu0 %v984
      %1537 = vmatpush.bf16.msra.mxu0 %v978
      %1538 = vmatpush.bf16.msra.mxu0 %v972
      %1539 = vmatpush.bf16.msra.mxu0 %v966
      %1540 = vmatpush.bf16.msra.mxu0 %v960
      %1541 = vmatpush.bf16.msra.mxu0 %v954
      %1542 = vmatmul.bf16.gmra.mxu0 %v544
      %v1543 = vpop.f32.mrf.mxu0
      %v1544 = vadd.f32 %v660, %v1543
      %v1545 = vpop.f32.mrf.mxu0
      %v1546 = vadd.f32 %v660, %v1545
      %1547 = vmatmul.bf16.gmra.mxu0 %v546
      %v1548 = vpop.f32.mrf.mxu0
      %v1549 = vadd.f32 %v660, %v1548
      %v1550 = vpop.f32.mrf.mxu0
      %v1551 = vadd.f32 %v660, %v1550
      %1552 = vmatmul.bf16.gmra.mxu0 %v548
      %v1553 = vpop.f32.mrf.mxu0
      %v1554 = vadd.f32 %v660, %v1553
      %v1555 = vpop.f32.mrf.mxu0
      %v1556 = vadd.f32 %v660, %v1555
      %1557 = vmatmul.bf16.gmra.mxu0 %v550
      %v1558 = vpop.f32.mrf.mxu0
      %v1559 = vadd.f32 %v660, %v1558
      %v1560 = vpop.f32.mrf.mxu0
      %v1561 = vadd.f32 %v660, %v1560
      %1562 = vmatmul.bf16.gmra.mxu0 %v552
      %v1563 = vpop.f32.mrf.mxu0
      %v1564 = vadd.f32 %v660, %v1563
      %v1565 = vpop.f32.mrf.mxu0
      %v1566 = vadd.f32 %v660, %v1565
      %1567 = vmatmul.bf16.gmra.mxu0 %v554
      %v1568 = vpop.f32.mrf.mxu0
      %v1569 = vadd.f32 %v660, %v1568
      %v1570 = vpop.f32.mrf.mxu0
      %v1571 = vadd.f32 %v660, %v1570
      %1572 = vmatmul.bf16.gmra.mxu0 %v556
      %v1573 = vpop.f32.mrf.mxu0
      %v1574 = vadd.f32 %v660, %v1573
      %v1575 = vpop.f32.mrf.mxu0
      %v1576 = vadd.f32 %v660, %v1575
      %1577 = vmatmul.bf16.gmra.mxu0 %v558
      %v1578 = vpop.f32.mrf.mxu0
      %v1579 = vadd.f32 %v660, %v1578
      %v1580 = vpop.f32.mrf.mxu0
      %v1581 = vadd.f32 %v660, %v1580
      %1582 = vdwg.mxu0
      %1583 = vmatpush.bf16.msra.mxu0 %v1044
      %1584 = vmatpush.bf16.msra.mxu0 %v1038
      %1585 = vmatpush.bf16.msra.mxu0 %v1032
      %1586 = vmatpush.bf16.msra.mxu0 %v1026
      %1587 = vmatpush.bf16.msra.mxu0 %v1020
      %1588 = vmatpush.bf16.msra.mxu0 %v1014
      %1589 = vmatpush.bf16.msra.mxu0 %v1008
      %1590 = vmatpush.bf16.msra.mxu0 %v1002
      %1591 = vmatmul.bf16.gmra.mxu0 %v545
      %v1592 = vpop.f32.mrf.mxu0
      %v1593 = vadd.f32 %v1544, %v1592
      %v1594 = vpop.f32.mrf.mxu0
      %v1595 = vadd.f32 %v1546, %v1594
      %1596 = vmatmul.bf16.gmra.mxu0 %v547
      %v1597 = vpop.f32.mrf.mxu0
      %v1598 = vadd.f32 %v1549, %v1597
      %v1599 = vpop.f32.mrf.mxu0
      %v1600 = vadd.f32 %v1551, %v1599
      %1601 = vmatmul.bf16.gmra.mxu0 %v549
      %v1602 = vpop.f32.mrf.mxu0
      %v1603 = vadd.f32 %v1554, %v1602
      %v1604 = vpop.f32.mrf.mxu0
      %v1605 = vadd.f32 %v1556, %v1604
      %1606 = vmatmul.bf16.gmra.mxu0 %v551
      %v1607 = vpop.f32.mrf.mxu0
      %v1608 = vadd.f32 %v1559, %v1607
      %v1609 = vpop.f32.mrf.mxu0
      %v1610 = vadd.f32 %v1561, %v1609
      %1611 = vmatmul.bf16.gmra.mxu0 %v553
      %v1612 = vpop.f32.mrf.mxu0
      %v1613 = vadd.f32 %v1564, %v1612
      %v1614 = vpop.f32.mrf.mxu0
      %v1615 = vadd.f32 %v1566, %v1614
      %1616 = vmatmul.bf16.gmra.mxu0 %v555
      %v1617 = vpop.f32.mrf.mxu0
      %v1618 = vadd.f32 %v1569, %v1617
      %v1619 = vpop.f32.mrf.mxu0
      %v1620 = vadd.f32 %v1571, %v1619
      %1621 = vmatmul.bf16.gmra.mxu0 %v557
      %v1622 = vpop.f32.mrf.mxu0
      %v1623 = vadd.f32 %v1574, %v1622
      %v1624 = vpop.f32.mrf.mxu0
      %v1625 = vadd.f32 %v1576, %v1624
      %1626 = vmatmul.bf16.gmra.mxu0 %v559
      %v1627 = vpop.f32.mrf.mxu0
      %v1628 = vadd.f32 %v1579, %v1627
      %v1629 = vpop.f32.mrf.mxu0
      %v1630 = vadd.f32 %v1581, %v1629
      %1631 = vdwg.mxu0
      %1632 = vmatpush.bf16.msra.mxu0 %v997
      %1633 = vmatpush.bf16.msra.mxu0 %v991
      %1634 = vmatpush.bf16.msra.mxu0 %v985
      %1635 = vmatpush.bf16.msra.mxu0 %v979
      %1636 = vmatpush.bf16.msra.mxu0 %v973
      %1637 = vmatpush.bf16.msra.mxu0 %v967
      %1638 = vmatpush.bf16.msra.mxu0 %v961
      %1639 = vmatpush.bf16.msra.mxu0 %v955
      %1640 = vmatmul.bf16.gmra.mxu0 %v544
      %v1641 = vpop.f32.mrf.mxu0
      %v1642 = vadd.f32 %v661, %v1641
      %v1643 = vpop.f32.mrf.mxu0
      %v1644 = vadd.f32 %v661, %v1643
      %1645 = vmatmul.bf16.gmra.mxu0 %v546
      %v1646 = vpop.f32.mrf.mxu0
      %v1647 = vadd.f32 %v661, %v1646
      %v1648 = vpop.f32.mrf.mxu0
      %v1649 = vadd.f32 %v661, %v1648
      %1650 = vmatmul.bf16.gmra.mxu0 %v548
      %v1651 = vpop.f32.mrf.mxu0
      %v1652 = vadd.f32 %v661, %v1651
      %v1653 = vpop.f32.mrf.mxu0
      %v1654 = vadd.f32 %v661, %v1653
      %1655 = vmatmul.bf16.gmra.mxu0 %v550
      %v1656 = vpop.f32.mrf.mxu0
      %v1657 = vadd.f32 %v661, %v1656
      %v1658 = vpop.f32.mrf.mxu0
      %v1659 = vadd.f32 %v661, %v1658
      %1660 = vmatmul.bf16.gmra.mxu0 %v552
      %v1661 = vpop.f32.mrf.mxu0
      %v1662 = vadd.f32 %v661, %v1661
      %v1663 = vpop.f32.mrf.mxu0
      %v1664 = vadd.f32 %v661, %v1663
      %1665 = vmatmul.bf16.gmra.mxu0 %v554
      %v1666 = vpop.f32.mrf.mxu0
      %v1667 = vadd.f32 %v661, %v1666
      %v1668 = vpop.f32.mrf.mxu0
      %v1669 = vadd.f32 %v661, %v1668
      %1670 = vmatmul.bf16.gmra.mxu0 %v556
      %v1671 = vpop.f32.mrf.mxu0
      %v1672 = vadd.f32 %v661, %v1671
      %v1673 = vpop.f32.mrf.mxu0
      %v1674 = vadd.f32 %v661, %v1673
      %1675 = vmatmul.bf16.gmra.mxu0 %v558
      %v1676 = vpop.f32.mrf.mxu0
      %v1677 = vadd.f32 %v661, %v1676
      %v1678 = vpop.f32.mrf.mxu0
      %v1679 = vadd.f32 %v661, %v1678
      %1680 = vdwg.mxu0
      %1681 = vmatpush.bf16.msra.mxu0 %v1045
      %1682 = vmatpush.bf16.msra.mxu0 %v1039
      %1683 = vmatpush.bf16.msra.mxu0 %v1033
      %1684 = vmatpush.bf16.msra.mxu0 %v1027
      %1685 = vmatpush.bf16.msra.mxu0 %v1021
      %1686 = vmatpush.bf16.msra.mxu0 %v1015
      %1687 = vmatpush.bf16.msra.mxu0 %v1009
      %1688 = vmatpush.bf16.msra.mxu0 %v1003
      %1689 = vmatmul.bf16.gmra.mxu0 %v545
      %v1690 = vpop.f32.mrf.mxu0
      %v1691 = vadd.f32 %v1642, %v1690
      %v1692 = vpop.f32.mrf.mxu0
      %v1693 = vadd.f32 %v1644, %v1692
      %1694 = vmatmul.bf16.gmra.mxu0 %v547
      %v1695 = vpop.f32.mrf.mxu0
      %v1696 = vadd.f32 %v1647, %v1695
      %v1697 = vpop.f32.mrf.mxu0
      %v1698 = vadd.f32 %v1649, %v1697
      %1699 = vmatmul.bf16.gmra.mxu0 %v549
      %v1700 = vpop.f32.mrf.mxu0
      %v1701 = vadd.f32 %v1652, %v1700
      %v1702 = vpop.f32.mrf.mxu0
      %v1703 = vadd.f32 %v1654, %v1702
      %1704 = vmatmul.bf16.gmra.mxu0 %v551
      %v1705 = vpop.f32.mrf.mxu0
      %v1706 = vadd.f32 %v1657, %v1705
      %v1707 = vpop.f32.mrf.mxu0
      %v1708 = vadd.f32 %v1659, %v1707
      %1709 = vmatmul.bf16.gmra.mxu0 %v553
      %v1710 = vpop.f32.mrf.mxu0
      %v1711 = vadd.f32 %v1662, %v1710
      %v1712 = vpop.f32.mrf.mxu0
      %v1713 = vadd.f32 %v1664, %v1712
      %1714 = vmatmul.bf16.gmra.mxu0 %v555
      %v1715 = vpop.f32.mrf.mxu0
      %v1716 = vadd.f32 %v1667, %v1715
      %v1717 = vpop.f32.mrf.mxu0
      %v1718 = vadd.f32 %v1669, %v1717
      %1719 = vmatmul.bf16.gmra.mxu0 %v557
      %v1720 = vpop.f32.mrf.mxu0
      %v1721 = vadd.f32 %v1672, %v1720
      %v1722 = vpop.f32.mrf.mxu0
      %v1723 = vadd.f32 %v1674, %v1722
      %1724 = vmatmul.bf16.gmra.mxu0 %v559
      %v1725 = vpop.f32.mrf.mxu0
      %v1726 = vadd.f32 %v1677, %v1725
      %v1727 = vpop.f32.mrf.mxu0
      %v1728 = vadd.f32 %v1679, %v1727
      %1729 = vdwg.mxu0
      %v1730 = vpack.c.bf16 %v1299, %v1201
      %v1731 = vpack.c.bf16 %v1301, %v1203
      %v1732 = vpack.c.bf16 %v1304, %v1206
      %v1733 = vpack.c.bf16 %v1306, %v1208
      %v1734 = vpack.c.bf16 %v1309, %v1211
      %v1735 = vpack.c.bf16 %v1311, %v1213
      %v1736 = vpack.c.bf16 %v1314, %v1216
      %v1737 = vpack.c.bf16 %v1316, %v1218
      %v1738 = vpack.c.bf16 %v1319, %v1221
      %v1739 = vpack.c.bf16 %v1321, %v1223
      %v1740 = vpack.c.bf16 %v1324, %v1226
      %v1741 = vpack.c.bf16 %v1326, %v1228
      %v1742 = vpack.c.bf16 %v1329, %v1231
      %v1743 = vpack.c.bf16 %v1331, %v1233
      %v1744 = vpack.c.bf16 %v1334, %v1236
      %v1745 = vpack.c.bf16 %v1336, %v1238
      %v1746 = vpack.c.bf16 %v1495, %v1397
      %v1747 = vpack.c.bf16 %v1497, %v1399
      %v1748 = vpack.c.bf16 %v1500, %v1402
      %v1749 = vpack.c.bf16 %v1502, %v1404
      %v1750 = vpack.c.bf16 %v1505, %v1407
      %v1751 = vpack.c.bf16 %v1507, %v1409
      %v1752 = vpack.c.bf16 %v1510, %v1412
      %v1753 = vpack.c.bf16 %v1512, %v1414
      %v1754 = vpack.c.bf16 %v1515, %v1417
      %v1755 = vpack.c.bf16 %v1517, %v1419
      %v1756 = vpack.c.bf16 %v1520, %v1422
      %v1757 = vpack.c.bf16 %v1522, %v1424
      %v1758 = vpack.c.bf16 %v1525, %v1427
      %v1759 = vpack.c.bf16 %v1527, %v1429
      %v1760 = vpack.c.bf16 %v1530, %v1432
      %v1761 = vpack.c.bf16 %v1532, %v1434
      %v1762 = vpack.c.bf16 %v1691, %v1593
      %v1763 = vpack.c.bf16 %v1693, %v1595
      %v1764 = vpack.c.bf16 %v1696, %v1598
      %v1765 = vpack.c.bf16 %v1698, %v1600
      %v1766 = vpack.c.bf16 %v1701, %v1603
      %v1767 = vpack.c.bf16 %v1703, %v1605
      %v1768 = vpack.c.bf16 %v1706, %v1608
      %v1769 = vpack.c.bf16 %v1708, %v1610
      %v1770 = vpack.c.bf16 %v1711, %v1613
      %v1771 = vpack.c.bf16 %v1713, %v1615
      %v1772 = vpack.c.bf16 %v1716, %v1618
      %v1773 = vpack.c.bf16 %v1718, %v1620
      %v1774 = vpack.c.bf16 %v1721, %v1623
      %v1775 = vpack.c.bf16 %v1723, %v1625
      %v1776 = vpack.c.bf16 %v1726, %v1628
      %v1777 = vpack.c.bf16 %v1728, %v1630
      %v1778 = vld [vmem:[%s384] sm:$0x3]
      %v1780 = vrot.slane %v1778, 1
      %v1789 = vunpack.c.l.b16 %v1730
      %v1790 = vunpack.c.l.b16 %v1731
      %v1791 = vunpack.c.l.b16 %v1732
      %v1792 = vunpack.c.l.b16 %v1733
      %v1793 = vunpack.c.l.b16 %v1734
      %v1794 = vunpack.c.l.b16 %v1735
      %v1795 = vunpack.c.l.b16 %v1736
      %v1796 = vunpack.c.l.b16 %v1737
      %v1797 = vpack.c.b16 %v1790, %v1789
      %v1798 = vpack.c.b16 %v1792, %v1791
      %v1799 = vpack.c.b16 %v1794, %v1793
      %v1800 = vpack.c.b16 %v1796, %v1795
      %v1813 = vunpack.c.l.b16 %v1746
      %v1814 = vunpack.c.l.b16 %v1747
      %v1815 = vunpack.c.l.b16 %v1748
      %v1816 = vunpack.c.l.b16 %v1749
      %v1817 = vunpack.c.l.b16 %v1750
      %v1818 = vunpack.c.l.b16 %v1751
      %v1819 = vunpack.c.l.b16 %v1752
      %v1820 = vunpack.c.l.b16 %v1753
      %v1821 = vpack.c.b16 %v1814, %v1813
      %v1822 = vpack.c.b16 %v1816, %v1815
      %v1823 = vpack.c.b16 %v1818, %v1817
      %v1824 = vpack.c.b16 %v1820, %v1819
      %1829 = vmatpush.bf16.xpose.msra.mxu0 0
      %1830 = vmatpush.bf16.xpose.msra.mxu0 0
      %1831 = vmatpush.bf16.xpose.msra.mxu0 0
      %1832 = vmatpush.bf16.xpose.msra.mxu0 0
      %1833 = vmatpush.bf16.xpose.msra.mxu0 %v1824
      %1834 = vmatpush.bf16.xpose.msra.mxu0 %v1823
      %1835 = vmatpush.bf16.xpose.msra.mxu0 %v1822
      %1836 = vmatpush.bf16.xpose.msra.mxu0 %v1821
      %1837 = vmatmul.bf16.gmra.mxu0 %v1797
      %v1838 = vpop.f32.mrf.mxu0
      %v1839 = vadd.f32 0.0, %v1838
      %v1840 = vpop.f32.mrf.mxu0
      %v1841 = vadd.f32 0.0, %v1840
      %1842 = vmatmul.bf16.gmra.mxu0 %v1798
      %v1843 = vpop.f32.mrf.mxu0
      %v1844 = vadd.f32 0.0, %v1843
      %v1845 = vpop.f32.mrf.mxu0
      %v1846 = vadd.f32 0.0, %v1845
      %1847 = vmatmul.bf16.gmra.mxu0 %v1799
      %v1848 = vpop.f32.mrf.mxu0
      %v1849 = vadd.f32 0.0, %v1848
      %v1850 = vpop.f32.mrf.mxu0
      %v1851 = vadd.f32 0.0, %v1850
      %1852 = vmatmul.bf16.gmra.mxu0 %v1800
      %v1853 = vpop.f32.mrf.mxu0
      %v1854 = vadd.f32 0.0, %v1853
      %v1855 = vpop.f32.mrf.mxu0
      %v1856 = vadd.f32 0.0, %v1855
      %1857 = vdwg.mxu0
      %v1866 = vunpack.c.l.b16 %v1738
      %v1867 = vunpack.c.l.b16 %v1739
      %v1868 = vunpack.c.l.b16 %v1740
      %v1869 = vunpack.c.l.b16 %v1741
      %v1870 = vunpack.c.l.b16 %v1742
      %v1871 = vunpack.c.l.b16 %v1743
      %v1872 = vunpack.c.l.b16 %v1744
      %v1873 = vunpack.c.l.b16 %v1745
      %v1874 = vpack.c.b16 %v1867, %v1866
      %v1875 = vpack.c.b16 %v1869, %v1868
      %v1876 = vpack.c.b16 %v1871, %v1870
      %v1877 = vpack.c.b16 %v1873, %v1872
      %v1890 = vunpack.c.l.b16 %v1754
      %v1891 = vunpack.c.l.b16 %v1755
      %v1892 = vunpack.c.l.b16 %v1756
      %v1893 = vunpack.c.l.b16 %v1757
      %v1894 = vunpack.c.l.b16 %v1758
      %v1895 = vunpack.c.l.b16 %v1759
      %v1896 = vunpack.c.l.b16 %v1760
      %v1897 = vunpack.c.l.b16 %v1761
      %v1898 = vpack.c.b16 %v1891, %v1890
      %v1899 = vpack.c.b16 %v1893, %v1892
      %v1900 = vpack.c.b16 %v1895, %v1894
      %v1901 = vpack.c.b16 %v1897, %v1896
      %1906 = vmatpush.bf16.xpose.msra.mxu0 0
      %1907 = vmatpush.bf16.xpose.msra.mxu0 0
      %1908 = vmatpush.bf16.xpose.msra.mxu0 0
      %1909 = vmatpush.bf16.xpose.msra.mxu0 0
      %1910 = vmatpush.bf16.xpose.msra.mxu0 %v1901
      %1911 = vmatpush.bf16.xpose.msra.mxu0 %v1900
      %1912 = vmatpush.bf16.xpose.msra.mxu0 %v1899
      %1913 = vmatpush.bf16.xpose.msra.mxu0 %v1898
      %1914 = vmatmul.bf16.gmra.mxu0 %v1874
      %v1915 = vpop.f32.mrf.mxu0
      %v1916 = vadd.f32 0.0, %v1915
      %v1917 = vpop.f32.mrf.mxu0
      %v1918 = vadd.f32 0.0, %v1917
      %1919 = vmatmul.bf16.gmra.mxu0 %v1875
      %v1920 = vpop.f32.mrf.mxu0
      %v1921 = vadd.f32 0.0, %v1920
      %v1922 = vpop.f32.mrf.mxu0
      %v1923 = vadd.f32 0.0, %v1922
      %1924 = vmatmul.bf16.gmra.mxu0 %v1876
      %v1925 = vpop.f32.mrf.mxu0
      %v1926 = vadd.f32 0.0, %v1925
      %v1927 = vpop.f32.mrf.mxu0
      %v1928 = vadd.f32 0.0, %v1927
      %1929 = vmatmul.bf16.gmra.mxu0 %v1877
      %v1930 = vpop.f32.mrf.mxu0
      %v1931 = vadd.f32 0.0, %v1930
      %v1932 = vpop.f32.mrf.mxu0
      %v1933 = vadd.f32 0.0, %v1932
      %1934 = vdwg.mxu0
      %v1935 = vmul.f32 %v1839, 0.088388346
      %v1936 = vmul.f32 %v1841, 0.088388346
      %v1937 = vmul.f32 %v1844, 0.088388346
      %v1938 = vmul.f32 %v1846, 0.088388346
      %v1939 = vmul.f32 %v1849, 0.088388346
      %v1940 = vmul.f32 %v1851, 0.088388346
      %v1941 = vmul.f32 %v1854, 0.088388346
      %v1942 = vmul.f32 %v1856, 0.088388346
      %v1943 = vmul.f32 %v1916, 0.088388346
      %v1944 = vmul.f32 %v1918, 0.088388346
      %v1945 = vmul.f32 %v1921, 0.088388346
      %v1946 = vmul.f32 %v1923, 0.088388346
      %v1947 = vmul.f32 %v1926, 0.088388346
      %v1948 = vmul.f32 %v1928, 0.088388346
      %v1949 = vmul.f32 %v1931, 0.088388346
      %v1950 = vmul.f32 %v1933, 0.088388346
      %v1951 = vperm.slane %v1778, 0
      %v1952 = vperm.slane %v1780, 0
      %v1955 = vadd.f32 %v1935, %v1951
      %v1956 = vadd.f32 %v1936, %v1951
      %v1957 = vadd.f32 %v1937, %v1951
      %v1958 = vadd.f32 %v1938, %v1951
      %v1959 = vadd.f32 %v1939, %v1951
      %v1960 = vadd.f32 %v1940, %v1951
      %v1961 = vadd.f32 %v1941, %v1951
      %v1962 = vadd.f32 %v1942, %v1951
      %v1963 = vadd.f32 %v1943, %v1952
      %v1964 = vadd.f32 %v1944, %v1952
      %v1965 = vadd.f32 %v1945, %v1952
      %v1966 = vadd.f32 %v1946, %v1952
      %v1967 = vadd.f32 %v1947, %v1952
      %v1968 = vadd.f32 %v1948, %v1952
      %v1969 = vadd.f32 %v1949, %v1952
      %v1970 = vadd.f32 %v1950, %v1952
      %vm1971 = vcmask 523264
      %v1972 = vsel %vm1971, %v1955, -inf
      %1973 = vmax.xlane.f32.xlu0 %v1972
      %v1974 = vpop.xlane.xlu0 %1973
      %v1975 = vsel %vm1971, %v1956, -inf
      %1976 = vmax.xlane.f32.xlu0 %v1975
      %v1977 = vpop.xlane.xlu0 %1976
      %v1978 = vsel %vm1971, %v1957, -inf
      %1979 = vmax.xlane.f32.xlu0 %v1978
      %v1980 = vpop.xlane.xlu0 %1979
      %v1981 = vsel %vm1971, %v1958, -inf
      %1982 = vmax.xlane.f32.xlu0 %v1981
      %v1983 = vpop.xlane.xlu0 %1982
      %v1984 = vsel %vm1971, %v1959, -inf
      %1985 = vmax.xlane.f32.xlu0 %v1984
      %v1986 = vpop.xlane.xlu0 %1985
      %v1987 = vsel %vm1971, %v1960, -inf
      %1988 = vmax.xlane.f32.xlu0 %v1987
      %v1989 = vpop.xlane.xlu0 %1988
      %v1990 = vsel %vm1971, %v1961, -inf
      %1991 = vmax.xlane.f32.xlu0 %v1990
      %v1992 = vpop.xlane.xlu0 %1991
      %v1993 = vsel %vm1971, %v1962, -inf
      %1994 = vmax.xlane.f32.xlu0 %v1993
      %v1995 = vpop.xlane.xlu0 %1994
      %v1996 = vsel %vm1971, %v1963, -inf
      %1997 = vmax.xlane.f32.xlu0 %v1996
      %v1998 = vpop.xlane.xlu0 %1997
      %v1999 = vsel %vm1971, %v1964, -inf
      %2000 = vmax.xlane.f32.xlu0 %v1999
      %v2001 = vpop.xlane.xlu0 %2000
      %v2002 = vsel %vm1971, %v1965, -inf
      %2003 = vmax.xlane.f32.xlu0 %v2002
      %v2004 = vpop.xlane.xlu0 %2003
      %v2005 = vsel %vm1971, %v1966, -inf
      %2006 = vmax.xlane.f32.xlu0 %v2005
      %v2007 = vpop.xlane.xlu0 %2006
      %v2008 = vsel %vm1971, %v1967, -inf
      %2009 = vmax.xlane.f32.xlu0 %v2008
      %v2010 = vpop.xlane.xlu0 %2009
      %v2011 = vsel %vm1971, %v1968, -inf
      %2012 = vmax.xlane.f32.xlu0 %v2011
      %v2013 = vpop.xlane.xlu0 %2012
      %v2014 = vsel %vm1971, %v1969, -inf
      %2015 = vmax.xlane.f32.xlu0 %v2014
      %v2016 = vpop.xlane.xlu0 %2015
      %v2017 = vsel %vm1971, %v1970, -inf
      %2018 = vmax.xlane.f32.xlu0 %v2017
      %v2019 = vpop.xlane.xlu0 %2018
      %v2020 = vsub.f32 %v1955, %v1974
      %v2021 = vsub.f32 %v1956, %v1977
      %v2022 = vsub.f32 %v1957, %v1980
      %v2023 = vsub.f32 %v1958, %v1983
      %v2024 = vsub.f32 %v1959, %v1986
      %v2025 = vsub.f32 %v1960, %v1989
      %v2026 = vsub.f32 %v1961, %v1992
      %v2027 = vsub.f32 %v1962, %v1995
      %v2028 = vsub.f32 %v1963, %v1998
      %v2029 = vsub.f32 %v1964, %v2001
      %v2030 = vsub.f32 %v1965, %v2004
      %v2031 = vsub.f32 %v1966, %v2007
      %v2032 = vsub.f32 %v1967, %v2010
      %v2033 = vsub.f32 %v1968, %v2013
      %v2034 = vsub.f32 %v1969, %v2016
      %v2035 = vsub.f32 %v1970, %v2019
      %v2036 = vmul.f32 %v2020, 1.442695
      %v2037 = vpow.pop %v2036
      %v2038 = vmul.f32 %v2021, 1.442695
      %v2039 = vpow.pop %v2038
      %v2040 = vmul.f32 %v2022, 1.442695
      %v2041 = vpow.pop %v2040
      %v2042 = vmul.f32 %v2023, 1.442695
      %v2043 = vpow.pop %v2042
      %v2044 = vmul.f32 %v2024, 1.442695
      %v2045 = vpow.pop %v2044
      %v2046 = vmul.f32 %v2025, 1.442695
      %v2047 = vpow.pop %v2046
      %v2048 = vmul.f32 %v2026, 1.442695
      %v2049 = vpow.pop %v2048
      %v2050 = vmul.f32 %v2027, 1.442695
      %v2051 = vpow.pop %v2050
      %v2052 = vmul.f32 %v2028, 1.442695
      %v2053 = vpow.pop %v2052
      %v2054 = vmul.f32 %v2029, 1.442695
      %v2055 = vpow.pop %v2054
      %v2056 = vmul.f32 %v2030, 1.442695
      %v2057 = vpow.pop %v2056
      %v2058 = vmul.f32 %v2031, 1.442695
      %v2059 = vpow.pop %v2058
      %v2060 = vmul.f32 %v2032, 1.442695
      %v2061 = vpow.pop %v2060
      %v2062 = vmul.f32 %v2033, 1.442695
      %v2063 = vpow.pop %v2062
      %v2064 = vmul.f32 %v2034, 1.442695
      %v2065 = vpow.pop %v2064
      %v2066 = vmul.f32 %v2035, 1.442695
      %v2067 = vpow.pop %v2066
      %v2068 = vsel %vm1971, %v2037, 0.0
      %2069 = vadd.xlane.f32.xlu0 %v2068
      %v2070 = vpop.xlane.xlu0 %2069
      %v2071 = vsel %vm1971, %v2039, 0.0
      %2072 = vadd.xlane.f32.xlu0 %v2071
      %v2073 = vpop.xlane.xlu0 %2072
      %v2074 = vsel %vm1971, %v2041, 0.0
      %2075 = vadd.xlane.f32.xlu0 %v2074
      %v2076 = vpop.xlane.xlu0 %2075
      %v2077 = vsel %vm1971, %v2043, 0.0
      %2078 = vadd.xlane.f32.xlu0 %v2077
      %v2079 = vpop.xlane.xlu0 %2078
      %v2080 = vsel %vm1971, %v2045, 0.0
      %2081 = vadd.xlane.f32.xlu0 %v2080
      %v2082 = vpop.xlane.xlu0 %2081
      %v2083 = vsel %vm1971, %v2047, 0.0
      %2084 = vadd.xlane.f32.xlu0 %v2083
      %v2085 = vpop.xlane.xlu0 %2084
      %v2086 = vsel %vm1971, %v2049, 0.0
      %2087 = vadd.xlane.f32.xlu0 %v2086
      %v2088 = vpop.xlane.xlu0 %2087
      %v2089 = vsel %vm1971, %v2051, 0.0
      %2090 = vadd.xlane.f32.xlu0 %v2089
      %v2091 = vpop.xlane.xlu0 %2090
      %v2092 = vsel %vm1971, %v2053, 0.0
      %2093 = vadd.xlane.f32.xlu0 %v2092
      %v2094 = vpop.xlane.xlu0 %2093
      %v2095 = vsel %vm1971, %v2055, 0.0
      %2096 = vadd.xlane.f32.xlu0 %v2095
      %v2097 = vpop.xlane.xlu0 %2096
      %v2098 = vsel %vm1971, %v2057, 0.0
      %2099 = vadd.xlane.f32.xlu0 %v2098
      %v2100 = vpop.xlane.xlu0 %2099
      %v2101 = vsel %vm1971, %v2059, 0.0
      %2102 = vadd.xlane.f32.xlu0 %v2101
      %v2103 = vpop.xlane.xlu0 %2102
      %v2104 = vsel %vm1971, %v2061, 0.0
      %2105 = vadd.xlane.f32.xlu0 %v2104
      %v2106 = vpop.xlane.xlu0 %2105
      %v2107 = vsel %vm1971, %v2063, 0.0
      %2108 = vadd.xlane.f32.xlu0 %v2107
      %v2109 = vpop.xlane.xlu0 %2108
      %v2110 = vsel %vm1971, %v2065, 0.0
      %2111 = vadd.xlane.f32.xlu0 %v2110
      %v2112 = vpop.xlane.xlu0 %2111
      %v2113 = vsel %vm1971, %v2067, 0.0
      %2114 = vadd.xlane.f32.xlu0 %v2113
      %v2115 = vpop.xlane.xlu0 %2114
      %v2116 = vrcp.pop %v2070
      %v2117 = vrcp.pop %v2073
      %v2118 = vrcp.pop %v2076
      %v2119 = vrcp.pop %v2079
      %v2120 = vrcp.pop %v2082
      %v2121 = vrcp.pop %v2085
      %v2122 = vrcp.pop %v2088
      %v2123 = vrcp.pop %v2091
      %v2124 = vrcp.pop %v2094
      %v2125 = vrcp.pop %v2097
      %v2126 = vrcp.pop %v2100
      %v2127 = vrcp.pop %v2103
      %v2128 = vrcp.pop %v2106
      %v2129 = vrcp.pop %v2109
      %v2130 = vrcp.pop %v2112
      %v2131 = vrcp.pop %v2115
      %v2132 = vmul.f32 %v2037, %v2116
      %v2133 = vmul.f32 %v2039, %v2117
      %v2134 = vmul.f32 %v2041, %v2118
      %v2135 = vmul.f32 %v2043, %v2119
      %v2136 = vmul.f32 %v2045, %v2120
      %v2137 = vmul.f32 %v2047, %v2121
      %v2138 = vmul.f32 %v2049, %v2122
      %v2139 = vmul.f32 %v2051, %v2123
      %v2140 = vmul.f32 %v2053, %v2124
      %v2141 = vmul.f32 %v2055, %v2125
      %v2142 = vmul.f32 %v2057, %v2126
      %v2143 = vmul.f32 %v2059, %v2127
      %v2144 = vmul.f32 %v2061, %v2128
      %v2145 = vmul.f32 %v2063, %v2129
      %v2146 = vmul.f32 %v2065, %v2130
      %v2147 = vmul.f32 %v2067, %v2131
      %v2148 = vpack.c.bf16 %v2132, %v2132
      %v2149 = vpack.c.bf16 %v2133, %v2133
      %v2150 = vpack.c.bf16 %v2134, %v2134
      %v2151 = vpack.c.bf16 %v2135, %v2135
      %v2152 = vpack.c.bf16 %v2136, %v2136
      %v2153 = vpack.c.bf16 %v2137, %v2137
      %v2154 = vpack.c.bf16 %v2138, %v2138
      %v2155 = vpack.c.bf16 %v2139, %v2139
      %v2156 = vpack.c.bf16 %v2140, %v2140
      %v2157 = vpack.c.bf16 %v2141, %v2141
      %v2158 = vpack.c.bf16 %v2142, %v2142
      %v2159 = vpack.c.bf16 %v2143, %v2143
      %v2160 = vpack.c.bf16 %v2144, %v2144
      %v2161 = vpack.c.bf16 %v2145, %v2145
      %v2162 = vpack.c.bf16 %v2146, %v2146
      %v2163 = vpack.c.bf16 %v2147, %v2147
      %v2172 = vunpack.c.l.b16 %v2148
      %v2173 = vunpack.c.l.b16 %v2149
      %v2174 = vunpack.c.l.b16 %v2150
      %v2175 = vunpack.c.l.b16 %v2151
      %v2176 = vunpack.c.l.b16 %v2152
      %v2177 = vunpack.c.l.b16 %v2153
      %v2178 = vunpack.c.l.b16 %v2154
      %v2179 = vunpack.c.l.b16 %v2155
      %v2180 = vpack.c.b16 %v2173, %v2172
      %v2181 = vpack.c.b16 %v2175, %v2174
      %v2182 = vpack.c.b16 %v2177, %v2176
      %v2183 = vpack.c.b16 %v2179, %v2178
      %v2192 = vunpack.c.l.b16 %v1762
      %v2193 = vunpack.c.l.b16 %v1763
      %v2194 = vunpack.c.l.b16 %v1764
      %v2195 = vunpack.c.l.b16 %v1765
      %v2196 = vunpack.c.l.b16 %v1766
      %v2197 = vunpack.c.l.b16 %v1767
      %v2198 = vunpack.c.l.b16 %v1768
      %v2199 = vunpack.c.l.b16 %v1769
      %v2200 = vpack.c.b16 %v2193, %v2192
      %v2201 = vpack.c.b16 %v2195, %v2194
      %v2202 = vpack.c.b16 %v2197, %v2196
      %v2203 = vpack.c.b16 %v2199, %v2198
      %v2209 = vsel %vm1971, %v2180, 0
      %v2212 = vsel %vm1971, %v2181, 0
      %v2215 = vsel %vm1971, %v2182, 0
      %v2218 = vsel %vm1971, %v2183, 0
      %2220 = vmatpush.bf16.msra.mxu0 0
      %2221 = vmatpush.bf16.msra.mxu0 0
      %2222 = vmatpush.bf16.msra.mxu0 0
      %2223 = vmatpush.bf16.msra.mxu0 0
      %2224 = vmatpush.bf16.msra.mxu0 %v2203
      %2225 = vmatpush.bf16.msra.mxu0 %v2202
      %2226 = vmatpush.bf16.msra.mxu0 %v2201
      %2227 = vmatpush.bf16.msra.mxu0 %v2200
      %2228 = vmatmul.bf16.gmra.mxu0 %v2209
      %v2229 = vpop.f32.mrf.mxu0
      %v2230 = vadd.f32 0.0, %v2229
      %v2231 = vpop.f32.mrf.mxu0
      %v2232 = vadd.f32 0.0, %v2231
      %2233 = vmatmul.bf16.gmra.mxu0 %v2212
      %v2234 = vpop.f32.mrf.mxu0
      %v2235 = vadd.f32 0.0, %v2234
      %v2236 = vpop.f32.mrf.mxu0
      %v2237 = vadd.f32 0.0, %v2236
      %2238 = vmatmul.bf16.gmra.mxu0 %v2215
      %v2239 = vpop.f32.mrf.mxu0
      %v2240 = vadd.f32 0.0, %v2239
      %v2241 = vpop.f32.mrf.mxu0
      %v2242 = vadd.f32 0.0, %v2241
      %2243 = vmatmul.bf16.gmra.mxu0 %v2218
      %v2244 = vpop.f32.mrf.mxu0
      %v2245 = vadd.f32 0.0, %v2244
      %v2246 = vpop.f32.mrf.mxu0
      %v2247 = vadd.f32 0.0, %v2246
      %2248 = vdwg.mxu0
      %v2257 = vunpack.c.l.b16 %v2156
      %v2258 = vunpack.c.l.b16 %v2157
      %v2259 = vunpack.c.l.b16 %v2158
      %v2260 = vunpack.c.l.b16 %v2159
      %v2261 = vunpack.c.l.b16 %v2160
      %v2262 = vunpack.c.l.b16 %v2161
      %v2263 = vunpack.c.l.b16 %v2162
      %v2264 = vunpack.c.l.b16 %v2163
      %v2265 = vpack.c.b16 %v2258, %v2257
      %v2266 = vpack.c.b16 %v2260, %v2259
      %v2267 = vpack.c.b16 %v2262, %v2261
      %v2268 = vpack.c.b16 %v2264, %v2263
      %v2277 = vunpack.c.l.b16 %v1770
      %v2278 = vunpack.c.l.b16 %v1771
      %v2279 = vunpack.c.l.b16 %v1772
      %v2280 = vunpack.c.l.b16 %v1773
      %v2281 = vunpack.c.l.b16 %v1774
      %v2282 = vunpack.c.l.b16 %v1775
      %v2283 = vunpack.c.l.b16 %v1776
      %v2284 = vunpack.c.l.b16 %v1777
      %v2285 = vpack.c.b16 %v2278, %v2277
      %v2286 = vpack.c.b16 %v2280, %v2279
      %v2287 = vpack.c.b16 %v2282, %v2281
      %v2288 = vpack.c.b16 %v2284, %v2283
      %v2294 = vsel %vm1971, %v2265, 0
      %v2297 = vsel %vm1971, %v2266, 0
      %v2300 = vsel %vm1971, %v2267, 0
      %v2303 = vsel %vm1971, %v2268, 0
      %2305 = vmatpush.bf16.msra.mxu0 0
      %2306 = vmatpush.bf16.msra.mxu0 0
      %2307 = vmatpush.bf16.msra.mxu0 0
      %2308 = vmatpush.bf16.msra.mxu0 0
      %2309 = vmatpush.bf16.msra.mxu0 %v2288
      %2310 = vmatpush.bf16.msra.mxu0 %v2287
      %2311 = vmatpush.bf16.msra.mxu0 %v2286
      %2312 = vmatpush.bf16.msra.mxu0 %v2285
      %2313 = vmatmul.bf16.gmra.mxu0 %v2294
      %v2314 = vpop.f32.mrf.mxu0
      %v2315 = vadd.f32 0.0, %v2314
      %v2316 = vpop.f32.mrf.mxu0
      %v2317 = vadd.f32 0.0, %v2316
      %2318 = vmatmul.bf16.gmra.mxu0 %v2297
      %v2319 = vpop.f32.mrf.mxu0
      %v2320 = vadd.f32 0.0, %v2319
      %v2321 = vpop.f32.mrf.mxu0
      %v2322 = vadd.f32 0.0, %v2321
      %2323 = vmatmul.bf16.gmra.mxu0 %v2300
      %v2324 = vpop.f32.mrf.mxu0
      %v2325 = vadd.f32 0.0, %v2324
      %v2326 = vpop.f32.mrf.mxu0
      %v2327 = vadd.f32 0.0, %v2326
      %2328 = vmatmul.bf16.gmra.mxu0 %v2303
      %v2329 = vpop.f32.mrf.mxu0
      %v2330 = vadd.f32 0.0, %v2329
      %v2331 = vpop.f32.mrf.mxu0
      %v2332 = vadd.f32 0.0, %v2331
      %2333 = vdwg.mxu0
      %v2334 = vrot.slane %v1730, 4
      %v2335 = vrot.slane %v1731, 4
      %v2336 = vrot.slane %v1732, 4
      %v2337 = vrot.slane %v1733, 4
      %v2338 = vrot.slane %v1734, 4
      %v2339 = vrot.slane %v1735, 4
      %v2340 = vrot.slane %v1736, 4
      %v2341 = vrot.slane %v1737, 4
      %v2342 = vrot.slane %v1746, 4
      %v2343 = vrot.slane %v1747, 4
      %v2344 = vrot.slane %v1748, 4
      %v2345 = vrot.slane %v1749, 4
      %v2346 = vrot.slane %v1750, 4
      %v2347 = vrot.slane %v1751, 4
      %v2348 = vrot.slane %v1752, 4
      %v2349 = vrot.slane %v1753, 4
      %v2350 = vunpack.c.l.b16 %v2334
      %v2351 = vunpack.c.l.b16 %v2335
      %v2352 = vunpack.c.l.b16 %v2336
      %v2353 = vunpack.c.l.b16 %v2337
      %v2354 = vunpack.c.l.b16 %v2338
      %v2355 = vunpack.c.l.b16 %v2339
      %v2356 = vunpack.c.l.b16 %v2340
      %v2357 = vunpack.c.l.b16 %v2341
      %v2358 = vpack.c.b16 %v2351, %v2350
      %v2359 = vpack.c.b16 %v2353, %v2352
      %v2360 = vpack.c.b16 %v2355, %v2354
      %v2361 = vpack.c.b16 %v2357, %v2356
      %v2366 = vunpack.c.l.b16 %v2342
      %v2367 = vunpack.c.l.b16 %v2343
      %v2368 = vunpack.c.l.b16 %v2344
      %v2369 = vunpack.c.l.b16 %v2345
      %v2370 = vunpack.c.l.b16 %v2346
      %v2371 = vunpack.c.l.b16 %v2347
      %v2372 = vunpack.c.l.b16 %v2348
      %v2373 = vunpack.c.l.b16 %v2349
      %v2374 = vpack.c.b16 %v2367, %v2366
      %v2375 = vpack.c.b16 %v2369, %v2368
      %v2376 = vpack.c.b16 %v2371, %v2370
      %v2377 = vpack.c.b16 %v2373, %v2372
      %2382 = vmatpush.bf16.xpose.msra.mxu0 0
      %2383 = vmatpush.bf16.xpose.msra.mxu0 0
      %2384 = vmatpush.bf16.xpose.msra.mxu0 0
      %2385 = vmatpush.bf16.xpose.msra.mxu0 0
      %2386 = vmatpush.bf16.xpose.msra.mxu0 %v2377
      %2387 = vmatpush.bf16.xpose.msra.mxu0 %v2376
      %2388 = vmatpush.bf16.xpose.msra.mxu0 %v2375
      %2389 = vmatpush.bf16.xpose.msra.mxu0 %v2374
      %2390 = vmatmul.bf16.gmra.mxu0 %v2358
      %v2391 = vpop.f32.mrf.mxu0
      %v2392 = vadd.f32 0.0, %v2391
      %v2393 = vpop.f32.mrf.mxu0
      %v2394 = vadd.f32 0.0, %v2393
      %2395 = vmatmul.bf16.gmra.mxu0 %v2359
      %v2396 = vpop.f32.mrf.mxu0
      %v2397 = vadd.f32 0.0, %v2396
      %v2398 = vpop.f32.mrf.mxu0
      %v2399 = vadd.f32 0.0, %v2398
      %2400 = vmatmul.bf16.gmra.mxu0 %v2360
      %v2401 = vpop.f32.mrf.mxu0
      %v2402 = vadd.f32 0.0, %v2401
      %v2403 = vpop.f32.mrf.mxu0
      %v2404 = vadd.f32 0.0, %v2403
      %2405 = vmatmul.bf16.gmra.mxu0 %v2361
      %v2406 = vpop.f32.mrf.mxu0
      %v2407 = vadd.f32 0.0, %v2406
      %v2408 = vpop.f32.mrf.mxu0
      %v2409 = vadd.f32 0.0, %v2408
      %2410 = vdwg.mxu0
      %v2411 = vrot.slane %v1738, 4
      %v2412 = vrot.slane %v1739, 4
      %v2413 = vrot.slane %v1740, 4
      %v2414 = vrot.slane %v1741, 4
      %v2415 = vrot.slane %v1742, 4
      %v2416 = vrot.slane %v1743, 4
      %v2417 = vrot.slane %v1744, 4
      %v2418 = vrot.slane %v1745, 4
      %v2419 = vrot.slane %v1754, 4
      %v2420 = vrot.slane %v1755, 4
      %v2421 = vrot.slane %v1756, 4
      %v2422 = vrot.slane %v1757, 4
      %v2423 = vrot.slane %v1758, 4
      %v2424 = vrot.slane %v1759, 4
      %v2425 = vrot.slane %v1760, 4
      %v2426 = vrot.slane %v1761, 4
      %v2427 = vunpack.c.l.b16 %v2411
      %v2428 = vunpack.c.l.b16 %v2412
      %v2429 = vunpack.c.l.b16 %v2413
      %v2430 = vunpack.c.l.b16 %v2414
      %v2431 = vunpack.c.l.b16 %v2415
      %v2432 = vunpack.c.l.b16 %v2416
      %v2433 = vunpack.c.l.b16 %v2417
      %v2434 = vunpack.c.l.b16 %v2418
      %v2435 = vpack.c.b16 %v2428, %v2427
      %v2436 = vpack.c.b16 %v2430, %v2429
      %v2437 = vpack.c.b16 %v2432, %v2431
      %v2438 = vpack.c.b16 %v2434, %v2433
      %v2443 = vunpack.c.l.b16 %v2419
      %v2444 = vunpack.c.l.b16 %v2420
      %v2445 = vunpack.c.l.b16 %v2421
      %v2446 = vunpack.c.l.b16 %v2422
      %v2447 = vunpack.c.l.b16 %v2423
      %v2448 = vunpack.c.l.b16 %v2424
      %v2449 = vunpack.c.l.b16 %v2425
      %v2450 = vunpack.c.l.b16 %v2426
      %v2451 = vpack.c.b16 %v2444, %v2443
      %v2452 = vpack.c.b16 %v2446, %v2445
      %v2453 = vpack.c.b16 %v2448, %v2447
      %v2454 = vpack.c.b16 %v2450, %v2449
      %2459 = vmatpush.bf16.xpose.msra.mxu0 0
      %2460 = vmatpush.bf16.xpose.msra.mxu0 0
      %2461 = vmatpush.bf16.xpose.msra.mxu0 0
      %2462 = vmatpush.bf16.xpose.msra.mxu0 0
      %2463 = vmatpush.bf16.xpose.msra.mxu0 %v2454
      %2464 = vmatpush.bf16.xpose.msra.mxu0 %v2453
      %2465 = vmatpush.bf16.xpose.msra.mxu0 %v2452
      %2466 = vmatpush.bf16.xpose.msra.mxu0 %v2451
      %2467 = vmatmul.bf16.gmra.mxu0 %v2435
      %v2468 = vpop.f32.mrf.mxu0
      %v2469 = vadd.f32 0.0, %v2468
      %v2470 = vpop.f32.mrf.mxu0
      %v2471 = vadd.f32 0.0, %v2470
      %2472 = vmatmul.bf16.gmra.mxu0 %v2436
      %v2473 = vpop.f32.mrf.mxu0
      %v2474 = vadd.f32 0.0, %v2473
      %v2475 = vpop.f32.mrf.mxu0
      %v2476 = vadd.f32 0.0, %v2475
      %2477 = vmatmul.bf16.gmra.mxu0 %v2437
      %v2478 = vpop.f32.mrf.mxu0
      %v2479 = vadd.f32 0.0, %v2478
      %v2480 = vpop.f32.mrf.mxu0
      %v2481 = vadd.f32 0.0, %v2480
      %2482 = vmatmul.bf16.gmra.mxu0 %v2438
      %v2483 = vpop.f32.mrf.mxu0
      %v2484 = vadd.f32 0.0, %v2483
      %v2485 = vpop.f32.mrf.mxu0
      %v2486 = vadd.f32 0.0, %v2485
      %2487 = vdwg.mxu0
      %v2488 = vmul.f32 %v2392, 0.088388346
      %v2489 = vmul.f32 %v2394, 0.088388346
      %v2490 = vmul.f32 %v2397, 0.088388346
      %v2491 = vmul.f32 %v2399, 0.088388346
      %v2492 = vmul.f32 %v2402, 0.088388346
      %v2493 = vmul.f32 %v2404, 0.088388346
      %v2494 = vmul.f32 %v2407, 0.088388346
      %v2495 = vmul.f32 %v2409, 0.088388346
      %v2496 = vmul.f32 %v2469, 0.088388346
      %v2497 = vmul.f32 %v2471, 0.088388346
      %v2498 = vmul.f32 %v2474, 0.088388346
      %v2499 = vmul.f32 %v2476, 0.088388346
      %v2500 = vmul.f32 %v2479, 0.088388346
      %v2501 = vmul.f32 %v2481, 0.088388346
      %v2502 = vmul.f32 %v2484, 0.088388346
      %v2503 = vmul.f32 %v2486, 0.088388346
      %v2504 = vadd.f32 %v2488, %v1951
      %v2505 = vadd.f32 %v2489, %v1951
      %v2506 = vadd.f32 %v2490, %v1951
      %v2507 = vadd.f32 %v2491, %v1951
      %v2508 = vadd.f32 %v2492, %v1951
      %v2509 = vadd.f32 %v2493, %v1951
      %v2510 = vadd.f32 %v2494, %v1951
      %v2511 = vadd.f32 %v2495, %v1951
      %v2512 = vadd.f32 %v2496, %v1952
      %v2513 = vadd.f32 %v2497, %v1952
      %v2514 = vadd.f32 %v2498, %v1952
      %v2515 = vadd.f32 %v2499, %v1952
      %v2516 = vadd.f32 %v2500, %v1952
      %v2517 = vadd.f32 %v2501, %v1952
      %v2518 = vadd.f32 %v2502, %v1952
      %v2519 = vadd.f32 %v2503, %v1952
      %v2520 = vsel %vm1971, %v2504, -inf
      %2521 = vmax.xlane.f32.xlu0 %v2520
      %v2522 = vpop.xlane.xlu0 %2521
      %v2523 = vsel %vm1971, %v2505, -inf
      %2524 = vmax.xlane.f32.xlu0 %v2523
      %v2525 = vpop.xlane.xlu0 %2524
      %v2526 = vsel %vm1971, %v2506, -inf
      %2527 = vmax.xlane.f32.xlu0 %v2526
      %v2528 = vpop.xlane.xlu0 %2527
      %v2529 = vsel %vm1971, %v2507, -inf
      %2530 = vmax.xlane.f32.xlu0 %v2529
      %v2531 = vpop.xlane.xlu0 %2530
      %v2532 = vsel %vm1971, %v2508, -inf
      %2533 = vmax.xlane.f32.xlu0 %v2532
      %v2534 = vpop.xlane.xlu0 %2533
      %v2535 = vsel %vm1971, %v2509, -inf
      %2536 = vmax.xlane.f32.xlu0 %v2535
      %v2537 = vpop.xlane.xlu0 %2536
      %v2538 = vsel %vm1971, %v2510, -inf
      %2539 = vmax.xlane.f32.xlu0 %v2538
      %v2540 = vpop.xlane.xlu0 %2539
      %v2541 = vsel %vm1971, %v2511, -inf
      %2542 = vmax.xlane.f32.xlu0 %v2541
      %v2543 = vpop.xlane.xlu0 %2542
      %v2544 = vsel %vm1971, %v2512, -inf
      %2545 = vmax.xlane.f32.xlu0 %v2544
      %v2546 = vpop.xlane.xlu0 %2545
      %v2547 = vsel %vm1971, %v2513, -inf
      %2548 = vmax.xlane.f32.xlu0 %v2547
      %v2549 = vpop.xlane.xlu0 %2548
      %v2550 = vsel %vm1971, %v2514, -inf
      %2551 = vmax.xlane.f32.xlu0 %v2550
      %v2552 = vpop.xlane.xlu0 %2551
      %v2553 = vsel %vm1971, %v2515, -inf
      %2554 = vmax.xlane.f32.xlu0 %v2553
      %v2555 = vpop.xlane.xlu0 %2554
      %v2556 = vsel %vm1971, %v2516, -inf
      %2557 = vmax.xlane.f32.xlu0 %v2556
      %v2558 = vpop.xlane.xlu0 %2557
      %v2559 = vsel %vm1971, %v2517, -inf
      %2560 = vmax.xlane.f32.xlu0 %v2559
      %v2561 = vpop.xlane.xlu0 %2560
      %v2562 = vsel %vm1971, %v2518, -inf
      %2563 = vmax.xlane.f32.xlu0 %v2562
      %v2564 = vpop.xlane.xlu0 %2563
      %v2565 = vsel %vm1971, %v2519, -inf
      %2566 = vmax.xlane.f32.xlu0 %v2565
      %v2567 = vpop.xlane.xlu0 %2566
      %v2568 = vsub.f32 %v2504, %v2522
      %v2569 = vsub.f32 %v2505, %v2525
      %v2570 = vsub.f32 %v2506, %v2528
      %v2571 = vsub.f32 %v2507, %v2531
      %v2572 = vsub.f32 %v2508, %v2534
      %v2573 = vsub.f32 %v2509, %v2537
      %v2574 = vsub.f32 %v2510, %v2540
      %v2575 = vsub.f32 %v2511, %v2543
      %v2576 = vsub.f32 %v2512, %v2546
      %v2577 = vsub.f32 %v2513, %v2549
      %v2578 = vsub.f32 %v2514, %v2552
      %v2579 = vsub.f32 %v2515, %v2555
      %v2580 = vsub.f32 %v2516, %v2558
      %v2581 = vsub.f32 %v2517, %v2561
      %v2582 = vsub.f32 %v2518, %v2564
      %v2583 = vsub.f32 %v2519, %v2567
      %v2584 = vmul.f32 %v2568, 1.442695
      %v2585 = vpow.pop %v2584
      %v2586 = vmul.f32 %v2569, 1.442695
      %v2587 = vpow.pop %v2586
      %v2588 = vmul.f32 %v2570, 1.442695
      %v2589 = vpow.pop %v2588
      %v2590 = vmul.f32 %v2571, 1.442695
      %v2591 = vpow.pop %v2590
      %v2592 = vmul.f32 %v2572, 1.442695
      %v2593 = vpow.pop %v2592
      %v2594 = vmul.f32 %v2573, 1.442695
      %v2595 = vpow.pop %v2594
      %v2596 = vmul.f32 %v2574, 1.442695
      %v2597 = vpow.pop %v2596
      %v2598 = vmul.f32 %v2575, 1.442695
      %v2599 = vpow.pop %v2598
      %v2600 = vmul.f32 %v2576, 1.442695
      %v2601 = vpow.pop %v2600
      %v2602 = vmul.f32 %v2577, 1.442695
      %v2603 = vpow.pop %v2602
      %v2604 = vmul.f32 %v2578, 1.442695
      %v2605 = vpow.pop %v2604
      %v2606 = vmul.f32 %v2579, 1.442695
      %v2607 = vpow.pop %v2606
      %v2608 = vmul.f32 %v2580, 1.442695
      %v2609 = vpow.pop %v2608
      %v2610 = vmul.f32 %v2581, 1.442695
      %v2611 = vpow.pop %v2610
      %v2612 = vmul.f32 %v2582, 1.442695
      %v2613 = vpow.pop %v2612
      %v2614 = vmul.f32 %v2583, 1.442695
      %v2615 = vpow.pop %v2614
      %v2616 = vsel %vm1971, %v2585, 0.0
      %2617 = vadd.xlane.f32.xlu0 %v2616
      %v2618 = vpop.xlane.xlu0 %2617
      %v2619 = vsel %vm1971, %v2587, 0.0
      %2620 = vadd.xlane.f32.xlu0 %v2619
      %v2621 = vpop.xlane.xlu0 %2620
      %v2622 = vsel %vm1971, %v2589, 0.0
      %2623 = vadd.xlane.f32.xlu0 %v2622
      %v2624 = vpop.xlane.xlu0 %2623
      %v2625 = vsel %vm1971, %v2591, 0.0
      %2626 = vadd.xlane.f32.xlu0 %v2625
      %v2627 = vpop.xlane.xlu0 %2626
      %v2628 = vsel %vm1971, %v2593, 0.0
      %2629 = vadd.xlane.f32.xlu0 %v2628
      %v2630 = vpop.xlane.xlu0 %2629
      %v2631 = vsel %vm1971, %v2595, 0.0
      %2632 = vadd.xlane.f32.xlu0 %v2631
      %v2633 = vpop.xlane.xlu0 %2632
      %v2634 = vsel %vm1971, %v2597, 0.0
      %2635 = vadd.xlane.f32.xlu0 %v2634
      %v2636 = vpop.xlane.xlu0 %2635
      %v2637 = vsel %vm1971, %v2599, 0.0
      %2638 = vadd.xlane.f32.xlu0 %v2637
      %v2639 = vpop.xlane.xlu0 %2638
      %v2640 = vsel %vm1971, %v2601, 0.0
      %2641 = vadd.xlane.f32.xlu0 %v2640
      %v2642 = vpop.xlane.xlu0 %2641
      %v2643 = vsel %vm1971, %v2603, 0.0
      %2644 = vadd.xlane.f32.xlu0 %v2643
      %v2645 = vpop.xlane.xlu0 %2644
      %v2646 = vsel %vm1971, %v2605, 0.0
      %2647 = vadd.xlane.f32.xlu0 %v2646
      %v2648 = vpop.xlane.xlu0 %2647
      %v2649 = vsel %vm1971, %v2607, 0.0
      %2650 = vadd.xlane.f32.xlu0 %v2649
      %v2651 = vpop.xlane.xlu0 %2650
      %v2652 = vsel %vm1971, %v2609, 0.0
      %2653 = vadd.xlane.f32.xlu0 %v2652
      %v2654 = vpop.xlane.xlu0 %2653
      %v2655 = vsel %vm1971, %v2611, 0.0
      %2656 = vadd.xlane.f32.xlu0 %v2655
      %v2657 = vpop.xlane.xlu0 %2656
      %v2658 = vsel %vm1971, %v2613, 0.0
      %2659 = vadd.xlane.f32.xlu0 %v2658
      %v2660 = vpop.xlane.xlu0 %2659
      %v2661 = vsel %vm1971, %v2615, 0.0
      %2662 = vadd.xlane.f32.xlu0 %v2661
      %v2663 = vpop.xlane.xlu0 %2662
      %v2664 = vrcp.pop %v2618
      %v2665 = vrcp.pop %v2621
      %v2666 = vrcp.pop %v2624
      %v2667 = vrcp.pop %v2627
      %v2668 = vrcp.pop %v2630
      %v2669 = vrcp.pop %v2633
      %v2670 = vrcp.pop %v2636
      %v2671 = vrcp.pop %v2639
      %v2672 = vrcp.pop %v2642
      %v2673 = vrcp.pop %v2645
      %v2674 = vrcp.pop %v2648
      %v2675 = vrcp.pop %v2651
      %v2676 = vrcp.pop %v2654
      %v2677 = vrcp.pop %v2657
      %v2678 = vrcp.pop %v2660
      %v2679 = vrcp.pop %v2663
      %v2680 = vmul.f32 %v2585, %v2664
      %v2681 = vmul.f32 %v2587, %v2665
      %v2682 = vmul.f32 %v2589, %v2666
      %v2683 = vmul.f32 %v2591, %v2667
      %v2684 = vmul.f32 %v2593, %v2668
      %v2685 = vmul.f32 %v2595, %v2669
      %v2686 = vmul.f32 %v2597, %v2670
      %v2687 = vmul.f32 %v2599, %v2671
      %v2688 = vmul.f32 %v2601, %v2672
      %v2689 = vmul.f32 %v2603, %v2673
      %v2690 = vmul.f32 %v2605, %v2674
      %v2691 = vmul.f32 %v2607, %v2675
      %v2692 = vmul.f32 %v2609, %v2676
      %v2693 = vmul.f32 %v2611, %v2677
      %v2694 = vmul.f32 %v2613, %v2678
      %v2695 = vmul.f32 %v2615, %v2679
      %v2696 = vpack.c.bf16 %v2680, %v2680
      %v2697 = vpack.c.bf16 %v2681, %v2681
      %v2698 = vpack.c.bf16 %v2682, %v2682
      %v2699 = vpack.c.bf16 %v2683, %v2683
      %v2700 = vpack.c.bf16 %v2684, %v2684
      %v2701 = vpack.c.bf16 %v2685, %v2685
      %v2702 = vpack.c.bf16 %v2686, %v2686
      %v2703 = vpack.c.bf16 %v2687, %v2687
      %v2704 = vpack.c.bf16 %v2688, %v2688
      %v2705 = vpack.c.bf16 %v2689, %v2689
      %v2706 = vpack.c.bf16 %v2690, %v2690
      %v2707 = vpack.c.bf16 %v2691, %v2691
      %v2708 = vpack.c.bf16 %v2692, %v2692
      %v2709 = vpack.c.bf16 %v2693, %v2693
      %v2710 = vpack.c.bf16 %v2694, %v2694
      %v2711 = vpack.c.bf16 %v2695, %v2695
      %v2712 = vrot.slane %v1762, 4
      %v2713 = vrot.slane %v1763, 4
      %v2714 = vrot.slane %v1764, 4
      %v2715 = vrot.slane %v1765, 4
      %v2716 = vrot.slane %v1766, 4
      %v2717 = vrot.slane %v1767, 4
      %v2718 = vrot.slane %v1768, 4
      %v2719 = vrot.slane %v1769, 4
      %v2728 = vunpack.c.l.b16 %v2696
      %v2729 = vunpack.c.l.b16 %v2697
      %v2730 = vunpack.c.l.b16 %v2698
      %v2731 = vunpack.c.l.b16 %v2699
      %v2732 = vunpack.c.l.b16 %v2700
      %v2733 = vunpack.c.l.b16 %v2701
      %v2734 = vunpack.c.l.b16 %v2702
      %v2735 = vunpack.c.l.b16 %v2703
      %v2736 = vpack.c.b16 %v2729, %v2728
      %v2737 = vpack.c.b16 %v2731, %v2730
      %v2738 = vpack.c.b16 %v2733, %v2732
      %v2739 = vpack.c.b16 %v2735, %v2734
      %v2740 = vunpack.c.l.b16 %v2712
      %v2741 = vunpack.c.l.b16 %v2713
      %v2742 = vunpack.c.l.b16 %v2714
      %v2743 = vunpack.c.l.b16 %v2715
      %v2744 = vunpack.c.l.b16 %v2716
      %v2745 = vunpack.c.l.b16 %v2717
      %v2746 = vunpack.c.l.b16 %v2718
      %v2747 = vunpack.c.l.b16 %v2719
      %v2748 = vpack.c.b16 %v2741, %v2740
      %v2749 = vpack.c.b16 %v2743, %v2742
      %v2750 = vpack.c.b16 %v2745, %v2744
      %v2751 = vpack.c.b16 %v2747, %v2746
      %v2757 = vsel %vm1971, %v2736, 0
      %v2760 = vsel %vm1971, %v2737, 0
      %v2763 = vsel %vm1971, %v2738, 0
      %v2766 = vsel %vm1971, %v2739, 0
      %2768 = vmatpush.bf16.msra.mxu0 0
      %2769 = vmatpush.bf16.msra.mxu0 0
      %2770 = vmatpush.bf16.msra.mxu0 0
      %2771 = vmatpush.bf16.msra.mxu0 0
      %2772 = vmatpush.bf16.msra.mxu0 %v2751
      %2773 = vmatpush.bf16.msra.mxu0 %v2750
      %2774 = vmatpush.bf16.msra.mxu0 %v2749
      %2775 = vmatpush.bf16.msra.mxu0 %v2748
      %2776 = vmatmul.bf16.gmra.mxu0 %v2757
      %v2777 = vpop.f32.mrf.mxu0
      %v2778 = vadd.f32 0.0, %v2777
      %v2779 = vpop.f32.mrf.mxu0
      %v2780 = vadd.f32 0.0, %v2779
      %2781 = vmatmul.bf16.gmra.mxu0 %v2760
      %v2782 = vpop.f32.mrf.mxu0
      %v2783 = vadd.f32 0.0, %v2782
      %v2784 = vpop.f32.mrf.mxu0
      %v2785 = vadd.f32 0.0, %v2784
      %2786 = vmatmul.bf16.gmra.mxu0 %v2763
      %v2787 = vpop.f32.mrf.mxu0
      %v2788 = vadd.f32 0.0, %v2787
      %v2789 = vpop.f32.mrf.mxu0
      %v2790 = vadd.f32 0.0, %v2789
      %2791 = vmatmul.bf16.gmra.mxu0 %v2766
      %v2792 = vpop.f32.mrf.mxu0
      %v2793 = vadd.f32 0.0, %v2792
      %v2794 = vpop.f32.mrf.mxu0
      %v2795 = vadd.f32 0.0, %v2794
      %2796 = vdwg.mxu0
      %v2797 = vrot.slane %v1770, 4
      %v2798 = vrot.slane %v1771, 4
      %v2799 = vrot.slane %v1772, 4
      %v2800 = vrot.slane %v1773, 4
      %v2801 = vrot.slane %v1774, 4
      %v2802 = vrot.slane %v1775, 4
      %v2803 = vrot.slane %v1776, 4
      %v2804 = vrot.slane %v1777, 4
      %v2813 = vunpack.c.l.b16 %v2704
      %v2814 = vunpack.c.l.b16 %v2705
      %v2815 = vunpack.c.l.b16 %v2706
      %v2816 = vunpack.c.l.b16 %v2707
      %v2817 = vunpack.c.l.b16 %v2708
      %v2818 = vunpack.c.l.b16 %v2709
      %v2819 = vunpack.c.l.b16 %v2710
      %v2820 = vunpack.c.l.b16 %v2711
      %v2821 = vpack.c.b16 %v2814, %v2813
      %v2822 = vpack.c.b16 %v2816, %v2815
      %v2823 = vpack.c.b16 %v2818, %v2817
      %v2824 = vpack.c.b16 %v2820, %v2819
      %v2825 = vunpack.c.l.b16 %v2797
      %v2826 = vunpack.c.l.b16 %v2798
      %v2827 = vunpack.c.l.b16 %v2799
      %v2828 = vunpack.c.l.b16 %v2800
      %v2829 = vunpack.c.l.b16 %v2801
      %v2830 = vunpack.c.l.b16 %v2802
      %v2831 = vunpack.c.l.b16 %v2803
      %v2832 = vunpack.c.l.b16 %v2804
      %v2833 = vpack.c.b16 %v2826, %v2825
      %v2834 = vpack.c.b16 %v2828, %v2827
      %v2835 = vpack.c.b16 %v2830, %v2829
      %v2836 = vpack.c.b16 %v2832, %v2831
      %v2842 = vsel %vm1971, %v2821, 0
      %v2845 = vsel %vm1971, %v2822, 0
      %v2848 = vsel %vm1971, %v2823, 0
      %v2851 = vsel %vm1971, %v2824, 0
      %2853 = vmatpush.bf16.msra.mxu0 0
      %2854 = vmatpush.bf16.msra.mxu0 0
      %2855 = vmatpush.bf16.msra.mxu0 0
      %2856 = vmatpush.bf16.msra.mxu0 0
      %2857 = vmatpush.bf16.msra.mxu0 %v2836
      %2858 = vmatpush.bf16.msra.mxu0 %v2835
      %2859 = vmatpush.bf16.msra.mxu0 %v2834
      %2860 = vmatpush.bf16.msra.mxu0 %v2833
      %2861 = vmatmul.bf16.gmra.mxu0 %v2842
      %v2862 = vpop.f32.mrf.mxu0
      %v2863 = vadd.f32 0.0, %v2862
      %v2864 = vpop.f32.mrf.mxu0
      %v2865 = vadd.f32 0.0, %v2864
      %2866 = vmatmul.bf16.gmra.mxu0 %v2845
      %v2867 = vpop.f32.mrf.mxu0
      %v2868 = vadd.f32 0.0, %v2867
      %v2869 = vpop.f32.mrf.mxu0
      %v2870 = vadd.f32 0.0, %v2869
      %2871 = vmatmul.bf16.gmra.mxu0 %v2848
      %v2872 = vpop.f32.mrf.mxu0
      %v2873 = vadd.f32 0.0, %v2872
      %v2874 = vpop.f32.mrf.mxu0
      %v2875 = vadd.f32 0.0, %v2874
      %2876 = vmatmul.bf16.gmra.mxu0 %v2851
      %v2877 = vpop.f32.mrf.mxu0
      %v2878 = vadd.f32 0.0, %v2877
      %v2879 = vpop.f32.mrf.mxu0
      %v2880 = vadd.f32 0.0, %v2879
      %2881 = vdwg.mxu0
      %v2882 = vpack.c.bf16 %v2232, %v2230
      %v2883 = vpack.c.bf16 %v2780, %v2778
      %v2884 = vpack.c.bf16 %v2237, %v2235
      %v2885 = vpack.c.bf16 %v2785, %v2783
      %v2886 = vpack.c.bf16 %v2242, %v2240
      %v2887 = vpack.c.bf16 %v2790, %v2788
      %v2888 = vpack.c.bf16 %v2247, %v2245
      %v2889 = vpack.c.bf16 %v2795, %v2793
      %v2890 = vpack.c.bf16 %v2317, %v2315
      %v2891 = vpack.c.bf16 %v2865, %v2863
      %v2892 = vpack.c.bf16 %v2322, %v2320
      %v2893 = vpack.c.bf16 %v2870, %v2868
      %v2894 = vpack.c.bf16 %v2327, %v2325
      %v2895 = vpack.c.bf16 %v2875, %v2873
      %v2896 = vpack.c.bf16 %v2332, %v2330
      %v2897 = vpack.c.bf16 %v2880, %v2878
      %v2898 = vld [vmem:[%s394] sm:$0xff]
      %v2899 = vld [vmem:[%s394 + $0x8] sm:$0xff]
      %v2900 = vld [vmem:[%s394 + $0x10] sm:$0xff]
      %v2901 = vld [vmem:[%s394 + $0x18] sm:$0xff]
      %v2902 = vld [vmem:[%s394 + $0x20] sm:$0xff]
      %v2903 = vld [vmem:[%s394 + $0x28] sm:$0xff]
      %v2904 = vld [vmem:[%s394 + $0x30] sm:$0xff]
      %v2905 = vld [vmem:[%s394 + $0x38] sm:$0xff]
      %v2906 = vld [vmem:[%s394 + $0x40] sm:$0xff]
      %v2907 = vld [vmem:[%s394 + $0x48] sm:$0xff]
      %v2908 = vld [vmem:[%s394 + $0x50] sm:$0xff]
      %v2909 = vld [vmem:[%s394 + $0x58] sm:$0xff]
      %v2910 = vld [vmem:[%s394 + $0x60] sm:$0xff]
      %v2911 = vld [vmem:[%s394 + $0x68] sm:$0xff]
      %v2912 = vld [vmem:[%s394 + $0x70] sm:$0xff]
      %v2913 = vld [vmem:[%s394 + $0x78] sm:$0xff]
      %v2914 = vld [vmem:[%s394 + $0x80] sm:$0xff]
      %v2915 = vld [vmem:[%s394 + $0x88] sm:$0xff]
      %v2916 = vld [vmem:[%s394 + $0x90] sm:$0xff]
      %v2917 = vld [vmem:[%s394 + $0x98] sm:$0xff]
      %v2918 = vld [vmem:[%s394 + $0xa0] sm:$0xff]
      %v2919 = vld [vmem:[%s394 + $0xa8] sm:$0xff]
      %v2920 = vld [vmem:[%s394 + $0xb0] sm:$0xff]
      %v2921 = vld [vmem:[%s394 + $0xb8] sm:$0xff]
      %v2922 = vld [vmem:[%s394 + $0xc0] sm:$0xff]
      %v2923 = vld [vmem:[%s394 + $0xc8] sm:$0xff]
      %v2924 = vld [vmem:[%s394 + $0xd0] sm:$0xff]
      %v2925 = vld [vmem:[%s394 + $0xd8] sm:$0xff]
      %v2926 = vld [vmem:[%s394 + $0xe0] sm:$0xff]
      %v2927 = vld [vmem:[%s394 + $0xe8] sm:$0xff]
      %v2928 = vld [vmem:[%s394 + $0xf0] sm:$0xff]
      %v2929 = vld [vmem:[%s394 + $0xf8] sm:$0xff]
      %v2930 = vperm.slane %v538, 1
      %v2931 = vperm.slane %v539, 1
      %v2964 = vunpack.c.l.b16 %v2898
      %v2965 = vunpack.c.h.b16 %v2898
      %v2966 = vunpack.c.l.b16 %v2899
      %v2967 = vunpack.c.h.b16 %v2899
      %v2968 = vunpack.c.l.b16 %v2900
      %v2969 = vunpack.c.h.b16 %v2900
      %v2970 = vunpack.c.l.b16 %v2901
      %v2971 = vunpack.c.h.b16 %v2901
      %v2972 = vunpack.c.l.b16 %v2902
      %v2973 = vunpack.c.h.b16 %v2902
      %v2974 = vunpack.c.l.b16 %v2903
      %v2975 = vunpack.c.h.b16 %v2903
      %v2976 = vunpack.c.l.b16 %v2904
      %v2977 = vunpack.c.h.b16 %v2904
      %v2978 = vunpack.c.l.b16 %v2905
      %v2979 = vunpack.c.h.b16 %v2905
      %v2980 = vunpack.c.l.b16 %v2906
      %v2981 = vunpack.c.h.b16 %v2906
      %v2982 = vunpack.c.l.b16 %v2907
      %v2983 = vunpack.c.h.b16 %v2907
      %v2984 = vunpack.c.l.b16 %v2908
      %v2985 = vunpack.c.h.b16 %v2908
      %v2986 = vunpack.c.l.b16 %v2909
      %v2987 = vunpack.c.h.b16 %v2909
      %v2988 = vunpack.c.l.b16 %v2910
      %v2989 = vunpack.c.h.b16 %v2910
      %v2990 = vunpack.c.l.b16 %v2911
      %v2991 = vunpack.c.h.b16 %v2911
      %v2992 = vunpack.c.l.b16 %v2912
      %v2993 = vunpack.c.h.b16 %v2912
      %v2994 = vunpack.c.l.b16 %v2913
      %v2995 = vunpack.c.h.b16 %v2913
      %v2996 = vunpack.c.l.b16 %v2914
      %v2997 = vunpack.c.h.b16 %v2914
      %v2998 = vunpack.c.l.b16 %v2915
      %v2999 = vunpack.c.h.b16 %v2915
      %v3000 = vunpack.c.l.b16 %v2916
      %v3001 = vunpack.c.h.b16 %v2916
      %v3002 = vunpack.c.l.b16 %v2917
      %v3003 = vunpack.c.h.b16 %v2917
      %v3004 = vunpack.c.l.b16 %v2918
      %v3005 = vunpack.c.h.b16 %v2918
      %v3006 = vunpack.c.l.b16 %v2919
      %v3007 = vunpack.c.h.b16 %v2919
      %v3008 = vunpack.c.l.b16 %v2920
      %v3009 = vunpack.c.h.b16 %v2920
      %v3010 = vunpack.c.l.b16 %v2921
      %v3011 = vunpack.c.h.b16 %v2921
      %v3012 = vunpack.c.l.b16 %v2922
      %v3013 = vunpack.c.h.b16 %v2922
      %v3014 = vunpack.c.l.b16 %v2923
      %v3015 = vunpack.c.h.b16 %v2923
      %v3016 = vunpack.c.l.b16 %v2924
      %v3017 = vunpack.c.h.b16 %v2924
      %v3018 = vunpack.c.l.b16 %v2925
      %v3019 = vunpack.c.h.b16 %v2925
      %v3020 = vunpack.c.l.b16 %v2926
      %v3021 = vunpack.c.h.b16 %v2926
      %v3022 = vunpack.c.l.b16 %v2927
      %v3023 = vunpack.c.h.b16 %v2927
      %v3024 = vunpack.c.l.b16 %v2928
      %v3025 = vunpack.c.h.b16 %v2928
      %v3026 = vunpack.c.l.b16 %v2929
      %v3027 = vunpack.c.h.b16 %v2929
      %v3028 = vpack.c.b16 %v2966, %v2964
      %v3029 = vpack.c.b16 %v2967, %v2965
      %v3030 = vpack.c.b16 %v2970, %v2968
      %v3031 = vpack.c.b16 %v2971, %v2969
      %v3032 = vpack.c.b16 %v2974, %v2972
      %v3033 = vpack.c.b16 %v2975, %v2973
      %v3034 = vpack.c.b16 %v2978, %v2976
      %v3035 = vpack.c.b16 %v2979, %v2977
      %v3036 = vpack.c.b16 %v2982, %v2980
      %v3037 = vpack.c.b16 %v2983, %v2981
      %v3038 = vpack.c.b16 %v2986, %v2984
      %v3039 = vpack.c.b16 %v2987, %v2985
      %v3040 = vpack.c.b16 %v2990, %v2988
      %v3041 = vpack.c.b16 %v2991, %v2989
      %v3042 = vpack.c.b16 %v2994, %v2992
      %v3043 = vpack.c.b16 %v2995, %v2993
      %v3044 = vpack.c.b16 %v2998, %v2996
      %v3045 = vpack.c.b16 %v2999, %v2997
      %v3046 = vpack.c.b16 %v3002, %v3000
      %v3047 = vpack.c.b16 %v3003, %v3001
      %v3048 = vpack.c.b16 %v3006, %v3004
      %v3049 = vpack.c.b16 %v3007, %v3005
      %v3050 = vpack.c.b16 %v3010, %v3008
      %v3051 = vpack.c.b16 %v3011, %v3009
      %v3052 = vpack.c.b16 %v3014, %v3012
      %v3053 = vpack.c.b16 %v3015, %v3013
      %v3054 = vpack.c.b16 %v3018, %v3016
      %v3055 = vpack.c.b16 %v3019, %v3017
      %v3056 = vpack.c.b16 %v3022, %v3020
      %v3057 = vpack.c.b16 %v3023, %v3021
      %v3058 = vpack.c.b16 %v3026, %v3024
      %v3059 = vpack.c.b16 %v3027, %v3025
      %3092 = vmatpush.bf16.msra.mxu0 %v3042
      %3093 = vmatpush.bf16.msra.mxu0 %v3040
      %3094 = vmatpush.bf16.msra.mxu0 %v3038
      %3095 = vmatpush.bf16.msra.mxu0 %v3036
      %3096 = vmatpush.bf16.msra.mxu0 %v3034
      %3097 = vmatpush.bf16.msra.mxu0 %v3032
      %3098 = vmatpush.bf16.msra.mxu0 %v3030
      %3099 = vmatpush.bf16.msra.mxu0 %v3028
      %3100 = vmatmul.bf16.gmra.mxu0 %v2882
      %v3101 = vpop.f32.mrf.mxu0
      %v3102 = vadd.f32 %v2930, %v3101
      %v3103 = vpop.f32.mrf.mxu0
      %v3104 = vadd.f32 %v2930, %v3103
      %3105 = vmatmul.bf16.gmra.mxu0 %v2884
      %v3106 = vpop.f32.mrf.mxu0
      %v3107 = vadd.f32 %v2930, %v3106
      %v3108 = vpop.f32.mrf.mxu0
      %v3109 = vadd.f32 %v2930, %v3108
      %3110 = vmatmul.bf16.gmra.mxu0 %v2886
      %v3111 = vpop.f32.mrf.mxu0
      %v3112 = vadd.f32 %v2930, %v3111
      %v3113 = vpop.f32.mrf.mxu0
      %v3114 = vadd.f32 %v2930, %v3113
      %3115 = vmatmul.bf16.gmra.mxu0 %v2888
      %v3116 = vpop.f32.mrf.mxu0
      %v3117 = vadd.f32 %v2930, %v3116
      %v3118 = vpop.f32.mrf.mxu0
      %v3119 = vadd.f32 %v2930, %v3118
      %3120 = vmatmul.bf16.gmra.mxu0 %v2890
      %v3121 = vpop.f32.mrf.mxu0
      %v3122 = vadd.f32 %v2930, %v3121
      %v3123 = vpop.f32.mrf.mxu0
      %v3124 = vadd.f32 %v2930, %v3123
      %3125 = vmatmul.bf16.gmra.mxu0 %v2892
      %v3126 = vpop.f32.mrf.mxu0
      %v3127 = vadd.f32 %v2930, %v3126
      %v3128 = vpop.f32.mrf.mxu0
      %v3129 = vadd.f32 %v2930, %v3128
      %3130 = vmatmul.bf16.gmra.mxu0 %v2894
      %v3131 = vpop.f32.mrf.mxu0
      %v3132 = vadd.f32 %v2930, %v3131
      %v3133 = vpop.f32.mrf.mxu0
      %v3134 = vadd.f32 %v2930, %v3133
      %3135 = vmatmul.bf16.gmra.mxu0 %v2896
      %v3136 = vpop.f32.mrf.mxu0
      %v3137 = vadd.f32 %v2930, %v3136
      %v3138 = vpop.f32.mrf.mxu0
      %v3139 = vadd.f32 %v2930, %v3138
      %3140 = vdwg.mxu0
      %3141 = vmatpush.bf16.msra.mxu0 %v3058
      %3142 = vmatpush.bf16.msra.mxu0 %v3056
      %3143 = vmatpush.bf16.msra.mxu0 %v3054
      %3144 = vmatpush.bf16.msra.mxu0 %v3052
      %3145 = vmatpush.bf16.msra.mxu0 %v3050
      %3146 = vmatpush.bf16.msra.mxu0 %v3048
      %3147 = vmatpush.bf16.msra.mxu0 %v3046
      %3148 = vmatpush.bf16.msra.mxu0 %v3044
      %3149 = vmatmul.bf16.gmra.mxu0 %v2883
      %v3150 = vpop.f32.mrf.mxu0
      %v3151 = vadd.f32 %v3102, %v3150
      %v3152 = vpop.f32.mrf.mxu0
      %v3153 = vadd.f32 %v3104, %v3152
      %3154 = vmatmul.bf16.gmra.mxu0 %v2885
      %v3155 = vpop.f32.mrf.mxu0
      %v3156 = vadd.f32 %v3107, %v3155
      %v3157 = vpop.f32.mrf.mxu0
      %v3158 = vadd.f32 %v3109, %v3157
      %3159 = vmatmul.bf16.gmra.mxu0 %v2887
      %v3160 = vpop.f32.mrf.mxu0
      %v3161 = vadd.f32 %v3112, %v3160
      %v3162 = vpop.f32.mrf.mxu0
      %v3163 = vadd.f32 %v3114, %v3162
      %3164 = vmatmul.bf16.gmra.mxu0 %v2889
      %v3165 = vpop.f32.mrf.mxu0
      %v3166 = vadd.f32 %v3117, %v3165
      %v3167 = vpop.f32.mrf.mxu0
      %v3168 = vadd.f32 %v3119, %v3167
      %3169 = vmatmul.bf16.gmra.mxu0 %v2891
      %v3170 = vpop.f32.mrf.mxu0
      %v3171 = vadd.f32 %v3122, %v3170
      %v3172 = vpop.f32.mrf.mxu0
      %v3173 = vadd.f32 %v3124, %v3172
      %3174 = vmatmul.bf16.gmra.mxu0 %v2893
      %v3175 = vpop.f32.mrf.mxu0
      %v3176 = vadd.f32 %v3127, %v3175
      %v3177 = vpop.f32.mrf.mxu0
      %v3178 = vadd.f32 %v3129, %v3177
      %3179 = vmatmul.bf16.gmra.mxu0 %v2895
      %v3180 = vpop.f32.mrf.mxu0
      %v3181 = vadd.f32 %v3132, %v3180
      %v3182 = vpop.f32.mrf.mxu0
      %v3183 = vadd.f32 %v3134, %v3182
      %3184 = vmatmul.bf16.gmra.mxu0 %v2897
      %v3185 = vpop.f32.mrf.mxu0
      %v3186 = vadd.f32 %v3137, %v3185
      %v3187 = vpop.f32.mrf.mxu0
      %v3188 = vadd.f32 %v3139, %v3187
      %3189 = vdwg.mxu0
      %3190 = vmatpush.bf16.msra.mxu0 %v3043
      %3191 = vmatpush.bf16.msra.mxu0 %v3041
      %3192 = vmatpush.bf16.msra.mxu0 %v3039
      %3193 = vmatpush.bf16.msra.mxu0 %v3037
      %3194 = vmatpush.bf16.msra.mxu0 %v3035
      %3195 = vmatpush.bf16.msra.mxu0 %v3033
      %3196 = vmatpush.bf16.msra.mxu0 %v3031
      %3197 = vmatpush.bf16.msra.mxu0 %v3029
      %3198 = vmatmul.bf16.gmra.mxu0 %v2882
      %v3199 = vpop.f32.mrf.mxu0
      %v3200 = vadd.f32 %v2931, %v3199
      %v3201 = vpop.f32.mrf.mxu0
      %v3202 = vadd.f32 %v2931, %v3201
      %3203 = vmatmul.bf16.gmra.mxu0 %v2884
      %v3204 = vpop.f32.mrf.mxu0
      %v3205 = vadd.f32 %v2931, %v3204
      %v3206 = vpop.f32.mrf.mxu0
      %v3207 = vadd.f32 %v2931, %v3206
      %3208 = vmatmul.bf16.gmra.mxu0 %v2886
      %v3209 = vpop.f32.mrf.mxu0
      %v3210 = vadd.f32 %v2931, %v3209
      %v3211 = vpop.f32.mrf.mxu0
      %v3212 = vadd.f32 %v2931, %v3211
      %3213 = vmatmul.bf16.gmra.mxu0 %v2888
      %v3214 = vpop.f32.mrf.mxu0
      %v3215 = vadd.f32 %v2931, %v3214
      %v3216 = vpop.f32.mrf.mxu0
      %v3217 = vadd.f32 %v2931, %v3216
      %3218 = vmatmul.bf16.gmra.mxu0 %v2890
      %v3219 = vpop.f32.mrf.mxu0
      %v3220 = vadd.f32 %v2931, %v3219
      %v3221 = vpop.f32.mrf.mxu0
      %v3222 = vadd.f32 %v2931, %v3221
      %3223 = vmatmul.bf16.gmra.mxu0 %v2892
      %v3224 = vpop.f32.mrf.mxu0
      %v3225 = vadd.f32 %v2931, %v3224
      %v3226 = vpop.f32.mrf.mxu0
      %v3227 = vadd.f32 %v2931, %v3226
      %3228 = vmatmul.bf16.gmra.mxu0 %v2894
      %v3229 = vpop.f32.mrf.mxu0
      %v3230 = vadd.f32 %v2931, %v3229
      %v3231 = vpop.f32.mrf.mxu0
      %v3232 = vadd.f32 %v2931, %v3231
      %3233 = vmatmul.bf16.gmra.mxu0 %v2896
      %v3234 = vpop.f32.mrf.mxu0
      %v3235 = vadd.f32 %v2931, %v3234
      %v3236 = vpop.f32.mrf.mxu0
      %v3237 = vadd.f32 %v2931, %v3236
      %3238 = vdwg.mxu0
      %3239 = vmatpush.bf16.msra.mxu0 %v3059
      %3240 = vmatpush.bf16.msra.mxu0 %v3057
      %3241 = vmatpush.bf16.msra.mxu0 %v3055
      %3242 = vmatpush.bf16.msra.mxu0 %v3053
      %3243 = vmatpush.bf16.msra.mxu0 %v3051
      %3244 = vmatpush.bf16.msra.mxu0 %v3049
      %3245 = vmatpush.bf16.msra.mxu0 %v3047
      %3246 = vmatpush.bf16.msra.mxu0 %v3045
      %3247 = vmatmul.bf16.gmra.mxu0 %v2883
      %v3248 = vpop.f32.mrf.mxu0
      %v3249 = vadd.f32 %v3200, %v3248
      %v3250 = vpop.f32.mrf.mxu0
      %v3251 = vadd.f32 %v3202, %v3250
      %3252 = vmatmul.bf16.gmra.mxu0 %v2885
      %v3253 = vpop.f32.mrf.mxu0
      %v3254 = vadd.f32 %v3205, %v3253
      %v3255 = vpop.f32.mrf.mxu0
      %v3256 = vadd.f32 %v3207, %v3255
      %3257 = vmatmul.bf16.gmra.mxu0 %v2887
      %v3258 = vpop.f32.mrf.mxu0
      %v3259 = vadd.f32 %v3210, %v3258
      %v3260 = vpop.f32.mrf.mxu0
      %v3261 = vadd.f32 %v3212, %v3260
      %3262 = vmatmul.bf16.gmra.mxu0 %v2889
      %v3263 = vpop.f32.mrf.mxu0
      %v3264 = vadd.f32 %v3215, %v3263
      %v3265 = vpop.f32.mrf.mxu0
      %v3266 = vadd.f32 %v3217, %v3265
      %3267 = vmatmul.bf16.gmra.mxu0 %v2891
      %v3268 = vpop.f32.mrf.mxu0
      %v3269 = vadd.f32 %v3220, %v3268
      %v3270 = vpop.f32.mrf.mxu0
      %v3271 = vadd.f32 %v3222, %v3270
      %3272 = vmatmul.bf16.gmra.mxu0 %v2893
      %v3273 = vpop.f32.mrf.mxu0
      %v3274 = vadd.f32 %v3225, %v3273
      %v3275 = vpop.f32.mrf.mxu0
      %v3276 = vadd.f32 %v3227, %v3275
      %3277 = vmatmul.bf16.gmra.mxu0 %v2895
      %v3278 = vpop.f32.mrf.mxu0
      %v3279 = vadd.f32 %v3230, %v3278
      %v3280 = vpop.f32.mrf.mxu0
      %v3281 = vadd.f32 %v3232, %v3280
      %3282 = vmatmul.bf16.gmra.mxu0 %v2897
      %v3283 = vpop.f32.mrf.mxu0
      %v3284 = vadd.f32 %v3235, %v3283
      %v3285 = vpop.f32.mrf.mxu0
      %v3286 = vadd.f32 %v3237, %v3285
      %3287 = vdwg.mxu0
      %v3288 = vadd.f32 %v506, %v3151
      %v3289 = vadd.f32 %v507, %v3249
      %v3290 = vadd.f32 %v508, %v3153
      %v3291 = vadd.f32 %v509, %v3251
      %v3292 = vadd.f32 %v510, %v3156
      %v3293 = vadd.f32 %v511, %v3254
      %v3294 = vadd.f32 %v512, %v3158
      %v3295 = vadd.f32 %v513, %v3256
      %v3296 = vadd.f32 %v514, %v3161
      %v3297 = vadd.f32 %v515, %v3259
      %v3298 = vadd.f32 %v516, %v3163
      %v3299 = vadd.f32 %v517, %v3261
      %v3300 = vadd.f32 %v518, %v3166
      %v3301 = vadd.f32 %v519, %v3264
      %v3302 = vadd.f32 %v520, %v3168
      %v3303 = vadd.f32 %v521, %v3266
      %v3304 = vadd.f32 %v522, %v3171
      %v3305 = vadd.f32 %v523, %v3269
      %v3306 = vadd.f32 %v524, %v3173
      %v3307 = vadd.f32 %v525, %v3271
      %v3308 = vadd.f32 %v526, %v3176
      %v3309 = vadd.f32 %v527, %v3274
      %v3310 = vadd.f32 %v528, %v3178
      %v3311 = vadd.f32 %v529, %v3276
      %v3312 = vadd.f32 %v530, %v3181
      %v3313 = vadd.f32 %v531, %v3279
      %v3314 = vadd.f32 %v532, %v3183
      %v3315 = vadd.f32 %v533, %v3281
      %v3316 = vadd.f32 %v534, %v3186
      %v3317 = vadd.f32 %v535, %v3284
      %v3318 = vadd.f32 %v536, %v3188
      %v3319 = vadd.f32 %v537, %v3286
      %v3320 = vadd.f32 %v3288, %v3289
      %3321 = vadd.xlane.f32.xlu0 %v3320
      %v3322 = vpop.xlane.xlu0 %3321
      %v3323 = vadd.f32 %v3290, %v3291
      %3324 = vadd.xlane.f32.xlu0 %v3323
      %v3325 = vpop.xlane.xlu0 %3324
      %v3326 = vadd.f32 %v3292, %v3293
      %3327 = vadd.xlane.f32.xlu0 %v3326
      %v3328 = vpop.xlane.xlu0 %3327
      %v3329 = vadd.f32 %v3294, %v3295
      %3330 = vadd.xlane.f32.xlu0 %v3329
      %v3331 = vpop.xlane.xlu0 %3330
      %v3332 = vadd.f32 %v3296, %v3297
      %3333 = vadd.xlane.f32.xlu0 %v3332
      %v3334 = vpop.xlane.xlu0 %3333
      %v3335 = vadd.f32 %v3298, %v3299
      %3336 = vadd.xlane.f32.xlu0 %v3335
      %v3337 = vpop.xlane.xlu0 %3336
      %v3338 = vadd.f32 %v3300, %v3301
      %3339 = vadd.xlane.f32.xlu0 %v3338
      %v3340 = vpop.xlane.xlu0 %3339
      %v3341 = vadd.f32 %v3302, %v3303
      %3342 = vadd.xlane.f32.xlu0 %v3341
      %v3343 = vpop.xlane.xlu0 %3342
      %v3344 = vadd.f32 %v3304, %v3305
      %3345 = vadd.xlane.f32.xlu0 %v3344
      %v3346 = vpop.xlane.xlu0 %3345
      %v3347 = vadd.f32 %v3306, %v3307
      %3348 = vadd.xlane.f32.xlu0 %v3347
      %v3349 = vpop.xlane.xlu0 %3348
      %v3350 = vadd.f32 %v3308, %v3309
      %3351 = vadd.xlane.f32.xlu0 %v3350
      %v3352 = vpop.xlane.xlu0 %3351
      %v3353 = vadd.f32 %v3310, %v3311
      %3354 = vadd.xlane.f32.xlu0 %v3353
      %v3355 = vpop.xlane.xlu0 %3354
      %v3356 = vadd.f32 %v3312, %v3313
      %3357 = vadd.xlane.f32.xlu0 %v3356
      %v3358 = vpop.xlane.xlu0 %3357
      %v3359 = vadd.f32 %v3314, %v3315
      %3360 = vadd.xlane.f32.xlu0 %v3359
      %v3361 = vpop.xlane.xlu0 %3360
      %v3362 = vadd.f32 %v3316, %v3317
      %3363 = vadd.xlane.f32.xlu0 %v3362
      %v3364 = vpop.xlane.xlu0 %3363
      %v3365 = vadd.f32 %v3318, %v3319
      %3366 = vadd.xlane.f32.xlu0 %v3365
      %v3367 = vpop.xlane.xlu0 %3366
      %v3368 = vrcp.pop 256.0
      %v3369 = vmul.f32 256.0, %v3368
      %v3370 = vsub.f32 1.0, %v3369
      %v3371 = vmul.f32 %v3368, %v3370
      %v3372 = vadd.f32 %v3368, %v3371
      %vm3373 = vweird.f32 %v3368
      %v3374 = vsel %vm3373, %v3368, %v3372
      %v3375 = vmul.f32 %v3322, %v3374
      %v3376 = vmul.f32 %v3325, %v3374
      %v3377 = vmul.f32 %v3328, %v3374
      %v3378 = vmul.f32 %v3331, %v3374
      %v3379 = vmul.f32 %v3334, %v3374
      %v3380 = vmul.f32 %v3337, %v3374
      %v3381 = vmul.f32 %v3340, %v3374
      %v3382 = vmul.f32 %v3343, %v3374
      %v3383 = vmul.f32 %v3346, %v3374
      %v3384 = vmul.f32 %v3349, %v3374
      %v3385 = vmul.f32 %v3352, %v3374
      %v3386 = vmul.f32 %v3355, %v3374
      %v3387 = vmul.f32 %v3358, %v3374
      %v3388 = vmul.f32 %v3361, %v3374
      %v3389 = vmul.f32 %v3364, %v3374
      %v3390 = vmul.f32 %v3367, %v3374
      %v3391 = vsub.f32 %v3288, %v3375
      %v3392 = vsub.f32 %v3289, %v3375
      %v3393 = vsub.f32 %v3290, %v3376
      %v3394 = vsub.f32 %v3291, %v3376
      %v3395 = vsub.f32 %v3292, %v3377
      %v3396 = vsub.f32 %v3293, %v3377
      %v3397 = vsub.f32 %v3294, %v3378
      %v3398 = vsub.f32 %v3295, %v3378
      %v3399 = vsub.f32 %v3296, %v3379
      %v3400 = vsub.f32 %v3297, %v3379
      %v3401 = vsub.f32 %v3298, %v3380
      %v3402 = vsub.f32 %v3299, %v3380
      %v3403 = vsub.f32 %v3300, %v3381
      %v3404 = vsub.f32 %v3301, %v3381
      %v3405 = vsub.f32 %v3302, %v3382
      %v3406 = vsub.f32 %v3303, %v3382
      %v3407 = vsub.f32 %v3304, %v3383
      %v3408 = vsub.f32 %v3305, %v3383
      %v3409 = vsub.f32 %v3306, %v3384
      %v3410 = vsub.f32 %v3307, %v3384
      %v3411 = vsub.f32 %v3308, %v3385
      %v3412 = vsub.f32 %v3309, %v3385
      %v3413 = vsub.f32 %v3310, %v3386
      %v3414 = vsub.f32 %v3311, %v3386
      %v3415 = vsub.f32 %v3312, %v3387
      %v3416 = vsub.f32 %v3313, %v3387
      %v3417 = vsub.f32 %v3314, %v3388
      %v3418 = vsub.f32 %v3315, %v3388
      %v3419 = vsub.f32 %v3316, %v3389
      %v3420 = vsub.f32 %v3317, %v3389
      %v3421 = vsub.f32 %v3318, %v3390
      %v3422 = vsub.f32 %v3319, %v3390
      %v3423 = vmul.f32 %v3391, %v3391
      %v3424 = vmul.f32 %v3392, %v3392
      %v3425 = vmul.f32 %v3393, %v3393
      %v3426 = vmul.f32 %v3394, %v3394
      %v3427 = vmul.f32 %v3395, %v3395
      %v3428 = vmul.f32 %v3396, %v3396
      %v3429 = vmul.f32 %v3397, %v3397
      %v3430 = vmul.f32 %v3398, %v3398
      %v3431 = vmul.f32 %v3399, %v3399
      %v3432 = vmul.f32 %v3400, %v3400
      %v3433 = vmul.f32 %v3401, %v3401
      %v3434 = vmul.f32 %v3402, %v3402
      %v3435 = vmul.f32 %v3403, %v3403
      %v3436 = vmul.f32 %v3404, %v3404
      %v3437 = vmul.f32 %v3405, %v3405
      %v3438 = vmul.f32 %v3406, %v3406
      %v3439 = vmul.f32 %v3407, %v3407
      %v3440 = vmul.f32 %v3408, %v3408
      %v3441 = vmul.f32 %v3409, %v3409
      %v3442 = vmul.f32 %v3410, %v3410
      %v3443 = vmul.f32 %v3411, %v3411
      %v3444 = vmul.f32 %v3412, %v3412
      %v3445 = vmul.f32 %v3413, %v3413
      %v3446 = vmul.f32 %v3414, %v3414
      %v3447 = vmul.f32 %v3415, %v3415
      %v3448 = vmul.f32 %v3416, %v3416
      %v3449 = vmul.f32 %v3417, %v3417
      %v3450 = vmul.f32 %v3418, %v3418
      %v3451 = vmul.f32 %v3419, %v3419
      %v3452 = vmul.f32 %v3420, %v3420
      %v3453 = vmul.f32 %v3421, %v3421
      %v3454 = vmul.f32 %v3422, %v3422
      %v3455 = vadd.f32 %v3423, %v3424
      %3456 = vadd.xlane.f32.xlu0 %v3455
      %v3457 = vpop.xlane.xlu0 %3456
      %v3458 = vadd.f32 %v3425, %v3426
      %3459 = vadd.xlane.f32.xlu0 %v3458
      %v3460 = vpop.xlane.xlu0 %3459
      %v3461 = vadd.f32 %v3427, %v3428
      %3462 = vadd.xlane.f32.xlu0 %v3461
      %v3463 = vpop.xlane.xlu0 %3462
      %v3464 = vadd.f32 %v3429, %v3430
      %3465 = vadd.xlane.f32.xlu0 %v3464
      %v3466 = vpop.xlane.xlu0 %3465
      %v3467 = vadd.f32 %v3431, %v3432
      %3468 = vadd.xlane.f32.xlu0 %v3467
      %v3469 = vpop.xlane.xlu0 %3468
      %v3470 = vadd.f32 %v3433, %v3434
      %3471 = vadd.xlane.f32.xlu0 %v3470
      %v3472 = vpop.xlane.xlu0 %3471
      %v3473 = vadd.f32 %v3435, %v3436
      %3474 = vadd.xlane.f32.xlu0 %v3473
      %v3475 = vpop.xlane.xlu0 %3474
      %v3476 = vadd.f32 %v3437, %v3438
      %3477 = vadd.xlane.f32.xlu0 %v3476
      %v3478 = vpop.xlane.xlu0 %3477
      %v3479 = vadd.f32 %v3439, %v3440
      %3480 = vadd.xlane.f32.xlu0 %v3479
      %v3481 = vpop.xlane.xlu0 %3480
      %v3482 = vadd.f32 %v3441, %v3442
      %3483 = vadd.xlane.f32.xlu0 %v3482
      %v3484 = vpop.xlane.xlu0 %3483
      %v3485 = vadd.f32 %v3443, %v3444
      %3486 = vadd.xlane.f32.xlu0 %v3485
      %v3487 = vpop.xlane.xlu0 %3486
      %v3488 = vadd.f32 %v3445, %v3446
      %3489 = vadd.xlane.f32.xlu0 %v3488
      %v3490 = vpop.xlane.xlu0 %3489
      %v3491 = vadd.f32 %v3447, %v3448
      %3492 = vadd.xlane.f32.xlu0 %v3491
      %v3493 = vpop.xlane.xlu0 %3492
      %v3494 = vadd.f32 %v3449, %v3450
      %3495 = vadd.xlane.f32.xlu0 %v3494
      %v3496 = vpop.xlane.xlu0 %3495
      %v3497 = vadd.f32 %v3451, %v3452
      %3498 = vadd.xlane.f32.xlu0 %v3497
      %v3499 = vpop.xlane.xlu0 %3498
      %v3500 = vadd.f32 %v3453, %v3454
      %3501 = vadd.xlane.f32.xlu0 %v3500
      %v3502 = vpop.xlane.xlu0 %3501
      %v3503 = vmul.f32 %v3457, %v3374
      %v3504 = vmul.f32 %v3460, %v3374
      %v3505 = vmul.f32 %v3463, %v3374
      %v3506 = vmul.f32 %v3466, %v3374
      %v3507 = vmul.f32 %v3469, %v3374
      %v3508 = vmul.f32 %v3472, %v3374
      %v3509 = vmul.f32 %v3475, %v3374
      %v3510 = vmul.f32 %v3478, %v3374
      %v3511 = vmul.f32 %v3481, %v3374
      %v3512 = vmul.f32 %v3484, %v3374
      %v3513 = vmul.f32 %v3487, %v3374
      %v3514 = vmul.f32 %v3490, %v3374
      %v3515 = vmul.f32 %v3493, %v3374
      %v3516 = vmul.f32 %v3496, %v3374
      %v3517 = vmul.f32 %v3499, %v3374
      %v3518 = vmul.f32 %v3502, %v3374
      %v3519 = vadd.f32 %v3503, 1e-05
      %v3520 = vadd.f32 %v3504, 1e-05
      %v3521 = vadd.f32 %v3505, 1e-05
      %v3522 = vadd.f32 %v3506, 1e-05
      %v3523 = vadd.f32 %v3507, 1e-05
      %v3524 = vadd.f32 %v3508, 1e-05
      %v3525 = vadd.f32 %v3509, 1e-05
      %v3526 = vadd.f32 %v3510, 1e-05
      %v3527 = vadd.f32 %v3511, 1e-05
      %v3528 = vadd.f32 %v3512, 1e-05
      %v3529 = vadd.f32 %v3513, 1e-05
      %v3530 = vadd.f32 %v3514, 1e-05
      %v3531 = vadd.f32 %v3515, 1e-05
      %v3532 = vadd.f32 %v3516, 1e-05
      %v3533 = vadd.f32 %v3517, 1e-05
      %v3534 = vadd.f32 %v3518, 1e-05
      %v3535 = vrsqrt.pop %v3519
      %v3536 = vmul.f32 %v3535, %v3519
      %v3537 = vmul.f32 %v3536, %v3535
      %v3538 = vmul.f32 0.5, %v3537
      %v3539 = vsub.f32 1.5, %v3538
      %v3540 = vmul.f32 %v3535, %v3539
      %vm3541 = vweird.f32 %v3519
      %vm3542 = vweird.f32 %v3535
      %vm3543 = vmor %vm3541, %vm3542
      %v3544 = vsel %vm3543, %v3535, %v3540
      %v3545 = vrsqrt.pop %v3520
      %v3546 = vmul.f32 %v3545, %v3520
      %v3547 = vmul.f32 %v3546, %v3545
      %v3548 = vmul.f32 0.5, %v3547
      %v3549 = vsub.f32 1.5, %v3548
      %v3550 = vmul.f32 %v3545, %v3549
      %vm3551 = vweird.f32 %v3520
      %vm3552 = vweird.f32 %v3545
      %vm3553 = vmor %vm3551, %vm3552
      %v3554 = vsel %vm3553, %v3545, %v3550
      %v3555 = vrsqrt.pop %v3521
      %v3556 = vmul.f32 %v3555, %v3521
      %v3557 = vmul.f32 %v3556, %v3555
      %v3558 = vmul.f32 0.5, %v3557
      %v3559 = vsub.f32 1.5, %v3558
      %v3560 = vmul.f32 %v3555, %v3559
      %vm3561 = vweird.f32 %v3521
      %vm3562 = vweird.f32 %v3555
      %vm3563 = vmor %vm3561, %vm3562
      %v3564 = vsel %vm3563, %v3555, %v3560
      %v3565 = vrsqrt.pop %v3522
      %v3566 = vmul.f32 %v3565, %v3522
      %v3567 = vmul.f32 %v3566, %v3565
      %v3568 = vmul.f32 0.5, %v3567
      %v3569 = vsub.f32 1.5, %v3568
      %v3570 = vmul.f32 %v3565, %v3569
      %vm3571 = vweird.f32 %v3522
      %vm3572 = vweird.f32 %v3565
      %vm3573 = vmor %vm3571, %vm3572
      %v3574 = vsel %vm3573, %v3565, %v3570
      %v3575 = vrsqrt.pop %v3523
      %v3576 = vmul.f32 %v3575, %v3523
      %v3577 = vmul.f32 %v3576, %v3575
      %v3578 = vmul.f32 0.5, %v3577
      %v3579 = vsub.f32 1.5, %v3578
      %v3580 = vmul.f32 %v3575, %v3579
      %vm3581 = vweird.f32 %v3523
      %vm3582 = vweird.f32 %v3575
      %vm3583 = vmor %vm3581, %vm3582
      %v3584 = vsel %vm3583, %v3575, %v3580
      %v3585 = vrsqrt.pop %v3524
      %v3586 = vmul.f32 %v3585, %v3524
      %v3587 = vmul.f32 %v3586, %v3585
      %v3588 = vmul.f32 0.5, %v3587
      %v3589 = vsub.f32 1.5, %v3588
      %v3590 = vmul.f32 %v3585, %v3589
      %vm3591 = vweird.f32 %v3524
      %vm3592 = vweird.f32 %v3585
      %vm3593 = vmor %vm3591, %vm3592
      %v3594 = vsel %vm3593, %v3585, %v3590
      %v3595 = vrsqrt.pop %v3525
      %v3596 = vmul.f32 %v3595, %v3525
      %v3597 = vmul.f32 %v3596, %v3595
      %v3598 = vmul.f32 0.5, %v3597
      %v3599 = vsub.f32 1.5, %v3598
      %v3600 = vmul.f32 %v3595, %v3599
      %vm3601 = vweird.f32 %v3525
      %vm3602 = vweird.f32 %v3595
      %vm3603 = vmor %vm3601, %vm3602
      %v3604 = vsel %vm3603, %v3595, %v3600
      %v3605 = vrsqrt.pop %v3526
      %v3606 = vmul.f32 %v3605, %v3526
      %v3607 = vmul.f32 %v3606, %v3605
      %v3608 = vmul.f32 0.5, %v3607
      %v3609 = vsub.f32 1.5, %v3608
      %v3610 = vmul.f32 %v3605, %v3609
      %vm3611 = vweird.f32 %v3526
      %vm3612 = vweird.f32 %v3605
      %vm3613 = vmor %vm3611, %vm3612
      %v3614 = vsel %vm3613, %v3605, %v3610
      %v3615 = vrsqrt.pop %v3527
      %v3616 = vmul.f32 %v3615, %v3527
      %v3617 = vmul.f32 %v3616, %v3615
      %v3618 = vmul.f32 0.5, %v3617
      %v3619 = vsub.f32 1.5, %v3618
      %v3620 = vmul.f32 %v3615, %v3619
      %vm3621 = vweird.f32 %v3527
      %vm3622 = vweird.f32 %v3615
      %vm3623 = vmor %vm3621, %vm3622
      %v3624 = vsel %vm3623, %v3615, %v3620
      %v3625 = vrsqrt.pop %v3528
      %v3626 = vmul.f32 %v3625, %v3528
      %v3627 = vmul.f32 %v3626, %v3625
      %v3628 = vmul.f32 0.5, %v3627
      %v3629 = vsub.f32 1.5, %v3628
      %v3630 = vmul.f32 %v3625, %v3629
      %vm3631 = vweird.f32 %v3528
      %vm3632 = vweird.f32 %v3625
      %vm3633 = vmor %vm3631, %vm3632
      %v3634 = vsel %vm3633, %v3625, %v3630
      %v3635 = vrsqrt.pop %v3529
      %v3636 = vmul.f32 %v3635, %v3529
      %v3637 = vmul.f32 %v3636, %v3635
      %v3638 = vmul.f32 0.5, %v3637
      %v3639 = vsub.f32 1.5, %v3638
      %v3640 = vmul.f32 %v3635, %v3639
      %vm3641 = vweird.f32 %v3529
      %vm3642 = vweird.f32 %v3635
      %vm3643 = vmor %vm3641, %vm3642
      %v3644 = vsel %vm3643, %v3635, %v3640
      %v3645 = vrsqrt.pop %v3530
      %v3646 = vmul.f32 %v3645, %v3530
      %v3647 = vmul.f32 %v3646, %v3645
      %v3648 = vmul.f32 0.5, %v3647
      %v3649 = vsub.f32 1.5, %v3648
      %v3650 = vmul.f32 %v3645, %v3649
      %vm3651 = vweird.f32 %v3530
      %vm3652 = vweird.f32 %v3645
      %vm3653 = vmor %vm3651, %vm3652
      %v3654 = vsel %vm3653, %v3645, %v3650
      %v3655 = vrsqrt.pop %v3531
      %v3656 = vmul.f32 %v3655, %v3531
      %v3657 = vmul.f32 %v3656, %v3655
      %v3658 = vmul.f32 0.5, %v3657
      %v3659 = vsub.f32 1.5, %v3658
      %v3660 = vmul.f32 %v3655, %v3659
      %vm3661 = vweird.f32 %v3531
      %vm3662 = vweird.f32 %v3655
      %vm3663 = vmor %vm3661, %vm3662
      %v3664 = vsel %vm3663, %v3655, %v3660
      %v3665 = vrsqrt.pop %v3532
      %v3666 = vmul.f32 %v3665, %v3532
      %v3667 = vmul.f32 %v3666, %v3665
      %v3668 = vmul.f32 0.5, %v3667
      %v3669 = vsub.f32 1.5, %v3668
      %v3670 = vmul.f32 %v3665, %v3669
      %vm3671 = vweird.f32 %v3532
      %vm3672 = vweird.f32 %v3665
      %vm3673 = vmor %vm3671, %vm3672
      %v3674 = vsel %vm3673, %v3665, %v3670
      %v3675 = vrsqrt.pop %v3533
      %v3676 = vmul.f32 %v3675, %v3533
      %v3677 = vmul.f32 %v3676, %v3675
      %v3678 = vmul.f32 0.5, %v3677
      %v3679 = vsub.f32 1.5, %v3678
      %v3680 = vmul.f32 %v3675, %v3679
      %vm3681 = vweird.f32 %v3533
      %vm3682 = vweird.f32 %v3675
      %vm3683 = vmor %vm3681, %vm3682
      %v3684 = vsel %vm3683, %v3675, %v3680
      %v3685 = vrsqrt.pop %v3534
      %v3686 = vmul.f32 %v3685, %v3534
      %v3687 = vmul.f32 %v3686, %v3685
      %v3688 = vmul.f32 0.5, %v3687
      %v3689 = vsub.f32 1.5, %v3688
      %v3690 = vmul.f32 %v3685, %v3689
      %vm3691 = vweird.f32 %v3534
      %vm3692 = vweird.f32 %v3685
      %vm3693 = vmor %vm3691, %vm3692
      %v3694 = vsel %vm3693, %v3685, %v3690
      %v3695 = vmul.f32 %v3391, %v3544
      %v3696 = vmul.f32 %v3392, %v3544
      %v3697 = vmul.f32 %v3393, %v3554
      %v3698 = vmul.f32 %v3394, %v3554
      %v3699 = vmul.f32 %v3395, %v3564
      %v3700 = vmul.f32 %v3396, %v3564
      %v3701 = vmul.f32 %v3397, %v3574
      %v3702 = vmul.f32 %v3398, %v3574
      %v3703 = vmul.f32 %v3399, %v3584
      %v3704 = vmul.f32 %v3400, %v3584
      %v3705 = vmul.f32 %v3401, %v3594
      %v3706 = vmul.f32 %v3402, %v3594
      %v3707 = vmul.f32 %v3403, %v3604
      %v3708 = vmul.f32 %v3404, %v3604
      %v3709 = vmul.f32 %v3405, %v3614
      %v3710 = vmul.f32 %v3406, %v3614
      %v3711 = vmul.f32 %v3407, %v3624
      %v3712 = vmul.f32 %v3408, %v3624
      %v3713 = vmul.f32 %v3409, %v3634
      %v3714 = vmul.f32 %v3410, %v3634
      %v3715 = vmul.f32 %v3411, %v3644
      %v3716 = vmul.f32 %v3412, %v3644
      %v3717 = vmul.f32 %v3413, %v3654
      %v3718 = vmul.f32 %v3414, %v3654
      %v3719 = vmul.f32 %v3415, %v3664
      %v3720 = vmul.f32 %v3416, %v3664
      %v3721 = vmul.f32 %v3417, %v3674
      %v3722 = vmul.f32 %v3418, %v3674
      %v3723 = vmul.f32 %v3419, %v3684
      %v3724 = vmul.f32 %v3420, %v3684
      %v3725 = vmul.f32 %v3421, %v3694
      %v3726 = vmul.f32 %v3422, %v3694
      %v3727 = vperm.slane %v538, 2
      %v3728 = vperm.slane %v539, 2
      %v3729 = vmul.f32 %v3695, %v3727
      %v3730 = vmul.f32 %v3696, %v3728
      %v3731 = vmul.f32 %v3697, %v3727
      %v3732 = vmul.f32 %v3698, %v3728
      %v3733 = vmul.f32 %v3699, %v3727
      %v3734 = vmul.f32 %v3700, %v3728
      %v3735 = vmul.f32 %v3701, %v3727
      %v3736 = vmul.f32 %v3702, %v3728
      %v3737 = vmul.f32 %v3703, %v3727
      %v3738 = vmul.f32 %v3704, %v3728
      %v3739 = vmul.f32 %v3705, %v3727
      %v3740 = vmul.f32 %v3706, %v3728
      %v3741 = vmul.f32 %v3707, %v3727
      %v3742 = vmul.f32 %v3708, %v3728
      %v3743 = vmul.f32 %v3709, %v3727
      %v3744 = vmul.f32 %v3710, %v3728
      %v3745 = vmul.f32 %v3711, %v3727
      %v3746 = vmul.f32 %v3712, %v3728
      %v3747 = vmul.f32 %v3713, %v3727
      %v3748 = vmul.f32 %v3714, %v3728
      %v3749 = vmul.f32 %v3715, %v3727
      %v3750 = vmul.f32 %v3716, %v3728
      %v3751 = vmul.f32 %v3717, %v3727
      %v3752 = vmul.f32 %v3718, %v3728
      %v3753 = vmul.f32 %v3719, %v3727
      %v3754 = vmul.f32 %v3720, %v3728
      %v3755 = vmul.f32 %v3721, %v3727
      %v3756 = vmul.f32 %v3722, %v3728
      %v3757 = vmul.f32 %v3723, %v3727
      %v3758 = vmul.f32 %v3724, %v3728
      %v3759 = vmul.f32 %v3725, %v3727
      %v3760 = vmul.f32 %v3726, %v3728
      %v3761 = vperm.slane %v538, 3
      %v3762 = vperm.slane %v539, 3
      %v3763 = vadd.f32 %v3729, %v3761
      %v3764 = vadd.f32 %v3730, %v3762
      %v3765 = vadd.f32 %v3731, %v3761
      %v3766 = vadd.f32 %v3732, %v3762
      %v3767 = vadd.f32 %v3733, %v3761
      %v3768 = vadd.f32 %v3734, %v3762
      %v3769 = vadd.f32 %v3735, %v3761
      %v3770 = vadd.f32 %v3736, %v3762
      %v3771 = vadd.f32 %v3737, %v3761
      %v3772 = vadd.f32 %v3738, %v3762
      %v3773 = vadd.f32 %v3739, %v3761
      %v3774 = vadd.f32 %v3740, %v3762
      %v3775 = vadd.f32 %v3741, %v3761
      %v3776 = vadd.f32 %v3742, %v3762
      %v3777 = vadd.f32 %v3743, %v3761
      %v3778 = vadd.f32 %v3744, %v3762
      %v3779 = vadd.f32 %v3745, %v3761
      %v3780 = vadd.f32 %v3746, %v3762
      %v3781 = vadd.f32 %v3747, %v3761
      %v3782 = vadd.f32 %v3748, %v3762
      %v3783 = vadd.f32 %v3749, %v3761
      %v3784 = vadd.f32 %v3750, %v3762
      %v3785 = vadd.f32 %v3751, %v3761
      %v3786 = vadd.f32 %v3752, %v3762
      %v3787 = vadd.f32 %v3753, %v3761
      %v3788 = vadd.f32 %v3754, %v3762
      %v3789 = vadd.f32 %v3755, %v3761
      %v3790 = vadd.f32 %v3756, %v3762
      %v3791 = vadd.f32 %v3757, %v3761
      %v3792 = vadd.f32 %v3758, %v3762
      %v3793 = vadd.f32 %v3759, %v3761
      %v3794 = vadd.f32 %v3760, %v3762
      %v3795 = vpack.c.bf16 %v3765, %v3763
      %v3796 = vpack.c.bf16 %v3766, %v3764
      %v3797 = vpack.c.bf16 %v3769, %v3767
      %v3798 = vpack.c.bf16 %v3770, %v3768
      %v3799 = vpack.c.bf16 %v3773, %v3771
      %v3800 = vpack.c.bf16 %v3774, %v3772
      %v3801 = vpack.c.bf16 %v3777, %v3775
      %v3802 = vpack.c.bf16 %v3778, %v3776
      %v3803 = vpack.c.bf16 %v3781, %v3779
      %v3804 = vpack.c.bf16 %v3782, %v3780
      %v3805 = vpack.c.bf16 %v3785, %v3783
      %v3806 = vpack.c.bf16 %v3786, %v3784
      %v3807 = vpack.c.bf16 %v3789, %v3787
      %v3808 = vpack.c.bf16 %v3790, %v3788
      %v3809 = vpack.c.bf16 %v3793, %v3791
      %v3810 = vpack.c.bf16 %v3794, %v3792
      %v3811 = vld [vmem:[%s399] sm:$0xff]
      %v3812 = vld [vmem:[%s399 + $0x8] sm:$0xff]
      %v3813 = vld [vmem:[%s399 + $0x10] sm:$0xff]
      %v3814 = vld [vmem:[%s399 + $0x18] sm:$0xff]
      %v3815 = vld [vmem:[%s399 + $0x20] sm:$0xff]
      %v3816 = vld [vmem:[%s399 + $0x28] sm:$0xff]
      %v3817 = vld [vmem:[%s399 + $0x30] sm:$0xff]
      %v3818 = vld [vmem:[%s399 + $0x38] sm:$0xff]
      %v3819 = vld [vmem:[%s399 + $0x40] sm:$0xff]
      %v3820 = vld [vmem:[%s399 + $0x48] sm:$0xff]
      %v3821 = vld [vmem:[%s399 + $0x50] sm:$0xff]
      %v3822 = vld [vmem:[%s399 + $0x58] sm:$0xff]
      %v3823 = vld [vmem:[%s399 + $0x60] sm:$0xff]
      %v3824 = vld [vmem:[%s399 + $0x68] sm:$0xff]
      %v3825 = vld [vmem:[%s399 + $0x70] sm:$0xff]
      %v3826 = vld [vmem:[%s399 + $0x78] sm:$0xff]
      %v3827 = vld [vmem:[%s399 + $0x80] sm:$0xff]
      %v3828 = vld [vmem:[%s399 + $0x88] sm:$0xff]
      %v3829 = vld [vmem:[%s399 + $0x90] sm:$0xff]
      %v3830 = vld [vmem:[%s399 + $0x98] sm:$0xff]
      %v3831 = vld [vmem:[%s399 + $0xa0] sm:$0xff]
      %v3832 = vld [vmem:[%s399 + $0xa8] sm:$0xff]
      %v3833 = vld [vmem:[%s399 + $0xb0] sm:$0xff]
      %v3834 = vld [vmem:[%s399 + $0xb8] sm:$0xff]
      %v3835 = vld [vmem:[%s399 + $0xc0] sm:$0xff]
      %v3836 = vld [vmem:[%s399 + $0xc8] sm:$0xff]
      %v3837 = vld [vmem:[%s399 + $0xd0] sm:$0xff]
      %v3838 = vld [vmem:[%s399 + $0xd8] sm:$0xff]
      %v3839 = vld [vmem:[%s399 + $0xe0] sm:$0xff]
      %v3840 = vld [vmem:[%s399 + $0xe8] sm:$0xff]
      %v3841 = vld [vmem:[%s399 + $0xf0] sm:$0xff]
      %v3842 = vld [vmem:[%s399 + $0xf8] sm:$0xff]
      %v3843 = vld [vmem:[%s399 + $0x100] sm:$0xff]
      %v3844 = vld [vmem:[%s399 + $0x108] sm:$0xff]
      %v3845 = vld [vmem:[%s399 + $0x110] sm:$0xff]
      %v3846 = vld [vmem:[%s399 + $0x118] sm:$0xff]
      %v3847 = vld [vmem:[%s399 + $0x120] sm:$0xff]
      %v3848 = vld [vmem:[%s399 + $0x128] sm:$0xff]
      %v3849 = vld [vmem:[%s399 + $0x130] sm:$0xff]
      %v3850 = vld [vmem:[%s399 + $0x138] sm:$0xff]
      %v3851 = vld [vmem:[%s399 + $0x140] sm:$0xff]
      %v3852 = vld [vmem:[%s399 + $0x148] sm:$0xff]
      %v3853 = vld [vmem:[%s399 + $0x150] sm:$0xff]
      %v3854 = vld [vmem:[%s399 + $0x158] sm:$0xff]
      %v3855 = vld [vmem:[%s399 + $0x160] sm:$0xff]
      %v3856 = vld [vmem:[%s399 + $0x168] sm:$0xff]
      %v3857 = vld [vmem:[%s399 + $0x170] sm:$0xff]
      %v3858 = vld [vmem:[%s399 + $0x178] sm:$0xff]
      %v3859 = vld [vmem:[%s399 + $0x180] sm:$0xff]
      %v3860 = vld [vmem:[%s399 + $0x188] sm:$0xff]
      %v3861 = vld [vmem:[%s399 + $0x190] sm:$0xff]
      %v3862 = vld [vmem:[%s399 + $0x198] sm:$0xff]
      %v3863 = vld [vmem:[%s399 + $0x1a0] sm:$0xff]
      %v3864 = vld [vmem:[%s399 + $0x1a8] sm:$0xff]
      %v3865 = vld [vmem:[%s399 + $0x1b0] sm:$0xff]
      %v3866 = vld [vmem:[%s399 + $0x1b8] sm:$0xff]
      %v3867 = vld [vmem:[%s399 + $0x1c0] sm:$0xff]
      %v3868 = vld [vmem:[%s399 + $0x1c8] sm:$0xff]
      %v3869 = vld [vmem:[%s399 + $0x1d0] sm:$0xff]
      %v3870 = vld [vmem:[%s399 + $0x1d8] sm:$0xff]
      %v3871 = vld [vmem:[%s399 + $0x1e0] sm:$0xff]
      %v3872 = vld [vmem:[%s399 + $0x1e8] sm:$0xff]
      %v3873 = vld [vmem:[%s399 + $0x1f0] sm:$0xff]
      %v3874 = vld [vmem:[%s399 + $0x1f8] sm:$0xff]
      %v3875 = vperm.slane %v538, 4
      %v3876 = vperm.slane %v539, 4
      %v3877 = vperm.slane %v540, 4
      %v3878 = vperm.slane %v541, 4
      %v3943 = vunpack.c.l.b16 %v3811
      %v3944 = vunpack.c.h.b16 %v3811
      %v3945 = vunpack.c.l.b16 %v3812
      %v3946 = vunpack.c.h.b16 %v3812
      %v3947 = vunpack.c.l.b16 %v3813
      %v3948 = vunpack.c.h.b16 %v3813
      %v3949 = vunpack.c.l.b16 %v3814
      %v3950 = vunpack.c.h.b16 %v3814
      %v3951 = vunpack.c.l.b16 %v3815
      %v3952 = vunpack.c.h.b16 %v3815
      %v3953 = vunpack.c.l.b16 %v3816
      %v3954 = vunpack.c.h.b16 %v3816
      %v3955 = vunpack.c.l.b16 %v3817
      %v3956 = vunpack.c.h.b16 %v3817
      %v3957 = vunpack.c.l.b16 %v3818
      %v3958 = vunpack.c.h.b16 %v3818
      %v3959 = vunpack.c.l.b16 %v3819
      %v3960 = vunpack.c.h.b16 %v3819
      %v3961 = vunpack.c.l.b16 %v3820
      %v3962 = vunpack.c.h.b16 %v3820
      %v3963 = vunpack.c.l.b16 %v3821
      %v3964 = vunpack.c.h.b16 %v3821
      %v3965 = vunpack.c.l.b16 %v3822
      %v3966 = vunpack.c.h.b16 %v3822
      %v3967 = vunpack.c.l.b16 %v3823
      %v3968 = vunpack.c.h.b16 %v3823
      %v3969 = vunpack.c.l.b16 %v3824
      %v3970 = vunpack.c.h.b16 %v3824
      %v3971 = vunpack.c.l.b16 %v3825
      %v3972 = vunpack.c.h.b16 %v3825
      %v3973 = vunpack.c.l.b16 %v3826
      %v3974 = vunpack.c.h.b16 %v3826
      %v3975 = vunpack.c.l.b16 %v3827
      %v3976 = vunpack.c.h.b16 %v3827
      %v3977 = vunpack.c.l.b16 %v3828
      %v3978 = vunpack.c.h.b16 %v3828
      %v3979 = vunpack.c.l.b16 %v3829
      %v3980 = vunpack.c.h.b16 %v3829
      %v3981 = vunpack.c.l.b16 %v3830
      %v3982 = vunpack.c.h.b16 %v3830
      %v3983 = vunpack.c.l.b16 %v3831
      %v3984 = vunpack.c.h.b16 %v3831
      %v3985 = vunpack.c.l.b16 %v3832
      %v3986 = vunpack.c.h.b16 %v3832
      %v3987 = vunpack.c.l.b16 %v3833
      %v3988 = vunpack.c.h.b16 %v3833
      %v3989 = vunpack.c.l.b16 %v3834
      %v3990 = vunpack.c.h.b16 %v3834
      %v3991 = vunpack.c.l.b16 %v3835
      %v3992 = vunpack.c.h.b16 %v3835
      %v3993 = vunpack.c.l.b16 %v3836
      %v3994 = vunpack.c.h.b16 %v3836
      %v3995 = vunpack.c.l.b16 %v3837
      %v3996 = vunpack.c.h.b16 %v3837
      %v3997 = vunpack.c.l.b16 %v3838
      %v3998 = vunpack.c.h.b16 %v3838
      %v3999 = vunpack.c.l.b16 %v3839
      %v4000 = vunpack.c.h.b16 %v3839
      %v4001 = vunpack.c.l.b16 %v3840
      %v4002 = vunpack.c.h.b16 %v3840
      %v4003 = vunpack.c.l.b16 %v3841
      %v4004 = vunpack.c.h.b16 %v3841
      %v4005 = vunpack.c.l.b16 %v3842
      %v4006 = vunpack.c.h.b16 %v3842
      %v4007 = vunpack.c.l.b16 %v3843
      %v4008 = vunpack.c.h.b16 %v3843
      %v4009 = vunpack.c.l.b16 %v3844
      %v4010 = vunpack.c.h.b16 %v3844
      %v4011 = vunpack.c.l.b16 %v3845
      %v4012 = vunpack.c.h.b16 %v3845
      %v4013 = vunpack.c.l.b16 %v3846
      %v4014 = vunpack.c.h.b16 %v3846
      %v4015 = vunpack.c.l.b16 %v3847
      %v4016 = vunpack.c.h.b16 %v3847
      %v4017 = vunpack.c.l.b16 %v3848
      %v4018 = vunpack.c.h.b16 %v3848
      %v4019 = vunpack.c.l.b16 %v3849
      %v4020 = vunpack.c.h.b16 %v3849
      %v4021 = vunpack.c.l.b16 %v3850
      %v4022 = vunpack.c.h.b16 %v3850
      %v4023 = vunpack.c.l.b16 %v3851
      %v4024 = vunpack.c.h.b16 %v3851
      %v4025 = vunpack.c.l.b16 %v3852
      %v4026 = vunpack.c.h.b16 %v3852
      %v4027 = vunpack.c.l.b16 %v3853
      %v4028 = vunpack.c.h.b16 %v3853
      %v4029 = vunpack.c.l.b16 %v3854
      %v4030 = vunpack.c.h.b16 %v3854
      %v4031 = vunpack.c.l.b16 %v3855
      %v4032 = vunpack.c.h.b16 %v3855
      %v4033 = vunpack.c.l.b16 %v3856
      %v4034 = vunpack.c.h.b16 %v3856
      %v4035 = vunpack.c.l.b16 %v3857
      %v4036 = vunpack.c.h.b16 %v3857
      %v4037 = vunpack.c.l.b16 %v3858
      %v4038 = vunpack.c.h.b16 %v3858
      %v4039 = vunpack.c.l.b16 %v3859
      %v4040 = vunpack.c.h.b16 %v3859
      %v4041 = vunpack.c.l.b16 %v3860
      %v4042 = vunpack.c.h.b16 %v3860
      %v4043 = vunpack.c.l.b16 %v3861
      %v4044 = vunpack.c.h.b16 %v3861
      %v4045 = vunpack.c.l.b16 %v3862
      %v4046 = vunpack.c.h.b16 %v3862
      %v4047 = vunpack.c.l.b16 %v3863
      %v4048 = vunpack.c.h.b16 %v3863
      %v4049 = vunpack.c.l.b16 %v3864
      %v4050 = vunpack.c.h.b16 %v3864
      %v4051 = vunpack.c.l.b16 %v3865
      %v4052 = vunpack.c.h.b16 %v3865
      %v4053 = vunpack.c.l.b16 %v3866
      %v4054 = vunpack.c.h.b16 %v3866
      %v4055 = vunpack.c.l.b16 %v3867
      %v4056 = vunpack.c.h.b16 %v3867
      %v4057 = vunpack.c.l.b16 %v3868
      %v4058 = vunpack.c.h.b16 %v3868
      %v4059 = vunpack.c.l.b16 %v3869
      %v4060 = vunpack.c.h.b16 %v3869
      %v4061 = vunpack.c.l.b16 %v3870
      %v4062 = vunpack.c.h.b16 %v3870
      %v4063 = vunpack.c.l.b16 %v3871
      %v4064 = vunpack.c.h.b16 %v3871
      %v4065 = vunpack.c.l.b16 %v3872
      %v4066 = vunpack.c.h.b16 %v3872
      %v4067 = vunpack.c.l.b16 %v3873
      %v4068 = vunpack.c.h.b16 %v3873
      %v4069 = vunpack.c.l.b16 %v3874
      %v4070 = vunpack.c.h.b16 %v3874
      %v4071 = vpack.c.b16 %v3947, %v3943
      %v4072 = vpack.c.b16 %v3948, %v3944
      %v4073 = vpack.c.b16 %v3949, %v3945
      %v4074 = vpack.c.b16 %v3950, %v3946
      %v4075 = vpack.c.b16 %v3955, %v3951
      %v4076 = vpack.c.b16 %v3956, %v3952
      %v4077 = vpack.c.b16 %v3957, %v3953
      %v4078 = vpack.c.b16 %v3958, %v3954
      %v4079 = vpack.c.b16 %v3963, %v3959
      %v4080 = vpack.c.b16 %v3964, %v3960
      %v4081 = vpack.c.b16 %v3965, %v3961
      %v4082 = vpack.c.b16 %v3966, %v3962
      %v4083 = vpack.c.b16 %v3971, %v3967
      %v4084 = vpack.c.b16 %v3972, %v3968
      %v4085 = vpack.c.b16 %v3973, %v3969
      %v4086 = vpack.c.b16 %v3974, %v3970
      %v4087 = vpack.c.b16 %v3979, %v3975
      %v4088 = vpack.c.b16 %v3980, %v3976
      %v4089 = vpack.c.b16 %v3981, %v3977
      %v4090 = vpack.c.b16 %v3982, %v3978
      %v4091 = vpack.c.b16 %v3987, %v3983
      %v4092 = vpack.c.b16 %v3988, %v3984
      %v4093 = vpack.c.b16 %v3989, %v3985
      %v4094 = vpack.c.b16 %v3990, %v3986
      %v4095 = vpack.c.b16 %v3995, %v3991
      %v4096 = vpack.c.b16 %v3996, %v3992
      %v4097 = vpack.c.b16 %v3997, %v3993
      %v4098 = vpack.c.b16 %v3998, %v3994
      %v4099 = vpack.c.b16 %v4003, %v3999
      %v4100 = vpack.c.b16 %v4004, %v4000
      %v4101 = vpack.c.b16 %v4005, %v4001
      %v4102 = vpack.c.b16 %v4006, %v4002
      %v4103 = vpack.c.b16 %v4011, %v4007
      %v4104 = vpack.c.b16 %v4012, %v4008
      %v4105 = vpack.c.b16 %v4013, %v4009
      %v4106 = vpack.c.b16 %v4014, %v4010
      %v4107 = vpack.c.b16 %v4019, %v4015
      %v4108 = vpack.c.b16 %v4020, %v4016
      %v4109 = vpack.c.b16 %v4021, %v4017
      %v4110 = vpack.c.b16 %v4022, %v4018
      %v4111 = vpack.c.b16 %v4027, %v4023
      %v4112 = vpack.c.b16 %v4028, %v4024
      %v4113 = vpack.c.b16 %v4029, %v4025
      %v4114 = vpack.c.b16 %v4030, %v4026
      %v4115 = vpack.c.b16 %v4035, %v4031
      %v4116 = vpack.c.b16 %v4036, %v4032
      %v4117 = vpack.c.b16 %v4037, %v4033
      %v4118 = vpack.c.b16 %v4038, %v4034
      %v4119 = vpack.c.b16 %v4043, %v4039
      %v4120 = vpack.c.b16 %v4044, %v4040
      %v4121 = vpack.c.b16 %v4045, %v4041
      %v4122 = vpack.c.b16 %v4046, %v4042
      %v4123 = vpack.c.b16 %v4051, %v4047
      %v4124 = vpack.c.b16 %v4052, %v4048
      %v4125 = vpack.c.b16 %v4053, %v4049
      %v4126 = vpack.c.b16 %v4054, %v4050
      %v4127 = vpack.c.b16 %v4059, %v4055
      %v4128 = vpack.c.b16 %v4060, %v4056
      %v4129 = vpack.c.b16 %v4061, %v4057
      %v4130 = vpack.c.b16 %v4062, %v4058
      %v4131 = vpack.c.b16 %v4067, %v4063
      %v4132 = vpack.c.b16 %v4068, %v4064
      %v4133 = vpack.c.b16 %v4069, %v4065
      %v4134 = vpack.c.b16 %v4070, %v4066
      %4199 = vmatpush.bf16.msra.mxu0 %v4099
      %4200 = vmatpush.bf16.msra.mxu0 %v4095
      %4201 = vmatpush.bf16.msra.mxu0 %v4091
      %4202 = vmatpush.bf16.msra.mxu0 %v4087
      %4203 = vmatpush.bf16.msra.mxu0 %v4083
      %4204 = vmatpush.bf16.msra.mxu0 %v4079
      %4205 = vmatpush.bf16.msra.mxu0 %v4075
      %4206 = vmatpush.bf16.msra.mxu0 %v4071
      %4207 = vmatmul.bf16.gmra.mxu0 %v3795
      %v4208 = vpop.f32.mrf.mxu0
      %v4209 = vadd.f32 %v3875, %v4208
      %v4210 = vpop.f32.mrf.mxu0
      %v4211 = vadd.f32 %v3875, %v4210
      %4212 = vmatmul.bf16.gmra.mxu0 %v3797
      %v4213 = vpop.f32.mrf.mxu0
      %v4214 = vadd.f32 %v3875, %v4213
      %v4215 = vpop.f32.mrf.mxu0
      %v4216 = vadd.f32 %v3875, %v4215
      %4217 = vmatmul.bf16.gmra.mxu0 %v3799
      %v4218 = vpop.f32.mrf.mxu0
      %v4219 = vadd.f32 %v3875, %v4218
      %v4220 = vpop.f32.mrf.mxu0
      %v4221 = vadd.f32 %v3875, %v4220
      %4222 = vmatmul.bf16.gmra.mxu0 %v3801
      %v4223 = vpop.f32.mrf.mxu0
      %v4224 = vadd.f32 %v3875, %v4223
      %v4225 = vpop.f32.mrf.mxu0
      %v4226 = vadd.f32 %v3875, %v4225
      %4227 = vmatmul.bf16.gmra.mxu0 %v3803
      %v4228 = vpop.f32.mrf.mxu0
      %v4229 = vadd.f32 %v3875, %v4228
      %v4230 = vpop.f32.mrf.mxu0
      %v4231 = vadd.f32 %v3875, %v4230
      %4232 = vmatmul.bf16.gmra.mxu0 %v3805
      %v4233 = vpop.f32.mrf.mxu0
      %v4234 = vadd.f32 %v3875, %v4233
      %v4235 = vpop.f32.mrf.mxu0
      %v4236 = vadd.f32 %v3875, %v4235
      %4237 = vmatmul.bf16.gmra.mxu0 %v3807
      %v4238 = vpop.f32.mrf.mxu0
      %v4239 = vadd.f32 %v3875, %v4238
      %v4240 = vpop.f32.mrf.mxu0
      %v4241 = vadd.f32 %v3875, %v4240
      %4242 = vmatmul.bf16.gmra.mxu0 %v3809
      %v4243 = vpop.f32.mrf.mxu0
      %v4244 = vadd.f32 %v3875, %v4243
      %v4245 = vpop.f32.mrf.mxu0
      %v4246 = vadd.f32 %v3875, %v4245
      %4247 = vdwg.mxu0
      %4248 = vmatpush.bf16.msra.mxu0 %v4131
      %4249 = vmatpush.bf16.msra.mxu0 %v4127
      %4250 = vmatpush.bf16.msra.mxu0 %v4123
      %4251 = vmatpush.bf16.msra.mxu0 %v4119
      %4252 = vmatpush.bf16.msra.mxu0 %v4115
      %4253 = vmatpush.bf16.msra.mxu0 %v4111
      %4254 = vmatpush.bf16.msra.mxu0 %v4107
      %4255 = vmatpush.bf16.msra.mxu0 %v4103
      %4256 = vmatmul.bf16.gmra.mxu0 %v3796
      %v4257 = vpop.f32.mrf.mxu0
      %v4258 = vadd.f32 %v4209, %v4257
      %v4259 = vpop.f32.mrf.mxu0
      %v4260 = vadd.f32 %v4211, %v4259
      %4261 = vmatmul.bf16.gmra.mxu0 %v3798
      %v4262 = vpop.f32.mrf.mxu0
      %v4263 = vadd.f32 %v4214, %v4262
      %v4264 = vpop.f32.mrf.mxu0
      %v4265 = vadd.f32 %v4216, %v4264
      %4266 = vmatmul.bf16.gmra.mxu0 %v3800
      %v4267 = vpop.f32.mrf.mxu0
      %v4268 = vadd.f32 %v4219, %v4267
      %v4269 = vpop.f32.mrf.mxu0
      %v4270 = vadd.f32 %v4221, %v4269
      %4271 = vmatmul.bf16.gmra.mxu0 %v3802
      %v4272 = vpop.f32.mrf.mxu0
      %v4273 = vadd.f32 %v4224, %v4272
      %v4274 = vpop.f32.mrf.mxu0
      %v4275 = vadd.f32 %v4226, %v4274
      %4276 = vmatmul.bf16.gmra.mxu0 %v3804
      %v4277 = vpop.f32.mrf.mxu0
      %v4278 = vadd.f32 %v4229, %v4277
      %v4279 = vpop.f32.mrf.mxu0
      %v4280 = vadd.f32 %v4231, %v4279
      %4281 = vmatmul.bf16.gmra.mxu0 %v3806
      %v4282 = vpop.f32.mrf.mxu0
      %v4283 = vadd.f32 %v4234, %v4282
      %v4284 = vpop.f32.mrf.mxu0
      %v4285 = vadd.f32 %v4236, %v4284
      %4286 = vmatmul.bf16.gmra.mxu0 %v3808
      %v4287 = vpop.f32.mrf.mxu0
      %v4288 = vadd.f32 %v4239, %v4287
      %v4289 = vpop.f32.mrf.mxu0
      %v4290 = vadd.f32 %v4241, %v4289
      %4291 = vmatmul.bf16.gmra.mxu0 %v3810
      %v4292 = vpop.f32.mrf.mxu0
      %v4293 = vadd.f32 %v4244, %v4292
      %v4294 = vpop.f32.mrf.mxu0
      %v4295 = vadd.f32 %v4246, %v4294
      %4296 = vdwg.mxu0
      %4297 = vmatpush.bf16.msra.mxu0 %v4100
      %4298 = vmatpush.bf16.msra.mxu0 %v4096
      %4299 = vmatpush.bf16.msra.mxu0 %v4092
      %4300 = vmatpush.bf16.msra.mxu0 %v4088
      %4301 = vmatpush.bf16.msra.mxu0 %v4084
      %4302 = vmatpush.bf16.msra.mxu0 %v4080
      %4303 = vmatpush.bf16.msra.mxu0 %v4076
      %4304 = vmatpush.bf16.msra.mxu0 %v4072
      %4305 = vmatmul.bf16.gmra.mxu0 %v3795
      %v4306 = vpop.f32.mrf.mxu0
      %v4307 = vadd.f32 %v3876, %v4306
      %v4308 = vpop.f32.mrf.mxu0
      %v4309 = vadd.f32 %v3876, %v4308
      %4310 = vmatmul.bf16.gmra.mxu0 %v3797
      %v4311 = vpop.f32.mrf.mxu0
      %v4312 = vadd.f32 %v3876, %v4311
      %v4313 = vpop.f32.mrf.mxu0
      %v4314 = vadd.f32 %v3876, %v4313
      %4315 = vmatmul.bf16.gmra.mxu0 %v3799
      %v4316 = vpop.f32.mrf.mxu0
      %v4317 = vadd.f32 %v3876, %v4316
      %v4318 = vpop.f32.mrf.mxu0
      %v4319 = vadd.f32 %v3876, %v4318
      %4320 = vmatmul.bf16.gmra.mxu0 %v3801
      %v4321 = vpop.f32.mrf.mxu0
      %v4322 = vadd.f32 %v3876, %v4321
      %v4323 = vpop.f32.mrf.mxu0
      %v4324 = vadd.f32 %v3876, %v4323
      %4325 = vmatmul.bf16.gmra.mxu0 %v3803
      %v4326 = vpop.f32.mrf.mxu0
      %v4327 = vadd.f32 %v3876, %v4326
      %v4328 = vpop.f32.mrf.mxu0
      %v4329 = vadd.f32 %v3876, %v4328
      %4330 = vmatmul.bf16.gmra.mxu0 %v3805
      %v4331 = vpop.f32.mrf.mxu0
      %v4332 = vadd.f32 %v3876, %v4331
      %v4333 = vpop.f32.mrf.mxu0
      %v4334 = vadd.f32 %v3876, %v4333
      %4335 = vmatmul.bf16.gmra.mxu0 %v3807
      %v4336 = vpop.f32.mrf.mxu0
      %v4337 = vadd.f32 %v3876, %v4336
      %v4338 = vpop.f32.mrf.mxu0
      %v4339 = vadd.f32 %v3876, %v4338
      %4340 = vmatmul.bf16.gmra.mxu0 %v3809
      %v4341 = vpop.f32.mrf.mxu0
      %v4342 = vadd.f32 %v3876, %v4341
      %v4343 = vpop.f32.mrf.mxu0
      %v4344 = vadd.f32 %v3876, %v4343
      %4345 = vdwg.mxu0
      %4346 = vmatpush.bf16.msra.mxu0 %v4132
      %4347 = vmatpush.bf16.msra.mxu0 %v4128
      %4348 = vmatpush.bf16.msra.mxu0 %v4124
      %4349 = vmatpush.bf16.msra.mxu0 %v4120
      %4350 = vmatpush.bf16.msra.mxu0 %v4116
      %4351 = vmatpush.bf16.msra.mxu0 %v4112
      %4352 = vmatpush.bf16.msra.mxu0 %v4108
      %4353 = vmatpush.bf16.msra.mxu0 %v4104
      %4354 = vmatmul.bf16.gmra.mxu0 %v3796
      %v4355 = vpop.f32.mrf.mxu0
      %v4356 = vadd.f32 %v4307, %v4355
      %v4357 = vpop.f32.mrf.mxu0
      %v4358 = vadd.f32 %v4309, %v4357
      %4359 = vmatmul.bf16.gmra.mxu0 %v3798
      %v4360 = vpop.f32.mrf.mxu0
      %v4361 = vadd.f32 %v4312, %v4360
      %v4362 = vpop.f32.mrf.mxu0
      %v4363 = vadd.f32 %v4314, %v4362
      %4364 = vmatmul.bf16.gmra.mxu0 %v3800
      %v4365 = vpop.f32.mrf.mxu0
      %v4366 = vadd.f32 %v4317, %v4365
      %v4367 = vpop.f32.mrf.mxu0
      %v4368 = vadd.f32 %v4319, %v4367
      %4369 = vmatmul.bf16.gmra.mxu0 %v3802
      %v4370 = vpop.f32.mrf.mxu0
      %v4371 = vadd.f32 %v4322, %v4370
      %v4372 = vpop.f32.mrf.mxu0
      %v4373 = vadd.f32 %v4324, %v4372
      %4374 = vmatmul.bf16.gmra.mxu0 %v3804
      %v4375 = vpop.f32.mrf.mxu0
      %v4376 = vadd.f32 %v4327, %v4375
      %v4377 = vpop.f32.mrf.mxu0
      %v4378 = vadd.f32 %v4329, %v4377
      %4379 = vmatmul.bf16.gmra.mxu0 %v3806
      %v4380 = vpop.f32.mrf.mxu0
      %v4381 = vadd.f32 %v4332, %v4380
      %v4382 = vpop.f32.mrf.mxu0
      %v4383 = vadd.f32 %v4334, %v4382
      %4384 = vmatmul.bf16.gmra.mxu0 %v3808
      %v4385 = vpop.f32.mrf.mxu0
      %v4386 = vadd.f32 %v4337, %v4385
      %v4387 = vpop.f32.mrf.mxu0
      %v4388 = vadd.f32 %v4339, %v4387
      %4389 = vmatmul.bf16.gmra.mxu0 %v3810
      %v4390 = vpop.f32.mrf.mxu0
      %v4391 = vadd.f32 %v4342, %v4390
      %v4392 = vpop.f32.mrf.mxu0
      %v4393 = vadd.f32 %v4344, %v4392
      %4394 = vdwg.mxu0
      %4395 = vmatpush.bf16.msra.mxu0 %v4101
      %4396 = vmatpush.bf16.msra.mxu0 %v4097
      %4397 = vmatpush.bf16.msra.mxu0 %v4093
      %4398 = vmatpush.bf16.msra.mxu0 %v4089
      %4399 = vmatpush.bf16.msra.mxu0 %v4085
      %4400 = vmatpush.bf16.msra.mxu0 %v4081
      %4401 = vmatpush.bf16.msra.mxu0 %v4077
      %4402 = vmatpush.bf16.msra.mxu0 %v4073
      %4403 = vmatmul.bf16.gmra.mxu0 %v3795
      %v4404 = vpop.f32.mrf.mxu0
      %v4405 = vadd.f32 %v3877, %v4404
      %v4406 = vpop.f32.mrf.mxu0
      %v4407 = vadd.f32 %v3877, %v4406
      %4408 = vmatmul.bf16.gmra.mxu0 %v3797
      %v4409 = vpop.f32.mrf.mxu0
      %v4410 = vadd.f32 %v3877, %v4409
      %v4411 = vpop.f32.mrf.mxu0
      %v4412 = vadd.f32 %v3877, %v4411
      %4413 = vmatmul.bf16.gmra.mxu0 %v3799
      %v4414 = vpop.f32.mrf.mxu0
      %v4415 = vadd.f32 %v3877, %v4414
      %v4416 = vpop.f32.mrf.mxu0
      %v4417 = vadd.f32 %v3877, %v4416
      %4418 = vmatmul.bf16.gmra.mxu0 %v3801
      %v4419 = vpop.f32.mrf.mxu0
      %v4420 = vadd.f32 %v3877, %v4419
      %v4421 = vpop.f32.mrf.mxu0
      %v4422 = vadd.f32 %v3877, %v4421
      %4423 = vmatmul.bf16.gmra.mxu0 %v3803
      %v4424 = vpop.f32.mrf.mxu0
      %v4425 = vadd.f32 %v3877, %v4424
      %v4426 = vpop.f32.mrf.mxu0
      %v4427 = vadd.f32 %v3877, %v4426
      %4428 = vmatmul.bf16.gmra.mxu0 %v3805
      %v4429 = vpop.f32.mrf.mxu0
      %v4430 = vadd.f32 %v3877, %v4429
      %v4431 = vpop.f32.mrf.mxu0
      %v4432 = vadd.f32 %v3877, %v4431
      %4433 = vmatmul.bf16.gmra.mxu0 %v3807
      %v4434 = vpop.f32.mrf.mxu0
      %v4435 = vadd.f32 %v3877, %v4434
      %v4436 = vpop.f32.mrf.mxu0
      %v4437 = vadd.f32 %v3877, %v4436
      %4438 = vmatmul.bf16.gmra.mxu0 %v3809
      %v4439 = vpop.f32.mrf.mxu0
      %v4440 = vadd.f32 %v3877, %v4439
      %v4441 = vpop.f32.mrf.mxu0
      %v4442 = vadd.f32 %v3877, %v4441
      %4443 = vdwg.mxu0
      %4444 = vmatpush.bf16.msra.mxu0 %v4133
      %4445 = vmatpush.bf16.msra.mxu0 %v4129
      %4446 = vmatpush.bf16.msra.mxu0 %v4125
      %4447 = vmatpush.bf16.msra.mxu0 %v4121
      %4448 = vmatpush.bf16.msra.mxu0 %v4117
      %4449 = vmatpush.bf16.msra.mxu0 %v4113
      %4450 = vmatpush.bf16.msra.mxu0 %v4109
      %4451 = vmatpush.bf16.msra.mxu0 %v4105
      %4452 = vmatmul.bf16.gmra.mxu0 %v3796
      %v4453 = vpop.f32.mrf.mxu0
      %v4454 = vadd.f32 %v4405, %v4453
      %v4455 = vpop.f32.mrf.mxu0
      %v4456 = vadd.f32 %v4407, %v4455
      %4457 = vmatmul.bf16.gmra.mxu0 %v3798
      %v4458 = vpop.f32.mrf.mxu0
      %v4459 = vadd.f32 %v4410, %v4458
      %v4460 = vpop.f32.mrf.mxu0
      %v4461 = vadd.f32 %v4412, %v4460
      %4462 = vmatmul.bf16.gmra.mxu0 %v3800
      %v4463 = vpop.f32.mrf.mxu0
      %v4464 = vadd.f32 %v4415, %v4463
      %v4465 = vpop.f32.mrf.mxu0
      %v4466 = vadd.f32 %v4417, %v4465
      %4467 = vmatmul.bf16.gmra.mxu0 %v3802
      %v4468 = vpop.f32.mrf.mxu0
      %v4469 = vadd.f32 %v4420, %v4468
      %v4470 = vpop.f32.mrf.mxu0
      %v4471 = vadd.f32 %v4422, %v4470
      %4472 = vmatmul.bf16.gmra.mxu0 %v3804
      %v4473 = vpop.f32.mrf.mxu0
      %v4474 = vadd.f32 %v4425, %v4473
      %v4475 = vpop.f32.mrf.mxu0
      %v4476 = vadd.f32 %v4427, %v4475
      %4477 = vmatmul.bf16.gmra.mxu0 %v3806
      %v4478 = vpop.f32.mrf.mxu0
      %v4479 = vadd.f32 %v4430, %v4478
      %v4480 = vpop.f32.mrf.mxu0
      %v4481 = vadd.f32 %v4432, %v4480
      %4482 = vmatmul.bf16.gmra.mxu0 %v3808
      %v4483 = vpop.f32.mrf.mxu0
      %v4484 = vadd.f32 %v4435, %v4483
      %v4485 = vpop.f32.mrf.mxu0
      %v4486 = vadd.f32 %v4437, %v4485
      %4487 = vmatmul.bf16.gmra.mxu0 %v3810
      %v4488 = vpop.f32.mrf.mxu0
      %v4489 = vadd.f32 %v4440, %v4488
      %v4490 = vpop.f32.mrf.mxu0
      %v4491 = vadd.f32 %v4442, %v4490
      %4492 = vdwg.mxu0
      %4493 = vmatpush.bf16.msra.mxu0 %v4102
      %4494 = vmatpush.bf16.msra.mxu0 %v4098
      %4495 = vmatpush.bf16.msra.mxu0 %v4094
      %4496 = vmatpush.bf16.msra.mxu0 %v4090
      %4497 = vmatpush.bf16.msra.mxu0 %v4086
      %4498 = vmatpush.bf16.msra.mxu0 %v4082
      %4499 = vmatpush.bf16.msra.mxu0 %v4078
      %4500 = vmatpush.bf16.msra.mxu0 %v4074
      %4501 = vmatmul.bf16.gmra.mxu0 %v3795
      %v4502 = vpop.f32.mrf.mxu0
      %v4503 = vadd.f32 %v3878, %v4502
      %v4504 = vpop.f32.mrf.mxu0
      %v4505 = vadd.f32 %v3878, %v4504
      %4506 = vmatmul.bf16.gmra.mxu0 %v3797
      %v4507 = vpop.f32.mrf.mxu0
      %v4508 = vadd.f32 %v3878, %v4507
      %v4509 = vpop.f32.mrf.mxu0
      %v4510 = vadd.f32 %v3878, %v4509
      %4511 = vmatmul.bf16.gmra.mxu0 %v3799
      %v4512 = vpop.f32.mrf.mxu0
      %v4513 = vadd.f32 %v3878, %v4512
      %v4514 = vpop.f32.mrf.mxu0
      %v4515 = vadd.f32 %v3878, %v4514
      %4516 = vmatmul.bf16.gmra.mxu0 %v3801
      %v4517 = vpop.f32.mrf.mxu0
      %v4518 = vadd.f32 %v3878, %v4517
      %v4519 = vpop.f32.mrf.mxu0
      %v4520 = vadd.f32 %v3878, %v4519
      %4521 = vmatmul.bf16.gmra.mxu0 %v3803
      %v4522 = vpop.f32.mrf.mxu0
      %v4523 = vadd.f32 %v3878, %v4522
      %v4524 = vpop.f32.mrf.mxu0
      %v4525 = vadd.f32 %v3878, %v4524
      %4526 = vmatmul.bf16.gmra.mxu0 %v3805
      %v4527 = vpop.f32.mrf.mxu0
      %v4528 = vadd.f32 %v3878, %v4527
      %v4529 = vpop.f32.mrf.mxu0
      %v4530 = vadd.f32 %v3878, %v4529
      %4531 = vmatmul.bf16.gmra.mxu0 %v3807
      %v4532 = vpop.f32.mrf.mxu0
      %v4533 = vadd.f32 %v3878, %v4532
      %v4534 = vpop.f32.mrf.mxu0
      %v4535 = vadd.f32 %v3878, %v4534
      %4536 = vmatmul.bf16.gmra.mxu0 %v3809
      %v4537 = vpop.f32.mrf.mxu0
      %v4538 = vadd.f32 %v3878, %v4537
      %v4539 = vpop.f32.mrf.mxu0
      %v4540 = vadd.f32 %v3878, %v4539
      %4541 = vdwg.mxu0
      %4542 = vmatpush.bf16.msra.mxu0 %v4134
      %4543 = vmatpush.bf16.msra.mxu0 %v4130
      %4544 = vmatpush.bf16.msra.mxu0 %v4126
      %4545 = vmatpush.bf16.msra.mxu0 %v4122
      %4546 = vmatpush.bf16.msra.mxu0 %v4118
      %4547 = vmatpush.bf16.msra.mxu0 %v4114
      %4548 = vmatpush.bf16.msra.mxu0 %v4110
      %4549 = vmatpush.bf16.msra.mxu0 %v4106
      %4550 = vmatmul.bf16.gmra.mxu0 %v3796
      %v4551 = vpop.f32.mrf.mxu0
      %v4552 = vadd.f32 %v4503, %v4551
      %v4553 = vpop.f32.mrf.mxu0
      %v4554 = vadd.f32 %v4505, %v4553
      %4555 = vmatmul.bf16.gmra.mxu0 %v3798
      %v4556 = vpop.f32.mrf.mxu0
      %v4557 = vadd.f32 %v4508, %v4556
      %v4558 = vpop.f32.mrf.mxu0
      %v4559 = vadd.f32 %v4510, %v4558
      %4560 = vmatmul.bf16.gmra.mxu0 %v3800
      %v4561 = vpop.f32.mrf.mxu0
      %v4562 = vadd.f32 %v4513, %v4561
      %v4563 = vpop.f32.mrf.mxu0
      %v4564 = vadd.f32 %v4515, %v4563
      %4565 = vmatmul.bf16.gmra.mxu0 %v3802
      %v4566 = vpop.f32.mrf.mxu0
      %v4567 = vadd.f32 %v4518, %v4566
      %v4568 = vpop.f32.mrf.mxu0
      %v4569 = vadd.f32 %v4520, %v4568
      %4570 = vmatmul.bf16.gmra.mxu0 %v3804
      %v4571 = vpop.f32.mrf.mxu0
      %v4572 = vadd.f32 %v4523, %v4571
      %v4573 = vpop.f32.mrf.mxu0
      %v4574 = vadd.f32 %v4525, %v4573
      %4575 = vmatmul.bf16.gmra.mxu0 %v3806
      %v4576 = vpop.f32.mrf.mxu0
      %v4577 = vadd.f32 %v4528, %v4576
      %v4578 = vpop.f32.mrf.mxu0
      %v4579 = vadd.f32 %v4530, %v4578
      %4580 = vmatmul.bf16.gmra.mxu0 %v3808
      %v4581 = vpop.f32.mrf.mxu0
      %v4582 = vadd.f32 %v4533, %v4581
      %v4583 = vpop.f32.mrf.mxu0
      %v4584 = vadd.f32 %v4535, %v4583
      %4585 = vmatmul.bf16.gmra.mxu0 %v3810
      %v4586 = vpop.f32.mrf.mxu0
      %v4587 = vadd.f32 %v4538, %v4586
      %v4588 = vpop.f32.mrf.mxu0
      %v4589 = vadd.f32 %v4540, %v4588
      %4590 = vdwg.mxu0
      %v4591 = vmul.f32 %v4258, %v4258
      %v4592 = vmul.f32 %v4356, %v4356
      %v4593 = vmul.f32 %v4454, %v4454
      %v4594 = vmul.f32 %v4552, %v4552
      %v4595 = vmul.f32 %v4260, %v4260
      %v4596 = vmul.f32 %v4358, %v4358
      %v4597 = vmul.f32 %v4456, %v4456
      %v4598 = vmul.f32 %v4554, %v4554
      %v4599 = vmul.f32 %v4263, %v4263
      %v4600 = vmul.f32 %v4361, %v4361
      %v4601 = vmul.f32 %v4459, %v4459
      %v4602 = vmul.f32 %v4557, %v4557
      %v4603 = vmul.f32 %v4265, %v4265
      %v4604 = vmul.f32 %v4363, %v4363
      %v4605 = vmul.f32 %v4461, %v4461
      %v4606 = vmul.f32 %v4559, %v4559
      %v4607 = vmul.f32 %v4268, %v4268
      %v4608 = vmul.f32 %v4366, %v4366
      %v4609 = vmul.f32 %v4464, %v4464
      %v4610 = vmul.f32 %v4562, %v4562
      %v4611 = vmul.f32 %v4270, %v4270
      %v4612 = vmul.f32 %v4368, %v4368
      %v4613 = vmul.f32 %v4466, %v4466
      %v4614 = vmul.f32 %v4564, %v4564
      %v4615 = vmul.f32 %v4273, %v4273
      %v4616 = vmul.f32 %v4371, %v4371
      %v4617 = vmul.f32 %v4469, %v4469
      %v4618 = vmul.f32 %v4567, %v4567
      %v4619 = vmul.f32 %v4275, %v4275
      %v4620 = vmul.f32 %v4373, %v4373
      %v4621 = vmul.f32 %v4471, %v4471
      %v4622 = vmul.f32 %v4569, %v4569
      %v4623 = vmul.f32 %v4278, %v4278
      %v4624 = vmul.f32 %v4376, %v4376
      %v4625 = vmul.f32 %v4474, %v4474
      %v4626 = vmul.f32 %v4572, %v4572
      %v4627 = vmul.f32 %v4280, %v4280
      %v4628 = vmul.f32 %v4378, %v4378
      %v4629 = vmul.f32 %v4476, %v4476
      %v4630 = vmul.f32 %v4574, %v4574
      %v4631 = vmul.f32 %v4283, %v4283
      %v4632 = vmul.f32 %v4381, %v4381
      %v4633 = vmul.f32 %v4479, %v4479
      %v4634 = vmul.f32 %v4577, %v4577
      %v4635 = vmul.f32 %v4285, %v4285
      %v4636 = vmul.f32 %v4383, %v4383
      %v4637 = vmul.f32 %v4481, %v4481
      %v4638 = vmul.f32 %v4579, %v4579
      %v4639 = vmul.f32 %v4288, %v4288
      %v4640 = vmul.f32 %v4386, %v4386
      %v4641 = vmul.f32 %v4484, %v4484
      %v4642 = vmul.f32 %v4582, %v4582
      %v4643 = vmul.f32 %v4290, %v4290
      %v4644 = vmul.f32 %v4388, %v4388
      %v4645 = vmul.f32 %v4486, %v4486
      %v4646 = vmul.f32 %v4584, %v4584
      %v4647 = vmul.f32 %v4293, %v4293
      %v4648 = vmul.f32 %v4391, %v4391
      %v4649 = vmul.f32 %v4489, %v4489
      %v4650 = vmul.f32 %v4587, %v4587
      %v4651 = vmul.f32 %v4295, %v4295
      %v4652 = vmul.f32 %v4393, %v4393
      %v4653 = vmul.f32 %v4491, %v4491
      %v4654 = vmul.f32 %v4589, %v4589
      %v4655 = vmul.f32 %v4258, %v4591
      %v4656 = vmul.f32 %v4356, %v4592
      %v4657 = vmul.f32 %v4454, %v4593
      %v4658 = vmul.f32 %v4552, %v4594
      %v4659 = vmul.f32 %v4260, %v4595
      %v4660 = vmul.f32 %v4358, %v4596
      %v4661 = vmul.f32 %v4456, %v4597
      %v4662 = vmul.f32 %v4554, %v4598
      %v4663 = vmul.f32 %v4263, %v4599
      %v4664 = vmul.f32 %v4361, %v4600
      %v4665 = vmul.f32 %v4459, %v4601
      %v4666 = vmul.f32 %v4557, %v4602
      %v4667 = vmul.f32 %v4265, %v4603
      %v4668 = vmul.f32 %v4363, %v4604
      %v4669 = vmul.f32 %v4461, %v4605
      %v4670 = vmul.f32 %v4559, %v4606
      %v4671 = vmul.f32 %v4268, %v4607
      %v4672 = vmul.f32 %v4366, %v4608
      %v4673 = vmul.f32 %v4464, %v4609
      %v4674 = vmul.f32 %v4562, %v4610
      %v4675 = vmul.f32 %v4270, %v4611
      %v4676 = vmul.f32 %v4368, %v4612
      %v4677 = vmul.f32 %v4466, %v4613
      %v4678 = vmul.f32 %v4564, %v4614
      %v4679 = vmul.f32 %v4273, %v4615
      %v4680 = vmul.f32 %v4371, %v4616
      %v4681 = vmul.f32 %v4469, %v4617
      %v4682 = vmul.f32 %v4567, %v4618
      %v4683 = vmul.f32 %v4275, %v4619
      %v4684 = vmul.f32 %v4373, %v4620
      %v4685 = vmul.f32 %v4471, %v4621
      %v4686 = vmul.f32 %v4569, %v4622
      %v4687 = vmul.f32 %v4278, %v4623
      %v4688 = vmul.f32 %v4376, %v4624
      %v4689 = vmul.f32 %v4474, %v4625
      %v4690 = vmul.f32 %v4572, %v4626
      %v4691 = vmul.f32 %v4280, %v4627
      %v4692 = vmul.f32 %v4378, %v4628
      %v4693 = vmul.f32 %v4476, %v4629
      %v4694 = vmul.f32 %v4574, %v4630
      %v4695 = vmul.f32 %v4283, %v4631
      %v4696 = vmul.f32 %v4381, %v4632
      %v4697 = vmul.f32 %v4479, %v4633
      %v4698 = vmul.f32 %v4577, %v4634
      %v4699 = vmul.f32 %v4285, %v4635
      %v4700 = vmul.f32 %v4383, %v4636
      %v4701 = vmul.f32 %v4481, %v4637
      %v4702 = vmul.f32 %v4579, %v4638
      %v4703 = vmul.f32 %v4288, %v4639
      %v4704 = vmul.f32 %v4386, %v4640
      %v4705 = vmul.f32 %v4484, %v4641
      %v4706 = vmul.f32 %v4582, %v4642
      %v4707 = vmul.f32 %v4290, %v4643
      %v4708 = vmul.f32 %v4388, %v4644
      %v4709 = vmul.f32 %v4486, %v4645
      %v4710 = vmul.f32 %v4584, %v4646
      %v4711 = vmul.f32 %v4293, %v4647
      %v4712 = vmul.f32 %v4391, %v4648
      %v4713 = vmul.f32 %v4489, %v4649
      %v4714 = vmul.f32 %v4587, %v4650
      %v4715 = vmul.f32 %v4295, %v4651
      %v4716 = vmul.f32 %v4393, %v4652
      %v4717 = vmul.f32 %v4491, %v4653
      %v4718 = vmul.f32 %v4589, %v4654
      %v4719 = vmul.f32 %v4655, 0.044715
      %v4720 = vmul.f32 %v4656, 0.044715
      %v4721 = vmul.f32 %v4657, 0.044715
      %v4722 = vmul.f32 %v4658, 0.044715
      %v4723 = vmul.f32 %v4659, 0.044715
      %v4724 = vmul.f32 %v4660, 0.044715
      %v4725 = vmul.f32 %v4661, 0.044715
      %v4726 = vmul.f32 %v4662, 0.044715
      %v4727 = vmul.f32 %v4663, 0.044715
      %v4728 = vmul.f32 %v4664, 0.044715
      %v4729 = vmul.f32 %v4665, 0.044715
      %v4730 = vmul.f32 %v4666, 0.044715
      %v4731 = vmul.f32 %v4667, 0.044715
      %v4732 = vmul.f32 %v4668, 0.044715
      %v4733 = vmul.f32 %v4669, 0.044715
      %v4734 = vmul.f32 %v4670, 0.044715
      %v4735 = vmul.f32 %v4671, 0.044715
      %v4736 = vmul.f32 %v4672, 0.044715
      %v4737 = vmul.f32 %v4673, 0.044715
      %v4738 = vmul.f32 %v4674, 0.044715
      %v4739 = vmul.f32 %v4675, 0.044715
      %v4740 = vmul.f32 %v4676, 0.044715
      %v4741 = vmul.f32 %v4677, 0.044715
      %v4742 = vmul.f32 %v4678, 0.044715
      %v4743 = vmul.f32 %v4679, 0.044715
      %v4744 = vmul.f32 %v4680, 0.044715
      %v4745 = vmul.f32 %v4681, 0.044715
      %v4746 = vmul.f32 %v4682, 0.044715
      %v4747 = vmul.f32 %v4683, 0.044715
      %v4748 = vmul.f32 %v4684, 0.044715
      %v4749 = vmul.f32 %v4685, 0.044715
      %v4750 = vmul.f32 %v4686, 0.044715
      %v4751 = vmul.f32 %v4687, 0.044715
      %v4752 = vmul.f32 %v4688, 0.044715
      %v4753 = vmul.f32 %v4689, 0.044715
      %v4754 = vmul.f32 %v4690, 0.044715
      %v4755 = vmul.f32 %v4691, 0.044715
      %v4756 = vmul.f32 %v4692, 0.044715
      %v4757 = vmul.f32 %v4693, 0.044715
      %v4758 = vmul.f32 %v4694, 0.044715
      %v4759 = vmul.f32 %v4695, 0.044715
      %v4760 = vmul.f32 %v4696, 0.044715
      %v4761 = vmul.f32 %v4697, 0.044715
      %v4762 = vmul.f32 %v4698, 0.044715
      %v4763 = vmul.f32 %v4699, 0.044715
      %v4764 = vmul.f32 %v4700, 0.044715
      %v4765 = vmul.f32 %v4701, 0.044715
      %v4766 = vmul.f32 %v4702, 0.044715
      %v4767 = vmul.f32 %v4703, 0.044715
      %v4768 = vmul.f32 %v4704, 0.044715
      %v4769 = vmul.f32 %v4705, 0.044715
      %v4770 = vmul.f32 %v4706, 0.044715
      %v4771 = vmul.f32 %v4707, 0.044715
      %v4772 = vmul.f32 %v4708, 0.044715
      %v4773 = vmul.f32 %v4709, 0.044715
      %v4774 = vmul.f32 %v4710, 0.044715
      %v4775 = vmul.f32 %v4711, 0.044715
      %v4776 = vmul.f32 %v4712, 0.044715
      %v4777 = vmul.f32 %v4713, 0.044715
      %v4778 = vmul.f32 %v4714, 0.044715
      %v4779 = vmul.f32 %v4715, 0.044715
      %v4780 = vmul.f32 %v4716, 0.044715
      %v4781 = vmul.f32 %v4717, 0.044715
      %v4782 = vmul.f32 %v4718, 0.044715
      %v4783 = vadd.f32 %v4258, %v4719
      %v4784 = vadd.f32 %v4356, %v4720
      %v4785 = vadd.f32 %v4454, %v4721
      %v4786 = vadd.f32 %v4552, %v4722
      %v4787 = vadd.f32 %v4260, %v4723
      %v4788 = vadd.f32 %v4358, %v4724
      %v4789 = vadd.f32 %v4456, %v4725
      %v4790 = vadd.f32 %v4554, %v4726
      %v4791 = vadd.f32 %v4263, %v4727
      %v4792 = vadd.f32 %v4361, %v4728
      %v4793 = vadd.f32 %v4459, %v4729
      %v4794 = vadd.f32 %v4557, %v4730
      %v4795 = vadd.f32 %v4265, %v4731
      %v4796 = vadd.f32 %v4363, %v4732
      %v4797 = vadd.f32 %v4461, %v4733
      %v4798 = vadd.f32 %v4559, %v4734
      %v4799 = vadd.f32 %v4268, %v4735
      %v4800 = vadd.f32 %v4366, %v4736
      %v4801 = vadd.f32 %v4464, %v4737
      %v4802 = vadd.f32 %v4562, %v4738
      %v4803 = vadd.f32 %v4270, %v4739
      %v4804 = vadd.f32 %v4368, %v4740
      %v4805 = vadd.f32 %v4466, %v4741
      %v4806 = vadd.f32 %v4564, %v4742
      %v4807 = vadd.f32 %v4273, %v4743
      %v4808 = vadd.f32 %v4371, %v4744
      %v4809 = vadd.f32 %v4469, %v4745
      %v4810 = vadd.f32 %v4567, %v4746
      %v4811 = vadd.f32 %v4275, %v4747
      %v4812 = vadd.f32 %v4373, %v4748
      %v4813 = vadd.f32 %v4471, %v4749
      %v4814 = vadd.f32 %v4569, %v4750
      %v4815 = vadd.f32 %v4278, %v4751
      %v4816 = vadd.f32 %v4376, %v4752
      %v4817 = vadd.f32 %v4474, %v4753
      %v4818 = vadd.f32 %v4572, %v4754
      %v4819 = vadd.f32 %v4280, %v4755
      %v4820 = vadd.f32 %v4378, %v4756
      %v4821 = vadd.f32 %v4476, %v4757
      %v4822 = vadd.f32 %v4574, %v4758
      %v4823 = vadd.f32 %v4283, %v4759
      %v4824 = vadd.f32 %v4381, %v4760
      %v4825 = vadd.f32 %v4479, %v4761
      %v4826 = vadd.f32 %v4577, %v4762
      %v4827 = vadd.f32 %v4285, %v4763
      %v4828 = vadd.f32 %v4383, %v4764
      %v4829 = vadd.f32 %v4481, %v4765
      %v4830 = vadd.f32 %v4579, %v4766
      %v4831 = vadd.f32 %v4288, %v4767
      %v4832 = vadd.f32 %v4386, %v4768
      %v4833 = vadd.f32 %v4484, %v4769
      %v4834 = vadd.f32 %v4582, %v4770
      %v4835 = vadd.f32 %v4290, %v4771
      %v4836 = vadd.f32 %v4388, %v4772
      %v4837 = vadd.f32 %v4486, %v4773
      %v4838 = vadd.f32 %v4584, %v4774
      %v4839 = vadd.f32 %v4293, %v4775
      %v4840 = vadd.f32 %v4391, %v4776
      %v4841 = vadd.f32 %v4489, %v4777
      %v4842 = vadd.f32 %v4587, %v4778
      %v4843 = vadd.f32 %v4295, %v4779
      %v4844 = vadd.f32 %v4393, %v4780
      %v4845 = vadd.f32 %v4491, %v4781
      %v4846 = vadd.f32 %v4589, %v4782
      %v4847 = vmul.f32 %v4783, 0.7978846
      %v4848 = vmul.f32 %v4784, 0.7978846
      %v4849 = vmul.f32 %v4785, 0.7978846
      %v4850 = vmul.f32 %v4786, 0.7978846
      %v4851 = vmul.f32 %v4787, 0.7978846
      %v4852 = vmul.f32 %v4788, 0.7978846
      %v4853 = vmul.f32 %v4789, 0.7978846
      %v4854 = vmul.f32 %v4790, 0.7978846
      %v4855 = vmul.f32 %v4791, 0.7978846
      %v4856 = vmul.f32 %v4792, 0.7978846
      %v4857 = vmul.f32 %v4793, 0.7978846
      %v4858 = vmul.f32 %v4794, 0.7978846
      %v4859 = vmul.f32 %v4795, 0.7978846
      %v4860 = vmul.f32 %v4796, 0.7978846
      %v4861 = vmul.f32 %v4797, 0.7978846
      %v4862 = vmul.f32 %v4798, 0.7978846
      %v4863 = vmul.f32 %v4799, 0.7978846
      %v4864 = vmul.f32 %v4800, 0.7978846
      %v4865 = vmul.f32 %v4801, 0.7978846
      %v4866 = vmul.f32 %v4802, 0.7978846
      %v4867 = vmul.f32 %v4803, 0.7978846
      %v4868 = vmul.f32 %v4804, 0.7978846
      %v4869 = vmul.f32 %v4805, 0.7978846
      %v4870 = vmul.f32 %v4806, 0.7978846
      %v4871 = vmul.f32 %v4807, 0.7978846
      %v4872 = vmul.f32 %v4808, 0.7978846
      %v4873 = vmul.f32 %v4809, 0.7978846
      %v4874 = vmul.f32 %v4810, 0.7978846
      %v4875 = vmul.f32 %v4811, 0.7978846
      %v4876 = vmul.f32 %v4812, 0.7978846
      %v4877 = vmul.f32 %v4813, 0.7978846
      %v4878 = vmul.f32 %v4814, 0.7978846
      %v4879 = vmul.f32 %v4815, 0.7978846
      %v4880 = vmul.f32 %v4816, 0.7978846
      %v4881 = vmul.f32 %v4817, 0.7978846
      %v4882 = vmul.f32 %v4818, 0.7978846
      %v4883 = vmul.f32 %v4819, 0.7978846
      %v4884 = vmul.f32 %v4820, 0.7978846
      %v4885 = vmul.f32 %v4821, 0.7978846
      %v4886 = vmul.f32 %v4822, 0.7978846
      %v4887 = vmul.f32 %v4823, 0.7978846
      %v4888 = vmul.f32 %v4824, 0.7978846
      %v4889 = vmul.f32 %v4825, 0.7978846
      %v4890 = vmul.f32 %v4826, 0.7978846
      %v4891 = vmul.f32 %v4827, 0.7978846
      %v4892 = vmul.f32 %v4828, 0.7978846
      %v4893 = vmul.f32 %v4829, 0.7978846
      %v4894 = vmul.f32 %v4830, 0.7978846
      %v4895 = vmul.f32 %v4831, 0.7978846
      %v4896 = vmul.f32 %v4832, 0.7978846
      %v4897 = vmul.f32 %v4833, 0.7978846
      %v4898 = vmul.f32 %v4834, 0.7978846
      %v4899 = vmul.f32 %v4835, 0.7978846
      %v4900 = vmul.f32 %v4836, 0.7978846
      %v4901 = vmul.f32 %v4837, 0.7978846
      %v4902 = vmul.f32 %v4838, 0.7978846
      %v4903 = vmul.f32 %v4839, 0.7978846
      %v4904 = vmul.f32 %v4840, 0.7978846
      %v4905 = vmul.f32 %v4841, 0.7978846
      %v4906 = vmul.f32 %v4842, 0.7978846
      %v4907 = vmul.f32 %v4843, 0.7978846
      %v4908 = vmul.f32 %v4844, 0.7978846
      %v4909 = vmul.f32 %v4845, 0.7978846
      %v4910 = vmul.f32 %v4846, 0.7978846
      %v4911 = vtanh.pop %v4847
      %v4912 = vtanh.pop %v4848
      %v4913 = vtanh.pop %v4849
      %v4914 = vtanh.pop %v4850
      %v4915 = vtanh.pop %v4851
      %v4916 = vtanh.pop %v4852
      %v4917 = vtanh.pop %v4853
      %v4918 = vtanh.pop %v4854
      %v4919 = vtanh.pop %v4855
      %v4920 = vtanh.pop %v4856
      %v4921 = vtanh.pop %v4857
      %v4922 = vtanh.pop %v4858
      %v4923 = vtanh.pop %v4859
      %v4924 = vtanh.pop %v4860
      %v4925 = vtanh.pop %v4861
      %v4926 = vtanh.pop %v4862
      %v4927 = vtanh.pop %v4863
      %v4928 = vtanh.pop %v4864
      %v4929 = vtanh.pop %v4865
      %v4930 = vtanh.pop %v4866
      %v4931 = vtanh.pop %v4867
      %v4932 = vtanh.pop %v4868
      %v4933 = vtanh.pop %v4869
      %v4934 = vtanh.pop %v4870
      %v4935 = vtanh.pop %v4871
      %v4936 = vtanh.pop %v4872
      %v4937 = vtanh.pop %v4873
      %v4938 = vtanh.pop %v4874
      %v4939 = vtanh.pop %v4875
      %v4940 = vtanh.pop %v4876
      %v4941 = vtanh.pop %v4877
      %v4942 = vtanh.pop %v4878
      %v4943 = vtanh.pop %v4879
      %v4944 = vtanh.pop %v4880
      %v4945 = vtanh.pop %v4881
      %v4946 = vtanh.pop %v4882
      %v4947 = vtanh.pop %v4883
      %v4948 = vtanh.pop %v4884
      %v4949 = vtanh.pop %v4885
      %v4950 = vtanh.pop %v4886
      %v4951 = vtanh.pop %v4887
      %v4952 = vtanh.pop %v4888
      %v4953 = vtanh.pop %v4889
      %v4954 = vtanh.pop %v4890
      %v4955 = vtanh.pop %v4891
      %v4956 = vtanh.pop %v4892
      %v4957 = vtanh.pop %v4893
      %v4958 = vtanh.pop %v4894
      %v4959 = vtanh.pop %v4895
      %v4960 = vtanh.pop %v4896
      %v4961 = vtanh.pop %v4897
      %v4962 = vtanh.pop %v4898
      %v4963 = vtanh.pop %v4899
      %v4964 = vtanh.pop %v4900
      %v4965 = vtanh.pop %v4901
      %v4966 = vtanh.pop %v4902
      %v4967 = vtanh.pop %v4903
      %v4968 = vtanh.pop %v4904
      %v4969 = vtanh.pop %v4905
      %v4970 = vtanh.pop %v4906
      %v4971 = vtanh.pop %v4907
      %v4972 = vtanh.pop %v4908
      %v4973 = vtanh.pop %v4909
      %v4974 = vtanh.pop %v4910
      %v4975 = vadd.f32 %v4911, 1.0
      %v4976 = vadd.f32 %v4912, 1.0
      %v4977 = vadd.f32 %v4913, 1.0
      %v4978 = vadd.f32 %v4914, 1.0
      %v4979 = vadd.f32 %v4915, 1.0
      %v4980 = vadd.f32 %v4916, 1.0
      %v4981 = vadd.f32 %v4917, 1.0
      %v4982 = vadd.f32 %v4918, 1.0
      %v4983 = vadd.f32 %v4919, 1.0
      %v4984 = vadd.f32 %v4920, 1.0
      %v4985 = vadd.f32 %v4921, 1.0
      %v4986 = vadd.f32 %v4922, 1.0
      %v4987 = vadd.f32 %v4923, 1.0
      %v4988 = vadd.f32 %v4924, 1.0
      %v4989 = vadd.f32 %v4925, 1.0
      %v4990 = vadd.f32 %v4926, 1.0
      %v4991 = vadd.f32 %v4927, 1.0
      %v4992 = vadd.f32 %v4928, 1.0
      %v4993 = vadd.f32 %v4929, 1.0
      %v4994 = vadd.f32 %v4930, 1.0
      %v4995 = vadd.f32 %v4931, 1.0
      %v4996 = vadd.f32 %v4932, 1.0
      %v4997 = vadd.f32 %v4933, 1.0
      %v4998 = vadd.f32 %v4934, 1.0
      %v4999 = vadd.f32 %v4935, 1.0
      %v5000 = vadd.f32 %v4936, 1.0
      %v5001 = vadd.f32 %v4937, 1.0
      %v5002 = vadd.f32 %v4938, 1.0
      %v5003 = vadd.f32 %v4939, 1.0
      %v5004 = vadd.f32 %v4940, 1.0
      %v5005 = vadd.f32 %v4941, 1.0
      %v5006 = vadd.f32 %v4942, 1.0
      %v5007 = vadd.f32 %v4943, 1.0
      %v5008 = vadd.f32 %v4944, 1.0
      %v5009 = vadd.f32 %v4945, 1.0
      %v5010 = vadd.f32 %v4946, 1.0
      %v5011 = vadd.f32 %v4947, 1.0
      %v5012 = vadd.f32 %v4948, 1.0
      %v5013 = vadd.f32 %v4949, 1.0
      %v5014 = vadd.f32 %v4950, 1.0
      %v5015 = vadd.f32 %v4951, 1.0
      %v5016 = vadd.f32 %v4952, 1.0
      %v5017 = vadd.f32 %v4953, 1.0
      %v5018 = vadd.f32 %v4954, 1.0
      %v5019 = vadd.f32 %v4955, 1.0
      %v5020 = vadd.f32 %v4956, 1.0
      %v5021 = vadd.f32 %v4957, 1.0
      %v5022 = vadd.f32 %v4958, 1.0
      %v5023 = vadd.f32 %v4959, 1.0
      %v5024 = vadd.f32 %v4960, 1.0
      %v5025 = vadd.f32 %v4961, 1.0
      %v5026 = vadd.f32 %v4962, 1.0
      %v5027 = vadd.f32 %v4963, 1.0
      %v5028 = vadd.f32 %v4964, 1.0
      %v5029 = vadd.f32 %v4965, 1.0
      %v5030 = vadd.f32 %v4966, 1.0
      %v5031 = vadd.f32 %v4967, 1.0
      %v5032 = vadd.f32 %v4968, 1.0
      %v5033 = vadd.f32 %v4969, 1.0
      %v5034 = vadd.f32 %v4970, 1.0
      %v5035 = vadd.f32 %v4971, 1.0
      %v5036 = vadd.f32 %v4972, 1.0
      %v5037 = vadd.f32 %v4973, 1.0
      %v5038 = vadd.f32 %v4974, 1.0
      %v5039 = vmul.f32 %v4975, 0.5
      %v5040 = vmul.f32 %v4976, 0.5
      %v5041 = vmul.f32 %v4977, 0.5
      %v5042 = vmul.f32 %v4978, 0.5
      %v5043 = vmul.f32 %v4979, 0.5
      %v5044 = vmul.f32 %v4980, 0.5
      %v5045 = vmul.f32 %v4981, 0.5
      %v5046 = vmul.f32 %v4982, 0.5
      %v5047 = vmul.f32 %v4983, 0.5
      %v5048 = vmul.f32 %v4984, 0.5
      %v5049 = vmul.f32 %v4985, 0.5
      %v5050 = vmul.f32 %v4986, 0.5
      %v5051 = vmul.f32 %v4987, 0.5
      %v5052 = vmul.f32 %v4988, 0.5
      %v5053 = vmul.f32 %v4989, 0.5
      %v5054 = vmul.f32 %v4990, 0.5
      %v5055 = vmul.f32 %v4991, 0.5
      %v5056 = vmul.f32 %v4992, 0.5
      %v5057 = vmul.f32 %v4993, 0.5
      %v5058 = vmul.f32 %v4994, 0.5
      %v5059 = vmul.f32 %v4995, 0.5
      %v5060 = vmul.f32 %v4996, 0.5
      %v5061 = vmul.f32 %v4997, 0.5
      %v5062 = vmul.f32 %v4998, 0.5
      %v5063 = vmul.f32 %v4999, 0.5
      %v5064 = vmul.f32 %v5000, 0.5
      %v5065 = vmul.f32 %v5001, 0.5
      %v5066 = vmul.f32 %v5002, 0.5
      %v5067 = vmul.f32 %v5003, 0.5
      %v5068 = vmul.f32 %v5004, 0.5
      %v5069 = vmul.f32 %v5005, 0.5
      %v5070 = vmul.f32 %v5006, 0.5
      %v5071 = vmul.f32 %v5007, 0.5
      %v5072 = vmul.f32 %v5008, 0.5
      %v5073 = vmul.f32 %v5009, 0.5
      %v5074 = vmul.f32 %v5010, 0.5
      %v5075 = vmul.f32 %v5011, 0.5
      %v5076 = vmul.f32 %v5012, 0.5
      %v5077 = vmul.f32 %v5013, 0.5
      %v5078 = vmul.f32 %v5014, 0.5
      %v5079 = vmul.f32 %v5015, 0.5
      %v5080 = vmul.f32 %v5016, 0.5
      %v5081 = vmul.f32 %v5017, 0.5
      %v5082 = vmul.f32 %v5018, 0.5
      %v5083 = vmul.f32 %v5019, 0.5
      %v5084 = vmul.f32 %v5020, 0.5
      %v5085 = vmul.f32 %v5021, 0.5
      %v5086 = vmul.f32 %v5022, 0.5
      %v5087 = vmul.f32 %v5023, 0.5
      %v5088 = vmul.f32 %v5024, 0.5
      %v5089 = vmul.f32 %v5025, 0.5
      %v5090 = vmul.f32 %v5026, 0.5
      %v5091 = vmul.f32 %v5027, 0.5
      %v5092 = vmul.f32 %v5028, 0.5
      %v5093 = vmul.f32 %v5029, 0.5
      %v5094 = vmul.f32 %v5030, 0.5
      %v5095 = vmul.f32 %v5031, 0.5
      %v5096 = vmul.f32 %v5032, 0.5
      %v5097 = vmul.f32 %v5033, 0.5
      %v5098 = vmul.f32 %v5034, 0.5
      %v5099 = vmul.f32 %v5035, 0.5
      %v5100 = vmul.f32 %v5036, 0.5
      %v5101 = vmul.f32 %v5037, 0.5
      %v5102 = vmul.f32 %v5038, 0.5
      %v5103 = vmul.f32 %v4258, %v5039
      %v5104 = vmul.f32 %v4356, %v5040
      %v5105 = vmul.f32 %v4454, %v5041
      %v5106 = vmul.f32 %v4552, %v5042
      %v5107 = vmul.f32 %v4260, %v5043
      %v5108 = vmul.f32 %v4358, %v5044
      %v5109 = vmul.f32 %v4456, %v5045
      %v5110 = vmul.f32 %v4554, %v5046
      %v5111 = vmul.f32 %v4263, %v5047
      %v5112 = vmul.f32 %v4361, %v5048
      %v5113 = vmul.f32 %v4459, %v5049
      %v5114 = vmul.f32 %v4557, %v5050
      %v5115 = vmul.f32 %v4265, %v5051
      %v5116 = vmul.f32 %v4363, %v5052
      %v5117 = vmul.f32 %v4461, %v5053
      %v5118 = vmul.f32 %v4559, %v5054
      %v5119 = vmul.f32 %v4268, %v5055
      %v5120 = vmul.f32 %v4366, %v5056
      %v5121 = vmul.f32 %v4464, %v5057
      %v5122 = vmul.f32 %v4562, %v5058
      %v5123 = vmul.f32 %v4270, %v5059
      %v5124 = vmul.f32 %v4368, %v5060
      %v5125 = vmul.f32 %v4466, %v5061
      %v5126 = vmul.f32 %v4564, %v5062
      %v5127 = vmul.f32 %v4273, %v5063
      %v5128 = vmul.f32 %v4371, %v5064
      %v5129 = vmul.f32 %v4469, %v5065
      %v5130 = vmul.f32 %v4567, %v5066
      %v5131 = vmul.f32 %v4275, %v5067
      %v5132 = vmul.f32 %v4373, %v5068
      %v5133 = vmul.f32 %v4471, %v5069
      %v5134 = vmul.f32 %v4569, %v5070
      %v5135 = vmul.f32 %v4278, %v5071
      %v5136 = vmul.f32 %v4376, %v5072
      %v5137 = vmul.f32 %v4474, %v5073
      %v5138 = vmul.f32 %v4572, %v5074
      %v5139 = vmul.f32 %v4280, %v5075
      %v5140 = vmul.f32 %v4378, %v5076
      %v5141 = vmul.f32 %v4476, %v5077
      %v5142 = vmul.f32 %v4574, %v5078
      %v5143 = vmul.f32 %v4283, %v5079
      %v5144 = vmul.f32 %v4381, %v5080
      %v5145 = vmul.f32 %v4479, %v5081
      %v5146 = vmul.f32 %v4577, %v5082
      %v5147 = vmul.f32 %v4285, %v5083
      %v5148 = vmul.f32 %v4383, %v5084
      %v5149 = vmul.f32 %v4481, %v5085
      %v5150 = vmul.f32 %v4579, %v5086
      %v5151 = vmul.f32 %v4288, %v5087
      %v5152 = vmul.f32 %v4386, %v5088
      %v5153 = vmul.f32 %v4484, %v5089
      %v5154 = vmul.f32 %v4582, %v5090
      %v5155 = vmul.f32 %v4290, %v5091
      %v5156 = vmul.f32 %v4388, %v5092
      %v5157 = vmul.f32 %v4486, %v5093
      %v5158 = vmul.f32 %v4584, %v5094
      %v5159 = vmul.f32 %v4293, %v5095
      %v5160 = vmul.f32 %v4391, %v5096
      %v5161 = vmul.f32 %v4489, %v5097
      %v5162 = vmul.f32 %v4587, %v5098
      %v5163 = vmul.f32 %v4295, %v5099
      %v5164 = vmul.f32 %v4393, %v5100
      %v5165 = vmul.f32 %v4491, %v5101
      %v5166 = vmul.f32 %v4589, %v5102
      %v5167 = vpack.c.bf16 %v5107, %v5103
      %v5168 = vpack.c.bf16 %v5108, %v5104
      %v5169 = vpack.c.bf16 %v5109, %v5105
      %v5170 = vpack.c.bf16 %v5110, %v5106
      %v5171 = vpack.c.bf16 %v5115, %v5111
      %v5172 = vpack.c.bf16 %v5116, %v5112
      %v5173 = vpack.c.bf16 %v5117, %v5113
      %v5174 = vpack.c.bf16 %v5118, %v5114
      %v5175 = vpack.c.bf16 %v5123, %v5119
      %v5176 = vpack.c.bf16 %v5124, %v5120
      %v5177 = vpack.c.bf16 %v5125, %v5121
      %v5178 = vpack.c.bf16 %v5126, %v5122
      %v5179 = vpack.c.bf16 %v5131, %v5127
      %v5180 = vpack.c.bf16 %v5132, %v5128
      %v5181 = vpack.c.bf16 %v5133, %v5129
      %v5182 = vpack.c.bf16 %v5134, %v5130
      %v5183 = vpack.c.bf16 %v5139, %v5135
      %v5184 = vpack.c.bf16 %v5140, %v5136
      %v5185 = vpack.c.bf16 %v5141, %v5137
      %v5186 = vpack.c.bf16 %v5142, %v5138
      %v5187 = vpack.c.bf16 %v5147, %v5143
      %v5188 = vpack.c.bf16 %v5148, %v5144
      %v5189 = vpack.c.bf16 %v5149, %v5145
      %v5190 = vpack.c.bf16 %v5150, %v5146
      %v5191 = vpack.c.bf16 %v5155, %v5151
      %v5192 = vpack.c.bf16 %v5156, %v5152
      %v5193 = vpack.c.bf16 %v5157, %v5153
      %v5194 = vpack.c.bf16 %v5158, %v5154
      %v5195 = vpack.c.bf16 %v5163, %v5159
      %v5196 = vpack.c.bf16 %v5164, %v5160
      %v5197 = vpack.c.bf16 %v5165, %v5161
      %v5198 = vpack.c.bf16 %v5166, %v5162
      %v5199 = vld [vmem:[%s404] sm:$0xff]
      %v5200 = vld [vmem:[%s404 + $0x8] sm:$0xff]
      %v5201 = vld [vmem:[%s404 + $0x10] sm:$0xff]
      %v5202 = vld [vmem:[%s404 + $0x18] sm:$0xff]
      %v5203 = vld [vmem:[%s404 + $0x20] sm:$0xff]
      %v5204 = vld [vmem:[%s404 + $0x28] sm:$0xff]
      %v5205 = vld [vmem:[%s404 + $0x30] sm:$0xff]
      %v5206 = vld [vmem:[%s404 + $0x38] sm:$0xff]
      %v5207 = vld [vmem:[%s404 + $0x40] sm:$0xff]
      %v5208 = vld [vmem:[%s404 + $0x48] sm:$0xff]
      %v5209 = vld [vmem:[%s404 + $0x50] sm:$0xff]
      %v5210 = vld [vmem:[%s404 + $0x58] sm:$0xff]
      %v5211 = vld [vmem:[%s404 + $0x60] sm:$0xff]
      %v5212 = vld [vmem:[%s404 + $0x68] sm:$0xff]
      %v5213 = vld [vmem:[%s404 + $0x70] sm:$0xff]
      %v5214 = vld [vmem:[%s404 + $0x78] sm:$0xff]
      %v5215 = vld [vmem:[%s404 + $0x80] sm:$0xff]
      %v5216 = vld [vmem:[%s404 + $0x88] sm:$0xff]
      %v5217 = vld [vmem:[%s404 + $0x90] sm:$0xff]
      %v5218 = vld [vmem:[%s404 + $0x98] sm:$0xff]
      %v5219 = vld [vmem:[%s404 + $0xa0] sm:$0xff]
      %v5220 = vld [vmem:[%s404 + $0xa8] sm:$0xff]
      %v5221 = vld [vmem:[%s404 + $0xb0] sm:$0xff]
      %v5222 = vld [vmem:[%s404 + $0xb8] sm:$0xff]
      %v5223 = vld [vmem:[%s404 + $0xc0] sm:$0xff]
      %v5224 = vld [vmem:[%s404 + $0xc8] sm:$0xff]
      %v5225 = vld [vmem:[%s404 + $0xd0] sm:$0xff]
      %v5226 = vld [vmem:[%s404 + $0xd8] sm:$0xff]
      %v5227 = vld [vmem:[%s404 + $0xe0] sm:$0xff]
      %v5228 = vld [vmem:[%s404 + $0xe8] sm:$0xff]
      %v5229 = vld [vmem:[%s404 + $0xf0] sm:$0xff]
      %v5230 = vld [vmem:[%s404 + $0xf8] sm:$0xff]
      %v5231 = vld [vmem:[%s404 + $0x100] sm:$0xff]
      %v5232 = vld [vmem:[%s404 + $0x108] sm:$0xff]
      %v5233 = vld [vmem:[%s404 + $0x110] sm:$0xff]
      %v5234 = vld [vmem:[%s404 + $0x118] sm:$0xff]
      %v5235 = vld [vmem:[%s404 + $0x120] sm:$0xff]
      %v5236 = vld [vmem:[%s404 + $0x128] sm:$0xff]
      %v5237 = vld [vmem:[%s404 + $0x130] sm:$0xff]
      %v5238 = vld [vmem:[%s404 + $0x138] sm:$0xff]
      %v5239 = vld [vmem:[%s404 + $0x140] sm:$0xff]
      %v5240 = vld [vmem:[%s404 + $0x148] sm:$0xff]
      %v5241 = vld [vmem:[%s404 + $0x150] sm:$0xff]
      %v5242 = vld [vmem:[%s404 + $0x158] sm:$0xff]
      %v5243 = vld [vmem:[%s404 + $0x160] sm:$0xff]
      %v5244 = vld [vmem:[%s404 + $0x168] sm:$0xff]
      %v5245 = vld [vmem:[%s404 + $0x170] sm:$0xff]
      %v5246 = vld [vmem:[%s404 + $0x178] sm:$0xff]
      %v5247 = vld [vmem:[%s404 + $0x180] sm:$0xff]
      %v5248 = vld [vmem:[%s404 + $0x188] sm:$0xff]
      %v5249 = vld [vmem:[%s404 + $0x190] sm:$0xff]
      %v5250 = vld [vmem:[%s404 + $0x198] sm:$0xff]
      %v5251 = vld [vmem:[%s404 + $0x1a0] sm:$0xff]
      %v5252 = vld [vmem:[%s404 + $0x1a8] sm:$0xff]
      %v5253 = vld [vmem:[%s404 + $0x1b0] sm:$0xff]
      %v5254 = vld [vmem:[%s404 + $0x1b8] sm:$0xff]
      %v5255 = vld [vmem:[%s404 + $0x1c0] sm:$0xff]
      %v5256 = vld [vmem:[%s404 + $0x1c8] sm:$0xff]
      %v5257 = vld [vmem:[%s404 + $0x1d0] sm:$0xff]
      %v5258 = vld [vmem:[%s404 + $0x1d8] sm:$0xff]
      %v5259 = vld [vmem:[%s404 + $0x1e0] sm:$0xff]
      %v5260 = vld [vmem:[%s404 + $0x1e8] sm:$0xff]
      %v5261 = vld [vmem:[%s404 + $0x1f0] sm:$0xff]
      %v5262 = vld [vmem:[%s404 + $0x1f8] sm:$0xff]
      %v5263 = vperm.slane %v538, 5
      %v5264 = vperm.slane %v539, 5
      %v5329 = vunpack.c.l.b16 %v5199
      %v5330 = vunpack.c.h.b16 %v5199
      %v5331 = vunpack.c.l.b16 %v5200
      %v5332 = vunpack.c.h.b16 %v5200
      %v5333 = vunpack.c.l.b16 %v5201
      %v5334 = vunpack.c.h.b16 %v5201
      %v5335 = vunpack.c.l.b16 %v5202
      %v5336 = vunpack.c.h.b16 %v5202
      %v5337 = vunpack.c.l.b16 %v5203
      %v5338 = vunpack.c.h.b16 %v5203
      %v5339 = vunpack.c.l.b16 %v5204
      %v5340 = vunpack.c.h.b16 %v5204
      %v5341 = vunpack.c.l.b16 %v5205
      %v5342 = vunpack.c.h.b16 %v5205
      %v5343 = vunpack.c.l.b16 %v5206
      %v5344 = vunpack.c.h.b16 %v5206
      %v5345 = vunpack.c.l.b16 %v5207
      %v5346 = vunpack.c.h.b16 %v5207
      %v5347 = vunpack.c.l.b16 %v5208
      %v5348 = vunpack.c.h.b16 %v5208
      %v5349 = vunpack.c.l.b16 %v5209
      %v5350 = vunpack.c.h.b16 %v5209
      %v5351 = vunpack.c.l.b16 %v5210
      %v5352 = vunpack.c.h.b16 %v5210
      %v5353 = vunpack.c.l.b16 %v5211
      %v5354 = vunpack.c.h.b16 %v5211
      %v5355 = vunpack.c.l.b16 %v5212
      %v5356 = vunpack.c.h.b16 %v5212
      %v5357 = vunpack.c.l.b16 %v5213
      %v5358 = vunpack.c.h.b16 %v5213
      %v5359 = vunpack.c.l.b16 %v5214
      %v5360 = vunpack.c.h.b16 %v5214
      %v5361 = vunpack.c.l.b16 %v5215
      %v5362 = vunpack.c.h.b16 %v5215
      %v5363 = vunpack.c.l.b16 %v5216
      %v5364 = vunpack.c.h.b16 %v5216
      %v5365 = vunpack.c.l.b16 %v5217
      %v5366 = vunpack.c.h.b16 %v5217
      %v5367 = vunpack.c.l.b16 %v5218
      %v5368 = vunpack.c.h.b16 %v5218
      %v5369 = vunpack.c.l.b16 %v5219
      %v5370 = vunpack.c.h.b16 %v5219
      %v5371 = vunpack.c.l.b16 %v5220
      %v5372 = vunpack.c.h.b16 %v5220
      %v5373 = vunpack.c.l.b16 %v5221
      %v5374 = vunpack.c.h.b16 %v5221
      %v5375 = vunpack.c.l.b16 %v5222
      %v5376 = vunpack.c.h.b16 %v5222
      %v5377 = vunpack.c.l.b16 %v5223
      %v5378 = vunpack.c.h.b16 %v5223
      %v5379 = vunpack.c.l.b16 %v5224
      %v5380 = vunpack.c.h.b16 %v5224
      %v5381 = vunpack.c.l.b16 %v5225
      %v5382 = vunpack.c.h.b16 %v5225
      %v5383 = vunpack.c.l.b16 %v5226
      %v5384 = vunpack.c.h.b16 %v5226
      %v5385 = vunpack.c.l.b16 %v5227
      %v5386 = vunpack.c.h.b16 %v5227
      %v5387 = vunpack.c.l.b16 %v5228
      %v5388 = vunpack.c.h.b16 %v5228
      %v5389 = vunpack.c.l.b16 %v5229
      %v5390 = vunpack.c.h.b16 %v5229
      %v5391 = vunpack.c.l.b16 %v5230
      %v5392 = vunpack.c.h.b16 %v5230
      %v5393 = vunpack.c.l.b16 %v5231
      %v5394 = vunpack.c.h.b16 %v5231
      %v5395 = vunpack.c.l.b16 %v5232
      %v5396 = vunpack.c.h.b16 %v5232
      %v5397 = vunpack.c.l.b16 %v5233
      %v5398 = vunpack.c.h.b16 %v5233
      %v5399 = vunpack.c.l.b16 %v5234
      %v5400 = vunpack.c.h.b16 %v5234
      %v5401 = vunpack.c.l.b16 %v5235
      %v5402 = vunpack.c.h.b16 %v5235
      %v5403 = vunpack.c.l.b16 %v5236
      %v5404 = vunpack.c.h.b16 %v5236
      %v5405 = vunpack.c.l.b16 %v5237
      %v5406 = vunpack.c.h.b16 %v5237
      %v5407 = vunpack.c.l.b16 %v5238
      %v5408 = vunpack.c.h.b16 %v5238
      %v5409 = vunpack.c.l.b16 %v5239
      %v5410 = vunpack.c.h.b16 %v5239
      %v5411 = vunpack.c.l.b16 %v5240
      %v5412 = vunpack.c.h.b16 %v5240
      %v5413 = vunpack.c.l.b16 %v5241
      %v5414 = vunpack.c.h.b16 %v5241
      %v5415 = vunpack.c.l.b16 %v5242
      %v5416 = vunpack.c.h.b16 %v5242
      %v5417 = vunpack.c.l.b16 %v5243
      %v5418 = vunpack.c.h.b16 %v5243
      %v5419 = vunpack.c.l.b16 %v5244
      %v5420 = vunpack.c.h.b16 %v5244
      %v5421 = vunpack.c.l.b16 %v5245
      %v5422 = vunpack.c.h.b16 %v5245
      %v5423 = vunpack.c.l.b16 %v5246
      %v5424 = vunpack.c.h.b16 %v5246
      %v5425 = vunpack.c.l.b16 %v5247
      %v5426 = vunpack.c.h.b16 %v5247
      %v5427 = vunpack.c.l.b16 %v5248
      %v5428 = vunpack.c.h.b16 %v5248
      %v5429 = vunpack.c.l.b16 %v5249
      %v5430 = vunpack.c.h.b16 %v5249
      %v5431 = vunpack.c.l.b16 %v5250
      %v5432 = vunpack.c.h.b16 %v5250
      %v5433 = vunpack.c.l.b16 %v5251
      %v5434 = vunpack.c.h.b16 %v5251
      %v5435 = vunpack.c.l.b16 %v5252
      %v5436 = vunpack.c.h.b16 %v5252
      %v5437 = vunpack.c.l.b16 %v5253
      %v5438 = vunpack.c.h.b16 %v5253
      %v5439 = vunpack.c.l.b16 %v5254
      %v5440 = vunpack.c.h.b16 %v5254
      %v5441 = vunpack.c.l.b16 %v5255
      %v5442 = vunpack.c.h.b16 %v5255
      %v5443 = vunpack.c.l.b16 %v5256
      %v5444 = vunpack.c.h.b16 %v5256
      %v5445 = vunpack.c.l.b16 %v5257
      %v5446 = vunpack.c.h.b16 %v5257
      %v5447 = vunpack.c.l.b16 %v5258
      %v5448 = vunpack.c.h.b16 %v5258
      %v5449 = vunpack.c.l.b16 %v5259
      %v5450 = vunpack.c.h.b16 %v5259
      %v5451 = vunpack.c.l.b16 %v5260
      %v5452 = vunpack.c.h.b16 %v5260
      %v5453 = vunpack.c.l.b16 %v5261
      %v5454 = vunpack.c.h.b16 %v5261
      %v5455 = vunpack.c.l.b16 %v5262
      %v5456 = vunpack.c.h.b16 %v5262
      %v5457 = vpack.c.b16 %v5331, %v5329
      %v5458 = vpack.c.b16 %v5332, %v5330
      %v5459 = vpack.c.b16 %v5335, %v5333
      %v5460 = vpack.c.b16 %v5336, %v5334
      %v5461 = vpack.c.b16 %v5339, %v5337
      %v5462 = vpack.c.b16 %v5340, %v5338
      %v5463 = vpack.c.b16 %v5343, %v5341
      %v5464 = vpack.c.b16 %v5344, %v5342
      %v5465 = vpack.c.b16 %v5347, %v5345
      %v5466 = vpack.c.b16 %v5348, %v5346
      %v5467 = vpack.c.b16 %v5351, %v5349
      %v5468 = vpack.c.b16 %v5352, %v5350
      %v5469 = vpack.c.b16 %v5355, %v5353
      %v5470 = vpack.c.b16 %v5356, %v5354
      %v5471 = vpack.c.b16 %v5359, %v5357
      %v5472 = vpack.c.b16 %v5360, %v5358
      %v5473 = vpack.c.b16 %v5363, %v5361
      %v5474 = vpack.c.b16 %v5364, %v5362
      %v5475 = vpack.c.b16 %v5367, %v5365
      %v5476 = vpack.c.b16 %v5368, %v5366
      %v5477 = vpack.c.b16 %v5371, %v5369
      %v5478 = vpack.c.b16 %v5372, %v5370
      %v5479 = vpack.c.b16 %v5375, %v5373
      %v5480 = vpack.c.b16 %v5376, %v5374
      %v5481 = vpack.c.b16 %v5379, %v5377
      %v5482 = vpack.c.b16 %v5380, %v5378
      %v5483 = vpack.c.b16 %v5383, %v5381
      %v5484 = vpack.c.b16 %v5384, %v5382
      %v5485 = vpack.c.b16 %v5387, %v5385
      %v5486 = vpack.c.b16 %v5388, %v5386
      %v5487 = vpack.c.b16 %v5391, %v5389
      %v5488 = vpack.c.b16 %v5392, %v5390
      %v5489 = vpack.c.b16 %v5395, %v5393
      %v5490 = vpack.c.b16 %v5396, %v5394
      %v5491 = vpack.c.b16 %v5399, %v5397
      %v5492 = vpack.c.b16 %v5400, %v5398
      %v5493 = vpack.c.b16 %v5403, %v5401
      %v5494 = vpack.c.b16 %v5404, %v5402
      %v5495 = vpack.c.b16 %v5407, %v5405
      %v5496 = vpack.c.b16 %v5408, %v5406
      %v5497 = vpack.c.b16 %v5411, %v5409
      %v5498 = vpack.c.b16 %v5412, %v5410
      %v5499 = vpack.c.b16 %v5415, %v5413
      %v5500 = vpack.c.b16 %v5416, %v5414
      %v5501 = vpack.c.b16 %v5419, %v5417
      %v5502 = vpack.c.b16 %v5420, %v5418
      %v5503 = vpack.c.b16 %v5423, %v5421
      %v5504 = vpack.c.b16 %v5424, %v5422
      %v5505 = vpack.c.b16 %v5427, %v5425
      %v5506 = vpack.c.b16 %v5428, %v5426
      %v5507 = vpack.c.b16 %v5431, %v5429
      %v5508 = vpack.c.b16 %v5432, %v5430
      %v5509 = vpack.c.b16 %v5435, %v5433
      %v5510 = vpack.c.b16 %v5436, %v5434
      %v5511 = vpack.c.b16 %v5439, %v5437
      %v5512 = vpack.c.b16 %v5440, %v5438
      %v5513 = vpack.c.b16 %v5443, %v5441
      %v5514 = vpack.c.b16 %v5444, %v5442
      %v5515 = vpack.c.b16 %v5447, %v5445
      %v5516 = vpack.c.b16 %v5448, %v5446
      %v5517 = vpack.c.b16 %v5451, %v5449
      %v5518 = vpack.c.b16 %v5452, %v5450
      %v5519 = vpack.c.b16 %v5455, %v5453
      %v5520 = vpack.c.b16 %v5456, %v5454
      %5585 = vmatpush.bf16.msra.mxu0 %v5471
      %5586 = vmatpush.bf16.msra.mxu0 %v5469
      %5587 = vmatpush.bf16.msra.mxu0 %v5467
      %5588 = vmatpush.bf16.msra.mxu0 %v5465
      %5589 = vmatpush.bf16.msra.mxu0 %v5463
      %5590 = vmatpush.bf16.msra.mxu0 %v5461
      %5591 = vmatpush.bf16.msra.mxu0 %v5459
      %5592 = vmatpush.bf16.msra.mxu0 %v5457
      %5593 = vmatmul.bf16.gmra.mxu0 %v5167
      %v5594 = vpop.f32.mrf.mxu0
      %v5595 = vadd.f32 %v5263, %v5594
      %v5596 = vpop.f32.mrf.mxu0
      %v5597 = vadd.f32 %v5263, %v5596
      %5598 = vmatmul.bf16.gmra.mxu0 %v5171
      %v5599 = vpop.f32.mrf.mxu0
      %v5600 = vadd.f32 %v5263, %v5599
      %v5601 = vpop.f32.mrf.mxu0
      %v5602 = vadd.f32 %v5263, %v5601
      %5603 = vmatmul.bf16.gmra.mxu0 %v5175
      %v5604 = vpop.f32.mrf.mxu0
      %v5605 = vadd.f32 %v5263, %v5604
      %v5606 = vpop.f32.mrf.mxu0
      %v5607 = vadd.f32 %v5263, %v5606
      %5608 = vmatmul.bf16.gmra.mxu0 %v5179
      %v5609 = vpop.f32.mrf.mxu0
      %v5610 = vadd.f32 %v5263, %v5609
      %v5611 = vpop.f32.mrf.mxu0
      %v5612 = vadd.f32 %v5263, %v5611
      %5613 = vmatmul.bf16.gmra.mxu0 %v5183
      %v5614 = vpop.f32.mrf.mxu0
      %v5615 = vadd.f32 %v5263, %v5614
      %v5616 = vpop.f32.mrf.mxu0
      %v5617 = vadd.f32 %v5263, %v5616
      %5618 = vmatmul.bf16.gmra.mxu0 %v5187
      %v5619 = vpop.f32.mrf.mxu0
      %v5620 = vadd.f32 %v5263, %v5619
      %v5621 = vpop.f32.mrf.mxu0
      %v5622 = vadd.f32 %v5263, %v5621
      %5623 = vmatmul.bf16.gmra.mxu0 %v5191
      %v5624 = vpop.f32.mrf.mxu0
      %v5625 = vadd.f32 %v5263, %v5624
      %v5626 = vpop.f32.mrf.mxu0
      %v5627 = vadd.f32 %v5263, %v5626
      %5628 = vmatmul.bf16.gmra.mxu0 %v5195
      %v5629 = vpop.f32.mrf.mxu0
      %v5630 = vadd.f32 %v5263, %v5629
      %v5631 = vpop.f32.mrf.mxu0
      %v5632 = vadd.f32 %v5263, %v5631
      %5633 = vdwg.mxu0
      %5634 = vmatpush.bf16.msra.mxu0 %v5487
      %5635 = vmatpush.bf16.msra.mxu0 %v5485
      %5636 = vmatpush.bf16.msra.mxu0 %v5483
      %5637 = vmatpush.bf16.msra.mxu0 %v5481
      %5638 = vmatpush.bf16.msra.mxu0 %v5479
      %5639 = vmatpush.bf16.msra.mxu0 %v5477
      %5640 = vmatpush.bf16.msra.mxu0 %v5475
      %5641 = vmatpush.bf16.msra.mxu0 %v5473
      %5642 = vmatmul.bf16.gmra.mxu0 %v5168
      %v5643 = vpop.f32.mrf.mxu0
      %v5644 = vadd.f32 %v5595, %v5643
      %v5645 = vpop.f32.mrf.mxu0
      %v5646 = vadd.f32 %v5597, %v5645
      %5647 = vmatmul.bf16.gmra.mxu0 %v5172
      %v5648 = vpop.f32.mrf.mxu0
      %v5649 = vadd.f32 %v5600, %v5648
      %v5650 = vpop.f32.mrf.mxu0
      %v5651 = vadd.f32 %v5602, %v5650
      %5652 = vmatmul.bf16.gmra.mxu0 %v5176
      %v5653 = vpop.f32.mrf.mxu0
      %v5654 = vadd.f32 %v5605, %v5653
      %v5655 = vpop.f32.mrf.mxu0
      %v5656 = vadd.f32 %v5607, %v5655
      %5657 = vmatmul.bf16.gmra.mxu0 %v5180
      %v5658 = vpop.f32.mrf.mxu0
      %v5659 = vadd.f32 %v5610, %v5658
      %v5660 = vpop.f32.mrf.mxu0
      %v5661 = vadd.f32 %v5612, %v5660
      %5662 = vmatmul.bf16.gmra.mxu0 %v5184
      %v5663 = vpop.f32.mrf.mxu0
      %v5664 = vadd.f32 %v5615, %v5663
      %v5665 = vpop.f32.mrf.mxu0
      %v5666 = vadd.f32 %v5617, %v5665
      %5667 = vmatmul.bf16.gmra.mxu0 %v5188
      %v5668 = vpop.f32.mrf.mxu0
      %v5669 = vadd.f32 %v5620, %v5668
      %v5670 = vpop.f32.mrf.mxu0
      %v5671 = vadd.f32 %v5622, %v5670
      %5672 = vmatmul.bf16.gmra.mxu0 %v5192
      %v5673 = vpop.f32.mrf.mxu0
      %v5674 = vadd.f32 %v5625, %v5673
      %v5675 = vpop.f32.mrf.mxu0
      %v5676 = vadd.f32 %v5627, %v5675
      %5677 = vmatmul.bf16.gmra.mxu0 %v5196
      %v5678 = vpop.f32.mrf.mxu0
      %v5679 = vadd.f32 %v5630, %v5678
      %v5680 = vpop.f32.mrf.mxu0
      %v5681 = vadd.f32 %v5632, %v5680
      %5682 = vdwg.mxu0
      %5683 = vmatpush.bf16.msra.mxu0 %v5503
      %5684 = vmatpush.bf16.msra.mxu0 %v5501
      %5685 = vmatpush.bf16.msra.mxu0 %v5499
      %5686 = vmatpush.bf16.msra.mxu0 %v5497
      %5687 = vmatpush.bf16.msra.mxu0 %v5495
      %5688 = vmatpush.bf16.msra.mxu0 %v5493
      %5689 = vmatpush.bf16.msra.mxu0 %v5491
      %5690 = vmatpush.bf16.msra.mxu0 %v5489
      %5691 = vmatmul.bf16.gmra.mxu0 %v5169
      %v5692 = vpop.f32.mrf.mxu0
      %v5693 = vadd.f32 %v5644, %v5692
      %v5694 = vpop.f32.mrf.mxu0
      %v5695 = vadd.f32 %v5646, %v5694
      %5696 = vmatmul.bf16.gmra.mxu0 %v5173
      %v5697 = vpop.f32.mrf.mxu0
      %v5698 = vadd.f32 %v5649, %v5697
      %v5699 = vpop.f32.mrf.mxu0
      %v5700 = vadd.f32 %v5651, %v5699
      %5701 = vmatmul.bf16.gmra.mxu0 %v5177
      %v5702 = vpop.f32.mrf.mxu0
      %v5703 = vadd.f32 %v5654, %v5702
      %v5704 = vpop.f32.mrf.mxu0
      %v5705 = vadd.f32 %v5656, %v5704
      %5706 = vmatmul.bf16.gmra.mxu0 %v5181
      %v5707 = vpop.f32.mrf.mxu0
      %v5708 = vadd.f32 %v5659, %v5707
      %v5709 = vpop.f32.mrf.mxu0
      %v5710 = vadd.f32 %v5661, %v5709
      %5711 = vmatmul.bf16.gmra.mxu0 %v5185
      %v5712 = vpop.f32.mrf.mxu0
      %v5713 = vadd.f32 %v5664, %v5712
      %v5714 = vpop.f32.mrf.mxu0
      %v5715 = vadd.f32 %v5666, %v5714
      %5716 = vmatmul.bf16.gmra.mxu0 %v5189
      %v5717 = vpop.f32.mrf.mxu0
      %v5718 = vadd.f32 %v5669, %v5717
      %v5719 = vpop.f32.mrf.mxu0
      %v5720 = vadd.f32 %v5671, %v5719
      %5721 = vmatmul.bf16.gmra.mxu0 %v5193
      %v5722 = vpop.f32.mrf.mxu0
      %v5723 = vadd.f32 %v5674, %v5722
      %v5724 = vpop.f32.mrf.mxu0
      %v5725 = vadd.f32 %v5676, %v5724
      %5726 = vmatmul.bf16.gmra.mxu0 %v5197
      %v5727 = vpop.f32.mrf.mxu0
      %v5728 = vadd.f32 %v5679, %v5727
      %v5729 = vpop.f32.mrf.mxu0
      %v5730 = vadd.f32 %v5681, %v5729
      %5731 = vdwg.mxu0
      %5732 = vmatpush.bf16.msra.mxu0 %v5519
      %5733 = vmatpush.bf16.msra.mxu0 %v5517
      %5734 = vmatpush.bf16.msra.mxu0 %v5515
      %5735 = vmatpush.bf16.msra.mxu0 %v5513
      %5736 = vmatpush.bf16.msra.mxu0 %v5511
      %5737 = vmatpush.bf16.msra.mxu0 %v5509
      %5738 = vmatpush.bf16.msra.mxu0 %v5507
      %5739 = vmatpush.bf16.msra.mxu0 %v5505
      %5740 = vmatmul.bf16.gmra.mxu0 %v5170
      %v5741 = vpop.f32.mrf.mxu0
      %v5742 = vadd.f32 %v5693, %v5741
      %v5743 = vpop.f32.mrf.mxu0
      %v5744 = vadd.f32 %v5695, %v5743
      %5745 = vmatmul.bf16.gmra.mxu0 %v5174
      %v5746 = vpop.f32.mrf.mxu0
      %v5747 = vadd.f32 %v5698, %v5746
      %v5748 = vpop.f32.mrf.mxu0
      %v5749 = vadd.f32 %v5700, %v5748
      %5750 = vmatmul.bf16.gmra.mxu0 %v5178
      %v5751 = vpop.f32.mrf.mxu0
      %v5752 = vadd.f32 %v5703, %v5751
      %v5753 = vpop.f32.mrf.mxu0
      %v5754 = vadd.f32 %v5705, %v5753
      %5755 = vmatmul.bf16.gmra.mxu0 %v5182
      %v5756 = vpop.f32.mrf.mxu0
      %v5757 = vadd.f32 %v5708, %v5756
      %v5758 = vpop.f32.mrf.mxu0
      %v5759 = vadd.f32 %v5710, %v5758
      %5760 = vmatmul.bf16.gmra.mxu0 %v5186
      %v5761 = vpop.f32.mrf.mxu0
      %v5762 = vadd.f32 %v5713, %v5761
      %v5763 = vpop.f32.mrf.mxu0
      %v5764 = vadd.f32 %v5715, %v5763
      %5765 = vmatmul.bf16.gmra.mxu0 %v5190
      %v5766 = vpop.f32.mrf.mxu0
      %v5767 = vadd.f32 %v5718, %v5766
      %v5768 = vpop.f32.mrf.mxu0
      %v5769 = vadd.f32 %v5720, %v5768
      %5770 = vmatmul.bf16.gmra.mxu0 %v5194
      %v5771 = vpop.f32.mrf.mxu0
      %v5772 = vadd.f32 %v5723, %v5771
      %v5773 = vpop.f32.mrf.mxu0
      %v5774 = vadd.f32 %v5725, %v5773
      %5775 = vmatmul.bf16.gmra.mxu0 %v5198
      %v5776 = vpop.f32.mrf.mxu0
      %v5777 = vadd.f32 %v5728, %v5776
      %v5778 = vpop.f32.mrf.mxu0
      %v5779 = vadd.f32 %v5730, %v5778
      %5780 = vdwg.mxu0
      %5781 = vmatpush.bf16.msra.mxu0 %v5472
      %5782 = vmatpush.bf16.msra.mxu0 %v5470
      %5783 = vmatpush.bf16.msra.mxu0 %v5468
      %5784 = vmatpush.bf16.msra.mxu0 %v5466
      %5785 = vmatpush.bf16.msra.mxu0 %v5464
      %5786 = vmatpush.bf16.msra.mxu0 %v5462
      %5787 = vmatpush.bf16.msra.mxu0 %v5460
      %5788 = vmatpush.bf16.msra.mxu0 %v5458
      %5789 = vmatmul.bf16.gmra.mxu0 %v5167
      %v5790 = vpop.f32.mrf.mxu0
      %v5791 = vadd.f32 %v5264, %v5790
      %v5792 = vpop.f32.mrf.mxu0
      %v5793 = vadd.f32 %v5264, %v5792
      %5794 = vmatmul.bf16.gmra.mxu0 %v5171
      %v5795 = vpop.f32.mrf.mxu0
      %v5796 = vadd.f32 %v5264, %v5795
      %v5797 = vpop.f32.mrf.mxu0
      %v5798 = vadd.f32 %v5264, %v5797
      %5799 = vmatmul.bf16.gmra.mxu0 %v5175
      %v5800 = vpop.f32.mrf.mxu0
      %v5801 = vadd.f32 %v5264, %v5800
      %v5802 = vpop.f32.mrf.mxu0
      %v5803 = vadd.f32 %v5264, %v5802
      %5804 = vmatmul.bf16.gmra.mxu0 %v5179
      %v5805 = vpop.f32.mrf.mxu0
      %v5806 = vadd.f32 %v5264, %v5805
      %v5807 = vpop.f32.mrf.mxu0
      %v5808 = vadd.f32 %v5264, %v5807
      %5809 = vmatmul.bf16.gmra.mxu0 %v5183
      %v5810 = vpop.f32.mrf.mxu0
      %v5811 = vadd.f32 %v5264, %v5810
      %v5812 = vpop.f32.mrf.mxu0
      %v5813 = vadd.f32 %v5264, %v5812
      %5814 = vmatmul.bf16.gmra.mxu0 %v5187
      %v5815 = vpop.f32.mrf.mxu0
      %v5816 = vadd.f32 %v5264, %v5815
      %v5817 = vpop.f32.mrf.mxu0
      %v5818 = vadd.f32 %v5264, %v5817
      %5819 = vmatmul.bf16.gmra.mxu0 %v5191
      %v5820 = vpop.f32.mrf.mxu0
      %v5821 = vadd.f32 %v5264, %v5820
      %v5822 = vpop.f32.mrf.mxu0
      %v5823 = vadd.f32 %v5264, %v5822
      %5824 = vmatmul.bf16.gmra.mxu0 %v5195
      %v5825 = vpop.f32.mrf.mxu0
      %v5826 = vadd.f32 %v5264, %v5825
      %v5827 = vpop.f32.mrf.mxu0
      %v5828 = vadd.f32 %v5264, %v5827
      %5829 = vdwg.mxu0
      %5830 = vmatpush.bf16.msra.mxu0 %v5488
      %5831 = vmatpush.bf16.msra.mxu0 %v5486
      %5832 = vmatpush.bf16.msra.mxu0 %v5484
      %5833 = vmatpush.bf16.msra.mxu0 %v5482
      %5834 = vmatpush.bf16.msra.mxu0 %v5480
      %5835 = vmatpush.bf16.msra.mxu0 %v5478
      %5836 = vmatpush.bf16.msra.mxu0 %v5476
      %5837 = vmatpush.bf16.msra.mxu0 %v5474
      %5838 = vmatmul.bf16.gmra.mxu0 %v5168
      %v5839 = vpop.f32.mrf.mxu0
      %v5840 = vadd.f32 %v5791, %v5839
      %v5841 = vpop.f32.mrf.mxu0
      %v5842 = vadd.f32 %v5793, %v5841
      %5843 = vmatmul.bf16.gmra.mxu0 %v5172
      %v5844 = vpop.f32.mrf.mxu0
      %v5845 = vadd.f32 %v5796, %v5844
      %v5846 = vpop.f32.mrf.mxu0
      %v5847 = vadd.f32 %v5798, %v5846
      %5848 = vmatmul.bf16.gmra.mxu0 %v5176
      %v5849 = vpop.f32.mrf.mxu0
      %v5850 = vadd.f32 %v5801, %v5849
      %v5851 = vpop.f32.mrf.mxu0
      %v5852 = vadd.f32 %v5803, %v5851
      %5853 = vmatmul.bf16.gmra.mxu0 %v5180
      %v5854 = vpop.f32.mrf.mxu0
      %v5855 = vadd.f32 %v5806, %v5854
      %v5856 = vpop.f32.mrf.mxu0
      %v5857 = vadd.f32 %v5808, %v5856
      %5858 = vmatmul.bf16.gmra.mxu0 %v5184
      %v5859 = vpop.f32.mrf.mxu0
      %v5860 = vadd.f32 %v5811, %v5859
      %v5861 = vpop.f32.mrf.mxu0
      %v5862 = vadd.f32 %v5813, %v5861
      %5863 = vmatmul.bf16.gmra.mxu0 %v5188
      %v5864 = vpop.f32.mrf.mxu0
      %v5865 = vadd.f32 %v5816, %v5864
      %v5866 = vpop.f32.mrf.mxu0
      %v5867 = vadd.f32 %v5818, %v5866
      %5868 = vmatmul.bf16.gmra.mxu0 %v5192
      %v5869 = vpop.f32.mrf.mxu0
      %v5870 = vadd.f32 %v5821, %v5869
      %v5871 = vpop.f32.mrf.mxu0
      %v5872 = vadd.f32 %v5823, %v5871
      %5873 = vmatmul.bf16.gmra.mxu0 %v5196
      %v5874 = vpop.f32.mrf.mxu0
      %v5875 = vadd.f32 %v5826, %v5874
      %v5876 = vpop.f32.mrf.mxu0
      %v5877 = vadd.f32 %v5828, %v5876
      %5878 = vdwg.mxu0
      %5879 = vmatpush.bf16.msra.mxu0 %v5504
      %5880 = vmatpush.bf16.msra.mxu0 %v5502
      %5881 = vmatpush.bf16.msra.mxu0 %v5500
      %5882 = vmatpush.bf16.msra.mxu0 %v5498
      %5883 = vmatpush.bf16.msra.mxu0 %v5496
      %5884 = vmatpush.bf16.msra.mxu0 %v5494
      %5885 = vmatpush.bf16.msra.mxu0 %v5492
      %5886 = vmatpush.bf16.msra.mxu0 %v5490
      %5887 = vmatmul.bf16.gmra.mxu0 %v5169
      %v5888 = vpop.f32.mrf.mxu0
      %v5889 = vadd.f32 %v5840, %v5888
      %v5890 = vpop.f32.mrf.mxu0
      %v5891 = vadd.f32 %v5842, %v5890
      %5892 = vmatmul.bf16.gmra.mxu0 %v5173
      %v5893 = vpop.f32.mrf.mxu0
      %v5894 = vadd.f32 %v5845, %v5893
      %v5895 = vpop.f32.mrf.mxu0
      %v5896 = vadd.f32 %v5847, %v5895
      %5897 = vmatmul.bf16.gmra.mxu0 %v5177
      %v5898 = vpop.f32.mrf.mxu0
      %v5899 = vadd.f32 %v5850, %v5898
      %v5900 = vpop.f32.mrf.mxu0
      %v5901 = vadd.f32 %v5852, %v5900
      %5902 = vmatmul.bf16.gmra.mxu0 %v5181
      %v5903 = vpop.f32.mrf.mxu0
      %v5904 = vadd.f32 %v5855, %v5903
      %v5905 = vpop.f32.mrf.mxu0
      %v5906 = vadd.f32 %v5857, %v5905
      %5907 = vmatmul.bf16.gmra.mxu0 %v5185
      %v5908 = vpop.f32.mrf.mxu0
      %v5909 = vadd.f32 %v5860, %v5908
      %v5910 = vpop.f32.mrf.mxu0
      %v5911 = vadd.f32 %v5862, %v5910
      %5912 = vmatmul.bf16.gmra.mxu0 %v5189
      %v5913 = vpop.f32.mrf.mxu0
      %v5914 = vadd.f32 %v5865, %v5913
      %v5915 = vpop.f32.mrf.mxu0
      %v5916 = vadd.f32 %v5867, %v5915
      %5917 = vmatmul.bf16.gmra.mxu0 %v5193
      %v5918 = vpop.f32.mrf.mxu0
      %v5919 = vadd.f32 %v5870, %v5918
      %v5920 = vpop.f32.mrf.mxu0
      %v5921 = vadd.f32 %v5872, %v5920
      %5922 = vmatmul.bf16.gmra.mxu0 %v5197
      %v5923 = vpop.f32.mrf.mxu0
      %v5924 = vadd.f32 %v5875, %v5923
      %v5925 = vpop.f32.mrf.mxu0
      %v5926 = vadd.f32 %v5877, %v5925
      %5927 = vdwg.mxu0
      %5928 = vmatpush.bf16.msra.mxu0 %v5520
      %5929 = vmatpush.bf16.msra.mxu0 %v5518
      %5930 = vmatpush.bf16.msra.mxu0 %v5516
      %5931 = vmatpush.bf16.msra.mxu0 %v5514
      %5932 = vmatpush.bf16.msra.mxu0 %v5512
      %5933 = vmatpush.bf16.msra.mxu0 %v5510
      %5934 = vmatpush.bf16.msra.mxu0 %v5508
      %5935 = vmatpush.bf16.msra.mxu0 %v5506
      %5936 = vmatmul.bf16.gmra.mxu0 %v5170
      %v5937 = vpop.f32.mrf.mxu0
      %v5938 = vadd.f32 %v5889, %v5937
      %v5939 = vpop.f32.mrf.mxu0
      %v5940 = vadd.f32 %v5891, %v5939
      %5941 = vmatmul.bf16.gmra.mxu0 %v5174
      %v5942 = vpop.f32.mrf.mxu0
      %v5943 = vadd.f32 %v5894, %v5942
      %v5944 = vpop.f32.mrf.mxu0
      %v5945 = vadd.f32 %v5896, %v5944
      %5946 = vmatmul.bf16.gmra.mxu0 %v5178
      %v5947 = vpop.f32.mrf.mxu0
      %v5948 = vadd.f32 %v5899, %v5947
      %v5949 = vpop.f32.mrf.mxu0
      %v5950 = vadd.f32 %v5901, %v5949
      %5951 = vmatmul.bf16.gmra.mxu0 %v5182
      %v5952 = vpop.f32.mrf.mxu0
      %v5953 = vadd.f32 %v5904, %v5952
      %v5954 = vpop.f32.mrf.mxu0
      %v5955 = vadd.f32 %v5906, %v5954
      %5956 = vmatmul.bf16.gmra.mxu0 %v5186
      %v5957 = vpop.f32.mrf.mxu0
      %v5958 = vadd.f32 %v5909, %v5957
      %v5959 = vpop.f32.mrf.mxu0
      %v5960 = vadd.f32 %v5911, %v5959
      %5961 = vmatmul.bf16.gmra.mxu0 %v5190
      %v5962 = vpop.f32.mrf.mxu0
      %v5963 = vadd.f32 %v5914, %v5962
      %v5964 = vpop.f32.mrf.mxu0
      %v5965 = vadd.f32 %v5916, %v5964
      %5966 = vmatmul.bf16.gmra.mxu0 %v5194
      %v5967 = vpop.f32.mrf.mxu0
      %v5968 = vadd.f32 %v5919, %v5967
      %v5969 = vpop.f32.mrf.mxu0
      %v5970 = vadd.f32 %v5921, %v5969
      %5971 = vmatmul.bf16.gmra.mxu0 %v5198
      %v5972 = vpop.f32.mrf.mxu0
      %v5973 = vadd.f32 %v5924, %v5972
      %v5974 = vpop.f32.mrf.mxu0
      %v5975 = vadd.f32 %v5926, %v5974
      %5976 = vdwg.mxu0
      %v5977 = vadd.f32 %v3763, %v5742
      %v5978 = vadd.f32 %v3764, %v5938
      %v5979 = vadd.f32 %v3765, %v5744
      %v5980 = vadd.f32 %v3766, %v5940
      %v5981 = vadd.f32 %v3767, %v5747
      %v5982 = vadd.f32 %v3768, %v5943
      %v5983 = vadd.f32 %v3769, %v5749
      %v5984 = vadd.f32 %v3770, %v5945
      %v5985 = vadd.f32 %v3771, %v5752
      %v5986 = vadd.f32 %v3772, %v5948
      %v5987 = vadd.f32 %v3773, %v5754
      %v5988 = vadd.f32 %v3774, %v5950
      %v5989 = vadd.f32 %v3775, %v5757
      %v5990 = vadd.f32 %v3776, %v5953
      %v5991 = vadd.f32 %v3777, %v5759
      %v5992 = vadd.f32 %v3778, %v5955
      %v5993 = vadd.f32 %v3779, %v5762
      %v5994 = vadd.f32 %v3780, %v5958
      %v5995 = vadd.f32 %v3781, %v5764
      %v5996 = vadd.f32 %v3782, %v5960
      %v5997 = vadd.f32 %v3783, %v5767
      %v5998 = vadd.f32 %v3784, %v5963
      %v5999 = vadd.f32 %v3785, %v5769
      %v6000 = vadd.f32 %v3786, %v5965
      %v6001 = vadd.f32 %v3787, %v5772
      %v6002 = vadd.f32 %v3788, %v5968
      %v6003 = vadd.f32 %v3789, %v5774
      %v6004 = vadd.f32 %v3790, %v5970
      %v6005 = vadd.f32 %v3791, %v5777
      %v6006 = vadd.f32 %v3792, %v5973
      %v6007 = vadd.f32 %v3793, %v5779
      %v6008 = vadd.f32 %v3794, %v5975
      %v6009 = vadd.f32 %v5977, %v5978
      %6010 = vadd.xlane.f32.xlu0 %v6009
      %v6011 = vpop.xlane.xlu0 %6010
      %v6012 = vadd.f32 %v5979, %v5980
      %6013 = vadd.xlane.f32.xlu0 %v6012
      %v6014 = vpop.xlane.xlu0 %6013
      %v6015 = vadd.f32 %v5981, %v5982
      %6016 = vadd.xlane.f32.xlu0 %v6015
      %v6017 = vpop.xlane.xlu0 %6016
      %v6018 = vadd.f32 %v5983, %v5984
      %6019 = vadd.xlane.f32.xlu0 %v6018
      %v6020 = vpop.xlane.xlu0 %6019
      %v6021 = vadd.f32 %v5985, %v5986
      %6022 = vadd.xlane.f32.xlu0 %v6021
      %v6023 = vpop.xlane.xlu0 %6022
      %v6024 = vadd.f32 %v5987, %v5988
      %6025 = vadd.xlane.f32.xlu0 %v6024
      %v6026 = vpop.xlane.xlu0 %6025
      %v6027 = vadd.f32 %v5989, %v5990
      %6028 = vadd.xlane.f32.xlu0 %v6027
      %v6029 = vpop.xlane.xlu0 %6028
      %v6030 = vadd.f32 %v5991, %v5992
      %6031 = vadd.xlane.f32.xlu0 %v6030
      %v6032 = vpop.xlane.xlu0 %6031
      %v6033 = vadd.f32 %v5993, %v5994
      %6034 = vadd.xlane.f32.xlu0 %v6033
      %v6035 = vpop.xlane.xlu0 %6034
      %v6036 = vadd.f32 %v5995, %v5996
      %6037 = vadd.xlane.f32.xlu0 %v6036
      %v6038 = vpop.xlane.xlu0 %6037
      %v6039 = vadd.f32 %v5997, %v5998
      %6040 = vadd.xlane.f32.xlu0 %v6039
      %v6041 = vpop.xlane.xlu0 %6040
      %v6042 = vadd.f32 %v5999, %v6000
      %6043 = vadd.xlane.f32.xlu0 %v6042
      %v6044 = vpop.xlane.xlu0 %6043
      %v6045 = vadd.f32 %v6001, %v6002
      %6046 = vadd.xlane.f32.xlu0 %v6045
      %v6047 = vpop.xlane.xlu0 %6046
      %v6048 = vadd.f32 %v6003, %v6004
      %6049 = vadd.xlane.f32.xlu0 %v6048
      %v6050 = vpop.xlane.xlu0 %6049
      %v6051 = vadd.f32 %v6005, %v6006
      %6052 = vadd.xlane.f32.xlu0 %v6051
      %v6053 = vpop.xlane.xlu0 %6052
      %v6054 = vadd.f32 %v6007, %v6008
      %6055 = vadd.xlane.f32.xlu0 %v6054
      %v6056 = vpop.xlane.xlu0 %6055
      %v6057 = vmul.f32 %v6011, %v3374
      %v6058 = vmul.f32 %v6014, %v3374
      %v6059 = vmul.f32 %v6017, %v3374
      %v6060 = vmul.f32 %v6020, %v3374
      %v6061 = vmul.f32 %v6023, %v3374
      %v6062 = vmul.f32 %v6026, %v3374
      %v6063 = vmul.f32 %v6029, %v3374
      %v6064 = vmul.f32 %v6032, %v3374
      %v6065 = vmul.f32 %v6035, %v3374
      %v6066 = vmul.f32 %v6038, %v3374
      %v6067 = vmul.f32 %v6041, %v3374
      %v6068 = vmul.f32 %v6044, %v3374
      %v6069 = vmul.f32 %v6047, %v3374
      %v6070 = vmul.f32 %v6050, %v3374
      %v6071 = vmul.f32 %v6053, %v3374
      %v6072 = vmul.f32 %v6056, %v3374
      %v6073 = vsub.f32 %v5977, %v6057
      %v6074 = vsub.f32 %v5978, %v6057
      %v6075 = vsub.f32 %v5979, %v6058
      %v6076 = vsub.f32 %v5980, %v6058
      %v6077 = vsub.f32 %v5981, %v6059
      %v6078 = vsub.f32 %v5982, %v6059
      %v6079 = vsub.f32 %v5983, %v6060
      %v6080 = vsub.f32 %v5984, %v6060
      %v6081 = vsub.f32 %v5985, %v6061
      %v6082 = vsub.f32 %v5986, %v6061
      %v6083 = vsub.f32 %v5987, %v6062
      %v6084 = vsub.f32 %v5988, %v6062
      %v6085 = vsub.f32 %v5989, %v6063
      %v6086 = vsub.f32 %v5990, %v6063
      %v6087 = vsub.f32 %v5991, %v6064
      %v6088 = vsub.f32 %v5992, %v6064
      %v6089 = vsub.f32 %v5993, %v6065
      %v6090 = vsub.f32 %v5994, %v6065
      %v6091 = vsub.f32 %v5995, %v6066
      %v6092 = vsub.f32 %v5996, %v6066
      %v6093 = vsub.f32 %v5997, %v6067
      %v6094 = vsub.f32 %v5998, %v6067
      %v6095 = vsub.f32 %v5999, %v6068
      %v6096 = vsub.f32 %v6000, %v6068
      %v6097 = vsub.f32 %v6001, %v6069
      %v6098 = vsub.f32 %v6002, %v6069
      %v6099 = vsub.f32 %v6003, %v6070
      %v6100 = vsub.f32 %v6004, %v6070
      %v6101 = vsub.f32 %v6005, %v6071
      %v6102 = vsub.f32 %v6006, %v6071
      %v6103 = vsub.f32 %v6007, %v6072
      %v6104 = vsub.f32 %v6008, %v6072
      %v6105 = vmul.f32 %v6073, %v6073
      %v6106 = vmul.f32 %v6074, %v6074
      %v6107 = vmul.f32 %v6075, %v6075
      %v6108 = vmul.f32 %v6076, %v6076
      %v6109 = vmul.f32 %v6077, %v6077
      %v6110 = vmul.f32 %v6078, %v6078
      %v6111 = vmul.f32 %v6079, %v6079
      %v6112 = vmul.f32 %v6080, %v6080
      %v6113 = vmul.f32 %v6081, %v6081
      %v6114 = vmul.f32 %v6082, %v6082
      %v6115 = vmul.f32 %v6083, %v6083
      %v6116 = vmul.f32 %v6084, %v6084
      %v6117 = vmul.f32 %v6085, %v6085
      %v6118 = vmul.f32 %v6086, %v6086
      %v6119 = vmul.f32 %v6087, %v6087
      %v6120 = vmul.f32 %v6088, %v6088
      %v6121 = vmul.f32 %v6089, %v6089
      %v6122 = vmul.f32 %v6090, %v6090
      %v6123 = vmul.f32 %v6091, %v6091
      %v6124 = vmul.f32 %v6092, %v6092
      %v6125 = vmul.f32 %v6093, %v6093
      %v6126 = vmul.f32 %v6094, %v6094
      %v6127 = vmul.f32 %v6095, %v6095
      %v6128 = vmul.f32 %v6096, %v6096
      %v6129 = vmul.f32 %v6097, %v6097
      %v6130 = vmul.f32 %v6098, %v6098
      %v6131 = vmul.f32 %v6099, %v6099
      %v6132 = vmul.f32 %v6100, %v6100
      %v6133 = vmul.f32 %v6101, %v6101
      %v6134 = vmul.f32 %v6102, %v6102
      %v6135 = vmul.f32 %v6103, %v6103
      %v6136 = vmul.f32 %v6104, %v6104
      %v6137 = vadd.f32 %v6105, %v6106
      %6138 = vadd.xlane.f32.xlu0 %v6137
      %v6139 = vpop.xlane.xlu0 %6138
      %v6140 = vadd.f32 %v6107, %v6108
      %6141 = vadd.xlane.f32.xlu0 %v6140
      %v6142 = vpop.xlane.xlu0 %6141
      %v6143 = vadd.f32 %v6109, %v6110
      %6144 = vadd.xlane.f32.xlu0 %v6143
      %v6145 = vpop.xlane.xlu0 %6144
      %v6146 = vadd.f32 %v6111, %v6112
      %6147 = vadd.xlane.f32.xlu0 %v6146
      %v6148 = vpop.xlane.xlu0 %6147
      %v6149 = vadd.f32 %v6113, %v6114
      %6150 = vadd.xlane.f32.xlu0 %v6149
      %v6151 = vpop.xlane.xlu0 %6150
      %v6152 = vadd.f32 %v6115, %v6116
      %6153 = vadd.xlane.f32.xlu0 %v6152
      %v6154 = vpop.xlane.xlu0 %6153
      %v6155 = vadd.f32 %v6117, %v6118
      %6156 = vadd.xlane.f32.xlu0 %v6155
      %v6157 = vpop.xlane.xlu0 %6156
      %v6158 = vadd.f32 %v6119, %v6120
      %6159 = vadd.xlane.f32.xlu0 %v6158
      %v6160 = vpop.xlane.xlu0 %6159
      %v6161 = vadd.f32 %v6121, %v6122
      %6162 = vadd.xlane.f32.xlu0 %v6161
      %v6163 = vpop.xlane.xlu0 %6162
      %v6164 = vadd.f32 %v6123, %v6124
      %6165 = vadd.xlane.f32.xlu0 %v6164
      %v6166 = vpop.xlane.xlu0 %6165
      %v6167 = vadd.f32 %v6125, %v6126
      %6168 = vadd.xlane.f32.xlu0 %v6167
      %v6169 = vpop.xlane.xlu0 %6168
      %v6170 = vadd.f32 %v6127, %v6128
      %6171 = vadd.xlane.f32.xlu0 %v6170
      %v6172 = vpop.xlane.xlu0 %6171
      %v6173 = vadd.f32 %v6129, %v6130
      %6174 = vadd.xlane.f32.xlu0 %v6173
      %v6175 = vpop.xlane.xlu0 %6174
      %v6176 = vadd.f32 %v6131, %v6132
      %6177 = vadd.xlane.f32.xlu0 %v6176
      %v6178 = vpop.xlane.xlu0 %6177
      %v6179 = vadd.f32 %v6133, %v6134
      %6180 = vadd.xlane.f32.xlu0 %v6179
      %v6181 = vpop.xlane.xlu0 %6180
      %v6182 = vadd.f32 %v6135, %v6136
      %6183 = vadd.xlane.f32.xlu0 %v6182
      %v6184 = vpop.xlane.xlu0 %6183
      %v6185 = vmul.f32 %v6139, %v3374
      %v6186 = vmul.f32 %v6142, %v3374
      %v6187 = vmul.f32 %v6145, %v3374
      %v6188 = vmul.f32 %v6148, %v3374
      %v6189 = vmul.f32 %v6151, %v3374
      %v6190 = vmul.f32 %v6154, %v3374
      %v6191 = vmul.f32 %v6157, %v3374
      %v6192 = vmul.f32 %v6160, %v3374
      %v6193 = vmul.f32 %v6163, %v3374
      %v6194 = vmul.f32 %v6166, %v3374
      %v6195 = vmul.f32 %v6169, %v3374
      %v6196 = vmul.f32 %v6172, %v3374
      %v6197 = vmul.f32 %v6175, %v3374
      %v6198 = vmul.f32 %v6178, %v3374
      %v6199 = vmul.f32 %v6181, %v3374
      %v6200 = vmul.f32 %v6184, %v3374
      %v6201 = vadd.f32 %v6185, 1e-05
      %v6202 = vadd.f32 %v6186, 1e-05
      %v6203 = vadd.f32 %v6187, 1e-05
      %v6204 = vadd.f32 %v6188, 1e-05
      %v6205 = vadd.f32 %v6189, 1e-05
      %v6206 = vadd.f32 %v6190, 1e-05
      %v6207 = vadd.f32 %v6191, 1e-05
      %v6208 = vadd.f32 %v6192, 1e-05
      %v6209 = vadd.f32 %v6193, 1e-05
      %v6210 = vadd.f32 %v6194, 1e-05
      %v6211 = vadd.f32 %v6195, 1e-05
      %v6212 = vadd.f32 %v6196, 1e-05
      %v6213 = vadd.f32 %v6197, 1e-05
      %v6214 = vadd.f32 %v6198, 1e-05
      %v6215 = vadd.f32 %v6199, 1e-05
      %v6216 = vadd.f32 %v6200, 1e-05
      %v6217 = vrsqrt.pop %v6201
      %v6218 = vmul.f32 %v6217, %v6201
      %v6219 = vmul.f32 %v6218, %v6217
      %v6220 = vmul.f32 0.5, %v6219
      %v6221 = vsub.f32 1.5, %v6220
      %v6222 = vmul.f32 %v6217, %v6221
      %vm6223 = vweird.f32 %v6201
      %vm6224 = vweird.f32 %v6217
      %vm6225 = vmor %vm6223, %vm6224
      %v6226 = vsel %vm6225, %v6217, %v6222
      %v6227 = vrsqrt.pop %v6202
      %v6228 = vmul.f32 %v6227, %v6202
      %v6229 = vmul.f32 %v6228, %v6227
      %v6230 = vmul.f32 0.5, %v6229
      %v6231 = vsub.f32 1.5, %v6230
      %v6232 = vmul.f32 %v6227, %v6231
      %vm6233 = vweird.f32 %v6202
      %vm6234 = vweird.f32 %v6227
      %vm6235 = vmor %vm6233, %vm6234
      %v6236 = vsel %vm6235, %v6227, %v6232
      %v6237 = vrsqrt.pop %v6203
      %v6238 = vmul.f32 %v6237, %v6203
      %v6239 = vmul.f32 %v6238, %v6237
      %v6240 = vmul.f32 0.5, %v6239
      %v6241 = vsub.f32 1.5, %v6240
      %v6242 = vmul.f32 %v6237, %v6241
      %vm6243 = vweird.f32 %v6203
      %vm6244 = vweird.f32 %v6237
      %vm6245 = vmor %vm6243, %vm6244
      %v6246 = vsel %vm6245, %v6237, %v6242
      %v6247 = vrsqrt.pop %v6204
      %v6248 = vmul.f32 %v6247, %v6204
      %v6249 = vmul.f32 %v6248, %v6247
      %v6250 = vmul.f32 0.5, %v6249
      %v6251 = vsub.f32 1.5, %v6250
      %v6252 = vmul.f32 %v6247, %v6251
      %vm6253 = vweird.f32 %v6204
      %vm6254 = vweird.f32 %v6247
      %vm6255 = vmor %vm6253, %vm6254
      %v6256 = vsel %vm6255, %v6247, %v6252
      %v6257 = vrsqrt.pop %v6205
      %v6258 = vmul.f32 %v6257, %v6205
      %v6259 = vmul.f32 %v6258, %v6257
      %v6260 = vmul.f32 0.5, %v6259
      %v6261 = vsub.f32 1.5, %v6260
      %v6262 = vmul.f32 %v6257, %v6261
      %vm6263 = vweird.f32 %v6205
      %vm6264 = vweird.f32 %v6257
      %vm6265 = vmor %vm6263, %vm6264
      %v6266 = vsel %vm6265, %v6257, %v6262
      %v6267 = vrsqrt.pop %v6206
      %v6268 = vmul.f32 %v6267, %v6206
      %v6269 = vmul.f32 %v6268, %v6267
      %v6270 = vmul.f32 0.5, %v6269
      %v6271 = vsub.f32 1.5, %v6270
      %v6272 = vmul.f32 %v6267, %v6271
      %vm6273 = vweird.f32 %v6206
      %vm6274 = vweird.f32 %v6267
      %vm6275 = vmor %vm6273, %vm6274
      %v6276 = vsel %vm6275, %v6267, %v6272
      %v6277 = vrsqrt.pop %v6207
      %v6278 = vmul.f32 %v6277, %v6207
      %v6279 = vmul.f32 %v6278, %v6277
      %v6280 = vmul.f32 0.5, %v6279
      %v6281 = vsub.f32 1.5, %v6280
      %v6282 = vmul.f32 %v6277, %v6281
      %vm6283 = vweird.f32 %v6207
      %vm6284 = vweird.f32 %v6277
      %vm6285 = vmor %vm6283, %vm6284
      %v6286 = vsel %vm6285, %v6277, %v6282
      %v6287 = vrsqrt.pop %v6208
      %v6288 = vmul.f32 %v6287, %v6208
      %v6289 = vmul.f32 %v6288, %v6287
      %v6290 = vmul.f32 0.5, %v6289
      %v6291 = vsub.f32 1.5, %v6290
      %v6292 = vmul.f32 %v6287, %v6291
      %vm6293 = vweird.f32 %v6208
      %vm6294 = vweird.f32 %v6287
      %vm6295 = vmor %vm6293, %vm6294
      %v6296 = vsel %vm6295, %v6287, %v6292
      %v6297 = vrsqrt.pop %v6209
      %v6298 = vmul.f32 %v6297, %v6209
      %v6299 = vmul.f32 %v6298, %v6297
      %v6300 = vmul.f32 0.5, %v6299
      %v6301 = vsub.f32 1.5, %v6300
      %v6302 = vmul.f32 %v6297, %v6301
      %vm6303 = vweird.f32 %v6209
      %vm6304 = vweird.f32 %v6297
      %vm6305 = vmor %vm6303, %vm6304
      %v6306 = vsel %vm6305, %v6297, %v6302
      %v6307 = vrsqrt.pop %v6210
      %v6308 = vmul.f32 %v6307, %v6210
      %v6309 = vmul.f32 %v6308, %v6307
      %v6310 = vmul.f32 0.5, %v6309
      %v6311 = vsub.f32 1.5, %v6310
      %v6312 = vmul.f32 %v6307, %v6311
      %vm6313 = vweird.f32 %v6210
      %vm6314 = vweird.f32 %v6307
      %vm6315 = vmor %vm6313, %vm6314
      %v6316 = vsel %vm6315, %v6307, %v6312
      %v6317 = vrsqrt.pop %v6211
      %v6318 = vmul.f32 %v6317, %v6211
      %v6319 = vmul.f32 %v6318, %v6317
      %v6320 = vmul.f32 0.5, %v6319
      %v6321 = vsub.f32 1.5, %v6320
      %v6322 = vmul.f32 %v6317, %v6321
      %vm6323 = vweird.f32 %v6211
      %vm6324 = vweird.f32 %v6317
      %vm6325 = vmor %vm6323, %vm6324
      %v6326 = vsel %vm6325, %v6317, %v6322
      %v6327 = vrsqrt.pop %v6212
      %v6328 = vmul.f32 %v6327, %v6212
      %v6329 = vmul.f32 %v6328, %v6327
      %v6330 = vmul.f32 0.5, %v6329
      %v6331 = vsub.f32 1.5, %v6330
      %v6332 = vmul.f32 %v6327, %v6331
      %vm6333 = vweird.f32 %v6212
      %vm6334 = vweird.f32 %v6327
      %vm6335 = vmor %vm6333, %vm6334
      %v6336 = vsel %vm6335, %v6327, %v6332
      %v6337 = vrsqrt.pop %v6213
      %v6338 = vmul.f32 %v6337, %v6213
      %v6339 = vmul.f32 %v6338, %v6337
      %v6340 = vmul.f32 0.5, %v6339
      %v6341 = vsub.f32 1.5, %v6340
      %v6342 = vmul.f32 %v6337, %v6341
      %vm6343 = vweird.f32 %v6213
      %vm6344 = vweird.f32 %v6337
      %vm6345 = vmor %vm6343, %vm6344
      %v6346 = vsel %vm6345, %v6337, %v6342
      %v6347 = vrsqrt.pop %v6214
      %v6348 = vmul.f32 %v6347, %v6214
      %v6349 = vmul.f32 %v6348, %v6347
      %v6350 = vmul.f32 0.5, %v6349
      %v6351 = vsub.f32 1.5, %v6350
      %v6352 = vmul.f32 %v6347, %v6351
      %vm6353 = vweird.f32 %v6214
      %vm6354 = vweird.f32 %v6347
      %vm6355 = vmor %vm6353, %vm6354
      %v6356 = vsel %vm6355, %v6347, %v6352
      %v6357 = vrsqrt.pop %v6215
      %v6358 = vmul.f32 %v6357, %v6215
      %v6359 = vmul.f32 %v6358, %v6357
      %v6360 = vmul.f32 0.5, %v6359
      %v6361 = vsub.f32 1.5, %v6360
      %v6362 = vmul.f32 %v6357, %v6361
      %vm6363 = vweird.f32 %v6215
      %vm6364 = vweird.f32 %v6357
      %vm6365 = vmor %vm6363, %vm6364
      %v6366 = vsel %vm6365, %v6357, %v6362
      %v6367 = vrsqrt.pop %v6216
      %v6368 = vmul.f32 %v6367, %v6216
      %v6369 = vmul.f32 %v6368, %v6367
      %v6370 = vmul.f32 0.5, %v6369
      %v6371 = vsub.f32 1.5, %v6370
      %v6372 = vmul.f32 %v6367, %v6371
      %vm6373 = vweird.f32 %v6216
      %vm6374 = vweird.f32 %v6367
      %vm6375 = vmor %vm6373, %vm6374
      %v6376 = vsel %vm6375, %v6367, %v6372
      %v6377 = vmul.f32 %v6073, %v6226
      %v6378 = vmul.f32 %v6074, %v6226
      %v6379 = vmul.f32 %v6075, %v6236
      %v6380 = vmul.f32 %v6076, %v6236
      %v6381 = vmul.f32 %v6077, %v6246
      %v6382 = vmul.f32 %v6078, %v6246
      %v6383 = vmul.f32 %v6079, %v6256
      %v6384 = vmul.f32 %v6080, %v6256
      %v6385 = vmul.f32 %v6081, %v6266
      %v6386 = vmul.f32 %v6082, %v6266
      %v6387 = vmul.f32 %v6083, %v6276
      %v6388 = vmul.f32 %v6084, %v6276
      %v6389 = vmul.f32 %v6085, %v6286
      %v6390 = vmul.f32 %v6086, %v6286
      %v6391 = vmul.f32 %v6087, %v6296
      %v6392 = vmul.f32 %v6088, %v6296
      %v6393 = vmul.f32 %v6089, %v6306
      %v6394 = vmul.f32 %v6090, %v6306
      %v6395 = vmul.f32 %v6091, %v6316
      %v6396 = vmul.f32 %v6092, %v6316
      %v6397 = vmul.f32 %v6093, %v6326
      %v6398 = vmul.f32 %v6094, %v6326
      %v6399 = vmul.f32 %v6095, %v6336
      %v6400 = vmul.f32 %v6096, %v6336
      %v6401 = vmul.f32 %v6097, %v6346
      %v6402 = vmul.f32 %v6098, %v6346
      %v6403 = vmul.f32 %v6099, %v6356
      %v6404 = vmul.f32 %v6100, %v6356
      %v6405 = vmul.f32 %v6101, %v6366
      %v6406 = vmul.f32 %v6102, %v6366
      %v6407 = vmul.f32 %v6103, %v6376
      %v6408 = vmul.f32 %v6104, %v6376
      %v6409 = vperm.slane %v538, 6
      %v6410 = vperm.slane %v539, 6
      %v6411 = vmul.f32 %v6377, %v6409
      %v6412 = vmul.f32 %v6378, %v6410
      %v6413 = vmul.f32 %v6379, %v6409
      %v6414 = vmul.f32 %v6380, %v6410
      %v6415 = vmul.f32 %v6381, %v6409
      %v6416 = vmul.f32 %v6382, %v6410
      %v6417 = vmul.f32 %v6383, %v6409
      %v6418 = vmul.f32 %v6384, %v6410
      %v6419 = vmul.f32 %v6385, %v6409
      %v6420 = vmul.f32 %v6386, %v6410
      %v6421 = vmul.f32 %v6387, %v6409
      %v6422 = vmul.f32 %v6388, %v6410
      %v6423 = vmul.f32 %v6389, %v6409
      %v6424 = vmul.f32 %v6390, %v6410
      %v6425 = vmul.f32 %v6391, %v6409
      %v6426 = vmul.f32 %v6392, %v6410
      %v6427 = vmul.f32 %v6393, %v6409
      %v6428 = vmul.f32 %v6394, %v6410
      %v6429 = vmul.f32 %v6395, %v6409
      %v6430 = vmul.f32 %v6396, %v6410
      %v6431 = vmul.f32 %v6397, %v6409
      %v6432 = vmul.f32 %v6398, %v6410
      %v6433 = vmul.f32 %v6399, %v6409
      %v6434 = vmul.f32 %v6400, %v6410
      %v6435 = vmul.f32 %v6401, %v6409
      %v6436 = vmul.f32 %v6402, %v6410
      %v6437 = vmul.f32 %v6403, %v6409
      %v6438 = vmul.f32 %v6404, %v6410
      %v6439 = vmul.f32 %v6405, %v6409
      %v6440 = vmul.f32 %v6406, %v6410
      %v6441 = vmul.f32 %v6407, %v6409
      %v6442 = vmul.f32 %v6408, %v6410
      %v6443 = vperm.slane %v538, 7
      %v6444 = vperm.slane %v539, 7
      %v6445 = vadd.f32 %v6411, %v6443
      %v6446 = vadd.f32 %v6412, %v6444
      %v6447 = vadd.f32 %v6413, %v6443
      %v6448 = vadd.f32 %v6414, %v6444
      %v6449 = vadd.f32 %v6415, %v6443
      %v6450 = vadd.f32 %v6416, %v6444
      %v6451 = vadd.f32 %v6417, %v6443
      %v6452 = vadd.f32 %v6418, %v6444
      %v6453 = vadd.f32 %v6419, %v6443
      %v6454 = vadd.f32 %v6420, %v6444
      %v6455 = vadd.f32 %v6421, %v6443
      %v6456 = vadd.f32 %v6422, %v6444
      %v6457 = vadd.f32 %v6423, %v6443
      %v6458 = vadd.f32 %v6424, %v6444
      %v6459 = vadd.f32 %v6425, %v6443
      %v6460 = vadd.f32 %v6426, %v6444
      %v6461 = vadd.f32 %v6427, %v6443
      %v6462 = vadd.f32 %v6428, %v6444
      %v6463 = vadd.f32 %v6429, %v6443
      %v6464 = vadd.f32 %v6430, %v6444
      %v6465 = vadd.f32 %v6431, %v6443
      %v6466 = vadd.f32 %v6432, %v6444
      %v6467 = vadd.f32 %v6433, %v6443
      %v6468 = vadd.f32 %v6434, %v6444
      %v6469 = vadd.f32 %v6435, %v6443
      %v6470 = vadd.f32 %v6436, %v6444
      %v6471 = vadd.f32 %v6437, %v6443
      %v6472 = vadd.f32 %v6438, %v6444
      %v6473 = vadd.f32 %v6439, %v6443
      %v6474 = vadd.f32 %v6440, %v6444
      %v6475 = vadd.f32 %v6441, %v6443
      %v6476 = vadd.f32 %v6442, %v6444
      %6477 = vst [vmem:[#allocation2] sm:$0xff] %v6445
      %6478 = vst [vmem:[#allocation2 + $0x8] sm:$0xff] %v6446
      %6479 = vst [vmem:[#allocation2 + $0x10] sm:$0xff] %v6447
      %6480 = vst [vmem:[#allocation2 + $0x18] sm:$0xff] %v6448
      %6481 = vst [vmem:[#allocation2 + $0x20] sm:$0xff] %v6449
      %6482 = vst [vmem:[#allocation2 + $0x28] sm:$0xff] %v6450
      %6483 = vst [vmem:[#allocation2 + $0x30] sm:$0xff] %v6451
      %6484 = vst [vmem:[#allocation2 + $0x38] sm:$0xff] %v6452
      %6485 = vst [vmem:[#allocation2 + $0x40] sm:$0xff] %v6453
      %6486 = vst [vmem:[#allocation2 + $0x48] sm:$0xff] %v6454
      %6487 = vst [vmem:[#allocation2 + $0x50] sm:$0xff] %v6455
      %6488 = vst [vmem:[#allocation2 + $0x58] sm:$0xff] %v6456
      %6489 = vst [vmem:[#allocation2 + $0x60] sm:$0xff] %v6457
      %6490 = vst [vmem:[#allocation2 + $0x68] sm:$0xff] %v6458
      %6491 = vst [vmem:[#allocation2 + $0x70] sm:$0xff] %v6459
      %6492 = vst [vmem:[#allocation2 + $0x78] sm:$0xff] %v6460
      %6493 = vst [vmem:[#allocation2 + $0x80] sm:$0xff] %v6461
      %6494 = vst [vmem:[#allocation2 + $0x88] sm:$0xff] %v6462
      %6495 = vst [vmem:[#allocation2 + $0x90] sm:$0xff] %v6463
      %6496 = vst [vmem:[#allocation2 + $0x98] sm:$0xff] %v6464
      %6497 = vst [vmem:[#allocation2 + $0xa0] sm:$0xff] %v6465
      %6498 = vst [vmem:[#allocation2 + $0xa8] sm:$0xff] %v6466
      %6499 = vst [vmem:[#allocation2 + $0xb0] sm:$0xff] %v6467
      %6500 = vst [vmem:[#allocation2 + $0xb8] sm:$0xff] %v6468
      %6501 = vst [vmem:[#allocation2 + $0xc0] sm:$0xff] %v6469
      %6502 = vst [vmem:[#allocation2 + $0xc8] sm:$0xff] %v6470
      %6503 = vst [vmem:[#allocation2 + $0xd0] sm:$0xff] %v6471
      %6504 = vst [vmem:[#allocation2 + $0xd8] sm:$0xff] %v6472
      %6505 = vst [vmem:[#allocation2 + $0xe0] sm:$0xff] %v6473
      %6506 = vst [vmem:[#allocation2 + $0xe8] sm:$0xff] %v6474
      %6507 = vst [vmem:[#allocation2 + $0xf0] sm:$0xff] %v6475
      %6508 = vst [vmem:[#allocation2 + $0xf8] sm:$0xff] %v6476
      %p6509 = scmp.eq.s32.totalorder %s25, 1
      // Predicated region
      $region76: #{align_scorer_forward.1} parent=51 // pred_check
        %p6510 = pneg %p6509
      $region77: #{align_scorer_forward.1} parent=51 // pred_check_branch
        %6512 = sbr.rel (%p6510) target = $region79
      $region78: #{align_scorer_forward.1} parent=51 // pred_region
        %v6513 = vpack.c.bf16 %v6445, %v6445
        %v6514 = vpack.c.bf16 %v6446, %v6446
        %v6515 = vpack.c.bf16 %v6461, %v6461
        %v6516 = vpack.c.bf16 %v6462, %v6462
        %v6517 = vld [vmem:[%s7] sm:$0xf]
        %v6518 = vld [vmem:[%s7 + $0x4] sm:$0xf]
        %v6519 = vld [vmem:[%s7 + $0x8] sm:$0xf]
        %v6520 = vld [vmem:[%s7 + $0xc] sm:$0xf]
        %v6521 = vld [vmem:[%s7 + $0x10] sm:$0xf]
        %v6522 = vld [vmem:[%s7 + $0x14] sm:$0xf]
        %v6523 = vld [vmem:[%s7 + $0x18] sm:$0xf]
        %v6524 = vld [vmem:[%s7 + $0x1c] sm:$0xf]
        %v6525 = vld [vmem:[%s7 + $0x20] sm:$0xf]
        %v6526 = vld [vmem:[%s7 + $0x24] sm:$0xf]
        %v6527 = vld [vmem:[%s7 + $0x28] sm:$0xf]
        %v6528 = vld [vmem:[%s7 + $0x2c] sm:$0xf]
        %v6529 = vld [vmem:[%s7 + $0x30] sm:$0xf]
        %v6530 = vld [vmem:[%s7 + $0x34] sm:$0xf]
        %v6531 = vld [vmem:[%s7 + $0x38] sm:$0xf]
        %v6532 = vld [vmem:[%s7 + $0x3c] sm:$0xf]
        %v6533 = vld [vmem:[%s7 + $0x40] sm:$0xf]
        %v6534 = vld [vmem:[%s7 + $0x44] sm:$0xf]
        %v6535 = vld [vmem:[%s7 + $0x48] sm:$0xf]
        %v6536 = vld [vmem:[%s7 + $0x4c] sm:$0xf]
        %v6537 = vld [vmem:[%s7 + $0x50] sm:$0xf]
        %v6538 = vld [vmem:[%s7 + $0x54] sm:$0xf]
        %v6539 = vld [vmem:[%s7 + $0x58] sm:$0xf]
        %v6540 = vld [vmem:[%s7 + $0x5c] sm:$0xf]
        %v6541 = vld [vmem:[%s7 + $0x60] sm:$0xf]
        %v6542 = vld [vmem:[%s7 + $0x64] sm:$0xf]
        %v6543 = vld [vmem:[%s7 + $0x68] sm:$0xf]
        %v6544 = vld [vmem:[%s7 + $0x6c] sm:$0xf]
        %v6545 = vld [vmem:[%s7 + $0x70] sm:$0xf]
        %v6546 = vld [vmem:[%s7 + $0x74] sm:$0xf]
        %v6547 = vld [vmem:[%s7 + $0x78] sm:$0xf]
        %v6548 = vld [vmem:[%s7 + $0x7c] sm:$0xf]
        %v6549 = vld [vmem:[%s8] sm:$0x1]
        %v6551 = vperm.slane %v6549, 0
        %v6557 = vunpack.c.l.b16 %v6513
        %v6558 = vunpack.c.l.b16 %v6514
        %v6559 = vunpack.c.l.b16 %v6515
        %v6560 = vunpack.c.l.b16 %v6516
        %v6561 = vrot.slane %v6559, 7
        %vm6562 = vcmask 1041409
        %v6563 = vsel %vm6562, %v6561, %v6557
        %v6564 = vrot.slane %v6560, 7
        %v6565 = vsel %vm6562, %v6564, %v6558
        %v6566 = vpack.c.b16 %v6563, %v6563
        %v6567 = vpack.c.b16 %v6565, %v6565
        %v6602 = vunpack.c.l.b16 %v6517
        %v6603 = vunpack.c.l.b16 %v6518
        %v6604 = vunpack.c.l.b16 %v6519
        %v6605 = vunpack.c.l.b16 %v6520
        %v6606 = vunpack.c.l.b16 %v6521
        %v6607 = vunpack.c.l.b16 %v6522
        %v6608 = vunpack.c.l.b16 %v6523
        %v6609 = vunpack.c.l.b16 %v6524
        %v6610 = vunpack.c.l.b16 %v6525
        %v6611 = vunpack.c.l.b16 %v6526
        %v6612 = vunpack.c.l.b16 %v6527
        %v6613 = vunpack.c.l.b16 %v6528
        %v6614 = vunpack.c.l.b16 %v6529
        %v6615 = vunpack.c.l.b16 %v6530
        %v6616 = vunpack.c.l.b16 %v6531
        %v6617 = vunpack.c.l.b16 %v6532
        %v6618 = vunpack.c.l.b16 %v6533
        %v6619 = vunpack.c.l.b16 %v6534
        %v6620 = vunpack.c.l.b16 %v6535
        %v6621 = vunpack.c.l.b16 %v6536
        %v6622 = vunpack.c.l.b16 %v6537
        %v6623 = vunpack.c.l.b16 %v6538
        %v6624 = vunpack.c.l.b16 %v6539
        %v6625 = vunpack.c.l.b16 %v6540
        %v6626 = vunpack.c.l.b16 %v6541
        %v6627 = vunpack.c.l.b16 %v6542
        %v6628 = vunpack.c.l.b16 %v6543
        %v6629 = vunpack.c.l.b16 %v6544
        %v6630 = vunpack.c.l.b16 %v6545
        %v6631 = vunpack.c.l.b16 %v6546
        %v6632 = vunpack.c.l.b16 %v6547
        %v6633 = vunpack.c.l.b16 %v6548
        %v6634 = vpack.c.b16 %v6603, %v6602
        %v6635 = vpack.c.b16 %v6605, %v6604
        %v6636 = vpack.c.b16 %v6607, %v6606
        %v6637 = vpack.c.b16 %v6609, %v6608
        %v6638 = vpack.c.b16 %v6611, %v6610
        %v6639 = vpack.c.b16 %v6613, %v6612
        %v6640 = vpack.c.b16 %v6615, %v6614
        %v6641 = vpack.c.b16 %v6617, %v6616
        %v6642 = vpack.c.b16 %v6619, %v6618
        %v6643 = vpack.c.b16 %v6621, %v6620
        %v6644 = vpack.c.b16 %v6623, %v6622
        %v6645 = vpack.c.b16 %v6625, %v6624
        %v6646 = vpack.c.b16 %v6627, %v6626
        %v6647 = vpack.c.b16 %v6629, %v6628
        %v6648 = vpack.c.b16 %v6631, %v6630
        %v6649 = vpack.c.b16 %v6633, %v6632
        %6666 = vmatpush.bf16.msra.mxu0 %v6641
        %6667 = vmatpush.bf16.msra.mxu0 %v6640
        %6668 = vmatpush.bf16.msra.mxu0 %v6639
        %6669 = vmatpush.bf16.msra.mxu0 %v6638
        %6670 = vmatpush.bf16.msra.mxu0 %v6637
        %6671 = vmatpush.bf16.msra.mxu0 %v6636
        %6672 = vmatpush.bf16.msra.mxu0 %v6635
        %6673 = vmatpush.bf16.msra.mxu0 %v6634
        %6674 = vmatmul.bf16.gmra.mxu0 %v6566
        %v6675 = vpop.f32.mrf.mxu0
        %v6676 = vadd.f32 %v6551, %v6675
        %v6677 = vpop.f32.mrf.mxu0
        %6678 = vdwg.mxu0
        %6679 = vmatpush.bf16.msra.mxu0 %v6649
        %6680 = vmatpush.bf16.msra.mxu0 %v6648
        %6681 = vmatpush.bf16.msra.mxu0 %v6647
        %6682 = vmatpush.bf16.msra.mxu0 %v6646
        %6683 = vmatpush.bf16.msra.mxu0 %v6645
        %6684 = vmatpush.bf16.msra.mxu0 %v6644
        %6685 = vmatpush.bf16.msra.mxu0 %v6643
        %6686 = vmatpush.bf16.msra.mxu0 %v6642
        %6687 = vmatmul.bf16.gmra.mxu0 %v6567
        %v6688 = vpop.f32.mrf.mxu0
        %v6689 = vadd.f32 %v6676, %v6688
        %v6690 = vpop.f32.mrf.mxu0
        %6691 = vdwg.mxu0
        %vm6692 = vcmask 17408
        %v6693 = vsel %vm6692, %v6689, -inf
        %6694 = vmax.xlane.f32.xlu0 %v6693
        %v6695 = vpop.xlane.xlu0 %6694
        %v6696 = vsub.f32 %v6689, %v6695
        %v6697 = vmul.f32 %v6696, 1.442695
        %v6698 = vpow.pop %v6697
        %v6699 = vsel %vm6692, %v6698, 0.0
        %6700 = vadd.xlane.f32.xlu0 %v6699
        %v6701 = vpop.xlane.xlu0 %6700
        %v6702 = vrcp.pop %v6701
        %v6703 = vmul.f32 %v6701, %v6702
        %v6704 = vsub.f32 1.0, %v6703
        %v6705 = vmul.f32 %v6702, %v6704
        %v6706 = vadd.f32 %v6702, %v6705
        %vm6707 = vweird.f32 %v6701
        %vm6708 = vweird.f32 %v6702
        %vm6709 = vmor %vm6707, %vm6708
        %v6710 = vsel %vm6709, %v6702, %v6706
        %v6711 = vand.u32 2147483647, %v6701
        %vm6712 = vcmp.eq.f32.partialorder %v6711, 8.507059e+37
        %v6713 = vand.u32 %v6701, 2147483648
        %v6714 = vor.u32 1.1754944e-38, %v6713
        %v6715 = vsel %vm6712, %v6714, %v6710
        %v6716 = vmul.f32 %v6698, %v6715
        %6717 = vst.msk [vmem:[%s413] sm:$0x3] %vm6692, %v6716
      $region79: #{align_scorer_forward.1} parent=51 // pred_fallthru
        _
      %p6718 = scmp.lt.s32.totalorder %s24, 1
      %s6719 = scalar_select %p6718, %s24, 1
      %s6720 = smul.addr %s6719, 2
      %s6721 = scalar_lea.vmem %s9, %s6720
      // Predicated region
      $region80: #{align_scorer_forward.1} parent=51 // pred_check
        %p6722 = pneg %p248
      $region81: #{align_scorer_forward.1} parent=51 // pred_check_branch
        %6724 = sbr.rel (%p6722) target = $region83
      $region82: #{align_scorer_forward.1} parent=51 // pred_region
        _
      $region83: #{align_scorer_forward.1} parent=51 // pred_fallthru
        _
    $region52: #{align_scorer_forward.1} parent=5 // pred_fallthru
      _
    %p6725 = scmp.le.s32.totalorder 2, %s15
    // Predicated region
    $region84: #{align_scorer_forward.1} parent=5 // pred_check
      %p6726 = pneg %p6725
    $region85: #{align_scorer_forward.1} parent=5 // pred_check_branch
      %6728 = sbr.rel (%p6726) target = $region87
    $region86: #{align_scorer_forward.1} parent=5 // pred_region
      %s6729 = ssub.s32 %s15, 2
      // Predicated region
      $region88: #{align_scorer_forward.1} parent=86 // pred_check
        %p6730 = pneg %p254
      $region89: #{align_scorer_forward.1} parent=86 // pred_check_branch
        %6732 = sbr.rel (%p6730) target = $region91
      $region90: #{align_scorer_forward.1} parent=86 // pred_region
        %p6733 = scmp.lt.s32.totalorder %s26, 1
        %s6734 = scalar_select %p6733, %s26, 1
        %s6735 = smul.addr %s6734, 2
        %s6736 = scalar_lea.vmem %s9, %s6735
      $region91: #{align_scorer_forward.1} parent=86 // pred_fallthru
        _
    $region87: #{align_scorer_forward.1} parent=5 // pred_fallthru
      _
  $region6: #{align_scorer_forward.1} parent=0 // loop_footer
    %s19 = sadd.s32 1, %s15
  $region7: #{align_scorer_forward.1} parent=0 // loop_footer_branch
    %14 = sbr.rel target = $region3
  $region8: #{align_scorer_forward.1} parent=0 // loop_exit
    _
  %6737 = vsyncmov [#allocation3]
  %s6738 = vpop.sfrf %6737
  %p6739 = scmp.eq.s32.totalorder %s6738, 0
  %p6740 = pneg %p6739
  %6742 = shalt.err (%p6740)

</llo_original>
